<compile_context>
chip_gen: v7x
topology: tpu7x:2x2x1
jax: 0.10.0
libtpu: 0.0.40
codegen_flags: <defaults>
</compile_context>

<pallas_src>
import functools

import jax
import jax.numpy as jnp
from jax.experimental import pallas as pl
from jax.experimental.pallas import tpu as pltpu


# --------------------------------------------------------------------------
# Fused SpatioTemporalGraphConvolution block kernel
# --------------------------------------------------------------------------

def _stgcn_block_kernel(x_ref, pres_ref, preb_ref,
                        wa_ref, ba_ref, wb_ref, bb_ref, abase_ref,
                        wd_ref, bd_ref, wres_ref, bres_ref,
                        wt_ref, bt_ref, o_ref,
                        *, T, V, Cin, Cout, Ce, KT):
    # Per-batch-element block: x is (T, V, Cin), channels-last.
    x = x_ref[0].astype(jnp.float32)
    x = x * pres_ref[...] + preb_ref[...]        # data BN (layer 0) / identity

    x_rows_f32 = x.reshape(T * V, Cin)           # rows ordered (t, v)
    x_rows = x_rows_f32.astype(jnp.bfloat16)
    x_bf = x.astype(jnp.bfloat16)                # (T, V, Cin)

    # ---- adaptive graph convolution -------------------------------------
    # conv_a / conv_b of all 3 subsets in one wide matmul each.
    theta = jnp.dot(x_rows, wa_ref[...],
                    preferred_element_type=jnp.float32) + ba_ref[...]  # (T*V, 3Ce)
    phi = jnp.dot(x_rows, wb_ref[...],
                  preferred_element_type=jnp.float32) + bb_ref[...]    # (T*V, 3Ce)
    th3 = theta.reshape(T, V, 3 * Ce).astype(jnp.bfloat16)
    ph3 = phi.reshape(T, V, 3 * Ce).astype(jnp.bfloat16)

    inv_scale = 1.0 / float(T * Ce)
    g_parts = []
    for k in range(3):                           # static unroll over subsets
        th_k = th3[:, :, k * Ce:(k + 1) * Ce]    # (T, V, Ce)
        ph_k = ph3[:, :, k * Ce:(k + 1) * Ce]
        # transposed score:  S^T[w, v] = sum_{t,c} phi[t,w,c] * theta[t,v,c]
        s3 = jnp.einsum('twc,tvc->twv', ph_k, th_k,
                        preferred_element_type=jnp.float32)            # (T, V, V)
        s = jnp.sum(s3, axis=0) * inv_scale      # (W, V)
        # softmax over v  (== dim=-2 of the untransposed score)
        s = s - jnp.max(s, axis=-1, keepdims=True)
        e = jnp.exp(s)
        attn_t = e / jnp.sum(e, axis=-1, keepdims=True)
        a1_t = (attn_t + abase_ref[k]).astype(jnp.bfloat16)  # + (A_k + PA_k)^T
        # graph mix: g[t, w, c] = sum_v A1[v, w] * x[t, v, c]
        a1_b = jnp.broadcast_to(a1_t, (T, V, V))
        g = jnp.einsum('twv,tvc->twc', a1_b, x_bf,
                       preferred_element_type=jnp.float32)             # (T, V, Cin)
        g_parts.append(g)
    gcat = jnp.concatenate(g_parts, axis=-1).reshape(T * V, 3 * Cin)

    # conv_d over all subsets (gcn BatchNorm folded into wd/bd)
    y = jnp.dot(gcat.astype(jnp.bfloat16), wd_ref[...],
                preferred_element_type=jnp.float32) + bd_ref[...]      # (T*V, Cout)
    # residual branch (identity or 1x1 down conv, BN folded) -- exact f32
    res = jnp.dot(x_rows_f32, wres_ref[...],
                  preferred_element_type=jnp.float32) + bres_ref[...]
    y = jnp.maximum(y + res, 0.0)

    # ---- temporal conv (KT, 1), 'same' padding, BN folded, ReLU ----------
    pad = (KT - 1) // 2
    y3 = y.reshape(T, V, Cout)
    zpad = jnp.zeros((pad, V, Cout), jnp.float32)
    ypad = jnp.concatenate([zpad, y3, zpad], axis=0)       # (T + KT - 1, V, Cout)
    taps = [ypad[k:k + T].reshape(T * V, Cout) for k in range(KT)]
    lhs = jnp.concatenate(taps, axis=-1).astype(jnp.bfloat16)   # (T*V, KT*Cout)
    t_out = jnp.dot(lhs, wt_ref[...],
                    preferred_element_type=jnp.float32) + bt_ref[...]
    t_out = jnp.maximum(t_out, 0.0)
    o_ref[0] = t_out.reshape(T, V, Cout)


def stgcn_block(x, lp):
    """One fused SpatioTemporalGraphConvolution block.

    x:  (NB, T, V, Cin) float32
    lp: fused layer parameters (see fuse_params).
    returns (NB, T, V, Cout) float32
    """
    NB, T, V, Cin = x.shape
    Cout = lp['wd'].shape[1]
    Ce = lp['wa'].shape[1] // 3
    KT = lp['wt'].shape[0] // Cout

    kern = functools.partial(_stgcn_block_kernel, T=T, V=V, Cin=Cin,
                             Cout=Cout, Ce=Ce, KT=KT)
    return pl.pallas_call(
        kern,
        out_shape=jax.ShapeDtypeStruct((NB, T, V, Cout), jnp.float32),
        grid=(NB,),
        in_specs=[
            pl.BlockSpec((1, T, V, Cin), lambda i: (i, 0, 0, 0)),    # x
            pl.BlockSpec((1, V, Cin), lambda i: (0, 0, 0)),          # pre scale
            pl.BlockSpec((1, V, Cin), lambda i: (0, 0, 0)),          # pre bias
            pl.BlockSpec((Cin, 3 * Ce), lambda i: (0, 0)),           # wa
            pl.BlockSpec((1, 3 * Ce), lambda i: (0, 0)),             # ba
            pl.BlockSpec((Cin, 3 * Ce), lambda i: (0, 0)),           # wb
            pl.BlockSpec((1, 3 * Ce), lambda i: (0, 0)),             # bb
            pl.BlockSpec((3, V, V), lambda i: (0, 0, 0)),            # (A+PA)^T
            pl.BlockSpec((3 * Cin, Cout), lambda i: (0, 0)),         # wd
            pl.BlockSpec((1, Cout), lambda i: (0, 0)),               # bd
            pl.BlockSpec((Cin, Cout), lambda i: (0, 0)),             # wres
            pl.BlockSpec((1, Cout), lambda i: (0, 0)),               # bres
            pl.BlockSpec((KT * Cout, Cout), lambda i: (0, 0)),       # wt
            pl.BlockSpec((1, Cout), lambda i: (0, 0)),               # bt
        ],
        out_specs=pl.BlockSpec((1, T, V, Cout), lambda i: (i, 0, 0, 0)),
        compiler_params=pltpu.CompilerParams(
            dimension_semantics=("parallel",)),
    )(x, lp['pre_s'], lp['pre_b'], lp['wa'], lp['ba'], lp['wb'], lp['bb'],
      lp['abase_t'], lp['wd'], lp['bd'], lp['wres'], lp['bres'],
      lp['wt'], lp['bt'])


# --------------------------------------------------------------------------
# Fused head: pool over (T, V) + person mean + fully-connected
# --------------------------------------------------------------------------

def _head_kernel(x_ref, w_ref, b_ref, o_ref, *, N, MTV):
    x = x_ref[...]                                     # (N*M, T, V, Cf)
    Cf = x.shape[-1]
    # mean over persons of the (T, V)-mean  ==  mean over all M*T*V positions
    pooled = jnp.mean(x.reshape(N, MTV, Cf), axis=1)   # (N, Cf)
    o_ref[...] = jnp.dot(pooled, w_ref[...],
                         preferred_element_type=jnp.float32) + b_ref[...]


def head(x, fc_w, fc_b, *, num_batch):
    NB, T, V, Cf = x.shape
    M = NB // num_batch
    ncls = fc_w.shape[1]
    kern = functools.partial(_head_kernel, N=num_batch, MTV=M * T * V)
    return pl.pallas_call(
        kern,
        out_shape=jax.ShapeDtypeStruct((num_batch, ncls), jnp.float32),
    )(x, fc_w, fc_b)


# --------------------------------------------------------------------------
# Forward pass
# --------------------------------------------------------------------------

def agcn_forward(x, params):
    """x: (N, M, C, T, V)  -- person_dimension=1."""
    N, M, C, T, V = x.shape
    NB = N * M
    # Person2Batch + channels-last: (N, M, C, T, V) -> (NB, T, V, C)
    x = x.reshape(NB, C, T, V).transpose(0, 2, 3, 1)
    for lp in params['layers']:
        x = stgcn_block(x, lp)
    # x.view(N', C, -1).mean(2), extract persons, FC -- one fused kernel
    return head(x, params['fc_W'], params['fc_b'], num_batch=N)


# --------------------------------------------------------------------------
# Deterministic synthetic parameters (mirror torch module), then fuse
# --------------------------------------------------------------------------

def init_raw_params(key, *, keypoint_dim, num_keypoints, num_classes, layers,
                    temporal_kernel_size=9):
    channels = [keypoint_dim, 64, 64, 64, 64, 128, 128, 128, 256, 256, 256]
    V = num_keypoints
    keys = iter(jax.random.split(key, 256))

    def normal(shape, scale=0.1):
        return scale * jax.random.normal(next(keys), shape, dtype=jnp.float32)

    def bn(shape):
        gamma = 1.0 + normal(shape)
        beta = normal(shape)
        mean = normal(shape)
        var = 1.0 + 0.1 * jax.random.uniform(next(keys), shape,
                                             dtype=jnp.float32)
        return gamma, beta, mean, var

    raw = {}
    # ChannelwiseBatchNorm == BatchNorm1d(C*V): per-(landmark, channel) stats
    raw['data_bn'] = bn((V, keypoint_dim))

    # synthetic 3-subset adjacency: identity + forward/backward ring
    eye = jnp.eye(V, dtype=jnp.float32)
    A = jnp.stack([eye, jnp.roll(eye, 1, axis=1), jnp.roll(eye, -1, axis=1)])

    raw['layers'] = []
    for li in range(layers):
        cin, cout = channels[li], channels[li + 1]
        ce = cout // 4                       # coff_embedding = 4
        lp = dict(
            A=A,
            PA=1e-2 * jax.random.normal(next(keys), (3, V, V),
                                        dtype=jnp.float32),
            Wa=normal((3, cin, ce)), ba=normal((3, ce)),
            Wb=normal((3, cin, ce)), bb=normal((3, ce)),
            Wd=normal((3, cin, cout)), bd=normal((3, cout)),
            gcn_bn=bn((cout,)),
            tcn_W=normal((temporal_kernel_size, cout, cout)),
            tcn_b=normal((cout,)),
            tcn_bn=bn((cout,)),
        )
        if cin != cout:
            lp['Wdown'] = normal((cin, cout))
            lp['bdown'] = normal((cout,))
            lp['down_bn'] = bn((cout,))
        raw['layers'].append(lp)
    raw['fc_W'] = normal((channels[layers], num_classes))
    raw['fc_b'] = normal((num_classes,))
    return raw


def _bn_scale_bias(bn_params, eps=1e-5):
    gamma, beta, mean, var = bn_params
    s = gamma / jnp.sqrt(var + eps)
    return s, beta - mean * s


def fuse_params(raw):
    """Fold eval-mode BNs into conv weights and batch the 3 adjacency subsets."""
    ds, db = _bn_scale_bias(raw['data_bn'])              # (V, C)
    V = ds.shape[0]
    fused = {'layers': []}
    for li, lp in enumerate(raw['layers']):
        cin = lp['Wa'].shape[1]
        ce = lp['Wa'].shape[2]
        cout = lp['Wd'].shape[2]
        kt = lp['tcn_W'].shape[0]
        gs, gb = _bn_scale_bias(lp['gcn_bn'])            # (cout,)
        ts, tb = _bn_scale_bias(lp['tcn_bn'])

        # conv_a / conv_b batched over the 3 subsets (lane-dense N = 3*ce)
        wa = jnp.concatenate([lp['Wa'][k] for k in range(3)], axis=1)
        ba = jnp.concatenate([lp['ba'][k] for k in range(3)]).reshape(1, 3 * ce)
        wb = jnp.concatenate([lp['Wb'][k] for k in range(3)], axis=1)
        bb = jnp.concatenate([lp['bb'][k] for k in range(3)]).reshape(1, 3 * ce)

        # conv_d concatenated along K (subset-major), gcn BN folded in
        wd = jnp.concatenate([lp['Wd'][k] for k in range(3)], axis=0) * gs[None, :]
        bd = (gs * jnp.sum(lp['bd'], axis=0) + gb).reshape(1, cout)

        # residual branch: 1x1 down conv + BN (folded) or exact identity
        if 'Wdown' in lp:
            rs, rb = _bn_scale_bias(lp['down_bn'])
            wres = lp['Wdown'] * rs[None, :]
            bres = (rs * lp['bdown'] + rb).reshape(1, cout)
        else:
            wres = jnp.eye(cin, dtype=jnp.float32)
            bres = jnp.zeros((1, cout), jnp.float32)

        # temporal conv, tap-major (KT*cout, cout) weight, tcn BN folded in
        wt = (lp['tcn_W'] * ts[None, None, :]).reshape(kt * cout, cout)
        bt = (ts * lp['tcn_b'] + tb).reshape(1, cout)

        # per-(landmark, channel) data BN as a pre-affine on layer 0 only
        if li == 0:
            pre_s = ds.reshape(1, V, cin)
            pre_b = db.reshape(1, V, cin)
        else:
            pre_s = jnp.ones((1, V, cin), jnp.float32)
            pre_b = jnp.zeros((1, V, cin), jnp.float32)

        fused['layers'].append(dict(
            pre_s=pre_s, pre_b=pre_b,
            wa=wa.astype(jnp.bfloat16), ba=ba,
            wb=wb.astype(jnp.bfloat16), bb=bb,
            abase_t=jnp.transpose(lp['A'] + lp['PA'], (0, 2, 1)),
            wd=wd.astype(jnp.bfloat16), bd=bd,
            wres=wres, bres=bres,
            wt=wt.astype(jnp.bfloat16), bt=bt,
        ))
    fused['fc_W'] = raw['fc_W']
    fused['fc_b'] = raw['fc_b'].reshape(1, -1)
    return fused


# --------------------------------------------------------------------------

if __name__ == "__main__":
    N, M, C, T, V = 2, 2, 3, 8, 16   # batch, persons, keypoint_dim, time, joints
    num_classes = 10
    layers = 3                       # DEFAULT_NUM_LAYERS

    key = jax.random.PRNGKey(0)
    kx, kp = jax.random.split(key)
    x = jax.random.normal(kx, (N, M, C, T, V), dtype=jnp.float32)
    raw = init_raw_params(kp, keypoint_dim=C, num_keypoints=V,
                          num_classes=num_classes, layers=layers)
    params = fuse_params(raw)

    out = jax.jit(agcn_forward)(x, params)
    out = jax.block_until_ready(out)
    assert out.shape == (N, num_classes), out.shape
    assert bool(jnp.all(jnp.isfinite(out)))
    print("KERNEL_OK")
</pallas_src>

<mosaic_0001>
module attributes {stable_mosaic.version = 11 : i64} {
  func.func @_stgcn_block_kernel(%arg0: i32, %arg1: memref<1x8x16x3xf32, #tpu.memory_space<vmem>>, %arg2: memref<1x16x3xf32, #tpu.memory_space<vmem>>, %arg3: memref<1x16x3xf32, #tpu.memory_space<vmem>>, %arg4: memref<3x48xbf16, #tpu.memory_space<vmem>>, %arg5: memref<1x48xf32, #tpu.memory_space<vmem>>, %arg6: memref<3x48xbf16, #tpu.memory_space<vmem>>, %arg7: memref<1x48xf32, #tpu.memory_space<vmem>>, %arg8: memref<3x16x16xf32, #tpu.memory_space<vmem>>, %arg9: memref<9x64xbf16, #tpu.memory_space<vmem>>, %arg10: memref<1x64xf32, #tpu.memory_space<vmem>>, %arg11: memref<3x64xf32, #tpu.memory_space<vmem>>, %arg12: memref<1x64xf32, #tpu.memory_space<vmem>>, %arg13: memref<576x64xbf16, #tpu.memory_space<vmem>>, %arg14: memref<1x64xf32, #tpu.memory_space<vmem>>, %arg15: memref<1x8x16x64xf32, #tpu.memory_space<vmem>>) attributes {dimension_semantics = [#tpu.dimension_semantics<parallel>], iteration_bounds = array<i64: 4>, scalar_prefetch = 0 : i64, scratch_operands = 0 : i64, tpu.core_type = #tpu.core_type<tc>, window_params = [{transform_indices = @transform_0, window_bounds = array<i64: 1, 8, 16, 3>}, {pipeline_mode = #tpu.pipeline_mode<synchronous>, transform_indices = @transform_1, window_bounds = array<i64: 1, 16, 3>}, {pipeline_mode = #tpu.pipeline_mode<synchronous>, transform_indices = @transform_2, window_bounds = array<i64: 1, 16, 3>}, {pipeline_mode = #tpu.pipeline_mode<synchronous>, transform_indices = @transform_3, window_bounds = array<i64: 3, 48>}, {pipeline_mode = #tpu.pipeline_mode<synchronous>, transform_indices = @transform_4, window_bounds = array<i64: 1, 48>}, {pipeline_mode = #tpu.pipeline_mode<synchronous>, transform_indices = @transform_5, window_bounds = array<i64: 3, 48>}, {pipeline_mode = #tpu.pipeline_mode<synchronous>, transform_indices = @transform_6, window_bounds = array<i64: 1, 48>}, {pipeline_mode = #tpu.pipeline_mode<synchronous>, transform_indices = @transform_7, window_bounds = array<i64: 3, 16, 16>}, {pipeline_mode = #tpu.pipeline_mode<synchronous>, transform_indices = @transform_8, window_bounds = array<i64: 9, 64>}, {pipeline_mode = #tpu.pipeline_mode<synchronous>, transform_indices = @transform_9, window_bounds = array<i64: 1, 64>}, {pipeline_mode = #tpu.pipeline_mode<synchronous>, transform_indices = @transform_10, window_bounds = array<i64: 3, 64>}, {pipeline_mode = #tpu.pipeline_mode<synchronous>, transform_indices = @transform_11, window_bounds = array<i64: 1, 64>}, {pipeline_mode = #tpu.pipeline_mode<synchronous>, transform_indices = @transform_12, window_bounds = array<i64: 576, 64>}, {pipeline_mode = #tpu.pipeline_mode<synchronous>, transform_indices = @transform_13, window_bounds = array<i64: 1, 64>}, {transform_indices = @transform_14, window_bounds = array<i64: 1, 8, 16, 64>}]} {
    %c0 = arith.constant 0 : index
    %c0_0 = arith.constant 0 : index
    %c0_1 = arith.constant 0 : index
    %c0_2 = arith.constant 0 : index
    %0 = vector.load %arg1[%c0, %c0_0, %c0_1, %c0_2] : memref<1x8x16x3xf32, #tpu.memory_space<vmem>>, vector<1x8x16x3xf32>
    %1 = vector.shape_cast %0 : vector<1x8x16x3xf32> to vector<8x16x3xf32>
    %c0_3 = arith.constant 0 : index
    %c0_4 = arith.constant 0 : index
    %c0_5 = arith.constant 0 : index
    %2 = vector.load %arg2[%c0_3, %c0_4, %c0_5] : memref<1x16x3xf32, #tpu.memory_space<vmem>>, vector<1x16x3xf32>
    %3 = vector.broadcast %2 : vector<1x16x3xf32> to vector<8x16x3xf32>
    %4 = arith.mulf %1, %3 : vector<8x16x3xf32>
    %c0_6 = arith.constant 0 : index
    %c0_7 = arith.constant 0 : index
    %c0_8 = arith.constant 0 : index
    %5 = vector.load %arg3[%c0_6, %c0_7, %c0_8] : memref<1x16x3xf32, #tpu.memory_space<vmem>>, vector<1x16x3xf32>
    %6 = vector.broadcast %5 : vector<1x16x3xf32> to vector<8x16x3xf32>
    %7 = arith.addf %4, %6 : vector<8x16x3xf32>
    %8 = vector.shape_cast %7 : vector<8x16x3xf32> to vector<128x3xf32>
    %9 = arith.truncf %8 : vector<128x3xf32> to vector<128x3xbf16>
    %10 = arith.truncf %7 : vector<8x16x3xf32> to vector<8x16x3xbf16>
    %c0_9 = arith.constant 0 : index
    %c0_10 = arith.constant 0 : index
    %11 = vector.load %arg4[%c0_9, %c0_10] : memref<3x48xbf16, #tpu.memory_space<vmem>>, vector<3x48xbf16>
    %cst = arith.constant dense<0.000000e+00> : vector<128x48xf32>
    %12 = tpu.matmul %9, %11, %cst {dimension_numbers = #tpu.dot_dimension_numbers<[1], [0], [0], [1], [0, 0, 1, 1], [], []>} : vector<128x3xbf16>, vector<3x48xbf16>, vector<128x48xf32> -> vector<128x48xf32>
    %c0_11 = arith.constant 0 : index
    %c0_12 = arith.constant 0 : index
    %13 = vector.load %arg5[%c0_11, %c0_12] : memref<1x48xf32, #tpu.memory_space<vmem>>, vector<1x48xf32>
    %14 = vector.broadcast %13 : vector<1x48xf32> to vector<128x48xf32>
    %15 = arith.addf %12, %14 : vector<128x48xf32>
    %c0_13 = arith.constant 0 : index
    %c0_14 = arith.constant 0 : index
    %16 = vector.load %arg6[%c0_13, %c0_14] : memref<3x48xbf16, #tpu.memory_space<vmem>>, vector<3x48xbf16>
    %cst_15 = arith.constant dense<0.000000e+00> : vector<128x48xf32>
    %17 = tpu.matmul %9, %16, %cst_15 {dimension_numbers = #tpu.dot_dimension_numbers<[1], [0], [0], [1], [0, 0, 1, 1], [], []>} : vector<128x3xbf16>, vector<3x48xbf16>, vector<128x48xf32> -> vector<128x48xf32>
    %c0_16 = arith.constant 0 : index
    %c0_17 = arith.constant 0 : index
    %18 = vector.load %arg7[%c0_16, %c0_17] : memref<1x48xf32, #tpu.memory_space<vmem>>, vector<1x48xf32>
    %19 = vector.broadcast %18 : vector<1x48xf32> to vector<128x48xf32>
    %20 = arith.addf %17, %19 : vector<128x48xf32>
    %21 = vector.shape_cast %15 : vector<128x48xf32> to vector<8x16x48xf32>
    %22 = arith.truncf %21 : vector<8x16x48xf32> to vector<8x16x48xbf16>
    %23 = vector.shape_cast %20 : vector<128x48xf32> to vector<8x16x48xf32>
    %24 = arith.truncf %23 : vector<8x16x48xf32> to vector<8x16x48xbf16>
    %25 = vector.extract_strided_slice %22 {offsets = [0, 0, 0], sizes = [8, 16, 16], strides = [1, 1, 1]} : vector<8x16x48xbf16> to vector<8x16x16xbf16>
    %26 = vector.extract_strided_slice %24 {offsets = [0, 0, 0], sizes = [8, 16, 16], strides = [1, 1, 1]} : vector<8x16x48xbf16> to vector<8x16x16xbf16>
    "tpu.trace_start"() <{level = 10 : i32, message = "twc,tvc->twv"}> : () -> ()
    %cst_18 = arith.constant dense<0.000000e+00> : vector<8x16x16xf32>
    %27 = tpu.matmul %26, %25, %cst_18 {dimension_numbers = #tpu.dot_dimension_numbers<[2], [2], [1], [1], [0, 0, 0, 1, 1, 1], [0], [0]>} : vector<8x16x16xbf16>, vector<8x16x16xbf16>, vector<8x16x16xf32> -> vector<8x16x16xf32>
    "tpu.trace_stop"() : () -> ()
    %cst_19 = arith.constant dense<0.000000e+00> : vector<16x16xf32>
    %28 = vector.multi_reduction <add>, %27, %cst_19 [0] : vector<8x16x16xf32> to vector<16x16xf32>
    %cst_20 = arith.constant 7.812500e-03 : f32
    %29 = vector.broadcast %cst_20 : f32 to vector<16x16xf32>
    %30 = arith.mulf %28, %29 : vector<16x16xf32>
    %cst_21 = arith.constant dense<0xFF800000> : vector<16xf32>
    %31 = vector.multi_reduction <maximumf>, %30, %cst_21 [1] : vector<16x16xf32> to vector<16xf32>
    %32 = vector.shape_cast %31 : vector<16xf32> to vector<16x1xf32>
    %33 = vector.broadcast %32 : vector<16x1xf32> to vector<16x16xf32>
    %34 = arith.subf %30, %33 : vector<16x16xf32>
    %35 = math.exp %34 : vector<16x16xf32>
    %cst_22 = arith.constant dense<0.000000e+00> : vector<16xf32>
    %36 = vector.multi_reduction <add>, %35, %cst_22 [1] : vector<16x16xf32> to vector<16xf32>
    %37 = vector.shape_cast %36 : vector<16xf32> to vector<16x1xf32>
    %38 = vector.broadcast %37 : vector<16x1xf32> to vector<16x16xf32>
    %39 = arith.divf %35, %38 : vector<16x16xf32>
    %c0_23 = arith.constant 0 : index
    %c0_24 = arith.constant 0 : index
    %c0_25 = arith.constant 0 : index
    %40 = vector.load %arg8[%c0_23, %c0_24, %c0_25] : memref<3x16x16xf32, #tpu.memory_space<vmem>>, vector<1x16x16xf32>
    %41 = vector.shape_cast %40 : vector<1x16x16xf32> to vector<16x16xf32>
    %42 = arith.addf %39, %41 : vector<16x16xf32>
    %43 = arith.truncf %42 : vector<16x16xf32> to vector<16x16xbf16>
    %44 = vector.shape_cast %43 : vector<16x16xbf16> to vector<1x16x16xbf16>
    %45 = vector.broadcast %44 : vector<1x16x16xbf16> to vector<8x16x16xbf16>
    "tpu.trace_start"() <{level = 10 : i32, message = "twv,tvc->twc"}> : () -> ()
    %cst_26 = arith.constant dense<0.000000e+00> : vector<8x16x3xf32>
    %46 = tpu.matmul %45, %10, %cst_26 {dimension_numbers = #tpu.dot_dimension_numbers<[2], [1], [1], [2], [0, 0, 0, 1, 1, 2], [0], [0]>} : vector<8x16x16xbf16>, vector<8x16x3xbf16>, vector<8x16x3xf32> -> vector<8x16x3xf32>
    "tpu.trace_stop"() : () -> ()
    %47 = vector.extract_strided_slice %22 {offsets = [0, 0, 16], sizes = [8, 16, 16], strides = [1, 1, 1]} : vector<8x16x48xbf16> to vector<8x16x16xbf16>
    %48 = vector.extract_strided_slice %24 {offsets = [0, 0, 16], sizes = [8, 16, 16], strides = [1, 1, 1]} : vector<8x16x48xbf16> to vector<8x16x16xbf16>
    "tpu.trace_start"() <{level = 10 : i32, message = "twc,tvc->twv"}> : () -> ()
    %cst_27 = arith.constant dense<0.000000e+00> : vector<8x16x16xf32>
    %49 = tpu.matmul %48, %47, %cst_27 {dimension_numbers = #tpu.dot_dimension_numbers<[2], [2], [1], [1], [0, 0, 0, 1, 1, 1], [0], [0]>} : vector<8x16x16xbf16>, vector<8x16x16xbf16>, vector<8x16x16xf32> -> vector<8x16x16xf32>
    "tpu.trace_stop"() : () -> ()
    %cst_28 = arith.constant dense<0.000000e+00> : vector<16x16xf32>
    %50 = vector.multi_reduction <add>, %49, %cst_28 [0] : vector<8x16x16xf32> to vector<16x16xf32>
    %cst_29 = arith.constant 7.812500e-03 : f32
    %51 = vector.broadcast %cst_29 : f32 to vector<16x16xf32>
    %52 = arith.mulf %50, %51 : vector<16x16xf32>
    %cst_30 = arith.constant dense<0xFF800000> : vector<16xf32>
    %53 = vector.multi_reduction <maximumf>, %52, %cst_30 [1] : vector<16x16xf32> to vector<16xf32>
    %54 = vector.shape_cast %53 : vector<16xf32> to vector<16x1xf32>
    %55 = vector.broadcast %54 : vector<16x1xf32> to vector<16x16xf32>
    %56 = arith.subf %52, %55 : vector<16x16xf32>
    %57 = math.exp %56 : vector<16x16xf32>
    %cst_31 = arith.constant dense<0.000000e+00> : vector<16xf32>
    %58 = vector.multi_reduction <add>, %57, %cst_31 [1] : vector<16x16xf32> to vector<16xf32>
    %59 = vector.shape_cast %58 : vector<16xf32> to vector<16x1xf32>
    %60 = vector.broadcast %59 : vector<16x1xf32> to vector<16x16xf32>
    %61 = arith.divf %57, %60 : vector<16x16xf32>
    %c1 = arith.constant 1 : index
    %c0_32 = arith.constant 0 : index
    %c0_33 = arith.constant 0 : index
    %62 = vector.load %arg8[%c1, %c0_32, %c0_33] : memref<3x16x16xf32, #tpu.memory_space<vmem>>, vector<1x16x16xf32>
    %63 = vector.shape_cast %62 : vector<1x16x16xf32> to vector<16x16xf32>
    %64 = arith.addf %61, %63 : vector<16x16xf32>
    %65 = arith.truncf %64 : vector<16x16xf32> to vector<16x16xbf16>
    %66 = vector.shape_cast %65 : vector<16x16xbf16> to vector<1x16x16xbf16>
    %67 = vector.broadcast %66 : vector<1x16x16xbf16> to vector<8x16x16xbf16>
    "tpu.trace_start"() <{level = 10 : i32, message = "twv,tvc->twc"}> : () -> ()
    %cst_34 = arith.constant dense<0.000000e+00> : vector<8x16x3xf32>
    %68 = tpu.matmul %67, %10, %cst_34 {dimension_numbers = #tpu.dot_dimension_numbers<[2], [1], [1], [2], [0, 0, 0, 1, 1, 2], [0], [0]>} : vector<8x16x16xbf16>, vector<8x16x3xbf16>, vector<8x16x3xf32> -> vector<8x16x3xf32>
    "tpu.trace_stop"() : () -> ()
    %69 = vector.extract_strided_slice %22 {offsets = [0, 0, 32], sizes = [8, 16, 16], strides = [1, 1, 1]} : vector<8x16x48xbf16> to vector<8x16x16xbf16>
    %70 = vector.extract_strided_slice %24 {offsets = [0, 0, 32], sizes = [8, 16, 16], strides = [1, 1, 1]} : vector<8x16x48xbf16> to vector<8x16x16xbf16>
    "tpu.trace_start"() <{level = 10 : i32, message = "twc,tvc->twv"}> : () -> ()
    %cst_35 = arith.constant dense<0.000000e+00> : vector<8x16x16xf32>
    %71 = tpu.matmul %70, %69, %cst_35 {dimension_numbers = #tpu.dot_dimension_numbers<[2], [2], [1], [1], [0, 0, 0, 1, 1, 1], [0], [0]>} : vector<8x16x16xbf16>, vector<8x16x16xbf16>, vector<8x16x16xf32> -> vector<8x16x16xf32>
    "tpu.trace_stop"() : () -> ()
    %cst_36 = arith.constant dense<0.000000e+00> : vector<16x16xf32>
    %72 = vector.multi_reduction <add>, %71, %cst_36 [0] : vector<8x16x16xf32> to vector<16x16xf32>
    %cst_37 = arith.constant 7.812500e-03 : f32
    %73 = vector.broadcast %cst_37 : f32 to vector<16x16xf32>
    %74 = arith.mulf %72, %73 : vector<16x16xf32>
    %cst_38 = arith.constant dense<0xFF800000> : vector<16xf32>
    %75 = vector.multi_reduction <maximumf>, %74, %cst_38 [1] : vector<16x16xf32> to vector<16xf32>
    %76 = vector.shape_cast %75 : vector<16xf32> to vector<16x1xf32>
    %77 = vector.broadcast %76 : vector<16x1xf32> to vector<16x16xf32>
    %78 = arith.subf %74, %77 : vector<16x16xf32>
    %79 = math.exp %78 : vector<16x16xf32>
    %cst_39 = arith.constant dense<0.000000e+00> : vector<16xf32>
    %80 = vector.multi_reduction <add>, %79, %cst_39 [1] : vector<16x16xf32> to vector<16xf32>
    %81 = vector.shape_cast %80 : vector<16xf32> to vector<16x1xf32>
    %82 = vector.broadcast %81 : vector<16x1xf32> to vector<16x16xf32>
    %83 = arith.divf %79, %82 : vector<16x16xf32>
    %c2 = arith.constant 2 : index
    %c0_40 = arith.constant 0 : index
    %c0_41 = arith.constant 0 : index
    %84 = vector.load %arg8[%c2, %c0_40, %c0_41] : memref<3x16x16xf32, #tpu.memory_space<vmem>>, vector<1x16x16xf32>
    %85 = vector.shape_cast %84 : vector<1x16x16xf32> to vector<16x16xf32>
    %86 = arith.addf %83, %85 : vector<16x16xf32>
    %87 = arith.truncf %86 : vector<16x16xf32> to vector<16x16xbf16>
    %88 = vector.shape_cast %87 : vector<16x16xbf16> to vector<1x16x16xbf16>
    %89 = vector.broadcast %88 : vector<1x16x16xbf16> to vector<8x16x16xbf16>
    "tpu.trace_start"() <{level = 10 : i32, message = "twv,tvc->twc"}> : () -> ()
    %cst_42 = arith.constant dense<0.000000e+00> : vector<8x16x3xf32>
    %90 = tpu.matmul %89, %10, %cst_42 {dimension_numbers = #tpu.dot_dimension_numbers<[2], [1], [1], [2], [0, 0, 0, 1, 1, 2], [0], [0]>} : vector<8x16x16xbf16>, vector<8x16x3xbf16>, vector<8x16x3xf32> -> vector<8x16x3xf32>
    "tpu.trace_stop"() : () -> ()
    %91 = tpu.concatenate %46, %68, %90 in 2 : vector<8x16x3xf32>, vector<8x16x3xf32>, vector<8x16x3xf32> -> vector<8x16x9xf32>
    %92 = vector.shape_cast %91 : vector<8x16x9xf32> to vector<128x9xf32>
    %93 = arith.truncf %92 : vector<128x9xf32> to vector<128x9xbf16>
    %c0_43 = arith.constant 0 : index
    %c0_44 = arith.constant 0 : index
    %94 = vector.load %arg9[%c0_43, %c0_44] : memref<9x64xbf16, #tpu.memory_space<vmem>>, vector<9x64xbf16>
    %cst_45 = arith.constant dense<0.000000e+00> : vector<128x64xf32>
    %95 = tpu.matmul %93, %94, %cst_45 {dimension_numbers = #tpu.dot_dimension_numbers<[1], [0], [0], [1], [0, 0, 1, 1], [], []>} : vector<128x9xbf16>, vector<9x64xbf16>, vector<128x64xf32> -> vector<128x64xf32>
    %c0_46 = arith.constant 0 : index
    %c0_47 = arith.constant 0 : index
    %96 = vector.load %arg10[%c0_46, %c0_47] : memref<1x64xf32, #tpu.memory_space<vmem>>, vector<1x64xf32>
    %97 = vector.broadcast %96 : vector<1x64xf32> to vector<128x64xf32>
    %98 = arith.addf %95, %97 : vector<128x64xf32>
    %c0_48 = arith.constant 0 : index
    %c0_49 = arith.constant 0 : index
    %99 = vector.load %arg11[%c0_48, %c0_49] : memref<3x64xf32, #tpu.memory_space<vmem>>, vector<3x64xf32>
    %cst_50 = arith.constant dense<0.000000e+00> : vector<128x64xf32>
    %100 = tpu.matmul %8, %99, %cst_50 {dimension_numbers = #tpu.dot_dimension_numbers<[1], [0], [0], [1], [0, 0, 1, 1], [], []>} : vector<128x3xf32>, vector<3x64xf32>, vector<128x64xf32> -> vector<128x64xf32>
    %c0_51 = arith.constant 0 : index
    %c0_52 = arith.constant 0 : index
    %101 = vector.load %arg12[%c0_51, %c0_52] : memref<1x64xf32, #tpu.memory_space<vmem>>, vector<1x64xf32>
    %102 = vector.broadcast %101 : vector<1x64xf32> to vector<128x64xf32>
    %103 = arith.addf %100, %102 : vector<128x64xf32>
    %104 = arith.addf %98, %103 : vector<128x64xf32>
    %cst_53 = arith.constant 0.000000e+00 : f32
    %105 = vector.broadcast %cst_53 : f32 to vector<128x64xf32>
    %106 = arith.maximumf %104, %105 : vector<128x64xf32>
    %107 = vector.shape_cast %106 : vector<128x64xf32> to vector<8x16x64xf32>
    %cst_54 = arith.constant 0.000000e+00 : f32
    %108 = vector.broadcast %cst_54 : f32 to vector<4x16x64xf32>
    %109 = tpu.concatenate %108, %107, %108 in 0 : vector<4x16x64xf32>, vector<8x16x64xf32>, vector<4x16x64xf32> -> vector<16x16x64xf32>
    %110 = vector.extract_strided_slice %109 {offsets = [0, 0, 0], sizes = [8, 16, 64], strides = [1, 1, 1]} : vector<16x16x64xf32> to vector<8x16x64xf32>
    %111 = vector.shape_cast %110 : vector<8x16x64xf32> to vector<128x64xf32>
    %112 = vector.extract_strided_slice %109 {offsets = [1, 0, 0], sizes = [8, 16, 64], strides = [1, 1, 1]} : vector<16x16x64xf32> to vector<8x16x64xf32>
    %113 = vector.shape_cast %112 : vector<8x16x64xf32> to vector<128x64xf32>
    %114 = vector.extract_strided_slice %109 {offsets = [2, 0, 0], sizes = [8, 16, 64], strides = [1, 1, 1]} : vector<16x16x64xf32> to vector<8x16x64xf32>
    %115 = vector.shape_cast %114 : vector<8x16x64xf32> to vector<128x64xf32>
    %116 = vector.extract_strided_slice %109 {offsets = [3, 0, 0], sizes = [8, 16, 64], strides = [1, 1, 1]} : vector<16x16x64xf32> to vector<8x16x64xf32>
    %117 = vector.shape_cast %116 : vector<8x16x64xf32> to vector<128x64xf32>
    %118 = vector.extract_strided_slice %109 {offsets = [4, 0, 0], sizes = [8, 16, 64], strides = [1, 1, 1]} : vector<16x16x64xf32> to vector<8x16x64xf32>
    %119 = vector.shape_cast %118 : vector<8x16x64xf32> to vector<128x64xf32>
    %120 = vector.extract_strided_slice %109 {offsets = [5, 0, 0], sizes = [8, 16, 64], strides = [1, 1, 1]} : vector<16x16x64xf32> to vector<8x16x64xf32>
    %121 = vector.shape_cast %120 : vector<8x16x64xf32> to vector<128x64xf32>
    %122 = vector.extract_strided_slice %109 {offsets = [6, 0, 0], sizes = [8, 16, 64], strides = [1, 1, 1]} : vector<16x16x64xf32> to vector<8x16x64xf32>
    %123 = vector.shape_cast %122 : vector<8x16x64xf32> to vector<128x64xf32>
    %124 = vector.extract_strided_slice %109 {offsets = [7, 0, 0], sizes = [8, 16, 64], strides = [1, 1, 1]} : vector<16x16x64xf32> to vector<8x16x64xf32>
    %125 = vector.shape_cast %124 : vector<8x16x64xf32> to vector<128x64xf32>
    %126 = vector.extract_strided_slice %109 {offsets = [8, 0, 0], sizes = [8, 16, 64], strides = [1, 1, 1]} : vector<16x16x64xf32> to vector<8x16x64xf32>
    %127 = vector.shape_cast %126 : vector<8x16x64xf32> to vector<128x64xf32>
    %128 = tpu.concatenate %111, %113, %115, %117, %119, %121, %123, %125, %127 in 1 : vector<128x64xf32>, vector<128x64xf32>, vector<128x64xf32>, vector<128x64xf32>, vector<128x64xf32>, vector<128x64xf32>, vector<128x64xf32>, vector<128x64xf32>, vector<128x64xf32> -> vector<128x576xf32>
    %129 = arith.truncf %128 : vector<128x576xf32> to vector<128x576xbf16>
    %c0_55 = arith.constant 0 : index
    %c0_56 = arith.constant 0 : index
    %130 = vector.load %arg13[%c0_55, %c0_56] : memref<576x64xbf16, #tpu.memory_space<vmem>>, vector<576x64xbf16>
    %cst_57 = arith.constant dense<0.000000e+00> : vector<128x64xf32>
    %131 = tpu.matmul %129, %130, %cst_57 {dimension_numbers = #tpu.dot_dimension_numbers<[1], [0], [0], [1], [0, 0, 1, 1], [], []>} : vector<128x576xbf16>, vector<576x64xbf16>, vector<128x64xf32> -> vector<128x64xf32>
    %c0_58 = arith.constant 0 : index
    %c0_59 = arith.constant 0 : index
    %132 = vector.load %arg14[%c0_58, %c0_59] : memref<1x64xf32, #tpu.memory_space<vmem>>, vector<1x64xf32>
    %133 = vector.broadcast %132 : vector<1x64xf32> to vector<128x64xf32>
    %134 = arith.addf %131, %133 : vector<128x64xf32>
    %cst_60 = arith.constant 0.000000e+00 : f32
    %135 = vector.broadcast %cst_60 : f32 to vector<128x64xf32>
    %136 = arith.maximumf %134, %135 : vector<128x64xf32>
    %137 = vector.shape_cast %136 : vector<128x64xf32> to vector<8x16x64xf32>
    %c0_61 = arith.constant 0 : index
    %c0_62 = arith.constant 0 : index
    %c0_63 = arith.constant 0 : index
    %c0_64 = arith.constant 0 : index
    %138 = vector.load %arg15[%c0_61, %c0_62, %c0_63, %c0_64] : memref<1x8x16x64xf32, #tpu.memory_space<vmem>>, vector<1x8x16x64xf32>
    %139 = vector.shape_cast %138 : vector<1x8x16x64xf32> to vector<8x16x64xf32>
    %140 = vector.shape_cast %137 : vector<8x16x64xf32> to vector<1x8x16x64xf32>
    tpu.vector_store %arg15[%c0_61, %c0_62, %c0_63, %c0_64], %140 {strides = array<i32>} : memref<1x8x16x64xf32, #tpu.memory_space<vmem>>, vector<1x8x16x64xf32>,
    return
  }
  func.func @transform_0(%arg0: i32) -> (i32, i32, i32, i32) {
    %c0_i32 = arith.constant 0 : i32
    %c0_i32_0 = arith.constant 0 : i32
    %c0_i32_1 = arith.constant 0 : i32
    %c0_i32_2 = arith.constant 0 : i32
    return %arg0, %c0_i32, %c0_i32_0, %c0_i32_1 : i32, i32, i32, i32
  }
  func.func @transform_1(%arg0: i32) -> (i32, i32, i32) {
    %c0_i32 = arith.constant 0 : i32
    %c0_i32_0 = arith.constant 0 : i32
    %c0_i32_1 = arith.constant 0 : i32
    %c0_i32_2 = arith.constant 0 : i32
    return %c0_i32, %c0_i32_0, %c0_i32_1 : i32, i32, i32
  }
  func.func @transform_2(%arg0: i32) -> (i32, i32, i32) {
    %c0_i32 = arith.constant 0 : i32
    %c0_i32_0 = arith.constant 0 : i32
    %c0_i32_1 = arith.constant 0 : i32
    %c0_i32_2 = arith.constant 0 : i32
    return %c0_i32, %c0_i32_0, %c0_i32_1 : i32, i32, i32
  }
  func.func @transform_3(%arg0: i32) -> (i32, i32) {
    %c0_i32 = arith.constant 0 : i32
    %c0_i32_0 = arith.constant 0 : i32
    %c0_i32_1 = arith.constant 0 : i32
    return %c0_i32, %c0_i32_0 : i32, i32
  }
  func.func @transform_4(%arg0: i32) -> (i32, i32) {
    %c0_i32 = arith.constant 0 : i32
    %c0_i32_0 = arith.constant 0 : i32
    %c0_i32_1 = arith.constant 0 : i32
    return %c0_i32, %c0_i32_0 : i32, i32
  }
  func.func @transform_5(%arg0: i32) -> (i32, i32) {
    %c0_i32 = arith.constant 0 : i32
    %c0_i32_0 = arith.constant 0 : i32
    %c0_i32_1 = arith.constant 0 : i32
    return %c0_i32, %c0_i32_0 : i32, i32
  }
  func.func @transform_6(%arg0: i32) -> (i32, i32) {
    %c0_i32 = arith.constant 0 : i32
    %c0_i32_0 = arith.constant 0 : i32
    %c0_i32_1 = arith.constant 0 : i32
    return %c0_i32, %c0_i32_0 : i32, i32
  }
  func.func @transform_7(%arg0: i32) -> (i32, i32, i32) {
    %c0_i32 = arith.constant 0 : i32
    %c0_i32_0 = arith.constant 0 : i32
    %c0_i32_1 = arith.constant 0 : i32
    %c0_i32_2 = arith.constant 0 : i32
    return %c0_i32, %c0_i32_0, %c0_i32_1 : i32, i32, i32
  }
  func.func @transform_8(%arg0: i32) -> (i32, i32) {
    %c0_i32 = arith.constant 0 : i32
    %c0_i32_0 = arith.constant 0 : i32
    %c0_i32_1 = arith.constant 0 : i32
    return %c0_i32, %c0_i32_0 : i32, i32
  }
  func.func @transform_9(%arg0: i32) -> (i32, i32) {
    %c0_i32 = arith.constant 0 : i32
    %c0_i32_0 = arith.constant 0 : i32
    %c0_i32_1 = arith.constant 0 : i32
    return %c0_i32, %c0_i32_0 : i32, i32
  }
  func.func @transform_10(%arg0: i32) -> (i32, i32) {
    %c0_i32 = arith.constant 0 : i32
    %c0_i32_0 = arith.constant 0 : i32
    %c0_i32_1 = arith.constant 0 : i32
    return %c0_i32, %c0_i32_0 : i32, i32
  }
  func.func @transform_11(%arg0: i32) -> (i32, i32) {
    %c0_i32 = arith.constant 0 : i32
    %c0_i32_0 = arith.constant 0 : i32
    %c0_i32_1 = arith.constant 0 : i32
    return %c0_i32, %c0_i32_0 : i32, i32
  }
  func.func @transform_12(%arg0: i32) -> (i32, i32) {
    %c0_i32 = arith.constant 0 : i32
    %c0_i32_0 = arith.constant 0 : i32
    %c0_i32_1 = arith.constant 0 : i32
    return %c0_i32, %c0_i32_0 : i32, i32
  }
  func.func @transform_13(%arg0: i32) -> (i32, i32) {
    %c0_i32 = arith.constant 0 : i32
    %c0_i32_0 = arith.constant 0 : i32
    %c0_i32_1 = arith.constant 0 : i32
    return %c0_i32, %c0_i32_0 : i32, i32
  }
  func.func @transform_14(%arg0: i32) -> (i32, i32, i32, i32) {
    %c0_i32 = arith.constant 0 : i32
    %c0_i32_0 = arith.constant 0 : i32
    %c0_i32_1 = arith.constant 0 : i32
    %c0_i32_2 = arith.constant 0 : i32
    return %arg0, %c0_i32, %c0_i32_0, %c0_i32_1 : i32, i32, i32, i32
  }
}

module attributes {stable_mosaic.version = 11 : i64} {
  func.func @_head_kernel(%arg0: memref<4x8x16x64xf32, #tpu.memory_space<vmem>>, %arg1: memref<64x10xf32, #tpu.memory_space<vmem>>, %arg2: memref<1x10xf32, #tpu.memory_space<vmem>>, %arg3: memref<2x10xf32, #tpu.memory_space<vmem>>) attributes {dimension_semantics = [], scalar_prefetch = 0 : i64, scratch_operands = 0 : i64, tpu.core_type = #tpu.core_type<tc>} {
    %c0 = arith.constant 0 : index
    %c0_0 = arith.constant 0 : index
    %c0_1 = arith.constant 0 : index
    %c0_2 = arith.constant 0 : index
    %0 = vector.load %arg0[%c0, %c0_0, %c0_1, %c0_2] : memref<4x8x16x64xf32, #tpu.memory_space<vmem>>, vector<4x8x16x64xf32>
    %1 = vector.shape_cast %0 : vector<4x8x16x64xf32> to vector<2x256x64xf32>
    %cst = arith.constant dense<0.000000e+00> : vector<2x64xf32>
    %2 = vector.multi_reduction <add>, %1, %cst [1] : vector<2x256x64xf32> to vector<2x64xf32>
    %cst_3 = arith.constant 2.560000e+02 : f32
    %3 = vector.broadcast %cst_3 : f32 to vector<2x64xf32>
    %4 = arith.divf %2, %3 : vector<2x64xf32>
    %c0_4 = arith.constant 0 : index
    %c0_5 = arith.constant 0 : index
    %5 = vector.load %arg1[%c0_4, %c0_5] : memref<64x10xf32, #tpu.memory_space<vmem>>, vector<64x10xf32>
    %cst_6 = arith.constant dense<0.000000e+00> : vector<2x10xf32>
    %6 = tpu.matmul %4, %5, %cst_6 {dimension_numbers = #tpu.dot_dimension_numbers<[1], [0], [0], [1], [0, 0, 1, 1], [], []>} : vector<2x64xf32>, vector<64x10xf32>, vector<2x10xf32> -> vector<2x10xf32>
    %c0_7 = arith.constant 0 : index
    %c0_8 = arith.constant 0 : index
    %7 = vector.load %arg2[%c0_7, %c0_8] : memref<1x10xf32, #tpu.memory_space<vmem>>, vector<1x10xf32>
    %8 = vector.broadcast %7 : vector<1x10xf32> to vector<2x10xf32>
    %9 = arith.addf %6, %8 : vector<2x10xf32>
    %c0_9 = arith.constant 0 : index
    %c0_10 = arith.constant 0 : index
    %10 = vector.load %arg3[%c0_9, %c0_10] : memref<2x10xf32, #tpu.memory_space<vmem>>, vector<2x10xf32>
    tpu.vector_store %arg3[%c0_9, %c0_10], %9 {strides = array<i32>} : memref<2x10xf32, #tpu.memory_space<vmem>>, vector<2x10xf32>,
    return
  }
}

module attributes {stable_mosaic.version = 11 : i64} {
  func.func @_stgcn_block_kernel(%arg0: i32, %arg1: memref<1x8x16x64xf32, #tpu.memory_space<vmem>>, %arg2: memref<1x16x64xf32, #tpu.memory_space<vmem>>, %arg3: memref<1x16x64xf32, #tpu.memory_space<vmem>>, %arg4: memref<64x48xbf16, #tpu.memory_space<vmem>>, %arg5: memref<1x48xf32, #tpu.memory_space<vmem>>, %arg6: memref<64x48xbf16, #tpu.memory_space<vmem>>, %arg7: memref<1x48xf32, #tpu.memory_space<vmem>>, %arg8: memref<3x16x16xf32, #tpu.memory_space<vmem>>, %arg9: memref<192x64xbf16, #tpu.memory_space<vmem>>, %arg10: memref<1x64xf32, #tpu.memory_space<vmem>>, %arg11: memref<64x64xf32, #tpu.memory_space<vmem>>, %arg12: memref<1x64xf32, #tpu.memory_space<vmem>>, %arg13: memref<576x64xbf16, #tpu.memory_space<vmem>>, %arg14: memref<1x64xf32, #tpu.memory_space<vmem>>, %arg15: memref<1x8x16x64xf32, #tpu.memory_space<vmem>>) attributes {dimension_semantics = [#tpu.dimension_semantics<parallel>], iteration_bounds = array<i64: 4>, scalar_prefetch = 0 : i64, scratch_operands = 0 : i64, tpu.core_type = #tpu.core_type<tc>, window_params = [{transform_indices = @transform_0, window_bounds = array<i64: 1, 8, 16, 64>}, {pipeline_mode = #tpu.pipeline_mode<synchronous>, transform_indices = @transform_1, window_bounds = array<i64: 1, 16, 64>}, {pipeline_mode = #tpu.pipeline_mode<synchronous>, transform_indices = @transform_2, window_bounds = array<i64: 1, 16, 64>}, {pipeline_mode = #tpu.pipeline_mode<synchronous>, transform_indices = @transform_3, window_bounds = array<i64: 64, 48>}, {pipeline_mode = #tpu.pipeline_mode<synchronous>, transform_indices = @transform_4, window_bounds = array<i64: 1, 48>}, {pipeline_mode = #tpu.pipeline_mode<synchronous>, transform_indices = @transform_5, window_bounds = array<i64: 64, 48>}, {pipeline_mode = #tpu.pipeline_mode<synchronous>, transform_indices = @transform_6, window_bounds = array<i64: 1, 48>}, {pipeline_mode = #tpu.pipeline_mode<synchronous>, transform_indices = @transform_7, window_bounds = array<i64: 3, 16, 16>}, {pipeline_mode = #tpu.pipeline_mode<synchronous>, transform_indices = @transform_8, window_bounds = array<i64: 192, 64>}, {pipeline_mode = #tpu.pipeline_mode<synchronous>, transform_indices = @transform_9, window_bounds = array<i64: 1, 64>}, {pipeline_mode = #tpu.pipeline_mode<synchronous>, transform_indices = @transform_10, window_bounds = array<i64: 64, 64>}, {pipeline_mode = #tpu.pipeline_mode<synchronous>, transform_indices = @transform_11, window_bounds = array<i64: 1, 64>}, {pipeline_mode = #tpu.pipeline_mode<synchronous>, transform_indices = @transform_12, window_bounds = array<i64: 576, 64>}, {pipeline_mode = #tpu.pipeline_mode<synchronous>, transform_indices = @transform_13, window_bounds = array<i64: 1, 64>}, {transform_indices = @transform_14, window_bounds = array<i64: 1, 8, 16, 64>}]} {
    %c0 = arith.constant 0 : index
    %c0_0 = arith.constant 0 : index
    %c0_1 = arith.constant 0 : index
    %c0_2 = arith.constant 0 : index
    %0 = vector.load %arg1[%c0, %c0_0, %c0_1, %c0_2] : memref<1x8x16x64xf32, #tpu.memory_space<vmem>>, vector<1x8x16x64xf32>
    %1 = vector.shape_cast %0 : vector<1x8x16x64xf32> to vector<8x16x64xf32>
    %c0_3 = arith.constant 0 : index
    %c0_4 = arith.constant 0 : index
    %c0_5 = arith.constant 0 : index
    %2 = vector.load %arg2[%c0_3, %c0_4, %c0_5] : memref<1x16x64xf32, #tpu.memory_space<vmem>>, vector<1x16x64xf32>
    %3 = vector.broadcast %2 : vector<1x16x64xf32> to vector<8x16x64xf32>
    %4 = arith.mulf %1, %3 : vector<8x16x64xf32>
    %c0_6 = arith.constant 0 : index
    %c0_7 = arith.constant 0 : index
    %c0_8 = arith.constant 0 : index
    %5 = vector.load %arg3[%c0_6, %c0_7, %c0_8] : memref<1x16x64xf32, #tpu.memory_space<vmem>>, vector<1x16x64xf32>
    %6 = vector.broadcast %5 : vector<1x16x64xf32> to vector<8x16x64xf32>
    %7 = arith.addf %4, %6 : vector<8x16x64xf32>
    %8 = vector.shape_cast %7 : vector<8x16x64xf32> to vector<128x64xf32>
    %9 = arith.truncf %8 : vector<128x64xf32> to vector<128x64xbf16>
    %10 = arith.truncf %7 : vector<8x16x64xf32> to vector<8x16x64xbf16>
    %c0_9 = arith.constant 0 : index
    %c0_10 = arith.constant 0 : index
    %11 = vector.load %arg4[%c0_9, %c0_10] : memref<64x48xbf16, #tpu.memory_space<vmem>>, vector<64x48xbf16>
    %cst = arith.constant dense<0.000000e+00> : vector<128x48xf32>
    %12 = tpu.matmul %9, %11, %cst {dimension_numbers = #tpu.dot_dimension_numbers<[1], [0], [0], [1], [0, 0, 1, 1], [], []>} : vector<128x64xbf16>, vector<64x48xbf16>, vector<128x48xf32> -> vector<128x48xf32>
    %c0_11 = arith.constant 0 : index
    %c0_12 = arith.constant 0 : index
    %13 = vector.load %arg5[%c0_11, %c0_12] : memref<1x48xf32, #tpu.memory_space<vmem>>, vector<1x48xf32>
    %14 = vector.broadcast %13 : vector<1x48xf32> to vector<128x48xf32>
    %15 = arith.addf %12, %14 : vector<128x48xf32>
    %c0_13 = arith.constant 0 : index
    %c0_14 = arith.constant 0 : index
    %16 = vector.load %arg6[%c0_13, %c0_14] : memref<64x48xbf16, #tpu.memory_space<vmem>>, vector<64x48xbf16>
    %cst_15 = arith.constant dense<0.000000e+00> : vector<128x48xf32>
    %17 = tpu.matmul %9, %16, %cst_15 {dimension_numbers = #tpu.dot_dimension_numbers<[1], [0], [0], [1], [0, 0, 1, 1], [], []>} : vector<128x64xbf16>, vector<64x48xbf16>, vector<128x48xf32> -> vector<128x48xf32>
    %c0_16 = arith.constant 0 : index
    %c0_17 = arith.constant 0 : index
    %18 = vector.load %arg7[%c0_16, %c0_17] : memref<1x48xf32, #tpu.memory_space<vmem>>, vector<1x48xf32>
    %19 = vector.broadcast %18 : vector<1x48xf32> to vector<128x48xf32>
    %20 = arith.addf %17, %19 : vector<128x48xf32>
    %21 = vector.shape_cast %15 : vector<128x48xf32> to vector<8x16x48xf32>
    %22 = arith.truncf %21 : vector<8x16x48xf32> to vector<8x16x48xbf16>
    %23 = vector.shape_cast %20 : vector<128x48xf32> to vector<8x16x48xf32>
    %24 = arith.truncf %23 : vector<8x16x48xf32> to vector<8x16x48xbf16>
    %25 = vector.extract_strided_slice %22 {offsets = [0, 0, 0], sizes = [8, 16, 16], strides = [1, 1, 1]} : vector<8x16x48xbf16> to vector<8x16x16xbf16>
    %26 = vector.extract_strided_slice %24 {offsets = [0, 0, 0], sizes = [8, 16, 16], strides = [1, 1, 1]} : vector<8x16x48xbf16> to vector<8x16x16xbf16>
    "tpu.trace_start"() <{level = 10 : i32, message = "twc,tvc->twv"}> : () -> ()
    %cst_18 = arith.constant dense<0.000000e+00> : vector<8x16x16xf32>
    %27 = tpu.matmul %26, %25, %cst_18 {dimension_numbers = #tpu.dot_dimension_numbers<[2], [2], [1], [1], [0, 0, 0, 1, 1, 1], [0], [0]>} : vector<8x16x16xbf16>, vector<8x16x16xbf16>, vector<8x16x16xf32> -> vector<8x16x16xf32>
    "tpu.trace_stop"() : () -> ()
    %cst_19 = arith.constant dense<0.000000e+00> : vector<16x16xf32>
    %28 = vector.multi_reduction <add>, %27, %cst_19 [0] : vector<8x16x16xf32> to vector<16x16xf32>
    %cst_20 = arith.constant 7.812500e-03 : f32
    %29 = vector.broadcast %cst_20 : f32 to vector<16x16xf32>
    %30 = arith.mulf %28, %29 : vector<16x16xf32>
    %cst_21 = arith.constant dense<0xFF800000> : vector<16xf32>
    %31 = vector.multi_reduction <maximumf>, %30, %cst_21 [1] : vector<16x16xf32> to vector<16xf32>
    %32 = vector.shape_cast %31 : vector<16xf32> to vector<16x1xf32>
    %33 = vector.broadcast %32 : vector<16x1xf32> to vector<16x16xf32>
    %34 = arith.subf %30, %33 : vector<16x16xf32>
    %35 = math.exp %34 : vector<16x16xf32>
    %cst_22 = arith.constant dense<0.000000e+00> : vector<16xf32>
    %36 = vector.multi_reduction <add>, %35, %cst_22 [1] : vector<16x16xf32> to vector<16xf32>
    %37 = vector.shape_cast %36 : vector<16xf32> to vector<16x1xf32>
    %38 = vector.broadcast %37 : vector<16x1xf32> to vector<16x16xf32>
    %39 = arith.divf %35, %38 : vector<16x16xf32>
    %c0_23 = arith.constant 0 : index
    %c0_24 = arith.constant 0 : index
    %c0_25 = arith.constant 0 : index
    %40 = vector.load %arg8[%c0_23, %c0_24, %c0_25] : memref<3x16x16xf32, #tpu.memory_space<vmem>>, vector<1x16x16xf32>
    %41 = vector.shape_cast %40 : vector<1x16x16xf32> to vector<16x16xf32>
    %42 = arith.addf %39, %41 : vector<16x16xf32>
    %43 = arith.truncf %42 : vector<16x16xf32> to vector<16x16xbf16>
    %44 = vector.shape_cast %43 : vector<16x16xbf16> to vector<1x16x16xbf16>
    %45 = vector.broadcast %44 : vector<1x16x16xbf16> to vector<8x16x16xbf16>
    "tpu.trace_start"() <{level = 10 : i32, message = "twv,tvc->twc"}> : () -> ()
    %cst_26 = arith.constant dense<0.000000e+00> : vector<8x16x64xf32>
    %46 = tpu.matmul %45, %10, %cst_26 {dimension_numbers = #tpu.dot_dimension_numbers<[2], [1], [1], [2], [0, 0, 0, 1, 1, 2], [0], [0]>} : vector<8x16x16xbf16>, vector<8x16x64xbf16>, vector<8x16x64xf32> -> vector<8x16x64xf32>
    "tpu.trace_stop"() : () -> ()
    %47 = vector.extract_strided_slice %22 {offsets = [0, 0, 16], sizes = [8, 16, 16], strides = [1, 1, 1]} : vector<8x16x48xbf16> to vector<8x16x16xbf16>
    %48 = vector.extract_strided_slice %24 {offsets = [0, 0, 16], sizes = [8, 16, 16], strides = [1, 1, 1]} : vector<8x16x48xbf16> to vector<8x16x16xbf16>
    "tpu.trace_start"() <{level = 10 : i32, message = "twc,tvc->twv"}> : () -> ()
    %cst_27 = arith.constant dense<0.000000e+00> : vector<8x16x16xf32>
    %49 = tpu.matmul %48, %47, %cst_27 {dimension_numbers = #tpu.dot_dimension_numbers<[2], [2], [1], [1], [0, 0, 0, 1, 1, 1], [0], [0]>} : vector<8x16x16xbf16>, vector<8x16x16xbf16>, vector<8x16x16xf32> -> vector<8x16x16xf32>
    "tpu.trace_stop"() : () -> ()
    %cst_28 = arith.constant dense<0.000000e+00> : vector<16x16xf32>
    %50 = vector.multi_reduction <add>, %49, %cst_28 [0] : vector<8x16x16xf32> to vector<16x16xf32>
    %cst_29 = arith.constant 7.812500e-03 : f32
    %51 = vector.broadcast %cst_29 : f32 to vector<16x16xf32>
    %52 = arith.mulf %50, %51 : vector<16x16xf32>
    %cst_30 = arith.constant dense<0xFF800000> : vector<16xf32>
    %53 = vector.multi_reduction <maximumf>, %52, %cst_30 [1] : vector<16x16xf32> to vector<16xf32>
    %54 = vector.shape_cast %53 : vector<16xf32> to vector<16x1xf32>
    %55 = vector.broadcast %54 : vector<16x1xf32> to vector<16x16xf32>
    %56 = arith.subf %52, %55 : vector<16x16xf32>
    %57 = math.exp %56 : vector<16x16xf32>
    %cst_31 = arith.constant dense<0.000000e+00> : vector<16xf32>
    %58 = vector.multi_reduction <add>, %57, %cst_31 [1] : vector<16x16xf32> to vector<16xf32>
    %59 = vector.shape_cast %58 : vector<16xf32> to vector<16x1xf32>
    %60 = vector.broadcast %59 : vector<16x1xf32> to vector<16x16xf32>
    %61 = arith.divf %57, %60 : vector<16x16xf32>
    %c1 = arith.constant 1 : index
    %c0_32 = arith.constant 0 : index
    %c0_33 = arith.constant 0 : index
    %62 = vector.load %arg8[%c1, %c0_32, %c0_33] : memref<3x16x16xf32, #tpu.memory_space<vmem>>, vector<1x16x16xf32>
    %63 = vector.shape_cast %62 : vector<1x16x16xf32> to vector<16x16xf32>
    %64 = arith.addf %61, %63 : vector<16x16xf32>
    %65 = arith.truncf %64 : vector<16x16xf32> to vector<16x16xbf16>
    %66 = vector.shape_cast %65 : vector<16x16xbf16> to vector<1x16x16xbf16>
    %67 = vector.broadcast %66 : vector<1x16x16xbf16> to vector<8x16x16xbf16>
    "tpu.trace_start"() <{level = 10 : i32, message = "twv,tvc->twc"}> : () -> ()
    %cst_34 = arith.constant dense<0.000000e+00> : vector<8x16x64xf32>
    %68 = tpu.matmul %67, %10, %cst_34 {dimension_numbers = #tpu.dot_dimension_numbers<[2], [1], [1], [2], [0, 0, 0, 1, 1, 2], [0], [0]>} : vector<8x16x16xbf16>, vector<8x16x64xbf16>, vector<8x16x64xf32> -> vector<8x16x64xf32>
    "tpu.trace_stop"() : () -> ()
    %69 = vector.extract_strided_slice %22 {offsets = [0, 0, 32], sizes = [8, 16, 16], strides = [1, 1, 1]} : vector<8x16x48xbf16> to vector<8x16x16xbf16>
    %70 = vector.extract_strided_slice %24 {offsets = [0, 0, 32], sizes = [8, 16, 16], strides = [1, 1, 1]} : vector<8x16x48xbf16> to vector<8x16x16xbf16>
    "tpu.trace_start"() <{level = 10 : i32, message = "twc,tvc->twv"}> : () -> ()
    %cst_35 = arith.constant dense<0.000000e+00> : vector<8x16x16xf32>
    %71 = tpu.matmul %70, %69, %cst_35 {dimension_numbers = #tpu.dot_dimension_numbers<[2], [2], [1], [1], [0, 0, 0, 1, 1, 1], [0], [0]>} : vector<8x16x16xbf16>, vector<8x16x16xbf16>, vector<8x16x16xf32> -> vector<8x16x16xf32>
    "tpu.trace_stop"() : () -> ()
    %cst_36 = arith.constant dense<0.000000e+00> : vector<16x16xf32>
    %72 = vector.multi_reduction <add>, %71, %cst_36 [0] : vector<8x16x16xf32> to vector<16x16xf32>
    %cst_37 = arith.constant 7.812500e-03 : f32
    %73 = vector.broadcast %cst_37 : f32 to vector<16x16xf32>
    %74 = arith.mulf %72, %73 : vector<16x16xf32>
    %cst_38 = arith.constant dense<0xFF800000> : vector<16xf32>
    %75 = vector.multi_reduction <maximumf>, %74, %cst_38 [1] : vector<16x16xf32> to vector<16xf32>
    %76 = vector.shape_cast %75 : vector<16xf32> to vector<16x1xf32>
    %77 = vector.broadcast %76 : vector<16x1xf32> to vector<16x16xf32>
    %78 = arith.subf %74, %77 : vector<16x16xf32>
    %79 = math.exp %78 : vector<16x16xf32>
    %cst_39 = arith.constant dense<0.000000e+00> : vector<16xf32>
    %80 = vector.multi_reduction <add>, %79, %cst_39 [1] : vector<16x16xf32> to vector<16xf32>
    %81 = vector.shape_cast %80 : vector<16xf32> to vector<16x1xf32>
    %82 = vector.broadcast %81 : vector<16x1xf32> to vector<16x16xf32>
    %83 = arith.divf %79, %82 : vector<16x16xf32>
    %c2 = arith.constant 2 : index
    %c0_40 = arith.constant 0 : index
    %c0_41 = arith.constant 0 : index
    %84 = vector.load %arg8[%c2, %c0_40, %c0_41] : memref<3x16x16xf32, #tpu.memory_space<vmem>>, vector<1x16x16xf32>
    %85 = vector.shape_cast %84 : vector<1x16x16xf32> to vector<16x16xf32>
    %86 = arith.addf %83, %85 : vector<16x16xf32>
    %87 = arith.truncf %86 : vector<16x16xf32> to vector<16x16xbf16>
    %88 = vector.shape_cast %87 : vector<16x16xbf16> to vector<1x16x16xbf16>
    %89 = vector.broadcast %88 : vector<1x16x16xbf16> to vector<8x16x16xbf16>
    "tpu.trace_start"() <{level = 10 : i32, message = "twv,tvc->twc"}> : () -> ()
    %cst_42 = arith.constant dense<0.000000e+00> : vector<8x16x64xf32>
    %90 = tpu.matmul %89, %10, %cst_42 {dimension_numbers = #tpu.dot_dimension_numbers<[2], [1], [1], [2], [0, 0, 0, 1, 1, 2], [0], [0]>} : vector<8x16x16xbf16>, vector<8x16x64xbf16>, vector<8x16x64xf32> -> vector<8x16x64xf32>
    "tpu.trace_stop"() : () -> ()
    %91 = tpu.concatenate %46, %68, %90 in 2 : vector<8x16x64xf32>, vector<8x16x64xf32>, vector<8x16x64xf32> -> vector<8x16x192xf32>
    %92 = vector.shape_cast %91 : vector<8x16x192xf32> to vector<128x192xf32>
    %93 = arith.truncf %92 : vector<128x192xf32> to vector<128x192xbf16>
    %c0_43 = arith.constant 0 : index
    %c0_44 = arith.constant 0 : index
    %94 = vector.load %arg9[%c0_43, %c0_44] : memref<192x64xbf16, #tpu.memory_space<vmem>>, vector<192x64xbf16>
    %cst_45 = arith.constant dense<0.000000e+00> : vector<128x64xf32>
    %95 = tpu.matmul %93, %94, %cst_45 {dimension_numbers = #tpu.dot_dimension_numbers<[1], [0], [0], [1], [0, 0, 1, 1], [], []>} : vector<128x192xbf16>, vector<192x64xbf16>, vector<128x64xf32> -> vector<128x64xf32>
    %c0_46 = arith.constant 0 : index
    %c0_47 = arith.constant 0 : index
    %96 = vector.load %arg10[%c0_46, %c0_47] : memref<1x64xf32, #tpu.memory_space<vmem>>, vector<1x64xf32>
    %97 = vector.broadcast %96 : vector<1x64xf32> to vector<128x64xf32>
    %98 = arith.addf %95, %97 : vector<128x64xf32>
    %c0_48 = arith.constant 0 : index
    %c0_49 = arith.constant 0 : index
    %99 = vector.load %arg11[%c0_48, %c0_49] : memref<64x64xf32, #tpu.memory_space<vmem>>, vector<64x64xf32>
    %cst_50 = arith.constant dense<0.000000e+00> : vector<128x64xf32>
    %100 = tpu.matmul %8, %99, %cst_50 {dimension_numbers = #tpu.dot_dimension_numbers<[1], [0], [0], [1], [0, 0, 1, 1], [], []>} : vector<128x64xf32>, vector<64x64xf32>, vector<128x64xf32> -> vector<128x64xf32>
    %c0_51 = arith.constant 0 : index
    %c0_52 = arith.constant 0 : index
    %101 = vector.load %arg12[%c0_51, %c0_52] : memref<1x64xf32, #tpu.memory_space<vmem>>, vector<1x64xf32>
    %102 = vector.broadcast %101 : vector<1x64xf32> to vector<128x64xf32>
    %103 = arith.addf %100, %102 : vector<128x64xf32>
    %104 = arith.addf %98, %103 : vector<128x64xf32>
    %cst_53 = arith.constant 0.000000e+00 : f32
    %105 = vector.broadcast %cst_53 : f32 to vector<128x64xf32>
    %106 = arith.maximumf %104, %105 : vector<128x64xf32>
    %107 = vector.shape_cast %106 : vector<128x64xf32> to vector<8x16x64xf32>
    %cst_54 = arith.constant 0.000000e+00 : f32
    %108 = vector.broadcast %cst_54 : f32 to vector<4x16x64xf32>
    %109 = tpu.concatenate %108, %107, %108 in 0 : vector<4x16x64xf32>, vector<8x16x64xf32>, vector<4x16x64xf32> -> vector<16x16x64xf32>
    %110 = vector.extract_strided_slice %109 {offsets = [0, 0, 0], sizes = [8, 16, 64], strides = [1, 1, 1]} : vector<16x16x64xf32> to vector<8x16x64xf32>
    %111 = vector.shape_cast %110 : vector<8x16x64xf32> to vector<128x64xf32>
    %112 = vector.extract_strided_slice %109 {offsets = [1, 0, 0], sizes = [8, 16, 64], strides = [1, 1, 1]} : vector<16x16x64xf32> to vector<8x16x64xf32>
    %113 = vector.shape_cast %112 : vector<8x16x64xf32> to vector<128x64xf32>
    %114 = vector.extract_strided_slice %109 {offsets = [2, 0, 0], sizes = [8, 16, 64], strides = [1, 1, 1]} : vector<16x16x64xf32> to vector<8x16x64xf32>
    %115 = vector.shape_cast %114 : vector<8x16x64xf32> to vector<128x64xf32>
    %116 = vector.extract_strided_slice %109 {offsets = [3, 0, 0], sizes = [8, 16, 64], strides = [1, 1, 1]} : vector<16x16x64xf32> to vector<8x16x64xf32>
    %117 = vector.shape_cast %116 : vector<8x16x64xf32> to vector<128x64xf32>
    %118 = vector.extract_strided_slice %109 {offsets = [4, 0, 0], sizes = [8, 16, 64], strides = [1, 1, 1]} : vector<16x16x64xf32> to vector<8x16x64xf32>
    %119 = vector.shape_cast %118 : vector<8x16x64xf32> to vector<128x64xf32>
    %120 = vector.extract_strided_slice %109 {offsets = [5, 0, 0], sizes = [8, 16, 64], strides = [1, 1, 1]} : vector<16x16x64xf32> to vector<8x16x64xf32>
    %121 = vector.shape_cast %120 : vector<8x16x64xf32> to vector<128x64xf32>
    %122 = vector.extract_strided_slice %109 {offsets = [6, 0, 0], sizes = [8, 16, 64], strides = [1, 1, 1]} : vector<16x16x64xf32> to vector<8x16x64xf32>
    %123 = vector.shape_cast %122 : vector<8x16x64xf32> to vector<128x64xf32>
    %124 = vector.extract_strided_slice %109 {offsets = [7, 0, 0], sizes = [8, 16, 64], strides = [1, 1, 1]} : vector<16x16x64xf32> to vector<8x16x64xf32>
    %125 = vector.shape_cast %124 : vector<8x16x64xf32> to vector<128x64xf32>
    %126 = vector.extract_strided_slice %109 {offsets = [8, 0, 0], sizes = [8, 16, 64], strides = [1, 1, 1]} : vector<16x16x64xf32> to vector<8x16x64xf32>
    %127 = vector.shape_cast %126 : vector<8x16x64xf32> to vector<128x64xf32>
    %128 = tpu.concatenate %111, %113, %115, %117, %119, %121, %123, %125, %127 in 1 : vector<128x64xf32>, vector<128x64xf32>, vector<128x64xf32>, vector<128x64xf32>, vector<128x64xf32>, vector<128x64xf32>, vector<128x64xf32>, vector<128x64xf32>, vector<128x64xf32> -> vector<128x576xf32>
    %129 = arith.truncf %128 : vector<128x576xf32> to vector<128x576xbf16>
    %c0_55 = arith.constant 0 : index
    %c0_56 = arith.constant 0 : index
    %130 = vector.load %arg13[%c0_55, %c0_56] : memref<576x64xbf16, #tpu.memory_space<vmem>>, vector<576x64xbf16>
    %cst_57 = arith.constant dense<0.000000e+00> : vector<128x64xf32>
    %131 = tpu.matmul %129, %130, %cst_57 {dimension_numbers = #tpu.dot_dimension_numbers<[1], [0], [0], [1], [0, 0, 1, 1], [], []>} : vector<128x576xbf16>, vector<576x64xbf16>, vector<128x64xf32> -> vector<128x64xf32>
    %c0_58 = arith.constant 0 : index
    %c0_59 = arith.constant 0 : index
    %132 = vector.load %arg14[%c0_58, %c0_59] : memref<1x64xf32, #tpu.memory_space<vmem>>, vector<1x64xf32>
    %133 = vector.broadcast %132 : vector<1x64xf32> to vector<128x64xf32>
    %134 = arith.addf %131, %133 : vector<128x64xf32>
    %cst_60 = arith.constant 0.000000e+00 : f32
    %135 = vector.broadcast %cst_60 : f32 to vector<128x64xf32>
    %136 = arith.maximumf %134, %135 : vector<128x64xf32>
    %137 = vector.shape_cast %136 : vector<128x64xf32> to vector<8x16x64xf32>
    %c0_61 = arith.constant 0 : index
    %c0_62 = arith.constant 0 : index
    %c0_63 = arith.constant 0 : index
    %c0_64 = arith.constant 0 : index
    %138 = vector.load %arg15[%c0_61, %c0_62, %c0_63, %c0_64] : memref<1x8x16x64xf32, #tpu.memory_space<vmem>>, vector<1x8x16x64xf32>
    %139 = vector.shape_cast %138 : vector<1x8x16x64xf32> to vector<8x16x64xf32>
    %140 = vector.shape_cast %137 : vector<8x16x64xf32> to vector<1x8x16x64xf32>
    tpu.vector_store %arg15[%c0_61, %c0_62, %c0_63, %c0_64], %140 {strides = array<i32>} : memref<1x8x16x64xf32, #tpu.memory_space<vmem>>, vector<1x8x16x64xf32>,
    return
  }
  func.func @transform_0(%arg0: i32) -> (i32, i32, i32, i32) {
    %c0_i32 = arith.constant 0 : i32
    %c0_i32_0 = arith.constant 0 : i32
    %c0_i32_1 = arith.constant 0 : i32
    %c0_i32_2 = arith.constant 0 : i32
    return %arg0, %c0_i32, %c0_i32_0, %c0_i32_1 : i32, i32, i32, i32
  }
  func.func @transform_1(%arg0: i32) -> (i32, i32, i32) {
    %c0_i32 = arith.constant 0 : i32
    %c0_i32_0 = arith.constant 0 : i32
    %c0_i32_1 = arith.constant 0 : i32
    %c0_i32_2 = arith.constant 0 : i32
    return %c0_i32, %c0_i32_0, %c0_i32_1 : i32, i32, i32
  }
  func.func @transform_2(%arg0: i32) -> (i32, i32, i32) {
    %c0_i32 = arith.constant 0 : i32
    %c0_i32_0 = arith.constant 0 : i32
    %c0_i32_1 = arith.constant 0 : i32
    %c0_i32_2 = arith.constant 0 : i32
    return %c0_i32, %c0_i32_0, %c0_i32_1 : i32, i32, i32
  }
  func.func @transform_3(%arg0: i32) -> (i32, i32) {
    %c0_i32 = arith.constant 0 : i32
    %c0_i32_0 = arith.constant 0 : i32
    %c0_i32_1 = arith.constant 0 : i32
    return %c0_i32, %c0_i32_0 : i32, i32
  }
  func.func @transform_4(%arg0: i32) -> (i32, i32) {
    %c0_i32 = arith.constant 0 : i32
    %c0_i32_0 = arith.constant 0 : i32
    %c0_i32_1 = arith.constant 0 : i32
    return %c0_i32, %c0_i32_0 : i32, i32
  }
  func.func @transform_5(%arg0: i32) -> (i32, i32) {
    %c0_i32 = arith.constant 0 : i32
    %c0_i32_0 = arith.constant 0 : i32
    %c0_i32_1 = arith.constant 0 : i32
    return %c0_i32, %c0_i32_0 : i32, i32
  }
  func.func @transform_6(%arg0: i32) -> (i32, i32) {
    %c0_i32 = arith.constant 0 : i32
    %c0_i32_0 = arith.constant 0 : i32
    %c0_i32_1 = arith.constant 0 : i32
    return %c0_i32, %c0_i32_0 : i32, i32
  }
  func.func @transform_7(%arg0: i32) -> (i32, i32, i32) {
    %c0_i32 = arith.constant 0 : i32
    %c0_i32_0 = arith.constant 0 : i32
    %c0_i32_1 = arith.constant 0 : i32
    %c0_i32_2 = arith.constant 0 : i32
    return %c0_i32, %c0_i32_0, %c0_i32_1 : i32, i32, i32
  }
  func.func @transform_8(%arg0: i32) -> (i32, i32) {
    %c0_i32 = arith.constant 0 : i32
    %c0_i32_0 = arith.constant 0 : i32
    %c0_i32_1 = arith.constant 0 : i32
    return %c0_i32, %c0_i32_0 : i32, i32
  }
  func.func @transform_9(%arg0: i32) -> (i32, i32) {
    %c0_i32 = arith.constant 0 : i32
    %c0_i32_0 = arith.constant 0 : i32
    %c0_i32_1 = arith.constant 0 : i32
    return %c0_i32, %c0_i32_0 : i32, i32
  }
  func.func @transform_10(%arg0: i32) -> (i32, i32) {
    %c0_i32 = arith.constant 0 : i32
    %c0_i32_0 = arith.constant 0 : i32
    %c0_i32_1 = arith.constant 0 : i32
    return %c0_i32, %c0_i32_0 : i32, i32
  }
  func.func @transform_11(%arg0: i32) -> (i32, i32) {
    %c0_i32 = arith.constant 0 : i32
    %c0_i32_0 = arith.constant 0 : i32
    %c0_i32_1 = arith.constant 0 : i32
    return %c0_i32, %c0_i32_0 : i32, i32
  }
  func.func @transform_12(%arg0: i32) -> (i32, i32) {
    %c0_i32 = arith.constant 0 : i32
    %c0_i32_0 = arith.constant 0 : i32
    %c0_i32_1 = arith.constant 0 : i32
    return %c0_i32, %c0_i32_0 : i32, i32
  }
  func.func @transform_13(%arg0: i32) -> (i32, i32) {
    %c0_i32 = arith.constant 0 : i32
    %c0_i32_0 = arith.constant 0 : i32
    %c0_i32_1 = arith.constant 0 : i32
    return %c0_i32, %c0_i32_0 : i32, i32
  }
  func.func @transform_14(%arg0: i32) -> (i32, i32, i32, i32) {
    %c0_i32 = arith.constant 0 : i32
    %c0_i32_0 = arith.constant 0 : i32
    %c0_i32_1 = arith.constant 0 : i32
    %c0_i32_2 = arith.constant 0 : i32
    return %arg0, %c0_i32, %c0_i32_0, %c0_i32_1 : i32, i32, i32, i32
  }
}

</mosaic_0001>

<llo_original>
// kernel: agcn_forward.7
$region0: #{agcn_forward.7}
  #allocation0 [shape = 'u32[]', space=smem, size = 0x4, offset = 0x4, fixed_abs, tag = 'smem constant byte address 0x4 - core index']
  #allocation1 [shape = 'u32[144,128]{1,0:T(1,128)}', space=vmem, size = 0x12000, scoped, tag = 'internal scratch']
  %s0 = inlined_call_operand.vmem [shape: f32[4,8,16,64], index: 0, kind: input, shape index: {}]
  %s1 = inlined_call_operand.vmem [shape: f32[64,10], index: 1, kind: input, shape index: {}]
  %s2 = inlined_call_operand.vmem [shape: f32[1,10], index: 2, kind: input, shape index: {}]
  %s3 = inlined_call_operand.hbm [shape: f32[2,10], index: 3, kind: output, shape index: {}]
  %s4 = sld [smem:[#allocation0]]
  $region22: #{agcn_forward.7} parent=0
    _
  %s6 = ssub.s32 1, %s4
  %s7 = scalar_select 0, %s6, %s4
  $region1: #{agcn_forward.7} parent=0
    #allocation2 [shape = 'u8[1024]{0}', space=vmem, size = 0x400, scoped, tag = 'output window, operand 0, single buffered']
    #allocation3 [shape = 's32[1]{0}', space=sflag, size = 0x4, scoped, tag = 'scoped memory for agcn_forward.7']
    %8 = vsyncpa [#allocation3], 0
    // Predicated region
    $region2: #{agcn_forward.7} parent=1 // pred_check
      _
    $region3: #{agcn_forward.7} parent=1 // pred_check_branch
      %10 = sbr.rel (0) target = $region5
    $region4: #{agcn_forward.7} parent=1 // pred_region
      _
    $region5: #{agcn_forward.7} parent=1 // pred_fallthru
      _
    // Predicated region
    $region6: #{agcn_forward.7} parent=1 // pred_check
      _
    $region7: #{agcn_forward.7} parent=1 // pred_check_branch
      %12 = sbr.rel (0) target = $region9
    $region8: #{agcn_forward.7} parent=1 // pred_region
      _
    $region9: #{agcn_forward.7} parent=1 // pred_fallthru
      _
    // Predicated region
    $region10: #{agcn_forward.7} parent=1 // pred_check
      _
    $region11: #{agcn_forward.7} parent=1 // pred_check_branch
      %14 = sbr.rel (0) target = $region13
    $region12: #{agcn_forward.7} parent=1 // pred_region
      _
    $region13: #{agcn_forward.7} parent=1 // pred_fallthru
      _
    %v15 = vld [vmem:[%s0] sm:$0xff]
    %v16 = vld [vmem:[%s0 + $0x8] sm:$0xff]
    %v17 = vld [vmem:[%s0 + $0x10] sm:$0xff]
    %v18 = vld [vmem:[%s0 + $0x18] sm:$0xff]
    %v19 = vld [vmem:[%s0 + $0x20] sm:$0xff]
    %v20 = vld [vmem:[%s0 + $0x28] sm:$0xff]
    %v21 = vld [vmem:[%s0 + $0x30] sm:$0xff]
    %v22 = vld [vmem:[%s0 + $0x38] sm:$0xff]
    %v23 = vld [vmem:[%s0 + $0x40] sm:$0xff]
    %v24 = vld [vmem:[%s0 + $0x48] sm:$0xff]
    %v25 = vld [vmem:[%s0 + $0x50] sm:$0xff]
    %v26 = vld [vmem:[%s0 + $0x58] sm:$0xff]
    %v27 = vld [vmem:[%s0 + $0x60] sm:$0xff]
    %v28 = vld [vmem:[%s0 + $0x68] sm:$0xff]
    %v29 = vld [vmem:[%s0 + $0x70] sm:$0xff]
    %v30 = vld [vmem:[%s0 + $0x78] sm:$0xff]
    %v31 = vld [vmem:[%s0 + $0x80] sm:$0xff]
    %v32 = vld [vmem:[%s0 + $0x88] sm:$0xff]
    %v33 = vld [vmem:[%s0 + $0x90] sm:$0xff]
    %v34 = vld [vmem:[%s0 + $0x98] sm:$0xff]
    %v35 = vld [vmem:[%s0 + $0xa0] sm:$0xff]
    %v36 = vld [vmem:[%s0 + $0xa8] sm:$0xff]
    %v37 = vld [vmem:[%s0 + $0xb0] sm:$0xff]
    %v38 = vld [vmem:[%s0 + $0xb8] sm:$0xff]
    %v39 = vld [vmem:[%s0 + $0xc0] sm:$0xff]
    %v40 = vld [vmem:[%s0 + $0xc8] sm:$0xff]
    %v41 = vld [vmem:[%s0 + $0xd0] sm:$0xff]
    %v42 = vld [vmem:[%s0 + $0xd8] sm:$0xff]
    %v43 = vld [vmem:[%s0 + $0xe0] sm:$0xff]
    %v44 = vld [vmem:[%s0 + $0xe8] sm:$0xff]
    %v45 = vld [vmem:[%s0 + $0xf0] sm:$0xff]
    %v46 = vld [vmem:[%s0 + $0xf8] sm:$0xff]
    %v47 = vld [vmem:[%s0 + $0x100] sm:$0xff]
    %v48 = vld [vmem:[%s0 + $0x108] sm:$0xff]
    %v49 = vld [vmem:[%s0 + $0x110] sm:$0xff]
    %v50 = vld [vmem:[%s0 + $0x118] sm:$0xff]
    %v51 = vld [vmem:[%s0 + $0x120] sm:$0xff]
    %v52 = vld [vmem:[%s0 + $0x128] sm:$0xff]
    %v53 = vld [vmem:[%s0 + $0x130] sm:$0xff]
    %v54 = vld [vmem:[%s0 + $0x138] sm:$0xff]
    %v55 = vld [vmem:[%s0 + $0x140] sm:$0xff]
    %v56 = vld [vmem:[%s0 + $0x148] sm:$0xff]
    %v57 = vld [vmem:[%s0 + $0x150] sm:$0xff]
    %v58 = vld [vmem:[%s0 + $0x158] sm:$0xff]
    %v59 = vld [vmem:[%s0 + $0x160] sm:$0xff]
    %v60 = vld [vmem:[%s0 + $0x168] sm:$0xff]
    %v61 = vld [vmem:[%s0 + $0x170] sm:$0xff]
    %v62 = vld [vmem:[%s0 + $0x178] sm:$0xff]
    %v63 = vld [vmem:[%s0 + $0x180] sm:$0xff]
    %v64 = vld [vmem:[%s0 + $0x188] sm:$0xff]
    %v65 = vld [vmem:[%s0 + $0x190] sm:$0xff]
    %v66 = vld [vmem:[%s0 + $0x198] sm:$0xff]
    %v67 = vld [vmem:[%s0 + $0x1a0] sm:$0xff]
    %v68 = vld [vmem:[%s0 + $0x1a8] sm:$0xff]
    %v69 = vld [vmem:[%s0 + $0x1b0] sm:$0xff]
    %v70 = vld [vmem:[%s0 + $0x1b8] sm:$0xff]
    %v71 = vld [vmem:[%s0 + $0x1c0] sm:$0xff]
    %v72 = vld [vmem:[%s0 + $0x1c8] sm:$0xff]
    %v73 = vld [vmem:[%s0 + $0x1d0] sm:$0xff]
    %v74 = vld [vmem:[%s0 + $0x1d8] sm:$0xff]
    %v75 = vld [vmem:[%s0 + $0x1e0] sm:$0xff]
    %v76 = vld [vmem:[%s0 + $0x1e8] sm:$0xff]
    %v77 = vld [vmem:[%s0 + $0x1f0] sm:$0xff]
    %v78 = vld [vmem:[%s0 + $0x1f8] sm:$0xff]
    %vm79 = vcmask 523264
    %v80 = vsel %vm79, %v15, 0.0
    %v81 = vsel %vm79, %v16, 0.0
    %v82 = vadd.f32 %v80, %v81
    %v83 = vsel %vm79, %v17, 0.0
    %v84 = vadd.f32 %v82, %v83
    %v85 = vsel %vm79, %v18, 0.0
    %v86 = vadd.f32 %v84, %v85
    %v87 = vsel %vm79, %v19, 0.0
    %v88 = vadd.f32 %v86, %v87
    %v89 = vsel %vm79, %v20, 0.0
    %v90 = vadd.f32 %v88, %v89
    %v91 = vsel %vm79, %v21, 0.0
    %v92 = vadd.f32 %v90, %v91
    %v93 = vsel %vm79, %v22, 0.0
    %v94 = vadd.f32 %v92, %v93
    %v95 = vsel %vm79, %v23, 0.0
    %v96 = vadd.f32 %v94, %v95
    %v97 = vsel %vm79, %v24, 0.0
    %v98 = vadd.f32 %v96, %v97
    %v99 = vsel %vm79, %v25, 0.0
    %v100 = vadd.f32 %v98, %v99
    %v101 = vsel %vm79, %v26, 0.0
    %v102 = vadd.f32 %v100, %v101
    %v103 = vsel %vm79, %v27, 0.0
    %v104 = vadd.f32 %v102, %v103
    %v105 = vsel %vm79, %v28, 0.0
    %v106 = vadd.f32 %v104, %v105
    %v107 = vsel %vm79, %v29, 0.0
    %v108 = vadd.f32 %v106, %v107
    %v109 = vsel %vm79, %v30, 0.0
    %v110 = vadd.f32 %v108, %v109
    %v111 = vsel %vm79, %v31, 0.0
    %v112 = vadd.f32 %v110, %v111
    %v113 = vsel %vm79, %v32, 0.0
    %v114 = vadd.f32 %v112, %v113
    %v115 = vsel %vm79, %v33, 0.0
    %v116 = vadd.f32 %v114, %v115
    %v117 = vsel %vm79, %v34, 0.0
    %v118 = vadd.f32 %v116, %v117
    %v119 = vsel %vm79, %v35, 0.0
    %v120 = vadd.f32 %v118, %v119
    %v121 = vsel %vm79, %v36, 0.0
    %v122 = vadd.f32 %v120, %v121
    %v123 = vsel %vm79, %v37, 0.0
    %v124 = vadd.f32 %v122, %v123
    %v125 = vsel %vm79, %v38, 0.0
    %v126 = vadd.f32 %v124, %v125
    %v127 = vsel %vm79, %v39, 0.0
    %v128 = vadd.f32 %v126, %v127
    %v129 = vsel %vm79, %v40, 0.0
    %v130 = vadd.f32 %v128, %v129
    %v131 = vsel %vm79, %v41, 0.0
    %v132 = vadd.f32 %v130, %v131
    %v133 = vsel %vm79, %v42, 0.0
    %v134 = vadd.f32 %v132, %v133
    %v135 = vsel %vm79, %v43, 0.0
    %v136 = vadd.f32 %v134, %v135
    %v137 = vsel %vm79, %v44, 0.0
    %v138 = vadd.f32 %v136, %v137
    %v139 = vsel %vm79, %v45, 0.0
    %v140 = vadd.f32 %v138, %v139
    %v141 = vsel %vm79, %v46, 0.0
    %v142 = vadd.f32 %v140, %v141
    %v143 = vrot.slane %v142, 4
    %v144 = vadd.f32 %v142, %v143
    %v145 = vrot.slane %v144, 2
    %v146 = vadd.f32 %v144, %v145
    %v147 = vrot.slane %v146, 1
    %v148 = vadd.f32 %v146, %v147
    %v149 = vsel %vm79, %v47, 0.0
    %v150 = vsel %vm79, %v48, 0.0
    %v151 = vadd.f32 %v149, %v150
    %v152 = vsel %vm79, %v49, 0.0
    %v153 = vadd.f32 %v151, %v152
    %v154 = vsel %vm79, %v50, 0.0
    %v155 = vadd.f32 %v153, %v154
    %v156 = vsel %vm79, %v51, 0.0
    %v157 = vadd.f32 %v155, %v156
    %v158 = vsel %vm79, %v52, 0.0
    %v159 = vadd.f32 %v157, %v158
    %v160 = vsel %vm79, %v53, 0.0
    %v161 = vadd.f32 %v159, %v160
    %v162 = vsel %vm79, %v54, 0.0
    %v163 = vadd.f32 %v161, %v162
    %v164 = vsel %vm79, %v55, 0.0
    %v165 = vadd.f32 %v163, %v164
    %v166 = vsel %vm79, %v56, 0.0
    %v167 = vadd.f32 %v165, %v166
    %v168 = vsel %vm79, %v57, 0.0
    %v169 = vadd.f32 %v167, %v168
    %v170 = vsel %vm79, %v58, 0.0
    %v171 = vadd.f32 %v169, %v170
    %v172 = vsel %vm79, %v59, 0.0
    %v173 = vadd.f32 %v171, %v172
    %v174 = vsel %vm79, %v60, 0.0
    %v175 = vadd.f32 %v173, %v174
    %v176 = vsel %vm79, %v61, 0.0
    %v177 = vadd.f32 %v175, %v176
    %v178 = vsel %vm79, %v62, 0.0
    %v179 = vadd.f32 %v177, %v178
    %v180 = vsel %vm79, %v63, 0.0
    %v181 = vadd.f32 %v179, %v180
    %v182 = vsel %vm79, %v64, 0.0
    %v183 = vadd.f32 %v181, %v182
    %v184 = vsel %vm79, %v65, 0.0
    %v185 = vadd.f32 %v183, %v184
    %v186 = vsel %vm79, %v66, 0.0
    %v187 = vadd.f32 %v185, %v186
    %v188 = vsel %vm79, %v67, 0.0
    %v189 = vadd.f32 %v187, %v188
    %v190 = vsel %vm79, %v68, 0.0
    %v191 = vadd.f32 %v189, %v190
    %v192 = vsel %vm79, %v69, 0.0
    %v193 = vadd.f32 %v191, %v192
    %v194 = vsel %vm79, %v70, 0.0
    %v195 = vadd.f32 %v193, %v194
    %v196 = vsel %vm79, %v71, 0.0
    %v197 = vadd.f32 %v195, %v196
    %v198 = vsel %vm79, %v72, 0.0
    %v199 = vadd.f32 %v197, %v198
    %v200 = vsel %vm79, %v73, 0.0
    %v201 = vadd.f32 %v199, %v200
    %v202 = vsel %vm79, %v74, 0.0
    %v203 = vadd.f32 %v201, %v202
    %v204 = vsel %vm79, %v75, 0.0
    %v205 = vadd.f32 %v203, %v204
    %v206 = vsel %vm79, %v76, 0.0
    %v207 = vadd.f32 %v205, %v206
    %v208 = vsel %vm79, %v77, 0.0
    %v209 = vadd.f32 %v207, %v208
    %v210 = vsel %vm79, %v78, 0.0
    %v211 = vadd.f32 %v209, %v210
    %v212 = vrot.slane %v211, 4
    %v213 = vadd.f32 %v211, %v212
    %v214 = vrot.slane %v213, 2
    %v215 = vadd.f32 %v213, %v214
    %v216 = vrot.slane %v215, 1
    %v217 = vadd.f32 %v215, %v216
    %v218 = vrcp.pop 256.0
    %v219 = vmul.f32 %v148, %v218
    %v220 = vmul.f32 %v217, %v218
    %v221 = vld [vmem:[%s1] sm:$0xff]
    %v222 = vld [vmem:[%s1 + $0x8] sm:$0xff]
    %v223 = vld [vmem:[%s1 + $0x10] sm:$0xff]
    %v224 = vld [vmem:[%s1 + $0x18] sm:$0xff]
    %v225 = vld [vmem:[%s1 + $0x20] sm:$0xff]
    %v226 = vld [vmem:[%s1 + $0x28] sm:$0xff]
    %v227 = vld [vmem:[%s1 + $0x30] sm:$0xff]
    %v228 = vld [vmem:[%s1 + $0x38] sm:$0xff]
    %v229 = vld [vmem:[%s2] sm:$0x1]
    %v231 = vlaneseq
    %v232 = vshrl.u32 %v231, 7
    %v233 = vsub.s32 0, %v232
    %v234 = vrot.slane %v229, %v233
    %vm238 = vcmask 1041409
    %v239 = vsel %vm238, %v220, %v219
    %v240 = vsel %vm79, %v239, 0
    %242 = vmatprep.subr.mxu0 0.0
    %243 = vmatpush1.msra.mxu0 %v221
    %244 = vmatprep.subr.mxu0 0.0
    %245 = vmatpush1.msra.mxu0 %v222
    %246 = vmatprep.subr.mxu0 0.0
    %247 = vmatpush1.msra.mxu0 %v223
    %248 = vmatprep.subr.mxu0 0.0
    %249 = vmatpush1.msra.mxu0 %v224
    %250 = vmatprep.subr.mxu0 0.0
    %251 = vmatpush1.msra.mxu0 %v225
    %252 = vmatprep.subr.mxu0 0.0
    %253 = vmatpush1.msra.mxu0 %v226
    %254 = vmatprep.subr.mxu0 0.0
    %255 = vmatpush1.msra.mxu0 %v227
    %256 = vmatprep.subr.mxu0 0.0
    %257 = vmatpush1.msra.mxu0 %v228
    %258 = vmatprep.subr.mxu0 0.0
    %259 = vmatpush1.msra.mxu0 0.0
    %260 = vmatprep.subr.mxu0 0.0
    %261 = vmatpush1.msra.mxu0 0.0
    %262 = vmatprep.subr.mxu0 0.0
    %263 = vmatpush1.msra.mxu0 0.0
    %264 = vmatprep.subr.mxu0 0.0
    %265 = vmatpush1.msra.mxu0 0.0
    %266 = vmatprep.subr.mxu0 0.0
    %267 = vmatpush1.msra.mxu0 0.0
    %268 = vmatprep.subr.mxu0 0.0
    %269 = vmatpush1.msra.mxu0 0.0
    %270 = vmatprep.subr.mxu0 0.0
    %271 = vmatpush1.msra.mxu0 0.0
    %272 = vmatprep.subr.mxu0 0.0
    %273 = vmatpush1.msra.mxu0 0.0
    %274 = vmatprep.subr.mxu0 0.0
    %275 = vmatpush1.msra.mxu0 0.0
    %276 = vmatprep.subr.mxu0 0.0
    %277 = vmatpush1.msra.mxu0 0.0
    %278 = vmatprep.subr.mxu0 0.0
    %279 = vmatpush1.msra.mxu0 0.0
    %280 = vmatprep.subr.mxu0 0.0
    %281 = vmatpush1.msra.mxu0 0.0
    %282 = vmatprep.subr.mxu0 0.0
    %283 = vmatpush1.msra.mxu0 0.0
    %284 = vmatprep.subr.mxu0 0.0
    %285 = vmatpush1.msra.mxu0 0.0
    %286 = vmatprep.subr.mxu0 0.0
    %287 = vmatpush1.msra.mxu0 0.0
    %288 = vmatprep.subr.mxu0 0.0
    %289 = vmatpush1.msra.mxu0 0.0
    %290 = vmatprep.subr.mxu0 0.0
    %291 = vmatpush1.msra.mxu0 0.0
    %292 = vmatprep.subr.mxu0 0.0
    %293 = vmatpush1.msra.mxu0 0.0
    %294 = vmatprep.subr.mxu0 0.0
    %295 = vmatpush1.msra.mxu0 0.0
    %296 = vmatprep.subr.mxu0 0.0
    %297 = vmatpush1.msra.mxu0 0.0
    %298 = vmatprep.subr.mxu0 0.0
    %299 = vmatpush1.msra.mxu0 0.0
    %300 = vmatprep.subr.mxu0 0.0
    %301 = vmatpush1.msra.mxu0 0.0
    %302 = vmatprep.subr.mxu0 0.0
    %303 = vmatpush1.msra.mxu0 0.0
    %304 = vmatprep.subr.mxu0 0.0
    %305 = vmatpush1.msra.mxu0 0.0
    %306 = vmatprep.mubr.f32.mxu0 0.0
    %307 = vmatmul.mubr.f32.gmra.mrb[0].mxu0 %v240
    %v308 = vpop.f32.mrb[0].mxu0
    %v309 = vadd.f32 %v234, %v308
    %v310 = vpop.f32.mrb[0].mxu0
    %311 = vdwg.mxu0
    %vm312 = vcmask 74752
    %313 = vst.msk [vmem:[#allocation2] sm:$0x3] %vm312, %v309
    // Predicated region
    $region14: #{agcn_forward.7} parent=1 // pred_check
      _
    $region15: #{agcn_forward.7} parent=1 // pred_check_branch
      %315 = sbr.rel (0) target = $region17
    $region16: #{agcn_forward.7} parent=1 // pred_region
      %s317 = ssub.s32 32, 32
      %318 = vsyncadd [#allocation3], %s317
      %s320 = sshll.u32 [#allocation2], 4
      %s321 = int_to_ptr.vmem [resolvable:$true] %s320
      %323 = dma.vmem_to_hbm [thread:$0]  %s321, 32, %s3, [#allocation3]
    $region17: #{agcn_forward.7} parent=1 // pred_fallthru
      _
    // Predicated region
    $region18: #{agcn_forward.7} parent=1 // pred_check
      _
    $region19: #{agcn_forward.7} parent=1 // pred_check_branch
      %325 = sbr.rel (0) target = $region21
    $region20: #{agcn_forward.7} parent=1 // pred_region
      %326 = dma.done [#allocation3], 32
    $region21: #{agcn_forward.7} parent=1 // pred_fallthru
      _
    %327 = vsyncpa [#allocation3], 1

// kernel: agcn_forward.4
$region0: #{agcn_forward.4}
  #allocation0 [shape = 'u32[]', space=smem, size = 0x4, offset = 0x4, fixed_abs, tag = 'smem constant byte address 0x4 - core index']
  #allocation1 [shape = 'u32[144,128]{1,0:T(1,128)}', space=vmem, size = 0x12000, scoped, tag = 'internal scratch']
  %s0 = inlined_call_operand.vmem [shape: f32[4,8,16,3], index: 0, kind: input, shape index: {}]
  %s1 = inlined_call_operand.vmem [shape: f32[1,16,3], index: 1, kind: input, shape index: {}]
  %s2 = inlined_call_operand.vmem [shape: f32[1,16,3], index: 2, kind: input, shape index: {}]
  %s3 = inlined_call_operand.vmem [shape: bf16[3,48], index: 3, kind: input, shape index: {}]
  %s4 = inlined_call_operand.vmem [shape: f32[1,48], index: 4, kind: input, shape index: {}]
  %s5 = inlined_call_operand.vmem [shape: bf16[3,48], index: 5, kind: input, shape index: {}]
  %s6 = inlined_call_operand.vmem [shape: f32[1,48], index: 6, kind: input, shape index: {}]
  %s7 = inlined_call_operand.vmem [shape: f32[3,16,16], index: 7, kind: input, shape index: {}]
  %s8 = inlined_call_operand.vmem [shape: bf16[9,64], index: 8, kind: input, shape index: {}]
  %s9 = inlined_call_operand.vmem [shape: f32[1,64], index: 9, kind: input, shape index: {}]
  %s10 = inlined_call_operand.vmem [shape: f32[3,64], index: 10, kind: input, shape index: {}]
  %s11 = inlined_call_operand.vmem [shape: f32[1,64], index: 11, kind: input, shape index: {}]
  %s12 = inlined_call_operand.vmem [shape: bf16[576,64], index: 12, kind: input, shape index: {}]
  %s13 = inlined_call_operand.vmem [shape: f32[1,64], index: 13, kind: input, shape index: {}]
  %s14 = inlined_call_operand.vmem [shape: f32[4,8,16,64], index: 14, kind: output, shape index: {}]
  %s15 = sld [smem:[#allocation0]]
  $region89: #{agcn_forward.4} parent=0
    _
  %s17 = ssub.s32 1, %s15
  %s18 = scalar_select 0, %s17, %s15
  loop: start=0, step=1, limit=6
  $region2: #{agcn_forward.4} parent=0 // loop_pre_header
    _
  $region3: #{agcn_forward.4} parent=0 // loop_header
    %s20 = sphi 0, %s24
    %p21 = scmp.ge.s32.totalorder %s20, 6
    %s30 = sphi 0, %s32
    %s33 = sphi 0, %s30
    %s34 = sphi 0, %s33
    %s50 = sphi 0, %s34
    %s54 = sphi 0, %s54
    %s56 = sphi 0, %s54
    %s57 = sphi 0, %s56
    %s71 = sphi 0, %s57
    %s75 = sphi 0, %s75
    %s77 = sphi 0, %s75
    %s78 = sphi 0, %s77
    %s92 = sphi 0, %s78
    %s96 = sphi 0, %s96
    %s98 = sphi 0, %s96
    %s99 = sphi 0, %s98
    %s113 = sphi 0, %s99
    %s117 = sphi 0, %s117
    %s119 = sphi 0, %s117
    %s120 = sphi 0, %s119
    %s134 = sphi 0, %s120
    %s138 = sphi 0, %s138
    %s140 = sphi 0, %s138
    %s141 = sphi 0, %s140
    %s155 = sphi 0, %s141
    %s159 = sphi 0, %s159
    %s161 = sphi 0, %s159
    %s162 = sphi 0, %s161
    %s176 = sphi 0, %s162
    %s180 = sphi 0, %s180
    %s182 = sphi 0, %s180
    %s183 = sphi 0, %s182
    %s197 = sphi 0, %s183
    %s201 = sphi 0, %s201
    %s203 = sphi 0, %s201
    %s204 = sphi 0, %s203
    %s218 = sphi 0, %s204
    %s222 = sphi 0, %s222
    %s224 = sphi 0, %s222
    %s225 = sphi 0, %s224
    %s239 = sphi 0, %s225
    %s243 = sphi 0, %s243
    %s245 = sphi 0, %s243
    %s246 = sphi 0, %s245
    %s260 = sphi 0, %s246
    %s264 = sphi 0, %s264
    %s266 = sphi 0, %s264
    %s267 = sphi 0, %s266
    %s281 = sphi 0, %s267
    %s285 = sphi 0, %s285
    %s287 = sphi 0, %s285
    %s288 = sphi 0, %s287
    %s302 = sphi 0, %s288
    %s306 = sphi 0, %s306
    %s308 = sphi 0, %s306
    %s309 = sphi 0, %s308
    %s323 = sphi 0, %s309
    %s329 = sphi 0, %s331
    %s332 = sphi 0, %s329
    %s333 = sphi 0, %s332
    %s349 = sphi 0, %s333
  $region4: #{agcn_forward.4} parent=0 // loop_header_branch
    %23 = sbr.rel (%p21) target = $region8
  $region5: #{agcn_forward.4} parent=0 // loop_body
    %s25 = ssub.s32 %s20, 1
    %s26 = ssub.s32 %s20, 2
    %s27 = sadd.s32 %s20, 1
    %s28 = ssub.s32 %s20, %s27
    %p29 = scmp.eq.s32.totalorder %s28, 0
    %s31 = sadd.s32 %s30, 1
    %s32 = scalar_select %p29, %s30, %s31
    %p35 = pneg %p29
    %p36 = scmp.eq.s32.totalorder %s20, 3
    %p37 = por %p35, %p36
    %p38 = scmp.ne.s32.totalorder %s30, %s33
    %p39 = scmp.eq.s32.totalorder %s20, 0
    %p40 = por %p38, %p39
    %p41 = scmp.ne.s32.totalorder %s30, %s33
    %p42 = scmp.eq.s32.totalorder %s25, 3
    %p43 = por %p41, %p42
    %p44 = scmp.ne.s32.totalorder %s33, %s34
    %p45 = scmp.eq.s32.totalorder %s25, 0
    %p46 = por %p44, %p45
    %p47 = scmp.ne.s32.totalorder %s33, %s34
    %p48 = scmp.eq.s32.totalorder %s26, 3
    %p49 = por %p47, %p48
    %p51 = scmp.ne.s32.totalorder %s34, %s50
    %p52 = scmp.eq.s32.totalorder %s26, 0
    %p53 = por %p51, %p52
    %s55 = sadd.s32 %s54, 1
    %p58 = scmp.eq.s32.totalorder %s20, 3
    %p59 = scmp.ne.s32.totalorder %s54, %s56
    %p60 = scmp.eq.s32.totalorder %s20, 0
    %p61 = por %p59, %p60
    %p62 = scmp.ne.s32.totalorder %s54, %s56
    %p63 = scmp.eq.s32.totalorder %s25, 3
    %p64 = por %p62, %p63
    %p65 = scmp.ne.s32.totalorder %s56, %s57
    %p66 = scmp.eq.s32.totalorder %s25, 0
    %p67 = por %p65, %p66
    %p68 = scmp.ne.s32.totalorder %s56, %s57
    %p69 = scmp.eq.s32.totalorder %s26, 3
    %p70 = por %p68, %p69
    %p72 = scmp.ne.s32.totalorder %s57, %s71
    %p73 = scmp.eq.s32.totalorder %s26, 0
    %p74 = por %p72, %p73
    %s76 = sadd.s32 %s75, 1
    %p79 = scmp.eq.s32.totalorder %s20, 3
    %p80 = scmp.ne.s32.totalorder %s75, %s77
    %p81 = scmp.eq.s32.totalorder %s20, 0
    %p82 = por %p80, %p81
    %p83 = scmp.ne.s32.totalorder %s75, %s77
    %p84 = scmp.eq.s32.totalorder %s25, 3
    %p85 = por %p83, %p84
    %p86 = scmp.ne.s32.totalorder %s77, %s78
    %p87 = scmp.eq.s32.totalorder %s25, 0
    %p88 = por %p86, %p87
    %p89 = scmp.ne.s32.totalorder %s77, %s78
    %p90 = scmp.eq.s32.totalorder %s26, 3
    %p91 = por %p89, %p90
    %p93 = scmp.ne.s32.totalorder %s78, %s92
    %p94 = scmp.eq.s32.totalorder %s26, 0
    %p95 = por %p93, %p94
    %s97 = sadd.s32 %s96, 1
    %p100 = scmp.eq.s32.totalorder %s20, 3
    %p101 = scmp.ne.s32.totalorder %s96, %s98
    %p102 = scmp.eq.s32.totalorder %s20, 0
    %p103 = por %p101, %p102
    %p104 = scmp.ne.s32.totalorder %s96, %s98
    %p105 = scmp.eq.s32.totalorder %s25, 3
    %p106 = por %p104, %p105
    %p107 = scmp.ne.s32.totalorder %s98, %s99
    %p108 = scmp.eq.s32.totalorder %s25, 0
    %p109 = por %p107, %p108
    %p110 = scmp.ne.s32.totalorder %s98, %s99
    %p111 = scmp.eq.s32.totalorder %s26, 3
    %p112 = por %p110, %p111
    %p114 = scmp.ne.s32.totalorder %s99, %s113
    %p115 = scmp.eq.s32.totalorder %s26, 0
    %p116 = por %p114, %p115
    %s118 = sadd.s32 %s117, 1
    %p121 = scmp.eq.s32.totalorder %s20, 3
    %p122 = scmp.ne.s32.totalorder %s117, %s119
    %p123 = scmp.eq.s32.totalorder %s20, 0
    %p124 = por %p122, %p123
    %p125 = scmp.ne.s32.totalorder %s117, %s119
    %p126 = scmp.eq.s32.totalorder %s25, 3
    %p127 = por %p125, %p126
    %p128 = scmp.ne.s32.totalorder %s119, %s120
    %p129 = scmp.eq.s32.totalorder %s25, 0
    %p130 = por %p128, %p129
    %p131 = scmp.ne.s32.totalorder %s119, %s120
    %p132 = scmp.eq.s32.totalorder %s26, 3
    %p133 = por %p131, %p132
    %p135 = scmp.ne.s32.totalorder %s120, %s134
    %p136 = scmp.eq.s32.totalorder %s26, 0
    %p137 = por %p135, %p136
    %s139 = sadd.s32 %s138, 1
    %p142 = scmp.eq.s32.totalorder %s20, 3
    %p143 = scmp.ne.s32.totalorder %s138, %s140
    %p144 = scmp.eq.s32.totalorder %s20, 0
    %p145 = por %p143, %p144
    %p146 = scmp.ne.s32.totalorder %s138, %s140
    %p147 = scmp.eq.s32.totalorder %s25, 3
    %p148 = por %p146, %p147
    %p149 = scmp.ne.s32.totalorder %s140, %s141
    %p150 = scmp.eq.s32.totalorder %s25, 0
    %p151 = por %p149, %p150
    %p152 = scmp.ne.s32.totalorder %s140, %s141
    %p153 = scmp.eq.s32.totalorder %s26, 3
    %p154 = por %p152, %p153
    %p156 = scmp.ne.s32.totalorder %s141, %s155
    %p157 = scmp.eq.s32.totalorder %s26, 0
    %p158 = por %p156, %p157
    %s160 = sadd.s32 %s159, 1
    %p163 = scmp.eq.s32.totalorder %s20, 3
    %p164 = scmp.ne.s32.totalorder %s159, %s161
    %p165 = scmp.eq.s32.totalorder %s20, 0
    %p166 = por %p164, %p165
    %p167 = scmp.ne.s32.totalorder %s159, %s161
    %p168 = scmp.eq.s32.totalorder %s25, 3
    %p169 = por %p167, %p168
    %p170 = scmp.ne.s32.totalorder %s161, %s162
    %p171 = scmp.eq.s32.totalorder %s25, 0
    %p172 = por %p170, %p171
    %p173 = scmp.ne.s32.totalorder %s161, %s162
    %p174 = scmp.eq.s32.totalorder %s26, 3
    %p175 = por %p173, %p174
    %p177 = scmp.ne.s32.totalorder %s162, %s176
    %p178 = scmp.eq.s32.totalorder %s26, 0
    %p179 = por %p177, %p178
    %s181 = sadd.s32 %s180, 1
    %p184 = scmp.eq.s32.totalorder %s20, 3
    %p185 = scmp.ne.s32.totalorder %s180, %s182
    %p186 = scmp.eq.s32.totalorder %s20, 0
    %p187 = por %p185, %p186
    %p188 = scmp.ne.s32.totalorder %s180, %s182
    %p189 = scmp.eq.s32.totalorder %s25, 3
    %p190 = por %p188, %p189
    %p191 = scmp.ne.s32.totalorder %s182, %s183
    %p192 = scmp.eq.s32.totalorder %s25, 0
    %p193 = por %p191, %p192
    %p194 = scmp.ne.s32.totalorder %s182, %s183
    %p195 = scmp.eq.s32.totalorder %s26, 3
    %p196 = por %p194, %p195
    %p198 = scmp.ne.s32.totalorder %s183, %s197
    %p199 = scmp.eq.s32.totalorder %s26, 0
    %p200 = por %p198, %p199
    %s202 = sadd.s32 %s201, 1
    %p205 = scmp.eq.s32.totalorder %s20, 3
    %p206 = scmp.ne.s32.totalorder %s201, %s203
    %p207 = scmp.eq.s32.totalorder %s20, 0
    %p208 = por %p206, %p207
    %p209 = scmp.ne.s32.totalorder %s201, %s203
    %p210 = scmp.eq.s32.totalorder %s25, 3
    %p211 = por %p209, %p210
    %p212 = scmp.ne.s32.totalorder %s203, %s204
    %p213 = scmp.eq.s32.totalorder %s25, 0
    %p214 = por %p212, %p213
    %p215 = scmp.ne.s32.totalorder %s203, %s204
    %p216 = scmp.eq.s32.totalorder %s26, 3
    %p217 = por %p215, %p216
    %p219 = scmp.ne.s32.totalorder %s204, %s218
    %p220 = scmp.eq.s32.totalorder %s26, 0
    %p221 = por %p219, %p220
    %s223 = sadd.s32 %s222, 1
    %p226 = scmp.eq.s32.totalorder %s20, 3
    %p227 = scmp.ne.s32.totalorder %s222, %s224
    %p228 = scmp.eq.s32.totalorder %s20, 0
    %p229 = por %p227, %p228
    %p230 = scmp.ne.s32.totalorder %s222, %s224
    %p231 = scmp.eq.s32.totalorder %s25, 3
    %p232 = por %p230, %p231
    %p233 = scmp.ne.s32.totalorder %s224, %s225
    %p234 = scmp.eq.s32.totalorder %s25, 0
    %p235 = por %p233, %p234
    %p236 = scmp.ne.s32.totalorder %s224, %s225
    %p237 = scmp.eq.s32.totalorder %s26, 3
    %p238 = por %p236, %p237
    %p240 = scmp.ne.s32.totalorder %s225, %s239
    %p241 = scmp.eq.s32.totalorder %s26, 0
    %p242 = por %p240, %p241
    %s244 = sadd.s32 %s243, 1
    %p247 = scmp.eq.s32.totalorder %s20, 3
    %p248 = scmp.ne.s32.totalorder %s243, %s245
    %p249 = scmp.eq.s32.totalorder %s20, 0
    %p250 = por %p248, %p249
    %p251 = scmp.ne.s32.totalorder %s243, %s245
    %p252 = scmp.eq.s32.totalorder %s25, 3
    %p253 = por %p251, %p252
    %p254 = scmp.ne.s32.totalorder %s245, %s246
    %p255 = scmp.eq.s32.totalorder %s25, 0
    %p256 = por %p254, %p255
    %p257 = scmp.ne.s32.totalorder %s245, %s246
    %p258 = scmp.eq.s32.totalorder %s26, 3
    %p259 = por %p257, %p258
    %p261 = scmp.ne.s32.totalorder %s246, %s260
    %p262 = scmp.eq.s32.totalorder %s26, 0
    %p263 = por %p261, %p262
    %s265 = sadd.s32 %s264, 1
    %p268 = scmp.eq.s32.totalorder %s20, 3
    %p269 = scmp.ne.s32.totalorder %s264, %s266
    %p270 = scmp.eq.s32.totalorder %s20, 0
    %p271 = por %p269, %p270
    %p272 = scmp.ne.s32.totalorder %s264, %s266
    %p273 = scmp.eq.s32.totalorder %s25, 3
    %p274 = por %p272, %p273
    %p275 = scmp.ne.s32.totalorder %s266, %s267
    %p276 = scmp.eq.s32.totalorder %s25, 0
    %p277 = por %p275, %p276
    %p278 = scmp.ne.s32.totalorder %s266, %s267
    %p279 = scmp.eq.s32.totalorder %s26, 3
    %p280 = por %p278, %p279
    %p282 = scmp.ne.s32.totalorder %s267, %s281
    %p283 = scmp.eq.s32.totalorder %s26, 0
    %p284 = por %p282, %p283
    %s286 = sadd.s32 %s285, 1
    %p289 = scmp.eq.s32.totalorder %s20, 3
    %p290 = scmp.ne.s32.totalorder %s285, %s287
    %p291 = scmp.eq.s32.totalorder %s20, 0
    %p292 = por %p290, %p291
    %p293 = scmp.ne.s32.totalorder %s285, %s287
    %p294 = scmp.eq.s32.totalorder %s25, 3
    %p295 = por %p293, %p294
    %p296 = scmp.ne.s32.totalorder %s287, %s288
    %p297 = scmp.eq.s32.totalorder %s25, 0
    %p298 = por %p296, %p297
    %p299 = scmp.ne.s32.totalorder %s287, %s288
    %p300 = scmp.eq.s32.totalorder %s26, 3
    %p301 = por %p299, %p300
    %p303 = scmp.ne.s32.totalorder %s288, %s302
    %p304 = scmp.eq.s32.totalorder %s26, 0
    %p305 = por %p303, %p304
    %s307 = sadd.s32 %s306, 1
    %p310 = scmp.eq.s32.totalorder %s20, 3
    %p311 = scmp.ne.s32.totalorder %s306, %s308
    %p312 = scmp.eq.s32.totalorder %s20, 0
    %p313 = por %p311, %p312
    %p314 = scmp.ne.s32.totalorder %s306, %s308
    %p315 = scmp.eq.s32.totalorder %s25, 3
    %p316 = por %p314, %p315
    %p317 = scmp.ne.s32.totalorder %s308, %s309
    %p318 = scmp.eq.s32.totalorder %s25, 0
    %p319 = por %p317, %p318
    %p320 = scmp.ne.s32.totalorder %s308, %s309
    %p321 = scmp.eq.s32.totalorder %s26, 3
    %p322 = por %p320, %p321
    %p324 = scmp.ne.s32.totalorder %s309, %s323
    %p325 = scmp.eq.s32.totalorder %s26, 0
    %p326 = por %p324, %p325
    %s327 = ssub.s32 %s20, %s27
    %p328 = scmp.eq.s32.totalorder %s327, 0
    %s330 = sadd.s32 %s329, 1
    %s331 = scalar_select %p328, %s329, %s330
    %p334 = pneg %p328
    %p335 = scmp.eq.s32.totalorder %s20, 3
    %p336 = por %p334, %p335
    %p337 = scmp.ne.s32.totalorder %s329, %s332
    %p338 = scmp.eq.s32.totalorder %s20, 0
    %p339 = por %p337, %p338
    %p340 = scmp.ne.s32.totalorder %s329, %s332
    %p341 = scmp.eq.s32.totalorder %s25, 3
    %p342 = por %p340, %p341
    %p343 = scmp.ne.s32.totalorder %s332, %s333
    %p344 = scmp.eq.s32.totalorder %s25, 0
    %p345 = por %p343, %p344
    %p346 = scmp.ne.s32.totalorder %s332, %s333
    %p347 = scmp.eq.s32.totalorder %s26, 3
    %p348 = por %p346, %p347
    %p350 = scmp.ne.s32.totalorder %s333, %s349
    %p351 = scmp.eq.s32.totalorder %s26, 0
    %p352 = por %p350, %p351
    %p353 = scmp.le.s32.totalorder 1, %s20
    %p354 = scmp.lt.s32.totalorder %s20, 5
    %p355 = pnand %p353, %p354
    %p356 = pneg %p355
    // Predicated region
    $region9: #{agcn_forward.4} parent=5 // pred_check
      _
    $region10: #{agcn_forward.4} parent=5 // pred_check_branch
      %358 = sbr.rel (%p355) target = $region12
    $region11: #{agcn_forward.4} parent=5 // pred_region
      %s359 = ssub.s32 %s20, 1
      // Predicated region
      $region13: #{agcn_forward.4} parent=11 // pred_check
        %p360 = pneg %p67
      $region14: #{agcn_forward.4} parent=11 // pred_check_branch
        %362 = sbr.rel (%p360) target = $region16
      $region15: #{agcn_forward.4} parent=11 // pred_region
        _
      $region16: #{agcn_forward.4} parent=11 // pred_fallthru
        _
      // Predicated region
      $region17: #{agcn_forward.4} parent=11 // pred_check
        %p363 = pneg %p88
      $region18: #{agcn_forward.4} parent=11 // pred_check_branch
        %365 = sbr.rel (%p363) target = $region20
      $region19: #{agcn_forward.4} parent=11 // pred_region
        _
      $region20: #{agcn_forward.4} parent=11 // pred_fallthru
        _
      // Predicated region
      $region21: #{agcn_forward.4} parent=11 // pred_check
        %p366 = pneg %p109
      $region22: #{agcn_forward.4} parent=11 // pred_check_branch
        %368 = sbr.rel (%p366) target = $region24
      $region23: #{agcn_forward.4} parent=11 // pred_region
        _
      $region24: #{agcn_forward.4} parent=11 // pred_fallthru
        _
      // Predicated region
      $region25: #{agcn_forward.4} parent=11 // pred_check
        %p369 = pneg %p130
      $region26: #{agcn_forward.4} parent=11 // pred_check_branch
        %371 = sbr.rel (%p369) target = $region28
      $region27: #{agcn_forward.4} parent=11 // pred_region
        _
      $region28: #{agcn_forward.4} parent=11 // pred_fallthru
        _
      // Predicated region
      $region29: #{agcn_forward.4} parent=11 // pred_check
        %p372 = pneg %p151
      $region30: #{agcn_forward.4} parent=11 // pred_check_branch
        %374 = sbr.rel (%p372) target = $region32
      $region31: #{agcn_forward.4} parent=11 // pred_region
        _
      $region32: #{agcn_forward.4} parent=11 // pred_fallthru
        _
      // Predicated region
      $region33: #{agcn_forward.4} parent=11 // pred_check
        %p375 = pneg %p172
      $region34: #{agcn_forward.4} parent=11 // pred_check_branch
        %377 = sbr.rel (%p375) target = $region36
      $region35: #{agcn_forward.4} parent=11 // pred_region
        _
      $region36: #{agcn_forward.4} parent=11 // pred_fallthru
        _
      // Predicated region
      $region37: #{agcn_forward.4} parent=11 // pred_check
        %p378 = pneg %p193
      $region38: #{agcn_forward.4} parent=11 // pred_check_branch
        %380 = sbr.rel (%p378) target = $region40
      $region39: #{agcn_forward.4} parent=11 // pred_region
        _
      $region40: #{agcn_forward.4} parent=11 // pred_fallthru
        _
      // Predicated region
      $region41: #{agcn_forward.4} parent=11 // pred_check
        %p381 = pneg %p214
      $region42: #{agcn_forward.4} parent=11 // pred_check_branch
        %383 = sbr.rel (%p381) target = $region44
      $region43: #{agcn_forward.4} parent=11 // pred_region
        _
      $region44: #{agcn_forward.4} parent=11 // pred_fallthru
        _
      // Predicated region
      $region45: #{agcn_forward.4} parent=11 // pred_check
        %p384 = pneg %p235
      $region46: #{agcn_forward.4} parent=11 // pred_check_branch
        %386 = sbr.rel (%p384) target = $region48
      $region47: #{agcn_forward.4} parent=11 // pred_region
        _
      $region48: #{agcn_forward.4} parent=11 // pred_fallthru
        _
      // Predicated region
      $region49: #{agcn_forward.4} parent=11 // pred_check
        %p387 = pneg %p256
      $region50: #{agcn_forward.4} parent=11 // pred_check_branch
        %389 = sbr.rel (%p387) target = $region52
      $region51: #{agcn_forward.4} parent=11 // pred_region
        _
      $region52: #{agcn_forward.4} parent=11 // pred_fallthru
        _
      // Predicated region
      $region53: #{agcn_forward.4} parent=11 // pred_check
        %p390 = pneg %p277
      $region54: #{agcn_forward.4} parent=11 // pred_check_branch
        %392 = sbr.rel (%p390) target = $region56
      $region55: #{agcn_forward.4} parent=11 // pred_region
        _
      $region56: #{agcn_forward.4} parent=11 // pred_fallthru
        _
      // Predicated region
      $region57: #{agcn_forward.4} parent=11 // pred_check
        %p393 = pneg %p298
      $region58: #{agcn_forward.4} parent=11 // pred_check_branch
        %395 = sbr.rel (%p393) target = $region60
      $region59: #{agcn_forward.4} parent=11 // pred_region
        _
      $region60: #{agcn_forward.4} parent=11 // pred_fallthru
        _
      // Predicated region
      $region61: #{agcn_forward.4} parent=11 // pred_check
        %p396 = pneg %p319
      $region62: #{agcn_forward.4} parent=11 // pred_check_branch
        %398 = sbr.rel (%p396) target = $region64
      $region63: #{agcn_forward.4} parent=11 // pred_region
        _
      $region64: #{agcn_forward.4} parent=11 // pred_fallthru
        _
    $region12: #{agcn_forward.4} parent=5 // pred_fallthru
      _
    %p399 = scmp.lt.s32.totalorder %s20, 4
    // Predicated region
    $region65: #{agcn_forward.4} parent=5 // pred_check
      %p400 = pneg %p399
    $region66: #{agcn_forward.4} parent=5 // pred_check_branch
      %402 = sbr.rel (%p400) target = $region68
    $region67: #{agcn_forward.4} parent=5 // pred_region
      // Predicated region
      $region69: #{agcn_forward.4} parent=67 // pred_check
        %p403 = pneg %p40
      $region70: #{agcn_forward.4} parent=67 // pred_check_branch
        %405 = sbr.rel (%p403) target = $region72
      $region71: #{agcn_forward.4} parent=67 // pred_region
        %p406 = scmp.lt.s32.totalorder %s20, 3
        %s407 = scalar_select %p406, %s20, 3
        %s408 = smul.addr %s407, 16
        %s409 = smul.addr %s408, 8
        %s410 = scalar_lea.vmem %s0, %s409
      $region72: #{agcn_forward.4} parent=67 // pred_fallthru
        _
    $region68: #{agcn_forward.4} parent=5 // pred_fallthru
      _
    %p411 = scmp.le.s32.totalorder 1, %s20
    %p412 = scmp.lt.s32.totalorder %s20, 5
    %p413 = pnand %p411, %p412
    %p414 = pneg %p413
    // Predicated region
    $region73: #{agcn_forward.4} parent=5 // pred_check
      _
    $region74: #{agcn_forward.4} parent=5 // pred_check_branch
      %416 = sbr.rel (%p413) target = $region76
    $region75: #{agcn_forward.4} parent=5 // pred_region
      %s417 = ssub.s32 %s20, 1
      %p418 = scmp.lt.s32.totalorder %s25, 3
      %s419 = scalar_select %p418, %s25, 3
      %s420 = smul.addr %s419, 16
      %s421 = smul.addr %s420, 8
      %s422 = scalar_lea.vmem %s0, %s421
      %p423 = pneg %p46
      %p424 = pneg %p43
      %p425 = pneg %p67
      %p426 = pneg %p64
      %p427 = pneg %p88
      %p428 = pneg %p85
      %p429 = pneg %p109
      %p430 = pneg %p106
      %p431 = pneg %p130
      %p432 = pneg %p127
      %p433 = pneg %p151
      %p434 = pneg %p148
      %p435 = pneg %p172
      %p436 = pneg %p169
      %p437 = pneg %p193
      %p438 = pneg %p190
      %p439 = pneg %p214
      %p440 = pneg %p211
      %p441 = pneg %p235
      %p442 = pneg %p232
      %p443 = pneg %p256
      %p444 = pneg %p253
      %p445 = pneg %p277
      %p446 = pneg %p274
      %p447 = pneg %p298
      %p448 = pneg %p295
      %p449 = pneg %p319
      %p450 = pneg %p316
      %p451 = pneg %p345
      %p452 = pneg %p342
      %p453 = scmp.lt.s32.totalorder %s25, 3
      %s454 = scalar_select %p453, %s25, 3
      %s455 = smul.addr %s454, 16
      %s456 = smul.addr %s455, 8
      %s457 = scalar_lea.vmem %s14, %s456
      %p458 = scmp.lt.s32.totalorder %s25, 3
      %s459 = scalar_select %p458, %s25, 3
      %s460 = smul.addr %s459, 16
      %s461 = smul.addr %s460, 8
      %s462 = scalar_lea.vmem %s0, %s461
      %p463 = scmp.lt.s32.totalorder %s25, 3
      %s464 = scalar_select %p463, %s25, 3
      %s465 = smul.addr %s464, 16
      %s466 = smul.addr %s465, 8
      %s467 = scalar_lea.vmem %s14, %s466
      %v469 = vld [vmem:[%s462] sm:$0xff]
      %v470 = vld [vmem:[%s462 + $0x8] sm:$0xff]
      %v471 = vld [vmem:[%s462 + $0x10] sm:$0xff]
      %v472 = vld [vmem:[%s462 + $0x18] sm:$0xff]
      %v473 = vld [vmem:[%s462 + $0x20] sm:$0xff]
      %v474 = vld [vmem:[%s462 + $0x28] sm:$0xff]
      %v475 = vld [vmem:[%s462 + $0x30] sm:$0xff]
      %v476 = vld [vmem:[%s462 + $0x38] sm:$0xff]
      %v477 = vld [vmem:[%s462 + $0x40] sm:$0xff]
      %v478 = vld [vmem:[%s462 + $0x48] sm:$0xff]
      %v479 = vld [vmem:[%s462 + $0x50] sm:$0xff]
      %v480 = vld [vmem:[%s462 + $0x58] sm:$0xff]
      %v481 = vld [vmem:[%s462 + $0x60] sm:$0xff]
      %v482 = vld [vmem:[%s462 + $0x68] sm:$0xff]
      %v483 = vld [vmem:[%s462 + $0x70] sm:$0xff]
      %v484 = vld [vmem:[%s462 + $0x78] sm:$0xff]
      %v485 = vld [vmem:[%s1] sm:$0xff]
      %v486 = vld [vmem:[%s1 + $0x8] sm:$0xff]
      %v487 = vmul.f32 %v469, %v485
      %v488 = vmul.f32 %v470, %v486
      %v489 = vmul.f32 %v471, %v485
      %v490 = vmul.f32 %v472, %v486
      %v491 = vmul.f32 %v473, %v485
      %v492 = vmul.f32 %v474, %v486
      %v493 = vmul.f32 %v475, %v485
      %v494 = vmul.f32 %v476, %v486
      %v495 = vmul.f32 %v477, %v485
      %v496 = vmul.f32 %v478, %v486
      %v497 = vmul.f32 %v479, %v485
      %v498 = vmul.f32 %v480, %v486
      %v499 = vmul.f32 %v481, %v485
      %v500 = vmul.f32 %v482, %v486
      %v501 = vmul.f32 %v483, %v485
      %v502 = vmul.f32 %v484, %v486
      %v503 = vld [vmem:[%s2] sm:$0xff]
      %v504 = vld [vmem:[%s2 + $0x8] sm:$0xff]
      %v505 = vadd.f32 %v487, %v503
      %v506 = vadd.f32 %v488, %v504
      %v507 = vadd.f32 %v489, %v503
      %v508 = vadd.f32 %v490, %v504
      %v509 = vadd.f32 %v491, %v503
      %v510 = vadd.f32 %v492, %v504
      %v511 = vadd.f32 %v493, %v503
      %v512 = vadd.f32 %v494, %v504
      %v513 = vadd.f32 %v495, %v503
      %v514 = vadd.f32 %v496, %v504
      %v515 = vadd.f32 %v497, %v503
      %v516 = vadd.f32 %v498, %v504
      %v517 = vadd.f32 %v499, %v503
      %v518 = vadd.f32 %v500, %v504
      %v519 = vadd.f32 %v501, %v503
      %v520 = vadd.f32 %v502, %v504
      %v521 = vpack.c.bf16 %v506, %v505
      %v522 = vpack.c.bf16 %v508, %v507
      %v523 = vpack.c.bf16 %v510, %v509
      %v524 = vpack.c.bf16 %v512, %v511
      %v525 = vpack.c.bf16 %v514, %v513
      %v526 = vpack.c.bf16 %v516, %v515
      %v527 = vpack.c.bf16 %v518, %v517
      %v528 = vpack.c.bf16 %v520, %v519
      %v529 = vld [vmem:[%s3] sm:$0x3]
      %v530 = vld [vmem:[%s4] sm:$0x1]
      %v532 = vlaneseq
      %v533 = vshrl.u32 %v532, 7
      %v534 = vsub.s32 0, %v533
      %v535 = vrot.slane %v530, %v534
      %vm537 = vcmask 23552
      %v539 = vsel %vm537, %v521, 0
      %v542 = vsel %vm537, %v522, 0
      %v545 = vsel %vm537, %v523, 0
      %v548 = vsel %vm537, %v524, 0
      %v551 = vsel %vm537, %v525, 0
      %v554 = vsel %vm537, %v526, 0
      %v557 = vsel %vm537, %v527, 0
      %v560 = vsel %vm537, %v528, 0
      %vm562 = vcmask 1040384
      %vm563 = vcmask 1041408
      %v564 = vsel %vm562, 4294967295, 65535
      %v565 = vsel %vm563, %v564, 0
      %v567 = vand.u32 %v529, %v565
      %569 = vmatprep.subr.bf16.mxu0 0
      %570 = vmatpush1.bf16.msra.mxu0 %v567
      %571 = vmatprep.subr.bf16.mxu0 0
      %572 = vmatpush1.bf16.msra.mxu0 0
      %573 = vmatprep.subr.bf16.mxu0 0
      %574 = vmatpush1.bf16.msra.mxu0 0
      %575 = vmatprep.subr.bf16.mxu0 0
      %576 = vmatpush1.bf16.msra.mxu0 0
      %577 = vmatprep.subr.bf16.mxu0 0
      %578 = vmatpush1.bf16.msra.mxu0 0
      %579 = vmatprep.subr.bf16.mxu0 0
      %580 = vmatpush1.bf16.msra.mxu0 0
      %581 = vmatprep.subr.bf16.mxu0 0
      %582 = vmatpush1.bf16.msra.mxu0 0
      %583 = vmatprep.subr.bf16.mxu0 0
      %584 = vmatpush1.bf16.msra.mxu0 0
      %585 = vmatprep.subr.bf16.mxu0 0
      %586 = vmatpush1.bf16.msra.mxu0 0
      %587 = vmatprep.subr.bf16.mxu0 0
      %588 = vmatpush1.bf16.msra.mxu0 0
      %589 = vmatprep.subr.bf16.mxu0 0
      %590 = vmatpush1.bf16.msra.mxu0 0
      %591 = vmatprep.subr.bf16.mxu0 0
      %592 = vmatpush1.bf16.msra.mxu0 0
      %593 = vmatprep.subr.bf16.mxu0 0
      %594 = vmatpush1.bf16.msra.mxu0 0
      %595 = vmatprep.subr.bf16.mxu0 0
      %596 = vmatpush1.bf16.msra.mxu0 0
      %597 = vmatprep.subr.bf16.mxu0 0
      %598 = vmatpush1.bf16.msra.mxu0 0
      %599 = vmatprep.subr.bf16.mxu0 0
      %600 = vmatpush1.bf16.msra.mxu0 0
      %601 = vmatprep.mubr.bf16.mxu0 0
      %602 = vmatmul.mubr.bf16.gmra.mrb[0].mxu0 %v539
      %v603 = vpop.f32.mrb[0].mxu0
      %v604 = vadd.f32 %v535, %v603
      %v605 = vpop.f32.mrb[0].mxu0
      %v606 = vpop.f32.mrb[0].mxu0
      %v607 = vadd.f32 %v535, %v606
      %v608 = vpop.f32.mrb[0].mxu0
      %609 = vmatprep.mubr.bf16.mxu0 0
      %610 = vmatmul.mubr.bf16.gmra.mrb[0].mxu0 %v542
      %v611 = vpop.f32.mrb[0].mxu0
      %v612 = vadd.f32 %v535, %v611
      %v613 = vpop.f32.mrb[0].mxu0
      %v614 = vpop.f32.mrb[0].mxu0
      %v615 = vadd.f32 %v535, %v614
      %v616 = vpop.f32.mrb[0].mxu0
      %617 = vmatprep.mubr.bf16.mxu0 0
      %618 = vmatmul.mubr.bf16.gmra.mrb[0].mxu0 %v545
      %v619 = vpop.f32.mrb[0].mxu0
      %v620 = vadd.f32 %v535, %v619
      %v621 = vpop.f32.mrb[0].mxu0
      %v622 = vpop.f32.mrb[0].mxu0
      %v623 = vadd.f32 %v535, %v622
      %v624 = vpop.f32.mrb[0].mxu0
      %625 = vmatprep.mubr.bf16.mxu0 0
      %626 = vmatmul.mubr.bf16.gmra.mrb[0].mxu0 %v548
      %v627 = vpop.f32.mrb[0].mxu0
      %v628 = vadd.f32 %v535, %v627
      %v629 = vpop.f32.mrb[0].mxu0
      %v630 = vpop.f32.mrb[0].mxu0
      %v631 = vadd.f32 %v535, %v630
      %v632 = vpop.f32.mrb[0].mxu0
      %633 = vmatprep.mubr.bf16.mxu0 0
      %634 = vmatmul.mubr.bf16.gmra.mrb[0].mxu0 %v551
      %v635 = vpop.f32.mrb[0].mxu0
      %v636 = vadd.f32 %v535, %v635
      %v637 = vpop.f32.mrb[0].mxu0
      %v638 = vpop.f32.mrb[0].mxu0
      %v639 = vadd.f32 %v535, %v638
      %v640 = vpop.f32.mrb[0].mxu0
      %641 = vmatprep.mubr.bf16.mxu0 0
      %642 = vmatmul.mubr.bf16.gmra.mrb[0].mxu0 %v554
      %v643 = vpop.f32.mrb[0].mxu0
      %v644 = vadd.f32 %v535, %v643
      %v645 = vpop.f32.mrb[0].mxu0
      %v646 = vpop.f32.mrb[0].mxu0
      %v647 = vadd.f32 %v535, %v646
      %v648 = vpop.f32.mrb[0].mxu0
      %649 = vmatprep.mubr.bf16.mxu0 0
      %650 = vmatmul.mubr.bf16.gmra.mrb[0].mxu0 %v557
      %v651 = vpop.f32.mrb[0].mxu0
      %v652 = vadd.f32 %v535, %v651
      %v653 = vpop.f32.mrb[0].mxu0
      %v654 = vpop.f32.mrb[0].mxu0
      %v655 = vadd.f32 %v535, %v654
      %v656 = vpop.f32.mrb[0].mxu0
      %657 = vmatprep.mubr.bf16.mxu0 0
      %658 = vmatmul.mubr.bf16.gmra.mrb[0].mxu0 %v560
      %v659 = vpop.f32.mrb[0].mxu0
      %v660 = vadd.f32 %v535, %v659
      %v661 = vpop.f32.mrb[0].mxu0
      %v662 = vpop.f32.mrb[0].mxu0
      %v663 = vadd.f32 %v535, %v662
      %v664 = vpop.f32.mrb[0].mxu0
      %665 = vdwg.mxu0
      %v666 = vld [vmem:[%s5] sm:$0x3]
      %v667 = vld [vmem:[%s6] sm:$0x1]
      %v669 = vlaneseq
      %v670 = vshrl.u32 %v669, 7
      %v671 = vsub.s32 0, %v670
      %v672 = vrot.slane %v667, %v671
      %v675 = vand.u32 %v666, %v565
      %677 = vmatprep.subr.bf16.mxu0 0
      %678 = vmatpush1.bf16.msra.mxu0 %v675
      %679 = vmatprep.subr.bf16.mxu0 0
      %680 = vmatpush1.bf16.msra.mxu0 0
      %681 = vmatprep.subr.bf16.mxu0 0
      %682 = vmatpush1.bf16.msra.mxu0 0
      %683 = vmatprep.subr.bf16.mxu0 0
      %684 = vmatpush1.bf16.msra.mxu0 0
      %685 = vmatprep.subr.bf16.mxu0 0
      %686 = vmatpush1.bf16.msra.mxu0 0
      %687 = vmatprep.subr.bf16.mxu0 0
      %688 = vmatpush1.bf16.msra.mxu0 0
      %689 = vmatprep.subr.bf16.mxu0 0
      %690 = vmatpush1.bf16.msra.mxu0 0
      %691 = vmatprep.subr.bf16.mxu0 0
      %692 = vmatpush1.bf16.msra.mxu0 0
      %693 = vmatprep.subr.bf16.mxu0 0
      %694 = vmatpush1.bf16.msra.mxu0 0
      %695 = vmatprep.subr.bf16.mxu0 0
      %696 = vmatpush1.bf16.msra.mxu0 0
      %697 = vmatprep.subr.bf16.mxu0 0
      %698 = vmatpush1.bf16.msra.mxu0 0
      %699 = vmatprep.subr.bf16.mxu0 0
      %700 = vmatpush1.bf16.msra.mxu0 0
      %701 = vmatprep.subr.bf16.mxu0 0
      %702 = vmatpush1.bf16.msra.mxu0 0
      %703 = vmatprep.subr.bf16.mxu0 0
      %704 = vmatpush1.bf16.msra.mxu0 0
      %705 = vmatprep.subr.bf16.mxu0 0
      %706 = vmatpush1.bf16.msra.mxu0 0
      %707 = vmatprep.subr.bf16.mxu0 0
      %708 = vmatpush1.bf16.msra.mxu0 0
      %709 = vmatprep.mubr.bf16.mxu0 0
      %710 = vmatmul.mubr.bf16.gmra.mrb[0].mxu0 %v539
      %v711 = vpop.f32.mrb[0].mxu0
      %v712 = vadd.f32 %v672, %v711
      %v713 = vpop.f32.mrb[0].mxu0
      %v714 = vpop.f32.mrb[0].mxu0
      %v715 = vadd.f32 %v672, %v714
      %v716 = vpop.f32.mrb[0].mxu0
      %717 = vmatprep.mubr.bf16.mxu0 0
      %718 = vmatmul.mubr.bf16.gmra.mrb[0].mxu0 %v542
      %v719 = vpop.f32.mrb[0].mxu0
      %v720 = vadd.f32 %v672, %v719
      %v721 = vpop.f32.mrb[0].mxu0
      %v722 = vpop.f32.mrb[0].mxu0
      %v723 = vadd.f32 %v672, %v722
      %v724 = vpop.f32.mrb[0].mxu0
      %725 = vmatprep.mubr.bf16.mxu0 0
      %726 = vmatmul.mubr.bf16.gmra.mrb[0].mxu0 %v545
      %v727 = vpop.f32.mrb[0].mxu0
      %v728 = vadd.f32 %v672, %v727
      %v729 = vpop.f32.mrb[0].mxu0
      %v730 = vpop.f32.mrb[0].mxu0
      %v731 = vadd.f32 %v672, %v730
      %v732 = vpop.f32.mrb[0].mxu0
      %733 = vmatprep.mubr.bf16.mxu0 0
      %734 = vmatmul.mubr.bf16.gmra.mrb[0].mxu0 %v548
      %v735 = vpop.f32.mrb[0].mxu0
      %v736 = vadd.f32 %v672, %v735
      %v737 = vpop.f32.mrb[0].mxu0
      %v738 = vpop.f32.mrb[0].mxu0
      %v739 = vadd.f32 %v672, %v738
      %v740 = vpop.f32.mrb[0].mxu0
      %741 = vmatprep.mubr.bf16.mxu0 0
      %742 = vmatmul.mubr.bf16.gmra.mrb[0].mxu0 %v551
      %v743 = vpop.f32.mrb[0].mxu0
      %v744 = vadd.f32 %v672, %v743
      %v745 = vpop.f32.mrb[0].mxu0
      %v746 = vpop.f32.mrb[0].mxu0
      %v747 = vadd.f32 %v672, %v746
      %v748 = vpop.f32.mrb[0].mxu0
      %749 = vmatprep.mubr.bf16.mxu0 0
      %750 = vmatmul.mubr.bf16.gmra.mrb[0].mxu0 %v554
      %v751 = vpop.f32.mrb[0].mxu0
      %v752 = vadd.f32 %v672, %v751
      %v753 = vpop.f32.mrb[0].mxu0
      %v754 = vpop.f32.mrb[0].mxu0
      %v755 = vadd.f32 %v672, %v754
      %v756 = vpop.f32.mrb[0].mxu0
      %757 = vmatprep.mubr.bf16.mxu0 0
      %758 = vmatmul.mubr.bf16.gmra.mrb[0].mxu0 %v557
      %v759 = vpop.f32.mrb[0].mxu0
      %v760 = vadd.f32 %v672, %v759
      %v761 = vpop.f32.mrb[0].mxu0
      %v762 = vpop.f32.mrb[0].mxu0
      %v763 = vadd.f32 %v672, %v762
      %v764 = vpop.f32.mrb[0].mxu0
      %765 = vmatprep.mubr.bf16.mxu0 0
      %766 = vmatmul.mubr.bf16.gmra.mrb[0].mxu0 %v560
      %v767 = vpop.f32.mrb[0].mxu0
      %v768 = vadd.f32 %v672, %v767
      %v769 = vpop.f32.mrb[0].mxu0
      %v770 = vpop.f32.mrb[0].mxu0
      %v771 = vadd.f32 %v672, %v770
      %v772 = vpop.f32.mrb[0].mxu0
      %773 = vdwg.mxu0
      %v774 = vpack.c.bf16 %v607, %v604
      %v775 = vpack.c.bf16 %v615, %v612
      %v776 = vpack.c.bf16 %v623, %v620
      %v777 = vpack.c.bf16 %v631, %v628
      %v778 = vpack.c.bf16 %v639, %v636
      %v779 = vpack.c.bf16 %v647, %v644
      %v780 = vpack.c.bf16 %v655, %v652
      %v781 = vpack.c.bf16 %v663, %v660
      %v782 = vpack.c.bf16 %v715, %v712
      %v783 = vpack.c.bf16 %v723, %v720
      %v784 = vpack.c.bf16 %v731, %v728
      %v785 = vpack.c.bf16 %v739, %v736
      %v786 = vpack.c.bf16 %v747, %v744
      %v787 = vpack.c.bf16 %v755, %v752
      %v788 = vpack.c.bf16 %v763, %v760
      %v789 = vpack.c.bf16 %v771, %v768
      %vm790 = vcmask 130048
      %v792 = vsel %vm790, %v782, 0
      %v795 = vsel %vm790, %v774, 0
      %797 = vmatprep.subr.bf16.mxu0 0
      %798 = vmatpush1.bf16.xpose.msra.mxu0 %v795
      %799 = vmatprep.subr.bf16.mxu0 0
      %800 = vmatpush1.bf16.xpose.msra.mxu0 0
      %801 = vmatprep.subr.bf16.mxu0 0
      %802 = vmatpush1.bf16.xpose.msra.mxu0 0
      %803 = vmatprep.subr.bf16.mxu0 0
      %804 = vmatpush1.bf16.xpose.msra.mxu0 0
      %805 = vmatprep.subr.bf16.mxu0 0
      %806 = vmatpush1.bf16.xpose.msra.mxu0 0
      %807 = vmatprep.subr.bf16.mxu0 0
      %808 = vmatpush1.bf16.xpose.msra.mxu0 0
      %809 = vmatprep.subr.bf16.mxu0 0
      %810 = vmatpush1.bf16.xpose.msra.mxu0 0
      %811 = vmatprep.subr.bf16.mxu0 0
      %812 = vmatpush1.bf16.xpose.msra.mxu0 0
      %813 = vmatprep.subr.bf16.mxu0 0
      %814 = vmatpush1.bf16.xpose.msra.mxu0 0
      %815 = vmatprep.subr.bf16.mxu0 0
      %816 = vmatpush1.bf16.xpose.msra.mxu0 0
      %817 = vmatprep.subr.bf16.mxu0 0
      %818 = vmatpush1.bf16.xpose.msra.mxu0 0
      %819 = vmatprep.subr.bf16.mxu0 0
      %820 = vmatpush1.bf16.xpose.msra.mxu0 0
      %821 = vmatprep.subr.bf16.mxu0 0
      %822 = vmatpush1.bf16.xpose.msra.mxu0 0
      %823 = vmatprep.subr.bf16.mxu0 0
      %824 = vmatpush1.bf16.xpose.msra.mxu0 0
      %825 = vmatprep.subr.bf16.mxu0 0
      %826 = vmatpush1.bf16.xpose.msra.mxu0 0
      %827 = vmatprep.subr.bf16.mxu0 0
      %828 = vmatpush1.bf16.xpose.msra.mxu0 0
      %829 = vmatprep.mubr.bf16.mxu0 0
      %830 = vmatmul.mubr.bf16.gmra.mrb[0].mxu0 %v792
      %v831 = vpop.f32.mrb[0].mxu0
      %v832 = vadd.f32 0.0, %v831
      %v833 = vpop.f32.mrb[0].mxu0
      %v834 = vpop.f32.mrb[0].mxu0
      %v835 = vadd.f32 0.0, %v834
      %v836 = vpop.f32.mrb[0].mxu0
      %837 = vdwg.mxu0
      %v839 = vsel %vm790, %v783, 0
      %v842 = vsel %vm790, %v775, 0
      %844 = vmatprep.subr.bf16.mxu0 0
      %845 = vmatpush1.bf16.xpose.msra.mxu0 %v842
      %846 = vmatprep.subr.bf16.mxu0 0
      %847 = vmatpush1.bf16.xpose.msra.mxu0 0
      %848 = vmatprep.subr.bf16.mxu0 0
      %849 = vmatpush1.bf16.xpose.msra.mxu0 0
      %850 = vmatprep.subr.bf16.mxu0 0
      %851 = vmatpush1.bf16.xpose.msra.mxu0 0
      %852 = vmatprep.subr.bf16.mxu0 0
      %853 = vmatpush1.bf16.xpose.msra.mxu0 0
      %854 = vmatprep.subr.bf16.mxu0 0
      %855 = vmatpush1.bf16.xpose.msra.mxu0 0
      %856 = vmatprep.subr.bf16.mxu0 0
      %857 = vmatpush1.bf16.xpose.msra.mxu0 0
      %858 = vmatprep.subr.bf16.mxu0 0
      %859 = vmatpush1.bf16.xpose.msra.mxu0 0
      %860 = vmatprep.subr.bf16.mxu0 0
      %861 = vmatpush1.bf16.xpose.msra.mxu0 0
      %862 = vmatprep.subr.bf16.mxu0 0
      %863 = vmatpush1.bf16.xpose.msra.mxu0 0
      %864 = vmatprep.subr.bf16.mxu0 0
      %865 = vmatpush1.bf16.xpose.msra.mxu0 0
      %866 = vmatprep.subr.bf16.mxu0 0
      %867 = vmatpush1.bf16.xpose.msra.mxu0 0
      %868 = vmatprep.subr.bf16.mxu0 0
      %869 = vmatpush1.bf16.xpose.msra.mxu0 0
      %870 = vmatprep.subr.bf16.mxu0 0
      %871 = vmatpush1.bf16.xpose.msra.mxu0 0
      %872 = vmatprep.subr.bf16.mxu0 0
      %873 = vmatpush1.bf16.xpose.msra.mxu0 0
      %874 = vmatprep.subr.bf16.mxu0 0
      %875 = vmatpush1.bf16.xpose.msra.mxu0 0
      %876 = vmatprep.mubr.bf16.mxu0 0
      %877 = vmatmul.mubr.bf16.gmra.mrb[0].mxu0 %v839
      %v878 = vpop.f32.mrb[0].mxu0
      %v879 = vadd.f32 0.0, %v878
      %v880 = vpop.f32.mrb[0].mxu0
      %v881 = vpop.f32.mrb[0].mxu0
      %v882 = vadd.f32 0.0, %v881
      %v883 = vpop.f32.mrb[0].mxu0
      %884 = vdwg.mxu0
      %v886 = vsel %vm790, %v784, 0
      %v889 = vsel %vm790, %v776, 0
      %891 = vmatprep.subr.bf16.mxu0 0
      %892 = vmatpush1.bf16.xpose.msra.mxu0 %v889
      %893 = vmatprep.subr.bf16.mxu0 0
      %894 = vmatpush1.bf16.xpose.msra.mxu0 0
      %895 = vmatprep.subr.bf16.mxu0 0
      %896 = vmatpush1.bf16.xpose.msra.mxu0 0
      %897 = vmatprep.subr.bf16.mxu0 0
      %898 = vmatpush1.bf16.xpose.msra.mxu0 0
      %899 = vmatprep.subr.bf16.mxu0 0
      %900 = vmatpush1.bf16.xpose.msra.mxu0 0
      %901 = vmatprep.subr.bf16.mxu0 0
      %902 = vmatpush1.bf16.xpose.msra.mxu0 0
      %903 = vmatprep.subr.bf16.mxu0 0
      %904 = vmatpush1.bf16.xpose.msra.mxu0 0
      %905 = vmatprep.subr.bf16.mxu0 0
      %906 = vmatpush1.bf16.xpose.msra.mxu0 0
      %907 = vmatprep.subr.bf16.mxu0 0
      %908 = vmatpush1.bf16.xpose.msra.mxu0 0
      %909 = vmatprep.subr.bf16.mxu0 0
      %910 = vmatpush1.bf16.xpose.msra.mxu0 0
      %911 = vmatprep.subr.bf16.mxu0 0
      %912 = vmatpush1.bf16.xpose.msra.mxu0 0
      %913 = vmatprep.subr.bf16.mxu0 0
      %914 = vmatpush1.bf16.xpose.msra.mxu0 0
      %915 = vmatprep.subr.bf16.mxu0 0
      %916 = vmatpush1.bf16.xpose.msra.mxu0 0
      %917 = vmatprep.subr.bf16.mxu0 0
      %918 = vmatpush1.bf16.xpose.msra.mxu0 0
      %919 = vmatprep.subr.bf16.mxu0 0
      %920 = vmatpush1.bf16.xpose.msra.mxu0 0
      %921 = vmatprep.subr.bf16.mxu0 0
      %922 = vmatpush1.bf16.xpose.msra.mxu0 0
      %923 = vmatprep.mubr.bf16.mxu0 0
      %924 = vmatmul.mubr.bf16.gmra.mrb[0].mxu0 %v886
      %v925 = vpop.f32.mrb[0].mxu0
      %v926 = vadd.f32 0.0, %v925
      %v927 = vpop.f32.mrb[0].mxu0
      %v928 = vpop.f32.mrb[0].mxu0
      %v929 = vadd.f32 0.0, %v928
      %v930 = vpop.f32.mrb[0].mxu0
      %931 = vdwg.mxu0
      %v933 = vsel %vm790, %v785, 0
      %v936 = vsel %vm790, %v777, 0
      %938 = vmatprep.subr.bf16.mxu0 0
      %939 = vmatpush1.bf16.xpose.msra.mxu0 %v936
      %940 = vmatprep.subr.bf16.mxu0 0
      %941 = vmatpush1.bf16.xpose.msra.mxu0 0
      %942 = vmatprep.subr.bf16.mxu0 0
      %943 = vmatpush1.bf16.xpose.msra.mxu0 0
      %944 = vmatprep.subr.bf16.mxu0 0
      %945 = vmatpush1.bf16.xpose.msra.mxu0 0
      %946 = vmatprep.subr.bf16.mxu0 0
      %947 = vmatpush1.bf16.xpose.msra.mxu0 0
      %948 = vmatprep.subr.bf16.mxu0 0
      %949 = vmatpush1.bf16.xpose.msra.mxu0 0
      %950 = vmatprep.subr.bf16.mxu0 0
      %951 = vmatpush1.bf16.xpose.msra.mxu0 0
      %952 = vmatprep.subr.bf16.mxu0 0
      %953 = vmatpush1.bf16.xpose.msra.mxu0 0
      %954 = vmatprep.subr.bf16.mxu0 0
      %955 = vmatpush1.bf16.xpose.msra.mxu0 0
      %956 = vmatprep.subr.bf16.mxu0 0
      %957 = vmatpush1.bf16.xpose.msra.mxu0 0
      %958 = vmatprep.subr.bf16.mxu0 0
      %959 = vmatpush1.bf16.xpose.msra.mxu0 0
      %960 = vmatprep.subr.bf16.mxu0 0
      %961 = vmatpush1.bf16.xpose.msra.mxu0 0
      %962 = vmatprep.subr.bf16.mxu0 0
      %963 = vmatpush1.bf16.xpose.msra.mxu0 0
      %964 = vmatprep.subr.bf16.mxu0 0
      %965 = vmatpush1.bf16.xpose.msra.mxu0 0
      %966 = vmatprep.subr.bf16.mxu0 0
      %967 = vmatpush1.bf16.xpose.msra.mxu0 0
      %968 = vmatprep.subr.bf16.mxu0 0
      %969 = vmatpush1.bf16.xpose.msra.mxu0 0
      %970 = vmatprep.mubr.bf16.mxu0 0
      %971 = vmatmul.mubr.bf16.gmra.mrb[0].mxu0 %v933
      %v972 = vpop.f32.mrb[0].mxu0
      %v973 = vadd.f32 0.0, %v972
      %v974 = vpop.f32.mrb[0].mxu0
      %v975 = vpop.f32.mrb[0].mxu0
      %v976 = vadd.f32 0.0, %v975
      %v977 = vpop.f32.mrb[0].mxu0
      %978 = vdwg.mxu0
      %v980 = vsel %vm790, %v786, 0
      %v983 = vsel %vm790, %v778, 0
      %985 = vmatprep.subr.bf16.mxu0 0
      %986 = vmatpush1.bf16.xpose.msra.mxu0 %v983
      %987 = vmatprep.subr.bf16.mxu0 0
      %988 = vmatpush1.bf16.xpose.msra.mxu0 0
      %989 = vmatprep.subr.bf16.mxu0 0
      %990 = vmatpush1.bf16.xpose.msra.mxu0 0
      %991 = vmatprep.subr.bf16.mxu0 0
      %992 = vmatpush1.bf16.xpose.msra.mxu0 0
      %993 = vmatprep.subr.bf16.mxu0 0
      %994 = vmatpush1.bf16.xpose.msra.mxu0 0
      %995 = vmatprep.subr.bf16.mxu0 0
      %996 = vmatpush1.bf16.xpose.msra.mxu0 0
      %997 = vmatprep.subr.bf16.mxu0 0
      %998 = vmatpush1.bf16.xpose.msra.mxu0 0
      %999 = vmatprep.subr.bf16.mxu0 0
      %1000 = vmatpush1.bf16.xpose.msra.mxu0 0
      %1001 = vmatprep.subr.bf16.mxu0 0
      %1002 = vmatpush1.bf16.xpose.msra.mxu0 0
      %1003 = vmatprep.subr.bf16.mxu0 0
      %1004 = vmatpush1.bf16.xpose.msra.mxu0 0
      %1005 = vmatprep.subr.bf16.mxu0 0
      %1006 = vmatpush1.bf16.xpose.msra.mxu0 0
      %1007 = vmatprep.subr.bf16.mxu0 0
      %1008 = vmatpush1.bf16.xpose.msra.mxu0 0
      %1009 = vmatprep.subr.bf16.mxu0 0
      %1010 = vmatpush1.bf16.xpose.msra.mxu0 0
      %1011 = vmatprep.subr.bf16.mxu0 0
      %1012 = vmatpush1.bf16.xpose.msra.mxu0 0
      %1013 = vmatprep.subr.bf16.mxu0 0
      %1014 = vmatpush1.bf16.xpose.msra.mxu0 0
      %1015 = vmatprep.subr.bf16.mxu0 0
      %1016 = vmatpush1.bf16.xpose.msra.mxu0 0
      %1017 = vmatprep.mubr.bf16.mxu0 0
      %1018 = vmatmul.mubr.bf16.gmra.mrb[0].mxu0 %v980
      %v1019 = vpop.f32.mrb[0].mxu0
      %v1020 = vadd.f32 0.0, %v1019
      %v1021 = vpop.f32.mrb[0].mxu0
      %v1022 = vpop.f32.mrb[0].mxu0
      %v1023 = vadd.f32 0.0, %v1022
      %v1024 = vpop.f32.mrb[0].mxu0
      %1025 = vdwg.mxu0
      %v1027 = vsel %vm790, %v787, 0
      %v1030 = vsel %vm790, %v779, 0
      %1032 = vmatprep.subr.bf16.mxu0 0
      %1033 = vmatpush1.bf16.xpose.msra.mxu0 %v1030
      %1034 = vmatprep.subr.bf16.mxu0 0
      %1035 = vmatpush1.bf16.xpose.msra.mxu0 0
      %1036 = vmatprep.subr.bf16.mxu0 0
      %1037 = vmatpush1.bf16.xpose.msra.mxu0 0
      %1038 = vmatprep.subr.bf16.mxu0 0
      %1039 = vmatpush1.bf16.xpose.msra.mxu0 0
      %1040 = vmatprep.subr.bf16.mxu0 0
      %1041 = vmatpush1.bf16.xpose.msra.mxu0 0
      %1042 = vmatprep.subr.bf16.mxu0 0
      %1043 = vmatpush1.bf16.xpose.msra.mxu0 0
      %1044 = vmatprep.subr.bf16.mxu0 0
      %1045 = vmatpush1.bf16.xpose.msra.mxu0 0
      %1046 = vmatprep.subr.bf16.mxu0 0
      %1047 = vmatpush1.bf16.xpose.msra.mxu0 0
      %1048 = vmatprep.subr.bf16.mxu0 0
      %1049 = vmatpush1.bf16.xpose.msra.mxu0 0
      %1050 = vmatprep.subr.bf16.mxu0 0
      %1051 = vmatpush1.bf16.xpose.msra.mxu0 0
      %1052 = vmatprep.subr.bf16.mxu0 0
      %1053 = vmatpush1.bf16.xpose.msra.mxu0 0
      %1054 = vmatprep.subr.bf16.mxu0 0
      %1055 = vmatpush1.bf16.xpose.msra.mxu0 0
      %1056 = vmatprep.subr.bf16.mxu0 0
      %1057 = vmatpush1.bf16.xpose.msra.mxu0 0
      %1058 = vmatprep.subr.bf16.mxu0 0
      %1059 = vmatpush1.bf16.xpose.msra.mxu0 0
      %1060 = vmatprep.subr.bf16.mxu0 0
      %1061 = vmatpush1.bf16.xpose.msra.mxu0 0
      %1062 = vmatprep.subr.bf16.mxu0 0
      %1063 = vmatpush1.bf16.xpose.msra.mxu0 0
      %1064 = vmatprep.mubr.bf16.mxu0 0
      %1065 = vmatmul.mubr.bf16.gmra.mrb[0].mxu0 %v1027
      %v1066 = vpop.f32.mrb[0].mxu0
      %v1067 = vadd.f32 0.0, %v1066
      %v1068 = vpop.f32.mrb[0].mxu0
      %v1069 = vpop.f32.mrb[0].mxu0
      %v1070 = vadd.f32 0.0, %v1069
      %v1071 = vpop.f32.mrb[0].mxu0
      %1072 = vdwg.mxu0
      %v1074 = vsel %vm790, %v788, 0
      %v1077 = vsel %vm790, %v780, 0
      %1079 = vmatprep.subr.bf16.mxu0 0
      %1080 = vmatpush1.bf16.xpose.msra.mxu0 %v1077
      %1081 = vmatprep.subr.bf16.mxu0 0
      %1082 = vmatpush1.bf16.xpose.msra.mxu0 0
      %1083 = vmatprep.subr.bf16.mxu0 0
      %1084 = vmatpush1.bf16.xpose.msra.mxu0 0
      %1085 = vmatprep.subr.bf16.mxu0 0
      %1086 = vmatpush1.bf16.xpose.msra.mxu0 0
      %1087 = vmatprep.subr.bf16.mxu0 0
      %1088 = vmatpush1.bf16.xpose.msra.mxu0 0
      %1089 = vmatprep.subr.bf16.mxu0 0
      %1090 = vmatpush1.bf16.xpose.msra.mxu0 0
      %1091 = vmatprep.subr.bf16.mxu0 0
      %1092 = vmatpush1.bf16.xpose.msra.mxu0 0
      %1093 = vmatprep.subr.bf16.mxu0 0
      %1094 = vmatpush1.bf16.xpose.msra.mxu0 0
      %1095 = vmatprep.subr.bf16.mxu0 0
      %1096 = vmatpush1.bf16.xpose.msra.mxu0 0
      %1097 = vmatprep.subr.bf16.mxu0 0
      %1098 = vmatpush1.bf16.xpose.msra.mxu0 0
      %1099 = vmatprep.subr.bf16.mxu0 0
      %1100 = vmatpush1.bf16.xpose.msra.mxu0 0
      %1101 = vmatprep.subr.bf16.mxu0 0
      %1102 = vmatpush1.bf16.xpose.msra.mxu0 0
      %1103 = vmatprep.subr.bf16.mxu0 0
      %1104 = vmatpush1.bf16.xpose.msra.mxu0 0
      %1105 = vmatprep.subr.bf16.mxu0 0
      %1106 = vmatpush1.bf16.xpose.msra.mxu0 0
      %1107 = vmatprep.subr.bf16.mxu0 0
      %1108 = vmatpush1.bf16.xpose.msra.mxu0 0
      %1109 = vmatprep.subr.bf16.mxu0 0
      %1110 = vmatpush1.bf16.xpose.msra.mxu0 0
      %1111 = vmatprep.mubr.bf16.mxu0 0
      %1112 = vmatmul.mubr.bf16.gmra.mrb[0].mxu0 %v1074
      %v1113 = vpop.f32.mrb[0].mxu0
      %v1114 = vadd.f32 0.0, %v1113
      %v1115 = vpop.f32.mrb[0].mxu0
      %v1116 = vpop.f32.mrb[0].mxu0
      %v1117 = vadd.f32 0.0, %v1116
      %v1118 = vpop.f32.mrb[0].mxu0
      %1119 = vdwg.mxu0
      %v1121 = vsel %vm790, %v789, 0
      %v1124 = vsel %vm790, %v781, 0
      %1126 = vmatprep.subr.bf16.mxu0 0
      %1127 = vmatpush1.bf16.xpose.msra.mxu0 %v1124
      %1128 = vmatprep.subr.bf16.mxu0 0
      %1129 = vmatpush1.bf16.xpose.msra.mxu0 0
      %1130 = vmatprep.subr.bf16.mxu0 0
      %1131 = vmatpush1.bf16.xpose.msra.mxu0 0
      %1132 = vmatprep.subr.bf16.mxu0 0
      %1133 = vmatpush1.bf16.xpose.msra.mxu0 0
      %1134 = vmatprep.subr.bf16.mxu0 0
      %1135 = vmatpush1.bf16.xpose.msra.mxu0 0
      %1136 = vmatprep.subr.bf16.mxu0 0
      %1137 = vmatpush1.bf16.xpose.msra.mxu0 0
      %1138 = vmatprep.subr.bf16.mxu0 0
      %1139 = vmatpush1.bf16.xpose.msra.mxu0 0
      %1140 = vmatprep.subr.bf16.mxu0 0
      %1141 = vmatpush1.bf16.xpose.msra.mxu0 0
      %1142 = vmatprep.subr.bf16.mxu0 0
      %1143 = vmatpush1.bf16.xpose.msra.mxu0 0
      %1144 = vmatprep.subr.bf16.mxu0 0
      %1145 = vmatpush1.bf16.xpose.msra.mxu0 0
      %1146 = vmatprep.subr.bf16.mxu0 0
      %1147 = vmatpush1.bf16.xpose.msra.mxu0 0
      %1148 = vmatprep.subr.bf16.mxu0 0
      %1149 = vmatpush1.bf16.xpose.msra.mxu0 0
      %1150 = vmatprep.subr.bf16.mxu0 0
      %1151 = vmatpush1.bf16.xpose.msra.mxu0 0
      %1152 = vmatprep.subr.bf16.mxu0 0
      %1153 = vmatpush1.bf16.xpose.msra.mxu0 0
      %1154 = vmatprep.subr.bf16.mxu0 0
      %1155 = vmatpush1.bf16.xpose.msra.mxu0 0
      %1156 = vmatprep.subr.bf16.mxu0 0
      %1157 = vmatpush1.bf16.xpose.msra.mxu0 0
      %1158 = vmatprep.mubr.bf16.mxu0 0
      %1159 = vmatmul.mubr.bf16.gmra.mrb[0].mxu0 %v1121
      %v1160 = vpop.f32.mrb[0].mxu0
      %v1161 = vadd.f32 0.0, %v1160
      %v1162 = vpop.f32.mrb[0].mxu0
      %v1163 = vpop.f32.mrb[0].mxu0
      %v1164 = vadd.f32 0.0, %v1163
      %v1165 = vpop.f32.mrb[0].mxu0
      %1166 = vdwg.mxu0
      %v1167 = vsel %vm790, %v832, 0.0
      %v1168 = vsel %vm790, %v879, 0.0
      %v1169 = vadd.f32 %v1167, %v1168
      %v1170 = vsel %vm790, %v926, 0.0
      %v1171 = vadd.f32 %v1169, %v1170
      %v1172 = vsel %vm790, %v973, 0.0
      %v1173 = vadd.f32 %v1171, %v1172
      %v1174 = vsel %vm790, %v1020, 0.0
      %v1175 = vadd.f32 %v1173, %v1174
      %v1176 = vsel %vm790, %v1067, 0.0
      %v1177 = vadd.f32 %v1175, %v1176
      %v1178 = vsel %vm790, %v1114, 0.0
      %v1179 = vadd.f32 %v1177, %v1178
      %v1180 = vsel %vm790, %v1161, 0.0
      %v1181 = vadd.f32 %v1179, %v1180
      %v1182 = vsel %vm790, %v835, 0.0
      %v1183 = vsel %vm790, %v882, 0.0
      %v1184 = vadd.f32 %v1182, %v1183
      %v1185 = vsel %vm790, %v929, 0.0
      %v1186 = vadd.f32 %v1184, %v1185
      %v1187 = vsel %vm790, %v976, 0.0
      %v1188 = vadd.f32 %v1186, %v1187
      %v1189 = vsel %vm790, %v1023, 0.0
      %v1190 = vadd.f32 %v1188, %v1189
      %v1191 = vsel %vm790, %v1070, 0.0
      %v1192 = vadd.f32 %v1190, %v1191
      %v1193 = vsel %vm790, %v1117, 0.0
      %v1194 = vadd.f32 %v1192, %v1193
      %v1195 = vsel %vm790, %v1164, 0.0
      %v1196 = vadd.f32 %v1194, %v1195
      %v1197 = vmul.f32 %v1181, 0.0078125
      %v1198 = vmul.f32 %v1196, 0.0078125
      %v1199 = vsel %vm790, %v1197, -inf
      %1200 = vmax.xlane.f32.xlu0 %v1199
      %v1201 = vpop.xlane.xlu0 %1200
      %v1202 = vsel %vm790, %v1198, -inf
      %1203 = vmax.xlane.f32.xlu0 %v1202
      %v1204 = vpop.xlane.xlu0 %1203
      %v1205 = vsub.f32 %v1197, %v1201
      %v1206 = vsub.f32 %v1198, %v1204
      %v1207 = vmul.f32 %v1205, 1.442695
      %v1208 = vpow.pop %v1207
      %v1209 = vmul.f32 %v1206, 1.442695
      %v1210 = vpow.pop %v1209
      %v1211 = vsel %vm790, %v1208, 0.0
      %1212 = vadd.xlane.f32.xlu0 %v1211
      %v1213 = vpop.xlane.xlu0 %1212
      %v1214 = vsel %vm790, %v1210, 0.0
      %1215 = vadd.xlane.f32.xlu0 %v1214
      %v1216 = vpop.xlane.xlu0 %1215
      %v1217 = vrcp.pop %v1213
      %v1218 = vmul.f32 %v1208, %v1217
      %v1219 = vrcp.pop %v1216
      %v1220 = vmul.f32 %v1210, %v1219
      %v1221 = vld [vmem:[%s7] sm:$0xff]
      %v1222 = vld [vmem:[%s7 + $0x8] sm:$0xff]
      %v1223 = vadd.f32 %v1218, %v1221
      %v1224 = vadd.f32 %v1220, %v1222
      %v1225 = vpack.c.bf16 %v1224, %v1223
      %v1227 = vsel %vm790, %v1225, 0
      %1229 = vmatprep.subr.bf16.mxu0 0
      %1230 = vmatpush1.bf16.msra.mxu0 %v521
      %1231 = vmatprep.subr.bf16.mxu0 0
      %1232 = vmatpush1.bf16.msra.mxu0 0
      %1233 = vmatprep.subr.bf16.mxu0 0
      %1234 = vmatpush1.bf16.msra.mxu0 0
      %1235 = vmatprep.subr.bf16.mxu0 0
      %1236 = vmatpush1.bf16.msra.mxu0 0
      %1237 = vmatprep.subr.bf16.mxu0 0
      %1238 = vmatpush1.bf16.msra.mxu0 0
      %1239 = vmatprep.subr.bf16.mxu0 0
      %1240 = vmatpush1.bf16.msra.mxu0 0
      %1241 = vmatprep.subr.bf16.mxu0 0
      %1242 = vmatpush1.bf16.msra.mxu0 0
      %1243 = vmatprep.subr.bf16.mxu0 0
      %1244 = vmatpush1.bf16.msra.mxu0 0
      %1245 = vmatprep.subr.bf16.mxu0 0
      %1246 = vmatpush1.bf16.msra.mxu0 0
      %1247 = vmatprep.subr.bf16.mxu0 0
      %1248 = vmatpush1.bf16.msra.mxu0 0
      %1249 = vmatprep.subr.bf16.mxu0 0
      %1250 = vmatpush1.bf16.msra.mxu0 0
      %1251 = vmatprep.subr.bf16.mxu0 0
      %1252 = vmatpush1.bf16.msra.mxu0 0
      %1253 = vmatprep.subr.bf16.mxu0 0
      %1254 = vmatpush1.bf16.msra.mxu0 0
      %1255 = vmatprep.subr.bf16.mxu0 0
      %1256 = vmatpush1.bf16.msra.mxu0 0
      %1257 = vmatprep.subr.bf16.mxu0 0
      %1258 = vmatpush1.bf16.msra.mxu0 0
      %1259 = vmatprep.subr.bf16.mxu0 0
      %1260 = vmatpush1.bf16.msra.mxu0 0
      %1261 = vmatprep.mubr.bf16.mxu0 0
      %1262 = vmatmul.mubr.bf16.gmra.mrb[0].mxu0 %v1227
      %v1263 = vpop.f32.mrb[0].mxu0
      %v1264 = vadd.f32 0.0, %v1263
      %v1265 = vpop.f32.mrb[0].mxu0
      %v1266 = vpop.f32.mrb[0].mxu0
      %v1267 = vadd.f32 0.0, %v1266
      %v1268 = vpop.f32.mrb[0].mxu0
      %1269 = vdwg.mxu0
      %1270 = vmatprep.subr.bf16.mxu0 0
      %1271 = vmatpush1.bf16.msra.mxu0 %v522
      %1272 = vmatprep.subr.bf16.mxu0 0
      %1273 = vmatpush1.bf16.msra.mxu0 0
      %1274 = vmatprep.subr.bf16.mxu0 0
      %1275 = vmatpush1.bf16.msra.mxu0 0
      %1276 = vmatprep.subr.bf16.mxu0 0
      %1277 = vmatpush1.bf16.msra.mxu0 0
      %1278 = vmatprep.subr.bf16.mxu0 0
      %1279 = vmatpush1.bf16.msra.mxu0 0
      %1280 = vmatprep.subr.bf16.mxu0 0
      %1281 = vmatpush1.bf16.msra.mxu0 0
      %1282 = vmatprep.subr.bf16.mxu0 0
      %1283 = vmatpush1.bf16.msra.mxu0 0
      %1284 = vmatprep.subr.bf16.mxu0 0
      %1285 = vmatpush1.bf16.msra.mxu0 0
      %1286 = vmatprep.subr.bf16.mxu0 0
      %1287 = vmatpush1.bf16.msra.mxu0 0
      %1288 = vmatprep.subr.bf16.mxu0 0
      %1289 = vmatpush1.bf16.msra.mxu0 0
      %1290 = vmatprep.subr.bf16.mxu0 0
      %1291 = vmatpush1.bf16.msra.mxu0 0
      %1292 = vmatprep.subr.bf16.mxu0 0
      %1293 = vmatpush1.bf16.msra.mxu0 0
      %1294 = vmatprep.subr.bf16.mxu0 0
      %1295 = vmatpush1.bf16.msra.mxu0 0
      %1296 = vmatprep.subr.bf16.mxu0 0
      %1297 = vmatpush1.bf16.msra.mxu0 0
      %1298 = vmatprep.subr.bf16.mxu0 0
      %1299 = vmatpush1.bf16.msra.mxu0 0
      %1300 = vmatprep.subr.bf16.mxu0 0
      %1301 = vmatpush1.bf16.msra.mxu0 0
      %1302 = vmatprep.mubr.bf16.mxu0 0
      %1303 = vmatmul.mubr.bf16.gmra.mrb[0].mxu0 %v1227
      %v1304 = vpop.f32.mrb[0].mxu0
      %v1305 = vadd.f32 0.0, %v1304
      %v1306 = vpop.f32.mrb[0].mxu0
      %v1307 = vpop.f32.mrb[0].mxu0
      %v1308 = vadd.f32 0.0, %v1307
      %v1309 = vpop.f32.mrb[0].mxu0
      %1310 = vdwg.mxu0
      %1311 = vmatprep.subr.bf16.mxu0 0
      %1312 = vmatpush1.bf16.msra.mxu0 %v523
      %1313 = vmatprep.subr.bf16.mxu0 0
      %1314 = vmatpush1.bf16.msra.mxu0 0
      %1315 = vmatprep.subr.bf16.mxu0 0
      %1316 = vmatpush1.bf16.msra.mxu0 0
      %1317 = vmatprep.subr.bf16.mxu0 0
      %1318 = vmatpush1.bf16.msra.mxu0 0
      %1319 = vmatprep.subr.bf16.mxu0 0
      %1320 = vmatpush1.bf16.msra.mxu0 0
      %1321 = vmatprep.subr.bf16.mxu0 0
      %1322 = vmatpush1.bf16.msra.mxu0 0
      %1323 = vmatprep.subr.bf16.mxu0 0
      %1324 = vmatpush1.bf16.msra.mxu0 0
      %1325 = vmatprep.subr.bf16.mxu0 0
      %1326 = vmatpush1.bf16.msra.mxu0 0
      %1327 = vmatprep.subr.bf16.mxu0 0
      %1328 = vmatpush1.bf16.msra.mxu0 0
      %1329 = vmatprep.subr.bf16.mxu0 0
      %1330 = vmatpush1.bf16.msra.mxu0 0
      %1331 = vmatprep.subr.bf16.mxu0 0
      %1332 = vmatpush1.bf16.msra.mxu0 0
      %1333 = vmatprep.subr.bf16.mxu0 0
      %1334 = vmatpush1.bf16.msra.mxu0 0
      %1335 = vmatprep.subr.bf16.mxu0 0
      %1336 = vmatpush1.bf16.msra.mxu0 0
      %1337 = vmatprep.subr.bf16.mxu0 0
      %1338 = vmatpush1.bf16.msra.mxu0 0
      %1339 = vmatprep.subr.bf16.mxu0 0
      %1340 = vmatpush1.bf16.msra.mxu0 0
      %1341 = vmatprep.subr.bf16.mxu0 0
      %1342 = vmatpush1.bf16.msra.mxu0 0
      %1343 = vmatprep.mubr.bf16.mxu0 0
      %1344 = vmatmul.mubr.bf16.gmra.mrb[0].mxu0 %v1227
      %v1345 = vpop.f32.mrb[0].mxu0
      %v1346 = vadd.f32 0.0, %v1345
      %v1347 = vpop.f32.mrb[0].mxu0
      %v1348 = vpop.f32.mrb[0].mxu0
      %v1349 = vadd.f32 0.0, %v1348
      %v1350 = vpop.f32.mrb[0].mxu0
      %1351 = vdwg.mxu0
      %1352 = vmatprep.subr.bf16.mxu0 0
      %1353 = vmatpush1.bf16.msra.mxu0 %v524
      %1354 = vmatprep.subr.bf16.mxu0 0
      %1355 = vmatpush1.bf16.msra.mxu0 0
      %1356 = vmatprep.subr.bf16.mxu0 0
      %1357 = vmatpush1.bf16.msra.mxu0 0
      %1358 = vmatprep.subr.bf16.mxu0 0
      %1359 = vmatpush1.bf16.msra.mxu0 0
      %1360 = vmatprep.subr.bf16.mxu0 0
      %1361 = vmatpush1.bf16.msra.mxu0 0
      %1362 = vmatprep.subr.bf16.mxu0 0
      %1363 = vmatpush1.bf16.msra.mxu0 0
      %1364 = vmatprep.subr.bf16.mxu0 0
      %1365 = vmatpush1.bf16.msra.mxu0 0
      %1366 = vmatprep.subr.bf16.mxu0 0
      %1367 = vmatpush1.bf16.msra.mxu0 0
      %1368 = vmatprep.subr.bf16.mxu0 0
      %1369 = vmatpush1.bf16.msra.mxu0 0
      %1370 = vmatprep.subr.bf16.mxu0 0
      %1371 = vmatpush1.bf16.msra.mxu0 0
      %1372 = vmatprep.subr.bf16.mxu0 0
      %1373 = vmatpush1.bf16.msra.mxu0 0
      %1374 = vmatprep.subr.bf16.mxu0 0
      %1375 = vmatpush1.bf16.msra.mxu0 0
      %1376 = vmatprep.subr.bf16.mxu0 0
      %1377 = vmatpush1.bf16.msra.mxu0 0
      %1378 = vmatprep.subr.bf16.mxu0 0
      %1379 = vmatpush1.bf16.msra.mxu0 0
      %1380 = vmatprep.subr.bf16.mxu0 0
      %1381 = vmatpush1.bf16.msra.mxu0 0
      %1382 = vmatprep.subr.bf16.mxu0 0
      %1383 = vmatpush1.bf16.msra.mxu0 0
      %1384 = vmatprep.mubr.bf16.mxu0 0
      %1385 = vmatmul.mubr.bf16.gmra.mrb[0].mxu0 %v1227
      %v1386 = vpop.f32.mrb[0].mxu0
      %v1387 = vadd.f32 0.0, %v1386
      %v1388 = vpop.f32.mrb[0].mxu0
      %v1389 = vpop.f32.mrb[0].mxu0
      %v1390 = vadd.f32 0.0, %v1389
      %v1391 = vpop.f32.mrb[0].mxu0
      %1392 = vdwg.mxu0
      %1393 = vmatprep.subr.bf16.mxu0 0
      %1394 = vmatpush1.bf16.msra.mxu0 %v525
      %1395 = vmatprep.subr.bf16.mxu0 0
      %1396 = vmatpush1.bf16.msra.mxu0 0
      %1397 = vmatprep.subr.bf16.mxu0 0
      %1398 = vmatpush1.bf16.msra.mxu0 0
      %1399 = vmatprep.subr.bf16.mxu0 0
      %1400 = vmatpush1.bf16.msra.mxu0 0
      %1401 = vmatprep.subr.bf16.mxu0 0
      %1402 = vmatpush1.bf16.msra.mxu0 0
      %1403 = vmatprep.subr.bf16.mxu0 0
      %1404 = vmatpush1.bf16.msra.mxu0 0
      %1405 = vmatprep.subr.bf16.mxu0 0
      %1406 = vmatpush1.bf16.msra.mxu0 0
      %1407 = vmatprep.subr.bf16.mxu0 0
      %1408 = vmatpush1.bf16.msra.mxu0 0
      %1409 = vmatprep.subr.bf16.mxu0 0
      %1410 = vmatpush1.bf16.msra.mxu0 0
      %1411 = vmatprep.subr.bf16.mxu0 0
      %1412 = vmatpush1.bf16.msra.mxu0 0
      %1413 = vmatprep.subr.bf16.mxu0 0
      %1414 = vmatpush1.bf16.msra.mxu0 0
      %1415 = vmatprep.subr.bf16.mxu0 0
      %1416 = vmatpush1.bf16.msra.mxu0 0
      %1417 = vmatprep.subr.bf16.mxu0 0
      %1418 = vmatpush1.bf16.msra.mxu0 0
      %1419 = vmatprep.subr.bf16.mxu0 0
      %1420 = vmatpush1.bf16.msra.mxu0 0
      %1421 = vmatprep.subr.bf16.mxu0 0
      %1422 = vmatpush1.bf16.msra.mxu0 0
      %1423 = vmatprep.subr.bf16.mxu0 0
      %1424 = vmatpush1.bf16.msra.mxu0 0
      %1425 = vmatprep.mubr.bf16.mxu0 0
      %1426 = vmatmul.mubr.bf16.gmra.mrb[0].mxu0 %v1227
      %v1427 = vpop.f32.mrb[0].mxu0
      %v1428 = vadd.f32 0.0, %v1427
      %v1429 = vpop.f32.mrb[0].mxu0
      %v1430 = vpop.f32.mrb[0].mxu0
      %v1431 = vadd.f32 0.0, %v1430
      %v1432 = vpop.f32.mrb[0].mxu0
      %1433 = vdwg.mxu0
      %1434 = vmatprep.subr.bf16.mxu0 0
      %1435 = vmatpush1.bf16.msra.mxu0 %v526
      %1436 = vmatprep.subr.bf16.mxu0 0
      %1437 = vmatpush1.bf16.msra.mxu0 0
      %1438 = vmatprep.subr.bf16.mxu0 0
      %1439 = vmatpush1.bf16.msra.mxu0 0
      %1440 = vmatprep.subr.bf16.mxu0 0
      %1441 = vmatpush1.bf16.msra.mxu0 0
      %1442 = vmatprep.subr.bf16.mxu0 0
      %1443 = vmatpush1.bf16.msra.mxu0 0
      %1444 = vmatprep.subr.bf16.mxu0 0
      %1445 = vmatpush1.bf16.msra.mxu0 0
      %1446 = vmatprep.subr.bf16.mxu0 0
      %1447 = vmatpush1.bf16.msra.mxu0 0
      %1448 = vmatprep.subr.bf16.mxu0 0
      %1449 = vmatpush1.bf16.msra.mxu0 0
      %1450 = vmatprep.subr.bf16.mxu0 0
      %1451 = vmatpush1.bf16.msra.mxu0 0
      %1452 = vmatprep.subr.bf16.mxu0 0
      %1453 = vmatpush1.bf16.msra.mxu0 0
      %1454 = vmatprep.subr.bf16.mxu0 0
      %1455 = vmatpush1.bf16.msra.mxu0 0
      %1456 = vmatprep.subr.bf16.mxu0 0
      %1457 = vmatpush1.bf16.msra.mxu0 0
      %1458 = vmatprep.subr.bf16.mxu0 0
      %1459 = vmatpush1.bf16.msra.mxu0 0
      %1460 = vmatprep.subr.bf16.mxu0 0
      %1461 = vmatpush1.bf16.msra.mxu0 0
      %1462 = vmatprep.subr.bf16.mxu0 0
      %1463 = vmatpush1.bf16.msra.mxu0 0
      %1464 = vmatprep.subr.bf16.mxu0 0
      %1465 = vmatpush1.bf16.msra.mxu0 0
      %1466 = vmatprep.mubr.bf16.mxu0 0
      %1467 = vmatmul.mubr.bf16.gmra.mrb[0].mxu0 %v1227
      %v1468 = vpop.f32.mrb[0].mxu0
      %v1469 = vadd.f32 0.0, %v1468
      %v1470 = vpop.f32.mrb[0].mxu0
      %v1471 = vpop.f32.mrb[0].mxu0
      %v1472 = vadd.f32 0.0, %v1471
      %v1473 = vpop.f32.mrb[0].mxu0
      %1474 = vdwg.mxu0
      %1475 = vmatprep.subr.bf16.mxu0 0
      %1476 = vmatpush1.bf16.msra.mxu0 %v527
      %1477 = vmatprep.subr.bf16.mxu0 0
      %1478 = vmatpush1.bf16.msra.mxu0 0
      %1479 = vmatprep.subr.bf16.mxu0 0
      %1480 = vmatpush1.bf16.msra.mxu0 0
      %1481 = vmatprep.subr.bf16.mxu0 0
      %1482 = vmatpush1.bf16.msra.mxu0 0
      %1483 = vmatprep.subr.bf16.mxu0 0
      %1484 = vmatpush1.bf16.msra.mxu0 0
      %1485 = vmatprep.subr.bf16.mxu0 0
      %1486 = vmatpush1.bf16.msra.mxu0 0
      %1487 = vmatprep.subr.bf16.mxu0 0
      %1488 = vmatpush1.bf16.msra.mxu0 0
      %1489 = vmatprep.subr.bf16.mxu0 0
      %1490 = vmatpush1.bf16.msra.mxu0 0
      %1491 = vmatprep.subr.bf16.mxu0 0
      %1492 = vmatpush1.bf16.msra.mxu0 0
      %1493 = vmatprep.subr.bf16.mxu0 0
      %1494 = vmatpush1.bf16.msra.mxu0 0
      %1495 = vmatprep.subr.bf16.mxu0 0
      %1496 = vmatpush1.bf16.msra.mxu0 0
      %1497 = vmatprep.subr.bf16.mxu0 0
      %1498 = vmatpush1.bf16.msra.mxu0 0
      %1499 = vmatprep.subr.bf16.mxu0 0
      %1500 = vmatpush1.bf16.msra.mxu0 0
      %1501 = vmatprep.subr.bf16.mxu0 0
      %1502 = vmatpush1.bf16.msra.mxu0 0
      %1503 = vmatprep.subr.bf16.mxu0 0
      %1504 = vmatpush1.bf16.msra.mxu0 0
      %1505 = vmatprep.subr.bf16.mxu0 0
      %1506 = vmatpush1.bf16.msra.mxu0 0
      %1507 = vmatprep.mubr.bf16.mxu0 0
      %1508 = vmatmul.mubr.bf16.gmra.mrb[0].mxu0 %v1227
      %v1509 = vpop.f32.mrb[0].mxu0
      %v1510 = vadd.f32 0.0, %v1509
      %v1511 = vpop.f32.mrb[0].mxu0
      %v1512 = vpop.f32.mrb[0].mxu0
      %v1513 = vadd.f32 0.0, %v1512
      %v1514 = vpop.f32.mrb[0].mxu0
      %1515 = vdwg.mxu0
      %1516 = vmatprep.subr.bf16.mxu0 0
      %1517 = vmatpush1.bf16.msra.mxu0 %v528
      %1518 = vmatprep.subr.bf16.mxu0 0
      %1519 = vmatpush1.bf16.msra.mxu0 0
      %1520 = vmatprep.subr.bf16.mxu0 0
      %1521 = vmatpush1.bf16.msra.mxu0 0
      %1522 = vmatprep.subr.bf16.mxu0 0
      %1523 = vmatpush1.bf16.msra.mxu0 0
      %1524 = vmatprep.subr.bf16.mxu0 0
      %1525 = vmatpush1.bf16.msra.mxu0 0
      %1526 = vmatprep.subr.bf16.mxu0 0
      %1527 = vmatpush1.bf16.msra.mxu0 0
      %1528 = vmatprep.subr.bf16.mxu0 0
      %1529 = vmatpush1.bf16.msra.mxu0 0
      %1530 = vmatprep.subr.bf16.mxu0 0
      %1531 = vmatpush1.bf16.msra.mxu0 0
      %1532 = vmatprep.subr.bf16.mxu0 0
      %1533 = vmatpush1.bf16.msra.mxu0 0
      %1534 = vmatprep.subr.bf16.mxu0 0
      %1535 = vmatpush1.bf16.msra.mxu0 0
      %1536 = vmatprep.subr.bf16.mxu0 0
      %1537 = vmatpush1.bf16.msra.mxu0 0
      %1538 = vmatprep.subr.bf16.mxu0 0
      %1539 = vmatpush1.bf16.msra.mxu0 0
      %1540 = vmatprep.subr.bf16.mxu0 0
      %1541 = vmatpush1.bf16.msra.mxu0 0
      %1542 = vmatprep.subr.bf16.mxu0 0
      %1543 = vmatpush1.bf16.msra.mxu0 0
      %1544 = vmatprep.subr.bf16.mxu0 0
      %1545 = vmatpush1.bf16.msra.mxu0 0
      %1546 = vmatprep.subr.bf16.mxu0 0
      %1547 = vmatpush1.bf16.msra.mxu0 0
      %1548 = vmatprep.mubr.bf16.mxu0 0
      %1549 = vmatmul.mubr.bf16.gmra.mrb[0].mxu0 %v1227
      %v1550 = vpop.f32.mrb[0].mxu0
      %v1551 = vadd.f32 0.0, %v1550
      %v1552 = vpop.f32.mrb[0].mxu0
      %v1553 = vpop.f32.mrb[0].mxu0
      %v1554 = vadd.f32 0.0, %v1553
      %v1555 = vpop.f32.mrb[0].mxu0
      %1556 = vdwg.mxu0
      %1558 = vrot.lane.b32.xlu0 %v782, 112
      %v1559 = vpop.permute.xlu0 %1558
      %1561 = vrot.lane.b32.xlu0 %v774, 112
      %v1562 = vpop.permute.xlu0 %1561
      %v1564 = vsel %vm790, %v1559, 0
      %v1567 = vsel %vm790, %v1562, 0
      %1569 = vmatprep.subr.bf16.mxu0 0
      %1570 = vmatpush1.bf16.xpose.msra.mxu0 %v1567
      %1571 = vmatprep.subr.bf16.mxu0 0
      %1572 = vmatpush1.bf16.xpose.msra.mxu0 0
      %1573 = vmatprep.subr.bf16.mxu0 0
      %1574 = vmatpush1.bf16.xpose.msra.mxu0 0
      %1575 = vmatprep.subr.bf16.mxu0 0
      %1576 = vmatpush1.bf16.xpose.msra.mxu0 0
      %1577 = vmatprep.subr.bf16.mxu0 0
      %1578 = vmatpush1.bf16.xpose.msra.mxu0 0
      %1579 = vmatprep.subr.bf16.mxu0 0
      %1580 = vmatpush1.bf16.xpose.msra.mxu0 0
      %1581 = vmatprep.subr.bf16.mxu0 0
      %1582 = vmatpush1.bf16.xpose.msra.mxu0 0
      %1583 = vmatprep.subr.bf16.mxu0 0
      %1584 = vmatpush1.bf16.xpose.msra.mxu0 0
      %1585 = vmatprep.subr.bf16.mxu0 0
      %1586 = vmatpush1.bf16.xpose.msra.mxu0 0
      %1587 = vmatprep.subr.bf16.mxu0 0
      %1588 = vmatpush1.bf16.xpose.msra.mxu0 0
      %1589 = vmatprep.subr.bf16.mxu0 0
      %1590 = vmatpush1.bf16.xpose.msra.mxu0 0
      %1591 = vmatprep.subr.bf16.mxu0 0
      %1592 = vmatpush1.bf16.xpose.msra.mxu0 0
      %1593 = vmatprep.subr.bf16.mxu0 0
      %1594 = vmatpush1.bf16.xpose.msra.mxu0 0
      %1595 = vmatprep.subr.bf16.mxu0 0
      %1596 = vmatpush1.bf16.xpose.msra.mxu0 0
      %1597 = vmatprep.subr.bf16.mxu0 0
      %1598 = vmatpush1.bf16.xpose.msra.mxu0 0
      %1599 = vmatprep.subr.bf16.mxu0 0
      %1600 = vmatpush1.bf16.xpose.msra.mxu0 0
      %1601 = vmatprep.mubr.bf16.mxu0 0
      %1602 = vmatmul.mubr.bf16.gmra.mrb[0].mxu0 %v1564
      %v1603 = vpop.f32.mrb[0].mxu0
      %v1604 = vadd.f32 0.0, %v1603
      %v1605 = vpop.f32.mrb[0].mxu0
      %v1606 = vpop.f32.mrb[0].mxu0
      %v1607 = vadd.f32 0.0, %v1606
      %v1608 = vpop.f32.mrb[0].mxu0
      %1609 = vdwg.mxu0
      %1611 = vrot.lane.b32.xlu0 %v783, 112
      %v1612 = vpop.permute.xlu0 %1611
      %1614 = vrot.lane.b32.xlu0 %v775, 112
      %v1615 = vpop.permute.xlu0 %1614
      %v1617 = vsel %vm790, %v1612, 0
      %v1620 = vsel %vm790, %v1615, 0
      %1622 = vmatprep.subr.bf16.mxu0 0
      %1623 = vmatpush1.bf16.xpose.msra.mxu0 %v1620
      %1624 = vmatprep.subr.bf16.mxu0 0
      %1625 = vmatpush1.bf16.xpose.msra.mxu0 0
      %1626 = vmatprep.subr.bf16.mxu0 0
      %1627 = vmatpush1.bf16.xpose.msra.mxu0 0
      %1628 = vmatprep.subr.bf16.mxu0 0
      %1629 = vmatpush1.bf16.xpose.msra.mxu0 0
      %1630 = vmatprep.subr.bf16.mxu0 0
      %1631 = vmatpush1.bf16.xpose.msra.mxu0 0
      %1632 = vmatprep.subr.bf16.mxu0 0
      %1633 = vmatpush1.bf16.xpose.msra.mxu0 0
      %1634 = vmatprep.subr.bf16.mxu0 0
      %1635 = vmatpush1.bf16.xpose.msra.mxu0 0
      %1636 = vmatprep.subr.bf16.mxu0 0
      %1637 = vmatpush1.bf16.xpose.msra.mxu0 0
      %1638 = vmatprep.subr.bf16.mxu0 0
      %1639 = vmatpush1.bf16.xpose.msra.mxu0 0
      %1640 = vmatprep.subr.bf16.mxu0 0
      %1641 = vmatpush1.bf16.xpose.msra.mxu0 0
      %1642 = vmatprep.subr.bf16.mxu0 0
      %1643 = vmatpush1.bf16.xpose.msra.mxu0 0
      %1644 = vmatprep.subr.bf16.mxu0 0
      %1645 = vmatpush1.bf16.xpose.msra.mxu0 0
      %1646 = vmatprep.subr.bf16.mxu0 0
      %1647 = vmatpush1.bf16.xpose.msra.mxu0 0
      %1648 = vmatprep.subr.bf16.mxu0 0
      %1649 = vmatpush1.bf16.xpose.msra.mxu0 0
      %1650 = vmatprep.subr.bf16.mxu0 0
      %1651 = vmatpush1.bf16.xpose.msra.mxu0 0
      %1652 = vmatprep.subr.bf16.mxu0 0
      %1653 = vmatpush1.bf16.xpose.msra.mxu0 0
      %1654 = vmatprep.mubr.bf16.mxu0 0
      %1655 = vmatmul.mubr.bf16.gmra.mrb[0].mxu0 %v1617
      %v1656 = vpop.f32.mrb[0].mxu0
      %v1657 = vadd.f32 0.0, %v1656
      %v1658 = vpop.f32.mrb[0].mxu0
      %v1659 = vpop.f32.mrb[0].mxu0
      %v1660 = vadd.f32 0.0, %v1659
      %v1661 = vpop.f32.mrb[0].mxu0
      %1662 = vdwg.mxu0
      %1664 = vrot.lane.b32.xlu0 %v784, 112
      %v1665 = vpop.permute.xlu0 %1664
      %1667 = vrot.lane.b32.xlu0 %v776, 112
      %v1668 = vpop.permute.xlu0 %1667
      %v1670 = vsel %vm790, %v1665, 0
      %v1673 = vsel %vm790, %v1668, 0
      %1675 = vmatprep.subr.bf16.mxu0 0
      %1676 = vmatpush1.bf16.xpose.msra.mxu0 %v1673
      %1677 = vmatprep.subr.bf16.mxu0 0
      %1678 = vmatpush1.bf16.xpose.msra.mxu0 0
      %1679 = vmatprep.subr.bf16.mxu0 0
      %1680 = vmatpush1.bf16.xpose.msra.mxu0 0
      %1681 = vmatprep.subr.bf16.mxu0 0
      %1682 = vmatpush1.bf16.xpose.msra.mxu0 0
      %1683 = vmatprep.subr.bf16.mxu0 0
      %1684 = vmatpush1.bf16.xpose.msra.mxu0 0
      %1685 = vmatprep.subr.bf16.mxu0 0
      %1686 = vmatpush1.bf16.xpose.msra.mxu0 0
      %1687 = vmatprep.subr.bf16.mxu0 0
      %1688 = vmatpush1.bf16.xpose.msra.mxu0 0
      %1689 = vmatprep.subr.bf16.mxu0 0
      %1690 = vmatpush1.bf16.xpose.msra.mxu0 0
      %1691 = vmatprep.subr.bf16.mxu0 0
      %1692 = vmatpush1.bf16.xpose.msra.mxu0 0
      %1693 = vmatprep.subr.bf16.mxu0 0
      %1694 = vmatpush1.bf16.xpose.msra.mxu0 0
      %1695 = vmatprep.subr.bf16.mxu0 0
      %1696 = vmatpush1.bf16.xpose.msra.mxu0 0
      %1697 = vmatprep.subr.bf16.mxu0 0
      %1698 = vmatpush1.bf16.xpose.msra.mxu0 0
      %1699 = vmatprep.subr.bf16.mxu0 0
      %1700 = vmatpush1.bf16.xpose.msra.mxu0 0
      %1701 = vmatprep.subr.bf16.mxu0 0
      %1702 = vmatpush1.bf16.xpose.msra.mxu0 0
      %1703 = vmatprep.subr.bf16.mxu0 0
      %1704 = vmatpush1.bf16.xpose.msra.mxu0 0
      %1705 = vmatprep.subr.bf16.mxu0 0
      %1706 = vmatpush1.bf16.xpose.msra.mxu0 0
      %1707 = vmatprep.mubr.bf16.mxu0 0
      %1708 = vmatmul.mubr.bf16.gmra.mrb[0].mxu0 %v1670
      %v1709 = vpop.f32.mrb[0].mxu0
      %v1710 = vadd.f32 0.0, %v1709
      %v1711 = vpop.f32.mrb[0].mxu0
      %v1712 = vpop.f32.mrb[0].mxu0
      %v1713 = vadd.f32 0.0, %v1712
      %v1714 = vpop.f32.mrb[0].mxu0
      %1715 = vdwg.mxu0
      %1717 = vrot.lane.b32.xlu0 %v785, 112
      %v1718 = vpop.permute.xlu0 %1717
      %1720 = vrot.lane.b32.xlu0 %v777, 112
      %v1721 = vpop.permute.xlu0 %1720
      %v1723 = vsel %vm790, %v1718, 0
      %v1726 = vsel %vm790, %v1721, 0
      %1728 = vmatprep.subr.bf16.mxu0 0
      %1729 = vmatpush1.bf16.xpose.msra.mxu0 %v1726
      %1730 = vmatprep.subr.bf16.mxu0 0
      %1731 = vmatpush1.bf16.xpose.msra.mxu0 0
      %1732 = vmatprep.subr.bf16.mxu0 0
      %1733 = vmatpush1.bf16.xpose.msra.mxu0 0
      %1734 = vmatprep.subr.bf16.mxu0 0
      %1735 = vmatpush1.bf16.xpose.msra.mxu0 0
      %1736 = vmatprep.subr.bf16.mxu0 0
      %1737 = vmatpush1.bf16.xpose.msra.mxu0 0
      %1738 = vmatprep.subr.bf16.mxu0 0
      %1739 = vmatpush1.bf16.xpose.msra.mxu0 0
      %1740 = vmatprep.subr.bf16.mxu0 0
      %1741 = vmatpush1.bf16.xpose.msra.mxu0 0
      %1742 = vmatprep.subr.bf16.mxu0 0
      %1743 = vmatpush1.bf16.xpose.msra.mxu0 0
      %1744 = vmatprep.subr.bf16.mxu0 0
      %1745 = vmatpush1.bf16.xpose.msra.mxu0 0
      %1746 = vmatprep.subr.bf16.mxu0 0
      %1747 = vmatpush1.bf16.xpose.msra.mxu0 0
      %1748 = vmatprep.subr.bf16.mxu0 0
      %1749 = vmatpush1.bf16.xpose.msra.mxu0 0
      %1750 = vmatprep.subr.bf16.mxu0 0
      %1751 = vmatpush1.bf16.xpose.msra.mxu0 0
      %1752 = vmatprep.subr.bf16.mxu0 0
      %1753 = vmatpush1.bf16.xpose.msra.mxu0 0
      %1754 = vmatprep.subr.bf16.mxu0 0
      %1755 = vmatpush1.bf16.xpose.msra.mxu0 0
      %1756 = vmatprep.subr.bf16.mxu0 0
      %1757 = vmatpush1.bf16.xpose.msra.mxu0 0
      %1758 = vmatprep.subr.bf16.mxu0 0
      %1759 = vmatpush1.bf16.xpose.msra.mxu0 0
      %1760 = vmatprep.mubr.bf16.mxu0 0
      %1761 = vmatmul.mubr.bf16.gmra.mrb[0].mxu0 %v1723
      %v1762 = vpop.f32.mrb[0].mxu0
      %v1763 = vadd.f32 0.0, %v1762
      %v1764 = vpop.f32.mrb[0].mxu0
      %v1765 = vpop.f32.mrb[0].mxu0
      %v1766 = vadd.f32 0.0, %v1765
      %v1767 = vpop.f32.mrb[0].mxu0
      %1768 = vdwg.mxu0
      %1770 = vrot.lane.b32.xlu0 %v786, 112
      %v1771 = vpop.permute.xlu0 %1770
      %1773 = vrot.lane.b32.xlu0 %v778, 112
      %v1774 = vpop.permute.xlu0 %1773
      %v1776 = vsel %vm790, %v1771, 0
      %v1779 = vsel %vm790, %v1774, 0
      %1781 = vmatprep.subr.bf16.mxu0 0
      %1782 = vmatpush1.bf16.xpose.msra.mxu0 %v1779
      %1783 = vmatprep.subr.bf16.mxu0 0
      %1784 = vmatpush1.bf16.xpose.msra.mxu0 0
      %1785 = vmatprep.subr.bf16.mxu0 0
      %1786 = vmatpush1.bf16.xpose.msra.mxu0 0
      %1787 = vmatprep.subr.bf16.mxu0 0
      %1788 = vmatpush1.bf16.xpose.msra.mxu0 0
      %1789 = vmatprep.subr.bf16.mxu0 0
      %1790 = vmatpush1.bf16.xpose.msra.mxu0 0
      %1791 = vmatprep.subr.bf16.mxu0 0
      %1792 = vmatpush1.bf16.xpose.msra.mxu0 0
      %1793 = vmatprep.subr.bf16.mxu0 0
      %1794 = vmatpush1.bf16.xpose.msra.mxu0 0
      %1795 = vmatprep.subr.bf16.mxu0 0
      %1796 = vmatpush1.bf16.xpose.msra.mxu0 0
      %1797 = vmatprep.subr.bf16.mxu0 0
      %1798 = vmatpush1.bf16.xpose.msra.mxu0 0
      %1799 = vmatprep.subr.bf16.mxu0 0
      %1800 = vmatpush1.bf16.xpose.msra.mxu0 0
      %1801 = vmatprep.subr.bf16.mxu0 0
      %1802 = vmatpush1.bf16.xpose.msra.mxu0 0
      %1803 = vmatprep.subr.bf16.mxu0 0
      %1804 = vmatpush1.bf16.xpose.msra.mxu0 0
      %1805 = vmatprep.subr.bf16.mxu0 0
      %1806 = vmatpush1.bf16.xpose.msra.mxu0 0
      %1807 = vmatprep.subr.bf16.mxu0 0
      %1808 = vmatpush1.bf16.xpose.msra.mxu0 0
      %1809 = vmatprep.subr.bf16.mxu0 0
      %1810 = vmatpush1.bf16.xpose.msra.mxu0 0
      %1811 = vmatprep.subr.bf16.mxu0 0
      %1812 = vmatpush1.bf16.xpose.msra.mxu0 0
      %1813 = vmatprep.mubr.bf16.mxu0 0
      %1814 = vmatmul.mubr.bf16.gmra.mrb[0].mxu0 %v1776
      %v1815 = vpop.f32.mrb[0].mxu0
      %v1816 = vadd.f32 0.0, %v1815
      %v1817 = vpop.f32.mrb[0].mxu0
      %v1818 = vpop.f32.mrb[0].mxu0
      %v1819 = vadd.f32 0.0, %v1818
      %v1820 = vpop.f32.mrb[0].mxu0
      %1821 = vdwg.mxu0
      %1823 = vrot.lane.b32.xlu0 %v787, 112
      %v1824 = vpop.permute.xlu0 %1823
      %1826 = vrot.lane.b32.xlu0 %v779, 112
      %v1827 = vpop.permute.xlu0 %1826
      %v1829 = vsel %vm790, %v1824, 0
      %v1832 = vsel %vm790, %v1827, 0
      %1834 = vmatprep.subr.bf16.mxu0 0
      %1835 = vmatpush1.bf16.xpose.msra.mxu0 %v1832
      %1836 = vmatprep.subr.bf16.mxu0 0
      %1837 = vmatpush1.bf16.xpose.msra.mxu0 0
      %1838 = vmatprep.subr.bf16.mxu0 0
      %1839 = vmatpush1.bf16.xpose.msra.mxu0 0
      %1840 = vmatprep.subr.bf16.mxu0 0
      %1841 = vmatpush1.bf16.xpose.msra.mxu0 0
      %1842 = vmatprep.subr.bf16.mxu0 0
      %1843 = vmatpush1.bf16.xpose.msra.mxu0 0
      %1844 = vmatprep.subr.bf16.mxu0 0
      %1845 = vmatpush1.bf16.xpose.msra.mxu0 0
      %1846 = vmatprep.subr.bf16.mxu0 0
      %1847 = vmatpush1.bf16.xpose.msra.mxu0 0
      %1848 = vmatprep.subr.bf16.mxu0 0
      %1849 = vmatpush1.bf16.xpose.msra.mxu0 0
      %1850 = vmatprep.subr.bf16.mxu0 0
      %1851 = vmatpush1.bf16.xpose.msra.mxu0 0
      %1852 = vmatprep.subr.bf16.mxu0 0
      %1853 = vmatpush1.bf16.xpose.msra.mxu0 0
      %1854 = vmatprep.subr.bf16.mxu0 0
      %1855 = vmatpush1.bf16.xpose.msra.mxu0 0
      %1856 = vmatprep.subr.bf16.mxu0 0
      %1857 = vmatpush1.bf16.xpose.msra.mxu0 0
      %1858 = vmatprep.subr.bf16.mxu0 0
      %1859 = vmatpush1.bf16.xpose.msra.mxu0 0
      %1860 = vmatprep.subr.bf16.mxu0 0
      %1861 = vmatpush1.bf16.xpose.msra.mxu0 0
      %1862 = vmatprep.subr.bf16.mxu0 0
      %1863 = vmatpush1.bf16.xpose.msra.mxu0 0
      %1864 = vmatprep.subr.bf16.mxu0 0
      %1865 = vmatpush1.bf16.xpose.msra.mxu0 0
      %1866 = vmatprep.mubr.bf16.mxu0 0
      %1867 = vmatmul.mubr.bf16.gmra.mrb[0].mxu0 %v1829
      %v1868 = vpop.f32.mrb[0].mxu0
      %v1869 = vadd.f32 0.0, %v1868
      %v1870 = vpop.f32.mrb[0].mxu0
      %v1871 = vpop.f32.mrb[0].mxu0
      %v1872 = vadd.f32 0.0, %v1871
      %v1873 = vpop.f32.mrb[0].mxu0
      %1874 = vdwg.mxu0
      %1876 = vrot.lane.b32.xlu0 %v788, 112
      %v1877 = vpop.permute.xlu0 %1876
      %1879 = vrot.lane.b32.xlu0 %v780, 112
      %v1880 = vpop.permute.xlu0 %1879
      %v1882 = vsel %vm790, %v1877, 0
      %v1885 = vsel %vm790, %v1880, 0
      %1887 = vmatprep.subr.bf16.mxu0 0
      %1888 = vmatpush1.bf16.xpose.msra.mxu0 %v1885
      %1889 = vmatprep.subr.bf16.mxu0 0
      %1890 = vmatpush1.bf16.xpose.msra.mxu0 0
      %1891 = vmatprep.subr.bf16.mxu0 0
      %1892 = vmatpush1.bf16.xpose.msra.mxu0 0
      %1893 = vmatprep.subr.bf16.mxu0 0
      %1894 = vmatpush1.bf16.xpose.msra.mxu0 0
      %1895 = vmatprep.subr.bf16.mxu0 0
      %1896 = vmatpush1.bf16.xpose.msra.mxu0 0
      %1897 = vmatprep.subr.bf16.mxu0 0
      %1898 = vmatpush1.bf16.xpose.msra.mxu0 0
      %1899 = vmatprep.subr.bf16.mxu0 0
      %1900 = vmatpush1.bf16.xpose.msra.mxu0 0
      %1901 = vmatprep.subr.bf16.mxu0 0
      %1902 = vmatpush1.bf16.xpose.msra.mxu0 0
      %1903 = vmatprep.subr.bf16.mxu0 0
      %1904 = vmatpush1.bf16.xpose.msra.mxu0 0
      %1905 = vmatprep.subr.bf16.mxu0 0
      %1906 = vmatpush1.bf16.xpose.msra.mxu0 0
      %1907 = vmatprep.subr.bf16.mxu0 0
      %1908 = vmatpush1.bf16.xpose.msra.mxu0 0
      %1909 = vmatprep.subr.bf16.mxu0 0
      %1910 = vmatpush1.bf16.xpose.msra.mxu0 0
      %1911 = vmatprep.subr.bf16.mxu0 0
      %1912 = vmatpush1.bf16.xpose.msra.mxu0 0
      %1913 = vmatprep.subr.bf16.mxu0 0
      %1914 = vmatpush1.bf16.xpose.msra.mxu0 0
      %1915 = vmatprep.subr.bf16.mxu0 0
      %1916 = vmatpush1.bf16.xpose.msra.mxu0 0
      %1917 = vmatprep.subr.bf16.mxu0 0
      %1918 = vmatpush1.bf16.xpose.msra.mxu0 0
      %1919 = vmatprep.mubr.bf16.mxu0 0
      %1920 = vmatmul.mubr.bf16.gmra.mrb[0].mxu0 %v1882
      %v1921 = vpop.f32.mrb[0].mxu0
      %v1922 = vadd.f32 0.0, %v1921
      %v1923 = vpop.f32.mrb[0].mxu0
      %v1924 = vpop.f32.mrb[0].mxu0
      %v1925 = vadd.f32 0.0, %v1924
      %v1926 = vpop.f32.mrb[0].mxu0
      %1927 = vdwg.mxu0
      %1929 = vrot.lane.b32.xlu0 %v789, 112
      %v1930 = vpop.permute.xlu0 %1929
      %1932 = vrot.lane.b32.xlu0 %v781, 112
      %v1933 = vpop.permute.xlu0 %1932
      %v1935 = vsel %vm790, %v1930, 0
      %v1938 = vsel %vm790, %v1933, 0
      %1940 = vmatprep.subr.bf16.mxu0 0
      %1941 = vmatpush1.bf16.xpose.msra.mxu0 %v1938
      %1942 = vmatprep.subr.bf16.mxu0 0
      %1943 = vmatpush1.bf16.xpose.msra.mxu0 0
      %1944 = vmatprep.subr.bf16.mxu0 0
      %1945 = vmatpush1.bf16.xpose.msra.mxu0 0
      %1946 = vmatprep.subr.bf16.mxu0 0
      %1947 = vmatpush1.bf16.xpose.msra.mxu0 0
      %1948 = vmatprep.subr.bf16.mxu0 0
      %1949 = vmatpush1.bf16.xpose.msra.mxu0 0
      %1950 = vmatprep.subr.bf16.mxu0 0
      %1951 = vmatpush1.bf16.xpose.msra.mxu0 0
      %1952 = vmatprep.subr.bf16.mxu0 0
      %1953 = vmatpush1.bf16.xpose.msra.mxu0 0
      %1954 = vmatprep.subr.bf16.mxu0 0
      %1955 = vmatpush1.bf16.xpose.msra.mxu0 0
      %1956 = vmatprep.subr.bf16.mxu0 0
      %1957 = vmatpush1.bf16.xpose.msra.mxu0 0
      %1958 = vmatprep.subr.bf16.mxu0 0
      %1959 = vmatpush1.bf16.xpose.msra.mxu0 0
      %1960 = vmatprep.subr.bf16.mxu0 0
      %1961 = vmatpush1.bf16.xpose.msra.mxu0 0
      %1962 = vmatprep.subr.bf16.mxu0 0
      %1963 = vmatpush1.bf16.xpose.msra.mxu0 0
      %1964 = vmatprep.subr.bf16.mxu0 0
      %1965 = vmatpush1.bf16.xpose.msra.mxu0 0
      %1966 = vmatprep.subr.bf16.mxu0 0
      %1967 = vmatpush1.bf16.xpose.msra.mxu0 0
      %1968 = vmatprep.subr.bf16.mxu0 0
      %1969 = vmatpush1.bf16.xpose.msra.mxu0 0
      %1970 = vmatprep.subr.bf16.mxu0 0
      %1971 = vmatpush1.bf16.xpose.msra.mxu0 0
      %1972 = vmatprep.mubr.bf16.mxu0 0
      %1973 = vmatmul.mubr.bf16.gmra.mrb[0].mxu0 %v1935
      %v1974 = vpop.f32.mrb[0].mxu0
      %v1975 = vadd.f32 0.0, %v1974
      %v1976 = vpop.f32.mrb[0].mxu0
      %v1977 = vpop.f32.mrb[0].mxu0
      %v1978 = vadd.f32 0.0, %v1977
      %v1979 = vpop.f32.mrb[0].mxu0
      %1980 = vdwg.mxu0
      %v1981 = vsel %vm790, %v1604, 0.0
      %v1982 = vsel %vm790, %v1657, 0.0
      %v1983 = vadd.f32 %v1981, %v1982
      %v1984 = vsel %vm790, %v1710, 0.0
      %v1985 = vadd.f32 %v1983, %v1984
      %v1986 = vsel %vm790, %v1763, 0.0
      %v1987 = vadd.f32 %v1985, %v1986
      %v1988 = vsel %vm790, %v1816, 0.0
      %v1989 = vadd.f32 %v1987, %v1988
      %v1990 = vsel %vm790, %v1869, 0.0
      %v1991 = vadd.f32 %v1989, %v1990
      %v1992 = vsel %vm790, %v1922, 0.0
      %v1993 = vadd.f32 %v1991, %v1992
      %v1994 = vsel %vm790, %v1975, 0.0
      %v1995 = vadd.f32 %v1993, %v1994
      %v1996 = vsel %vm790, %v1607, 0.0
      %v1997 = vsel %vm790, %v1660, 0.0
      %v1998 = vadd.f32 %v1996, %v1997
      %v1999 = vsel %vm790, %v1713, 0.0
      %v2000 = vadd.f32 %v1998, %v1999
      %v2001 = vsel %vm790, %v1766, 0.0
      %v2002 = vadd.f32 %v2000, %v2001
      %v2003 = vsel %vm790, %v1819, 0.0
      %v2004 = vadd.f32 %v2002, %v2003
      %v2005 = vsel %vm790, %v1872, 0.0
      %v2006 = vadd.f32 %v2004, %v2005
      %v2007 = vsel %vm790, %v1925, 0.0
      %v2008 = vadd.f32 %v2006, %v2007
      %v2009 = vsel %vm790, %v1978, 0.0
      %v2010 = vadd.f32 %v2008, %v2009
      %v2011 = vmul.f32 %v1995, 0.0078125
      %v2012 = vmul.f32 %v2010, 0.0078125
      %v2013 = vsel %vm790, %v2011, -inf
      %2014 = vmax.xlane.f32.xlu0 %v2013
      %v2015 = vpop.xlane.xlu0 %2014
      %v2016 = vsel %vm790, %v2012, -inf
      %2017 = vmax.xlane.f32.xlu0 %v2016
      %v2018 = vpop.xlane.xlu0 %2017
      %v2019 = vsub.f32 %v2011, %v2015
      %v2020 = vsub.f32 %v2012, %v2018
      %v2021 = vmul.f32 %v2019, 1.442695
      %v2022 = vpow.pop %v2021
      %v2023 = vmul.f32 %v2020, 1.442695
      %v2024 = vpow.pop %v2023
      %v2025 = vsel %vm790, %v2022, 0.0
      %2026 = vadd.xlane.f32.xlu0 %v2025
      %v2027 = vpop.xlane.xlu0 %2026
      %v2028 = vsel %vm790, %v2024, 0.0
      %2029 = vadd.xlane.f32.xlu0 %v2028
      %v2030 = vpop.xlane.xlu0 %2029
      %v2031 = vrcp.pop %v2027
      %v2032 = vmul.f32 %v2022, %v2031
      %v2033 = vrcp.pop %v2030
      %v2034 = vmul.f32 %v2024, %v2033
      %s2035 = scalar_lea.vmem %s7, 16
      %v2036 = vld [vmem:[%s2035] sm:$0xff]
      %v2037 = vld [vmem:[%s2035 + $0x8] sm:$0xff]
      %v2038 = vadd.f32 %v2032, %v2036
      %v2039 = vadd.f32 %v2034, %v2037
      %v2040 = vpack.c.bf16 %v2039, %v2038
      %v2042 = vsel %vm790, %v2040, 0
      %2044 = vmatprep.subr.bf16.mxu0 0
      %2045 = vmatpush1.bf16.msra.mxu0 %v521
      %2046 = vmatprep.subr.bf16.mxu0 0
      %2047 = vmatpush1.bf16.msra.mxu0 0
      %2048 = vmatprep.subr.bf16.mxu0 0
      %2049 = vmatpush1.bf16.msra.mxu0 0
      %2050 = vmatprep.subr.bf16.mxu0 0
      %2051 = vmatpush1.bf16.msra.mxu0 0
      %2052 = vmatprep.subr.bf16.mxu0 0
      %2053 = vmatpush1.bf16.msra.mxu0 0
      %2054 = vmatprep.subr.bf16.mxu0 0
      %2055 = vmatpush1.bf16.msra.mxu0 0
      %2056 = vmatprep.subr.bf16.mxu0 0
      %2057 = vmatpush1.bf16.msra.mxu0 0
      %2058 = vmatprep.subr.bf16.mxu0 0
      %2059 = vmatpush1.bf16.msra.mxu0 0
      %2060 = vmatprep.subr.bf16.mxu0 0
      %2061 = vmatpush1.bf16.msra.mxu0 0
      %2062 = vmatprep.subr.bf16.mxu0 0
      %2063 = vmatpush1.bf16.msra.mxu0 0
      %2064 = vmatprep.subr.bf16.mxu0 0
      %2065 = vmatpush1.bf16.msra.mxu0 0
      %2066 = vmatprep.subr.bf16.mxu0 0
      %2067 = vmatpush1.bf16.msra.mxu0 0
      %2068 = vmatprep.subr.bf16.mxu0 0
      %2069 = vmatpush1.bf16.msra.mxu0 0
      %2070 = vmatprep.subr.bf16.mxu0 0
      %2071 = vmatpush1.bf16.msra.mxu0 0
      %2072 = vmatprep.subr.bf16.mxu0 0
      %2073 = vmatpush1.bf16.msra.mxu0 0
      %2074 = vmatprep.subr.bf16.mxu0 0
      %2075 = vmatpush1.bf16.msra.mxu0 0
      %2076 = vmatprep.mubr.bf16.mxu0 0
      %2077 = vmatmul.mubr.bf16.gmra.mrb[0].mxu0 %v2042
      %v2078 = vpop.f32.mrb[0].mxu0
      %v2079 = vadd.f32 0.0, %v2078
      %v2080 = vpop.f32.mrb[0].mxu0
      %v2081 = vpop.f32.mrb[0].mxu0
      %v2082 = vadd.f32 0.0, %v2081
      %v2083 = vpop.f32.mrb[0].mxu0
      %2084 = vdwg.mxu0
      %2085 = vmatprep.subr.bf16.mxu0 0
      %2086 = vmatpush1.bf16.msra.mxu0 %v522
      %2087 = vmatprep.subr.bf16.mxu0 0
      %2088 = vmatpush1.bf16.msra.mxu0 0
      %2089 = vmatprep.subr.bf16.mxu0 0
      %2090 = vmatpush1.bf16.msra.mxu0 0
      %2091 = vmatprep.subr.bf16.mxu0 0
      %2092 = vmatpush1.bf16.msra.mxu0 0
      %2093 = vmatprep.subr.bf16.mxu0 0
      %2094 = vmatpush1.bf16.msra.mxu0 0
      %2095 = vmatprep.subr.bf16.mxu0 0
      %2096 = vmatpush1.bf16.msra.mxu0 0
      %2097 = vmatprep.subr.bf16.mxu0 0
      %2098 = vmatpush1.bf16.msra.mxu0 0
      %2099 = vmatprep.subr.bf16.mxu0 0
      %2100 = vmatpush1.bf16.msra.mxu0 0
      %2101 = vmatprep.subr.bf16.mxu0 0
      %2102 = vmatpush1.bf16.msra.mxu0 0
      %2103 = vmatprep.subr.bf16.mxu0 0
      %2104 = vmatpush1.bf16.msra.mxu0 0
      %2105 = vmatprep.subr.bf16.mxu0 0
      %2106 = vmatpush1.bf16.msra.mxu0 0
      %2107 = vmatprep.subr.bf16.mxu0 0
      %2108 = vmatpush1.bf16.msra.mxu0 0
      %2109 = vmatprep.subr.bf16.mxu0 0
      %2110 = vmatpush1.bf16.msra.mxu0 0
      %2111 = vmatprep.subr.bf16.mxu0 0
      %2112 = vmatpush1.bf16.msra.mxu0 0
      %2113 = vmatprep.subr.bf16.mxu0 0
      %2114 = vmatpush1.bf16.msra.mxu0 0
      %2115 = vmatprep.subr.bf16.mxu0 0
      %2116 = vmatpush1.bf16.msra.mxu0 0
      %2117 = vmatprep.mubr.bf16.mxu0 0
      %2118 = vmatmul.mubr.bf16.gmra.mrb[0].mxu0 %v2042
      %v2119 = vpop.f32.mrb[0].mxu0
      %v2120 = vadd.f32 0.0, %v2119
      %v2121 = vpop.f32.mrb[0].mxu0
      %v2122 = vpop.f32.mrb[0].mxu0
      %v2123 = vadd.f32 0.0, %v2122
      %v2124 = vpop.f32.mrb[0].mxu0
      %2125 = vdwg.mxu0
      %2126 = vmatprep.subr.bf16.mxu0 0
      %2127 = vmatpush1.bf16.msra.mxu0 %v523
      %2128 = vmatprep.subr.bf16.mxu0 0
      %2129 = vmatpush1.bf16.msra.mxu0 0
      %2130 = vmatprep.subr.bf16.mxu0 0
      %2131 = vmatpush1.bf16.msra.mxu0 0
      %2132 = vmatprep.subr.bf16.mxu0 0
      %2133 = vmatpush1.bf16.msra.mxu0 0
      %2134 = vmatprep.subr.bf16.mxu0 0
      %2135 = vmatpush1.bf16.msra.mxu0 0
      %2136 = vmatprep.subr.bf16.mxu0 0
      %2137 = vmatpush1.bf16.msra.mxu0 0
      %2138 = vmatprep.subr.bf16.mxu0 0
      %2139 = vmatpush1.bf16.msra.mxu0 0
      %2140 = vmatprep.subr.bf16.mxu0 0
      %2141 = vmatpush1.bf16.msra.mxu0 0
      %2142 = vmatprep.subr.bf16.mxu0 0
      %2143 = vmatpush1.bf16.msra.mxu0 0
      %2144 = vmatprep.subr.bf16.mxu0 0
      %2145 = vmatpush1.bf16.msra.mxu0 0
      %2146 = vmatprep.subr.bf16.mxu0 0
      %2147 = vmatpush1.bf16.msra.mxu0 0
      %2148 = vmatprep.subr.bf16.mxu0 0
      %2149 = vmatpush1.bf16.msra.mxu0 0
      %2150 = vmatprep.subr.bf16.mxu0 0
      %2151 = vmatpush1.bf16.msra.mxu0 0
      %2152 = vmatprep.subr.bf16.mxu0 0
      %2153 = vmatpush1.bf16.msra.mxu0 0
      %2154 = vmatprep.subr.bf16.mxu0 0
      %2155 = vmatpush1.bf16.msra.mxu0 0
      %2156 = vmatprep.subr.bf16.mxu0 0
      %2157 = vmatpush1.bf16.msra.mxu0 0
      %2158 = vmatprep.mubr.bf16.mxu0 0
      %2159 = vmatmul.mubr.bf16.gmra.mrb[0].mxu0 %v2042
      %v2160 = vpop.f32.mrb[0].mxu0
      %v2161 = vadd.f32 0.0, %v2160
      %v2162 = vpop.f32.mrb[0].mxu0
      %v2163 = vpop.f32.mrb[0].mxu0
      %v2164 = vadd.f32 0.0, %v2163
      %v2165 = vpop.f32.mrb[0].mxu0
      %2166 = vdwg.mxu0
      %2167 = vmatprep.subr.bf16.mxu0 0
      %2168 = vmatpush1.bf16.msra.mxu0 %v524
      %2169 = vmatprep.subr.bf16.mxu0 0
      %2170 = vmatpush1.bf16.msra.mxu0 0
      %2171 = vmatprep.subr.bf16.mxu0 0
      %2172 = vmatpush1.bf16.msra.mxu0 0
      %2173 = vmatprep.subr.bf16.mxu0 0
      %2174 = vmatpush1.bf16.msra.mxu0 0
      %2175 = vmatprep.subr.bf16.mxu0 0
      %2176 = vmatpush1.bf16.msra.mxu0 0
      %2177 = vmatprep.subr.bf16.mxu0 0
      %2178 = vmatpush1.bf16.msra.mxu0 0
      %2179 = vmatprep.subr.bf16.mxu0 0
      %2180 = vmatpush1.bf16.msra.mxu0 0
      %2181 = vmatprep.subr.bf16.mxu0 0
      %2182 = vmatpush1.bf16.msra.mxu0 0
      %2183 = vmatprep.subr.bf16.mxu0 0
      %2184 = vmatpush1.bf16.msra.mxu0 0
      %2185 = vmatprep.subr.bf16.mxu0 0
      %2186 = vmatpush1.bf16.msra.mxu0 0
      %2187 = vmatprep.subr.bf16.mxu0 0
      %2188 = vmatpush1.bf16.msra.mxu0 0
      %2189 = vmatprep.subr.bf16.mxu0 0
      %2190 = vmatpush1.bf16.msra.mxu0 0
      %2191 = vmatprep.subr.bf16.mxu0 0
      %2192 = vmatpush1.bf16.msra.mxu0 0
      %2193 = vmatprep.subr.bf16.mxu0 0
      %2194 = vmatpush1.bf16.msra.mxu0 0
      %2195 = vmatprep.subr.bf16.mxu0 0
      %2196 = vmatpush1.bf16.msra.mxu0 0
      %2197 = vmatprep.subr.bf16.mxu0 0
      %2198 = vmatpush1.bf16.msra.mxu0 0
      %2199 = vmatprep.mubr.bf16.mxu0 0
      %2200 = vmatmul.mubr.bf16.gmra.mrb[0].mxu0 %v2042
      %v2201 = vpop.f32.mrb[0].mxu0
      %v2202 = vadd.f32 0.0, %v2201
      %v2203 = vpop.f32.mrb[0].mxu0
      %v2204 = vpop.f32.mrb[0].mxu0
      %v2205 = vadd.f32 0.0, %v2204
      %v2206 = vpop.f32.mrb[0].mxu0
      %2207 = vdwg.mxu0
      %2208 = vmatprep.subr.bf16.mxu0 0
      %2209 = vmatpush1.bf16.msra.mxu0 %v525
      %2210 = vmatprep.subr.bf16.mxu0 0
      %2211 = vmatpush1.bf16.msra.mxu0 0
      %2212 = vmatprep.subr.bf16.mxu0 0
      %2213 = vmatpush1.bf16.msra.mxu0 0
      %2214 = vmatprep.subr.bf16.mxu0 0
      %2215 = vmatpush1.bf16.msra.mxu0 0
      %2216 = vmatprep.subr.bf16.mxu0 0
      %2217 = vmatpush1.bf16.msra.mxu0 0
      %2218 = vmatprep.subr.bf16.mxu0 0
      %2219 = vmatpush1.bf16.msra.mxu0 0
      %2220 = vmatprep.subr.bf16.mxu0 0
      %2221 = vmatpush1.bf16.msra.mxu0 0
      %2222 = vmatprep.subr.bf16.mxu0 0
      %2223 = vmatpush1.bf16.msra.mxu0 0
      %2224 = vmatprep.subr.bf16.mxu0 0
      %2225 = vmatpush1.bf16.msra.mxu0 0
      %2226 = vmatprep.subr.bf16.mxu0 0
      %2227 = vmatpush1.bf16.msra.mxu0 0
      %2228 = vmatprep.subr.bf16.mxu0 0
      %2229 = vmatpush1.bf16.msra.mxu0 0
      %2230 = vmatprep.subr.bf16.mxu0 0
      %2231 = vmatpush1.bf16.msra.mxu0 0
      %2232 = vmatprep.subr.bf16.mxu0 0
      %2233 = vmatpush1.bf16.msra.mxu0 0
      %2234 = vmatprep.subr.bf16.mxu0 0
      %2235 = vmatpush1.bf16.msra.mxu0 0
      %2236 = vmatprep.subr.bf16.mxu0 0
      %2237 = vmatpush1.bf16.msra.mxu0 0
      %2238 = vmatprep.subr.bf16.mxu0 0
      %2239 = vmatpush1.bf16.msra.mxu0 0
      %2240 = vmatprep.mubr.bf16.mxu0 0
      %2241 = vmatmul.mubr.bf16.gmra.mrb[0].mxu0 %v2042
      %v2242 = vpop.f32.mrb[0].mxu0
      %v2243 = vadd.f32 0.0, %v2242
      %v2244 = vpop.f32.mrb[0].mxu0
      %v2245 = vpop.f32.mrb[0].mxu0
      %v2246 = vadd.f32 0.0, %v2245
      %v2247 = vpop.f32.mrb[0].mxu0
      %2248 = vdwg.mxu0
      %2249 = vmatprep.subr.bf16.mxu0 0
      %2250 = vmatpush1.bf16.msra.mxu0 %v526
      %2251 = vmatprep.subr.bf16.mxu0 0
      %2252 = vmatpush1.bf16.msra.mxu0 0
      %2253 = vmatprep.subr.bf16.mxu0 0
      %2254 = vmatpush1.bf16.msra.mxu0 0
      %2255 = vmatprep.subr.bf16.mxu0 0
      %2256 = vmatpush1.bf16.msra.mxu0 0
      %2257 = vmatprep.subr.bf16.mxu0 0
      %2258 = vmatpush1.bf16.msra.mxu0 0
      %2259 = vmatprep.subr.bf16.mxu0 0
      %2260 = vmatpush1.bf16.msra.mxu0 0
      %2261 = vmatprep.subr.bf16.mxu0 0
      %2262 = vmatpush1.bf16.msra.mxu0 0
      %2263 = vmatprep.subr.bf16.mxu0 0
      %2264 = vmatpush1.bf16.msra.mxu0 0
      %2265 = vmatprep.subr.bf16.mxu0 0
      %2266 = vmatpush1.bf16.msra.mxu0 0
      %2267 = vmatprep.subr.bf16.mxu0 0
      %2268 = vmatpush1.bf16.msra.mxu0 0
      %2269 = vmatprep.subr.bf16.mxu0 0
      %2270 = vmatpush1.bf16.msra.mxu0 0
      %2271 = vmatprep.subr.bf16.mxu0 0
      %2272 = vmatpush1.bf16.msra.mxu0 0
      %2273 = vmatprep.subr.bf16.mxu0 0
      %2274 = vmatpush1.bf16.msra.mxu0 0
      %2275 = vmatprep.subr.bf16.mxu0 0
      %2276 = vmatpush1.bf16.msra.mxu0 0
      %2277 = vmatprep.subr.bf16.mxu0 0
      %2278 = vmatpush1.bf16.msra.mxu0 0
      %2279 = vmatprep.subr.bf16.mxu0 0
      %2280 = vmatpush1.bf16.msra.mxu0 0
      %2281 = vmatprep.mubr.bf16.mxu0 0
      %2282 = vmatmul.mubr.bf16.gmra.mrb[0].mxu0 %v2042
      %v2283 = vpop.f32.mrb[0].mxu0
      %v2284 = vadd.f32 0.0, %v2283
      %v2285 = vpop.f32.mrb[0].mxu0
      %v2286 = vpop.f32.mrb[0].mxu0
      %v2287 = vadd.f32 0.0, %v2286
      %v2288 = vpop.f32.mrb[0].mxu0
      %2289 = vdwg.mxu0
      %2290 = vmatprep.subr.bf16.mxu0 0
      %2291 = vmatpush1.bf16.msra.mxu0 %v527
      %2292 = vmatprep.subr.bf16.mxu0 0
      %2293 = vmatpush1.bf16.msra.mxu0 0
      %2294 = vmatprep.subr.bf16.mxu0 0
      %2295 = vmatpush1.bf16.msra.mxu0 0
      %2296 = vmatprep.subr.bf16.mxu0 0
      %2297 = vmatpush1.bf16.msra.mxu0 0
      %2298 = vmatprep.subr.bf16.mxu0 0
      %2299 = vmatpush1.bf16.msra.mxu0 0
      %2300 = vmatprep.subr.bf16.mxu0 0
      %2301 = vmatpush1.bf16.msra.mxu0 0
      %2302 = vmatprep.subr.bf16.mxu0 0
      %2303 = vmatpush1.bf16.msra.mxu0 0
      %2304 = vmatprep.subr.bf16.mxu0 0
      %2305 = vmatpush1.bf16.msra.mxu0 0
      %2306 = vmatprep.subr.bf16.mxu0 0
      %2307 = vmatpush1.bf16.msra.mxu0 0
      %2308 = vmatprep.subr.bf16.mxu0 0
      %2309 = vmatpush1.bf16.msra.mxu0 0
      %2310 = vmatprep.subr.bf16.mxu0 0
      %2311 = vmatpush1.bf16.msra.mxu0 0
      %2312 = vmatprep.subr.bf16.mxu0 0
      %2313 = vmatpush1.bf16.msra.mxu0 0
      %2314 = vmatprep.subr.bf16.mxu0 0
      %2315 = vmatpush1.bf16.msra.mxu0 0
      %2316 = vmatprep.subr.bf16.mxu0 0
      %2317 = vmatpush1.bf16.msra.mxu0 0
      %2318 = vmatprep.subr.bf16.mxu0 0
      %2319 = vmatpush1.bf16.msra.mxu0 0
      %2320 = vmatprep.subr.bf16.mxu0 0
      %2321 = vmatpush1.bf16.msra.mxu0 0
      %2322 = vmatprep.mubr.bf16.mxu0 0
      %2323 = vmatmul.mubr.bf16.gmra.mrb[0].mxu0 %v2042
      %v2324 = vpop.f32.mrb[0].mxu0
      %v2325 = vadd.f32 0.0, %v2324
      %v2326 = vpop.f32.mrb[0].mxu0
      %v2327 = vpop.f32.mrb[0].mxu0
      %v2328 = vadd.f32 0.0, %v2327
      %v2329 = vpop.f32.mrb[0].mxu0
      %2330 = vdwg.mxu0
      %2331 = vmatprep.subr.bf16.mxu0 0
      %2332 = vmatpush1.bf16.msra.mxu0 %v528
      %2333 = vmatprep.subr.bf16.mxu0 0
      %2334 = vmatpush1.bf16.msra.mxu0 0
      %2335 = vmatprep.subr.bf16.mxu0 0
      %2336 = vmatpush1.bf16.msra.mxu0 0
      %2337 = vmatprep.subr.bf16.mxu0 0
      %2338 = vmatpush1.bf16.msra.mxu0 0
      %2339 = vmatprep.subr.bf16.mxu0 0
      %2340 = vmatpush1.bf16.msra.mxu0 0
      %2341 = vmatprep.subr.bf16.mxu0 0
      %2342 = vmatpush1.bf16.msra.mxu0 0
      %2343 = vmatprep.subr.bf16.mxu0 0
      %2344 = vmatpush1.bf16.msra.mxu0 0
      %2345 = vmatprep.subr.bf16.mxu0 0
      %2346 = vmatpush1.bf16.msra.mxu0 0
      %2347 = vmatprep.subr.bf16.mxu0 0
      %2348 = vmatpush1.bf16.msra.mxu0 0
      %2349 = vmatprep.subr.bf16.mxu0 0
      %2350 = vmatpush1.bf16.msra.mxu0 0
      %2351 = vmatprep.subr.bf16.mxu0 0
      %2352 = vmatpush1.bf16.msra.mxu0 0
      %2353 = vmatprep.subr.bf16.mxu0 0
      %2354 = vmatpush1.bf16.msra.mxu0 0
      %2355 = vmatprep.subr.bf16.mxu0 0
      %2356 = vmatpush1.bf16.msra.mxu0 0
      %2357 = vmatprep.subr.bf16.mxu0 0
      %2358 = vmatpush1.bf16.msra.mxu0 0
      %2359 = vmatprep.subr.bf16.mxu0 0
      %2360 = vmatpush1.bf16.msra.mxu0 0
      %2361 = vmatprep.subr.bf16.mxu0 0
      %2362 = vmatpush1.bf16.msra.mxu0 0
      %2363 = vmatprep.mubr.bf16.mxu0 0
      %2364 = vmatmul.mubr.bf16.gmra.mrb[0].mxu0 %v2042
      %v2365 = vpop.f32.mrb[0].mxu0
      %v2366 = vadd.f32 0.0, %v2365
      %v2367 = vpop.f32.mrb[0].mxu0
      %v2368 = vpop.f32.mrb[0].mxu0
      %v2369 = vadd.f32 0.0, %v2368
      %v2370 = vpop.f32.mrb[0].mxu0
      %2371 = vdwg.mxu0
      %2372 = vrot.lane.b32.xlu0 %v782, 96
      %v2373 = vpop.permute.xlu0 %2372
      %2374 = vrot.lane.b32.xlu0 %v774, 96
      %v2375 = vpop.permute.xlu0 %2374
      %v2377 = vsel %vm790, %v2373, 0
      %v2380 = vsel %vm790, %v2375, 0
      %2382 = vmatprep.subr.bf16.mxu0 0
      %2383 = vmatpush1.bf16.xpose.msra.mxu0 %v2380
      %2384 = vmatprep.subr.bf16.mxu0 0
      %2385 = vmatpush1.bf16.xpose.msra.mxu0 0
      %2386 = vmatprep.subr.bf16.mxu0 0
      %2387 = vmatpush1.bf16.xpose.msra.mxu0 0
      %2388 = vmatprep.subr.bf16.mxu0 0
      %2389 = vmatpush1.bf16.xpose.msra.mxu0 0
      %2390 = vmatprep.subr.bf16.mxu0 0
      %2391 = vmatpush1.bf16.xpose.msra.mxu0 0
      %2392 = vmatprep.subr.bf16.mxu0 0
      %2393 = vmatpush1.bf16.xpose.msra.mxu0 0
      %2394 = vmatprep.subr.bf16.mxu0 0
      %2395 = vmatpush1.bf16.xpose.msra.mxu0 0
      %2396 = vmatprep.subr.bf16.mxu0 0
      %2397 = vmatpush1.bf16.xpose.msra.mxu0 0
      %2398 = vmatprep.subr.bf16.mxu0 0
      %2399 = vmatpush1.bf16.xpose.msra.mxu0 0
      %2400 = vmatprep.subr.bf16.mxu0 0
      %2401 = vmatpush1.bf16.xpose.msra.mxu0 0
      %2402 = vmatprep.subr.bf16.mxu0 0
      %2403 = vmatpush1.bf16.xpose.msra.mxu0 0
      %2404 = vmatprep.subr.bf16.mxu0 0
      %2405 = vmatpush1.bf16.xpose.msra.mxu0 0
      %2406 = vmatprep.subr.bf16.mxu0 0
      %2407 = vmatpush1.bf16.xpose.msra.mxu0 0
      %2408 = vmatprep.subr.bf16.mxu0 0
      %2409 = vmatpush1.bf16.xpose.msra.mxu0 0
      %2410 = vmatprep.subr.bf16.mxu0 0
      %2411 = vmatpush1.bf16.xpose.msra.mxu0 0
      %2412 = vmatprep.subr.bf16.mxu0 0
      %2413 = vmatpush1.bf16.xpose.msra.mxu0 0
      %2414 = vmatprep.mubr.bf16.mxu0 0
      %2415 = vmatmul.mubr.bf16.gmra.mrb[0].mxu0 %v2377
      %v2416 = vpop.f32.mrb[0].mxu0
      %v2417 = vadd.f32 0.0, %v2416
      %v2418 = vpop.f32.mrb[0].mxu0
      %v2419 = vpop.f32.mrb[0].mxu0
      %v2420 = vadd.f32 0.0, %v2419
      %v2421 = vpop.f32.mrb[0].mxu0
      %2422 = vdwg.mxu0
      %2423 = vrot.lane.b32.xlu0 %v783, 96
      %v2424 = vpop.permute.xlu0 %2423
      %2425 = vrot.lane.b32.xlu0 %v775, 96
      %v2426 = vpop.permute.xlu0 %2425
      %v2428 = vsel %vm790, %v2424, 0
      %v2431 = vsel %vm790, %v2426, 0
      %2433 = vmatprep.subr.bf16.mxu0 0
      %2434 = vmatpush1.bf16.xpose.msra.mxu0 %v2431
      %2435 = vmatprep.subr.bf16.mxu0 0
      %2436 = vmatpush1.bf16.xpose.msra.mxu0 0
      %2437 = vmatprep.subr.bf16.mxu0 0
      %2438 = vmatpush1.bf16.xpose.msra.mxu0 0
      %2439 = vmatprep.subr.bf16.mxu0 0
      %2440 = vmatpush1.bf16.xpose.msra.mxu0 0
      %2441 = vmatprep.subr.bf16.mxu0 0
      %2442 = vmatpush1.bf16.xpose.msra.mxu0 0
      %2443 = vmatprep.subr.bf16.mxu0 0
      %2444 = vmatpush1.bf16.xpose.msra.mxu0 0
      %2445 = vmatprep.subr.bf16.mxu0 0
      %2446 = vmatpush1.bf16.xpose.msra.mxu0 0
      %2447 = vmatprep.subr.bf16.mxu0 0
      %2448 = vmatpush1.bf16.xpose.msra.mxu0 0
      %2449 = vmatprep.subr.bf16.mxu0 0
      %2450 = vmatpush1.bf16.xpose.msra.mxu0 0
      %2451 = vmatprep.subr.bf16.mxu0 0
      %2452 = vmatpush1.bf16.xpose.msra.mxu0 0
      %2453 = vmatprep.subr.bf16.mxu0 0
      %2454 = vmatpush1.bf16.xpose.msra.mxu0 0
      %2455 = vmatprep.subr.bf16.mxu0 0
      %2456 = vmatpush1.bf16.xpose.msra.mxu0 0
      %2457 = vmatprep.subr.bf16.mxu0 0
      %2458 = vmatpush1.bf16.xpose.msra.mxu0 0
      %2459 = vmatprep.subr.bf16.mxu0 0
      %2460 = vmatpush1.bf16.xpose.msra.mxu0 0
      %2461 = vmatprep.subr.bf16.mxu0 0
      %2462 = vmatpush1.bf16.xpose.msra.mxu0 0
      %2463 = vmatprep.subr.bf16.mxu0 0
      %2464 = vmatpush1.bf16.xpose.msra.mxu0 0
      %2465 = vmatprep.mubr.bf16.mxu0 0
      %2466 = vmatmul.mubr.bf16.gmra.mrb[0].mxu0 %v2428
      %v2467 = vpop.f32.mrb[0].mxu0
      %v2468 = vadd.f32 0.0, %v2467
      %v2469 = vpop.f32.mrb[0].mxu0
      %v2470 = vpop.f32.mrb[0].mxu0
      %v2471 = vadd.f32 0.0, %v2470
      %v2472 = vpop.f32.mrb[0].mxu0
      %2473 = vdwg.mxu0
      %2474 = vrot.lane.b32.xlu0 %v784, 96
      %v2475 = vpop.permute.xlu0 %2474
      %2476 = vrot.lane.b32.xlu0 %v776, 96
      %v2477 = vpop.permute.xlu0 %2476
      %v2479 = vsel %vm790, %v2475, 0
      %v2482 = vsel %vm790, %v2477, 0
      %2484 = vmatprep.subr.bf16.mxu0 0
      %2485 = vmatpush1.bf16.xpose.msra.mxu0 %v2482
      %2486 = vmatprep.subr.bf16.mxu0 0
      %2487 = vmatpush1.bf16.xpose.msra.mxu0 0
      %2488 = vmatprep.subr.bf16.mxu0 0
      %2489 = vmatpush1.bf16.xpose.msra.mxu0 0
      %2490 = vmatprep.subr.bf16.mxu0 0
      %2491 = vmatpush1.bf16.xpose.msra.mxu0 0
      %2492 = vmatprep.subr.bf16.mxu0 0
      %2493 = vmatpush1.bf16.xpose.msra.mxu0 0
      %2494 = vmatprep.subr.bf16.mxu0 0
      %2495 = vmatpush1.bf16.xpose.msra.mxu0 0
      %2496 = vmatprep.subr.bf16.mxu0 0
      %2497 = vmatpush1.bf16.xpose.msra.mxu0 0
      %2498 = vmatprep.subr.bf16.mxu0 0
      %2499 = vmatpush1.bf16.xpose.msra.mxu0 0
      %2500 = vmatprep.subr.bf16.mxu0 0
      %2501 = vmatpush1.bf16.xpose.msra.mxu0 0
      %2502 = vmatprep.subr.bf16.mxu0 0
      %2503 = vmatpush1.bf16.xpose.msra.mxu0 0
      %2504 = vmatprep.subr.bf16.mxu0 0
      %2505 = vmatpush1.bf16.xpose.msra.mxu0 0
      %2506 = vmatprep.subr.bf16.mxu0 0
      %2507 = vmatpush1.bf16.xpose.msra.mxu0 0
      %2508 = vmatprep.subr.bf16.mxu0 0
      %2509 = vmatpush1.bf16.xpose.msra.mxu0 0
      %2510 = vmatprep.subr.bf16.mxu0 0
      %2511 = vmatpush1.bf16.xpose.msra.mxu0 0
      %2512 = vmatprep.subr.bf16.mxu0 0
      %2513 = vmatpush1.bf16.xpose.msra.mxu0 0
      %2514 = vmatprep.subr.bf16.mxu0 0
      %2515 = vmatpush1.bf16.xpose.msra.mxu0 0
      %2516 = vmatprep.mubr.bf16.mxu0 0
      %2517 = vmatmul.mubr.bf16.gmra.mrb[0].mxu0 %v2479
      %v2518 = vpop.f32.mrb[0].mxu0
      %v2519 = vadd.f32 0.0, %v2518
      %v2520 = vpop.f32.mrb[0].mxu0
      %v2521 = vpop.f32.mrb[0].mxu0
      %v2522 = vadd.f32 0.0, %v2521
      %v2523 = vpop.f32.mrb[0].mxu0
      %2524 = vdwg.mxu0
      %2525 = vrot.lane.b32.xlu0 %v785, 96
      %v2526 = vpop.permute.xlu0 %2525
      %2527 = vrot.lane.b32.xlu0 %v777, 96
      %v2528 = vpop.permute.xlu0 %2527
      %v2530 = vsel %vm790, %v2526, 0
      %v2533 = vsel %vm790, %v2528, 0
      %2535 = vmatprep.subr.bf16.mxu0 0
      %2536 = vmatpush1.bf16.xpose.msra.mxu0 %v2533
      %2537 = vmatprep.subr.bf16.mxu0 0
      %2538 = vmatpush1.bf16.xpose.msra.mxu0 0
      %2539 = vmatprep.subr.bf16.mxu0 0
      %2540 = vmatpush1.bf16.xpose.msra.mxu0 0
      %2541 = vmatprep.subr.bf16.mxu0 0
      %2542 = vmatpush1.bf16.xpose.msra.mxu0 0
      %2543 = vmatprep.subr.bf16.mxu0 0
      %2544 = vmatpush1.bf16.xpose.msra.mxu0 0
      %2545 = vmatprep.subr.bf16.mxu0 0
      %2546 = vmatpush1.bf16.xpose.msra.mxu0 0
      %2547 = vmatprep.subr.bf16.mxu0 0
      %2548 = vmatpush1.bf16.xpose.msra.mxu0 0
      %2549 = vmatprep.subr.bf16.mxu0 0
      %2550 = vmatpush1.bf16.xpose.msra.mxu0 0
      %2551 = vmatprep.subr.bf16.mxu0 0
      %2552 = vmatpush1.bf16.xpose.msra.mxu0 0
      %2553 = vmatprep.subr.bf16.mxu0 0
      %2554 = vmatpush1.bf16.xpose.msra.mxu0 0
      %2555 = vmatprep.subr.bf16.mxu0 0
      %2556 = vmatpush1.bf16.xpose.msra.mxu0 0
      %2557 = vmatprep.subr.bf16.mxu0 0
      %2558 = vmatpush1.bf16.xpose.msra.mxu0 0
      %2559 = vmatprep.subr.bf16.mxu0 0
      %2560 = vmatpush1.bf16.xpose.msra.mxu0 0
      %2561 = vmatprep.subr.bf16.mxu0 0
      %2562 = vmatpush1.bf16.xpose.msra.mxu0 0
      %2563 = vmatprep.subr.bf16.mxu0 0
      %2564 = vmatpush1.bf16.xpose.msra.mxu0 0
      %2565 = vmatprep.subr.bf16.mxu0 0
      %2566 = vmatpush1.bf16.xpose.msra.mxu0 0
      %2567 = vmatprep.mubr.bf16.mxu0 0
      %2568 = vmatmul.mubr.bf16.gmra.mrb[0].mxu0 %v2530
      %v2569 = vpop.f32.mrb[0].mxu0
      %v2570 = vadd.f32 0.0, %v2569
      %v2571 = vpop.f32.mrb[0].mxu0
      %v2572 = vpop.f32.mrb[0].mxu0
      %v2573 = vadd.f32 0.0, %v2572
      %v2574 = vpop.f32.mrb[0].mxu0
      %2575 = vdwg.mxu0
      %2576 = vrot.lane.b32.xlu0 %v786, 96
      %v2577 = vpop.permute.xlu0 %2576
      %2578 = vrot.lane.b32.xlu0 %v778, 96
      %v2579 = vpop.permute.xlu0 %2578
      %v2581 = vsel %vm790, %v2577, 0
      %v2584 = vsel %vm790, %v2579, 0
      %2586 = vmatprep.subr.bf16.mxu0 0
      %2587 = vmatpush1.bf16.xpose.msra.mxu0 %v2584
      %2588 = vmatprep.subr.bf16.mxu0 0
      %2589 = vmatpush1.bf16.xpose.msra.mxu0 0
      %2590 = vmatprep.subr.bf16.mxu0 0
      %2591 = vmatpush1.bf16.xpose.msra.mxu0 0
      %2592 = vmatprep.subr.bf16.mxu0 0
      %2593 = vmatpush1.bf16.xpose.msra.mxu0 0
      %2594 = vmatprep.subr.bf16.mxu0 0
      %2595 = vmatpush1.bf16.xpose.msra.mxu0 0
      %2596 = vmatprep.subr.bf16.mxu0 0
      %2597 = vmatpush1.bf16.xpose.msra.mxu0 0
      %2598 = vmatprep.subr.bf16.mxu0 0
      %2599 = vmatpush1.bf16.xpose.msra.mxu0 0
      %2600 = vmatprep.subr.bf16.mxu0 0
      %2601 = vmatpush1.bf16.xpose.msra.mxu0 0
      %2602 = vmatprep.subr.bf16.mxu0 0
      %2603 = vmatpush1.bf16.xpose.msra.mxu0 0
      %2604 = vmatprep.subr.bf16.mxu0 0
      %2605 = vmatpush1.bf16.xpose.msra.mxu0 0
      %2606 = vmatprep.subr.bf16.mxu0 0
      %2607 = vmatpush1.bf16.xpose.msra.mxu0 0
      %2608 = vmatprep.subr.bf16.mxu0 0
      %2609 = vmatpush1.bf16.xpose.msra.mxu0 0
      %2610 = vmatprep.subr.bf16.mxu0 0
      %2611 = vmatpush1.bf16.xpose.msra.mxu0 0
      %2612 = vmatprep.subr.bf16.mxu0 0
      %2613 = vmatpush1.bf16.xpose.msra.mxu0 0
      %2614 = vmatprep.subr.bf16.mxu0 0
      %2615 = vmatpush1.bf16.xpose.msra.mxu0 0
      %2616 = vmatprep.subr.bf16.mxu0 0
      %2617 = vmatpush1.bf16.xpose.msra.mxu0 0
      %2618 = vmatprep.mubr.bf16.mxu0 0
      %2619 = vmatmul.mubr.bf16.gmra.mrb[0].mxu0 %v2581
      %v2620 = vpop.f32.mrb[0].mxu0
      %v2621 = vadd.f32 0.0, %v2620
      %v2622 = vpop.f32.mrb[0].mxu0
      %v2623 = vpop.f32.mrb[0].mxu0
      %v2624 = vadd.f32 0.0, %v2623
      %v2625 = vpop.f32.mrb[0].mxu0
      %2626 = vdwg.mxu0
      %2627 = vrot.lane.b32.xlu0 %v787, 96
      %v2628 = vpop.permute.xlu0 %2627
      %2629 = vrot.lane.b32.xlu0 %v779, 96
      %v2630 = vpop.permute.xlu0 %2629
      %v2632 = vsel %vm790, %v2628, 0
      %v2635 = vsel %vm790, %v2630, 0
      %2637 = vmatprep.subr.bf16.mxu0 0
      %2638 = vmatpush1.bf16.xpose.msra.mxu0 %v2635
      %2639 = vmatprep.subr.bf16.mxu0 0
      %2640 = vmatpush1.bf16.xpose.msra.mxu0 0
      %2641 = vmatprep.subr.bf16.mxu0 0
      %2642 = vmatpush1.bf16.xpose.msra.mxu0 0
      %2643 = vmatprep.subr.bf16.mxu0 0
      %2644 = vmatpush1.bf16.xpose.msra.mxu0 0
      %2645 = vmatprep.subr.bf16.mxu0 0
      %2646 = vmatpush1.bf16.xpose.msra.mxu0 0
      %2647 = vmatprep.subr.bf16.mxu0 0
      %2648 = vmatpush1.bf16.xpose.msra.mxu0 0
      %2649 = vmatprep.subr.bf16.mxu0 0
      %2650 = vmatpush1.bf16.xpose.msra.mxu0 0
      %2651 = vmatprep.subr.bf16.mxu0 0
      %2652 = vmatpush1.bf16.xpose.msra.mxu0 0
      %2653 = vmatprep.subr.bf16.mxu0 0
      %2654 = vmatpush1.bf16.xpose.msra.mxu0 0
      %2655 = vmatprep.subr.bf16.mxu0 0
      %2656 = vmatpush1.bf16.xpose.msra.mxu0 0
      %2657 = vmatprep.subr.bf16.mxu0 0
      %2658 = vmatpush1.bf16.xpose.msra.mxu0 0
      %2659 = vmatprep.subr.bf16.mxu0 0
      %2660 = vmatpush1.bf16.xpose.msra.mxu0 0
      %2661 = vmatprep.subr.bf16.mxu0 0
      %2662 = vmatpush1.bf16.xpose.msra.mxu0 0
      %2663 = vmatprep.subr.bf16.mxu0 0
      %2664 = vmatpush1.bf16.xpose.msra.mxu0 0
      %2665 = vmatprep.subr.bf16.mxu0 0
      %2666 = vmatpush1.bf16.xpose.msra.mxu0 0
      %2667 = vmatprep.subr.bf16.mxu0 0
      %2668 = vmatpush1.bf16.xpose.msra.mxu0 0
      %2669 = vmatprep.mubr.bf16.mxu0 0
      %2670 = vmatmul.mubr.bf16.gmra.mrb[0].mxu0 %v2632
      %v2671 = vpop.f32.mrb[0].mxu0
      %v2672 = vadd.f32 0.0, %v2671
      %v2673 = vpop.f32.mrb[0].mxu0
      %v2674 = vpop.f32.mrb[0].mxu0
      %v2675 = vadd.f32 0.0, %v2674
      %v2676 = vpop.f32.mrb[0].mxu0
      %2677 = vdwg.mxu0
      %2678 = vrot.lane.b32.xlu0 %v788, 96
      %v2679 = vpop.permute.xlu0 %2678
      %2680 = vrot.lane.b32.xlu0 %v780, 96
      %v2681 = vpop.permute.xlu0 %2680
      %v2683 = vsel %vm790, %v2679, 0
      %v2686 = vsel %vm790, %v2681, 0
      %2688 = vmatprep.subr.bf16.mxu0 0
      %2689 = vmatpush1.bf16.xpose.msra.mxu0 %v2686
      %2690 = vmatprep.subr.bf16.mxu0 0
      %2691 = vmatpush1.bf16.xpose.msra.mxu0 0
      %2692 = vmatprep.subr.bf16.mxu0 0
      %2693 = vmatpush1.bf16.xpose.msra.mxu0 0
      %2694 = vmatprep.subr.bf16.mxu0 0
      %2695 = vmatpush1.bf16.xpose.msra.mxu0 0
      %2696 = vmatprep.subr.bf16.mxu0 0
      %2697 = vmatpush1.bf16.xpose.msra.mxu0 0
      %2698 = vmatprep.subr.bf16.mxu0 0
      %2699 = vmatpush1.bf16.xpose.msra.mxu0 0
      %2700 = vmatprep.subr.bf16.mxu0 0
      %2701 = vmatpush1.bf16.xpose.msra.mxu0 0
      %2702 = vmatprep.subr.bf16.mxu0 0
      %2703 = vmatpush1.bf16.xpose.msra.mxu0 0
      %2704 = vmatprep.subr.bf16.mxu0 0
      %2705 = vmatpush1.bf16.xpose.msra.mxu0 0
      %2706 = vmatprep.subr.bf16.mxu0 0
      %2707 = vmatpush1.bf16.xpose.msra.mxu0 0
      %2708 = vmatprep.subr.bf16.mxu0 0
      %2709 = vmatpush1.bf16.xpose.msra.mxu0 0
      %2710 = vmatprep.subr.bf16.mxu0 0
      %2711 = vmatpush1.bf16.xpose.msra.mxu0 0
      %2712 = vmatprep.subr.bf16.mxu0 0
      %2713 = vmatpush1.bf16.xpose.msra.mxu0 0
      %2714 = vmatprep.subr.bf16.mxu0 0
      %2715 = vmatpush1.bf16.xpose.msra.mxu0 0
      %2716 = vmatprep.subr.bf16.mxu0 0
      %2717 = vmatpush1.bf16.xpose.msra.mxu0 0
      %2718 = vmatprep.subr.bf16.mxu0 0
      %2719 = vmatpush1.bf16.xpose.msra.mxu0 0
      %2720 = vmatprep.mubr.bf16.mxu0 0
      %2721 = vmatmul.mubr.bf16.gmra.mrb[0].mxu0 %v2683
      %v2722 = vpop.f32.mrb[0].mxu0
      %v2723 = vadd.f32 0.0, %v2722
      %v2724 = vpop.f32.mrb[0].mxu0
      %v2725 = vpop.f32.mrb[0].mxu0
      %v2726 = vadd.f32 0.0, %v2725
      %v2727 = vpop.f32.mrb[0].mxu0
      %2728 = vdwg.mxu0
      %2729 = vrot.lane.b32.xlu0 %v789, 96
      %v2730 = vpop.permute.xlu0 %2729
      %2731 = vrot.lane.b32.xlu0 %v781, 96
      %v2732 = vpop.permute.xlu0 %2731
      %v2734 = vsel %vm790, %v2730, 0
      %v2737 = vsel %vm790, %v2732, 0
      %2739 = vmatprep.subr.bf16.mxu0 0
      %2740 = vmatpush1.bf16.xpose.msra.mxu0 %v2737
      %2741 = vmatprep.subr.bf16.mxu0 0
      %2742 = vmatpush1.bf16.xpose.msra.mxu0 0
      %2743 = vmatprep.subr.bf16.mxu0 0
      %2744 = vmatpush1.bf16.xpose.msra.mxu0 0
      %2745 = vmatprep.subr.bf16.mxu0 0
      %2746 = vmatpush1.bf16.xpose.msra.mxu0 0
      %2747 = vmatprep.subr.bf16.mxu0 0
      %2748 = vmatpush1.bf16.xpose.msra.mxu0 0
      %2749 = vmatprep.subr.bf16.mxu0 0
      %2750 = vmatpush1.bf16.xpose.msra.mxu0 0
      %2751 = vmatprep.subr.bf16.mxu0 0
      %2752 = vmatpush1.bf16.xpose.msra.mxu0 0
      %2753 = vmatprep.subr.bf16.mxu0 0
      %2754 = vmatpush1.bf16.xpose.msra.mxu0 0
      %2755 = vmatprep.subr.bf16.mxu0 0
      %2756 = vmatpush1.bf16.xpose.msra.mxu0 0
      %2757 = vmatprep.subr.bf16.mxu0 0
      %2758 = vmatpush1.bf16.xpose.msra.mxu0 0
      %2759 = vmatprep.subr.bf16.mxu0 0
      %2760 = vmatpush1.bf16.xpose.msra.mxu0 0
      %2761 = vmatprep.subr.bf16.mxu0 0
      %2762 = vmatpush1.bf16.xpose.msra.mxu0 0
      %2763 = vmatprep.subr.bf16.mxu0 0
      %2764 = vmatpush1.bf16.xpose.msra.mxu0 0
      %2765 = vmatprep.subr.bf16.mxu0 0
      %2766 = vmatpush1.bf16.xpose.msra.mxu0 0
      %2767 = vmatprep.subr.bf16.mxu0 0
      %2768 = vmatpush1.bf16.xpose.msra.mxu0 0
      %2769 = vmatprep.subr.bf16.mxu0 0
      %2770 = vmatpush1.bf16.xpose.msra.mxu0 0
      %2771 = vmatprep.mubr.bf16.mxu0 0
      %2772 = vmatmul.mubr.bf16.gmra.mrb[0].mxu0 %v2734
      %v2773 = vpop.f32.mrb[0].mxu0
      %v2774 = vadd.f32 0.0, %v2773
      %v2775 = vpop.f32.mrb[0].mxu0
      %v2776 = vpop.f32.mrb[0].mxu0
      %v2777 = vadd.f32 0.0, %v2776
      %v2778 = vpop.f32.mrb[0].mxu0
      %2779 = vdwg.mxu0
      %v2780 = vsel %vm790, %v2417, 0.0
      %v2781 = vsel %vm790, %v2468, 0.0
      %v2782 = vadd.f32 %v2780, %v2781
      %v2783 = vsel %vm790, %v2519, 0.0
      %v2784 = vadd.f32 %v2782, %v2783
      %v2785 = vsel %vm790, %v2570, 0.0
      %v2786 = vadd.f32 %v2784, %v2785
      %v2787 = vsel %vm790, %v2621, 0.0
      %v2788 = vadd.f32 %v2786, %v2787
      %v2789 = vsel %vm790, %v2672, 0.0
      %v2790 = vadd.f32 %v2788, %v2789
      %v2791 = vsel %vm790, %v2723, 0.0
      %v2792 = vadd.f32 %v2790, %v2791
      %v2793 = vsel %vm790, %v2774, 0.0
      %v2794 = vadd.f32 %v2792, %v2793
      %v2795 = vsel %vm790, %v2420, 0.0
      %v2796 = vsel %vm790, %v2471, 0.0
      %v2797 = vadd.f32 %v2795, %v2796
      %v2798 = vsel %vm790, %v2522, 0.0
      %v2799 = vadd.f32 %v2797, %v2798
      %v2800 = vsel %vm790, %v2573, 0.0
      %v2801 = vadd.f32 %v2799, %v2800
      %v2802 = vsel %vm790, %v2624, 0.0
      %v2803 = vadd.f32 %v2801, %v2802
      %v2804 = vsel %vm790, %v2675, 0.0
      %v2805 = vadd.f32 %v2803, %v2804
      %v2806 = vsel %vm790, %v2726, 0.0
      %v2807 = vadd.f32 %v2805, %v2806
      %v2808 = vsel %vm790, %v2777, 0.0
      %v2809 = vadd.f32 %v2807, %v2808
      %v2810 = vmul.f32 %v2794, 0.0078125
      %v2811 = vmul.f32 %v2809, 0.0078125
      %v2812 = vsel %vm790, %v2810, -inf
      %2813 = vmax.xlane.f32.xlu0 %v2812
      %v2814 = vpop.xlane.xlu0 %2813
      %v2815 = vsel %vm790, %v2811, -inf
      %2816 = vmax.xlane.f32.xlu0 %v2815
      %v2817 = vpop.xlane.xlu0 %2816
      %v2818 = vsub.f32 %v2810, %v2814
      %v2819 = vsub.f32 %v2811, %v2817
      %v2820 = vmul.f32 %v2818, 1.442695
      %v2821 = vpow.pop %v2820
      %v2822 = vmul.f32 %v2819, 1.442695
      %v2823 = vpow.pop %v2822
      %v2824 = vsel %vm790, %v2821, 0.0
      %2825 = vadd.xlane.f32.xlu0 %v2824
      %v2826 = vpop.xlane.xlu0 %2825
      %v2827 = vsel %vm790, %v2823, 0.0
      %2828 = vadd.xlane.f32.xlu0 %v2827
      %v2829 = vpop.xlane.xlu0 %2828
      %v2830 = vrcp.pop %v2826
      %v2831 = vmul.f32 %v2821, %v2830
      %v2832 = vrcp.pop %v2829
      %v2833 = vmul.f32 %v2823, %v2832
      %s2834 = scalar_lea.vmem %s7, 32
      %v2835 = vld [vmem:[%s2834] sm:$0xff]
      %v2836 = vld [vmem:[%s2834 + $0x8] sm:$0xff]
      %v2837 = vadd.f32 %v2831, %v2835
      %v2838 = vadd.f32 %v2833, %v2836
      %v2839 = vpack.c.bf16 %v2838, %v2837
      %v2841 = vsel %vm790, %v2839, 0
      %2843 = vmatprep.subr.bf16.mxu0 0
      %2844 = vmatpush1.bf16.msra.mxu0 %v521
      %2845 = vmatprep.subr.bf16.mxu0 0
      %2846 = vmatpush1.bf16.msra.mxu0 0
      %2847 = vmatprep.subr.bf16.mxu0 0
      %2848 = vmatpush1.bf16.msra.mxu0 0
      %2849 = vmatprep.subr.bf16.mxu0 0
      %2850 = vmatpush1.bf16.msra.mxu0 0
      %2851 = vmatprep.subr.bf16.mxu0 0
      %2852 = vmatpush1.bf16.msra.mxu0 0
      %2853 = vmatprep.subr.bf16.mxu0 0
      %2854 = vmatpush1.bf16.msra.mxu0 0
      %2855 = vmatprep.subr.bf16.mxu0 0
      %2856 = vmatpush1.bf16.msra.mxu0 0
      %2857 = vmatprep.subr.bf16.mxu0 0
      %2858 = vmatpush1.bf16.msra.mxu0 0
      %2859 = vmatprep.subr.bf16.mxu0 0
      %2860 = vmatpush1.bf16.msra.mxu0 0
      %2861 = vmatprep.subr.bf16.mxu0 0
      %2862 = vmatpush1.bf16.msra.mxu0 0
      %2863 = vmatprep.subr.bf16.mxu0 0
      %2864 = vmatpush1.bf16.msra.mxu0 0
      %2865 = vmatprep.subr.bf16.mxu0 0
      %2866 = vmatpush1.bf16.msra.mxu0 0
      %2867 = vmatprep.subr.bf16.mxu0 0
      %2868 = vmatpush1.bf16.msra.mxu0 0
      %2869 = vmatprep.subr.bf16.mxu0 0
      %2870 = vmatpush1.bf16.msra.mxu0 0
      %2871 = vmatprep.subr.bf16.mxu0 0
      %2872 = vmatpush1.bf16.msra.mxu0 0
      %2873 = vmatprep.subr.bf16.mxu0 0
      %2874 = vmatpush1.bf16.msra.mxu0 0
      %2875 = vmatprep.mubr.bf16.mxu0 0
      %2876 = vmatmul.mubr.bf16.gmra.mrb[0].mxu0 %v2841
      %v2877 = vpop.f32.mrb[0].mxu0
      %v2878 = vadd.f32 0.0, %v2877
      %v2879 = vpop.f32.mrb[0].mxu0
      %v2880 = vpop.f32.mrb[0].mxu0
      %v2881 = vadd.f32 0.0, %v2880
      %v2882 = vpop.f32.mrb[0].mxu0
      %2883 = vdwg.mxu0
      %2884 = vmatprep.subr.bf16.mxu0 0
      %2885 = vmatpush1.bf16.msra.mxu0 %v522
      %2886 = vmatprep.subr.bf16.mxu0 0
      %2887 = vmatpush1.bf16.msra.mxu0 0
      %2888 = vmatprep.subr.bf16.mxu0 0
      %2889 = vmatpush1.bf16.msra.mxu0 0
      %2890 = vmatprep.subr.bf16.mxu0 0
      %2891 = vmatpush1.bf16.msra.mxu0 0
      %2892 = vmatprep.subr.bf16.mxu0 0
      %2893 = vmatpush1.bf16.msra.mxu0 0
      %2894 = vmatprep.subr.bf16.mxu0 0
      %2895 = vmatpush1.bf16.msra.mxu0 0
      %2896 = vmatprep.subr.bf16.mxu0 0
      %2897 = vmatpush1.bf16.msra.mxu0 0
      %2898 = vmatprep.subr.bf16.mxu0 0
      %2899 = vmatpush1.bf16.msra.mxu0 0
      %2900 = vmatprep.subr.bf16.mxu0 0
      %2901 = vmatpush1.bf16.msra.mxu0 0
      %2902 = vmatprep.subr.bf16.mxu0 0
      %2903 = vmatpush1.bf16.msra.mxu0 0
      %2904 = vmatprep.subr.bf16.mxu0 0
      %2905 = vmatpush1.bf16.msra.mxu0 0
      %2906 = vmatprep.subr.bf16.mxu0 0
      %2907 = vmatpush1.bf16.msra.mxu0 0
      %2908 = vmatprep.subr.bf16.mxu0 0
      %2909 = vmatpush1.bf16.msra.mxu0 0
      %2910 = vmatprep.subr.bf16.mxu0 0
      %2911 = vmatpush1.bf16.msra.mxu0 0
      %2912 = vmatprep.subr.bf16.mxu0 0
      %2913 = vmatpush1.bf16.msra.mxu0 0
      %2914 = vmatprep.subr.bf16.mxu0 0
      %2915 = vmatpush1.bf16.msra.mxu0 0
      %2916 = vmatprep.mubr.bf16.mxu0 0
      %2917 = vmatmul.mubr.bf16.gmra.mrb[0].mxu0 %v2841
      %v2918 = vpop.f32.mrb[0].mxu0
      %v2919 = vadd.f32 0.0, %v2918
      %v2920 = vpop.f32.mrb[0].mxu0
      %v2921 = vpop.f32.mrb[0].mxu0
      %v2922 = vadd.f32 0.0, %v2921
      %v2923 = vpop.f32.mrb[0].mxu0
      %2924 = vdwg.mxu0
      %2925 = vmatprep.subr.bf16.mxu0 0
      %2926 = vmatpush1.bf16.msra.mxu0 %v523
      %2927 = vmatprep.subr.bf16.mxu0 0
      %2928 = vmatpush1.bf16.msra.mxu0 0
      %2929 = vmatprep.subr.bf16.mxu0 0
      %2930 = vmatpush1.bf16.msra.mxu0 0
      %2931 = vmatprep.subr.bf16.mxu0 0
      %2932 = vmatpush1.bf16.msra.mxu0 0
      %2933 = vmatprep.subr.bf16.mxu0 0
      %2934 = vmatpush1.bf16.msra.mxu0 0
      %2935 = vmatprep.subr.bf16.mxu0 0
      %2936 = vmatpush1.bf16.msra.mxu0 0
      %2937 = vmatprep.subr.bf16.mxu0 0
      %2938 = vmatpush1.bf16.msra.mxu0 0
      %2939 = vmatprep.subr.bf16.mxu0 0
      %2940 = vmatpush1.bf16.msra.mxu0 0
      %2941 = vmatprep.subr.bf16.mxu0 0
      %2942 = vmatpush1.bf16.msra.mxu0 0
      %2943 = vmatprep.subr.bf16.mxu0 0
      %2944 = vmatpush1.bf16.msra.mxu0 0
      %2945 = vmatprep.subr.bf16.mxu0 0
      %2946 = vmatpush1.bf16.msra.mxu0 0
      %2947 = vmatprep.subr.bf16.mxu0 0
      %2948 = vmatpush1.bf16.msra.mxu0 0
      %2949 = vmatprep.subr.bf16.mxu0 0
      %2950 = vmatpush1.bf16.msra.mxu0 0
      %2951 = vmatprep.subr.bf16.mxu0 0
      %2952 = vmatpush1.bf16.msra.mxu0 0
      %2953 = vmatprep.subr.bf16.mxu0 0
      %2954 = vmatpush1.bf16.msra.mxu0 0
      %2955 = vmatprep.subr.bf16.mxu0 0
      %2956 = vmatpush1.bf16.msra.mxu0 0
      %2957 = vmatprep.mubr.bf16.mxu0 0
      %2958 = vmatmul.mubr.bf16.gmra.mrb[0].mxu0 %v2841
      %v2959 = vpop.f32.mrb[0].mxu0
      %v2960 = vadd.f32 0.0, %v2959
      %v2961 = vpop.f32.mrb[0].mxu0
      %v2962 = vpop.f32.mrb[0].mxu0
      %v2963 = vadd.f32 0.0, %v2962
      %v2964 = vpop.f32.mrb[0].mxu0
      %2965 = vdwg.mxu0
      %2966 = vmatprep.subr.bf16.mxu0 0
      %2967 = vmatpush1.bf16.msra.mxu0 %v524
      %2968 = vmatprep.subr.bf16.mxu0 0
      %2969 = vmatpush1.bf16.msra.mxu0 0
      %2970 = vmatprep.subr.bf16.mxu0 0
      %2971 = vmatpush1.bf16.msra.mxu0 0
      %2972 = vmatprep.subr.bf16.mxu0 0
      %2973 = vmatpush1.bf16.msra.mxu0 0
      %2974 = vmatprep.subr.bf16.mxu0 0
      %2975 = vmatpush1.bf16.msra.mxu0 0
      %2976 = vmatprep.subr.bf16.mxu0 0
      %2977 = vmatpush1.bf16.msra.mxu0 0
      %2978 = vmatprep.subr.bf16.mxu0 0
      %2979 = vmatpush1.bf16.msra.mxu0 0
      %2980 = vmatprep.subr.bf16.mxu0 0
      %2981 = vmatpush1.bf16.msra.mxu0 0
      %2982 = vmatprep.subr.bf16.mxu0 0
      %2983 = vmatpush1.bf16.msra.mxu0 0
      %2984 = vmatprep.subr.bf16.mxu0 0
      %2985 = vmatpush1.bf16.msra.mxu0 0
      %2986 = vmatprep.subr.bf16.mxu0 0
      %2987 = vmatpush1.bf16.msra.mxu0 0
      %2988 = vmatprep.subr.bf16.mxu0 0
      %2989 = vmatpush1.bf16.msra.mxu0 0
      %2990 = vmatprep.subr.bf16.mxu0 0
      %2991 = vmatpush1.bf16.msra.mxu0 0
      %2992 = vmatprep.subr.bf16.mxu0 0
      %2993 = vmatpush1.bf16.msra.mxu0 0
      %2994 = vmatprep.subr.bf16.mxu0 0
      %2995 = vmatpush1.bf16.msra.mxu0 0
      %2996 = vmatprep.subr.bf16.mxu0 0
      %2997 = vmatpush1.bf16.msra.mxu0 0
      %2998 = vmatprep.mubr.bf16.mxu0 0
      %2999 = vmatmul.mubr.bf16.gmra.mrb[0].mxu0 %v2841
      %v3000 = vpop.f32.mrb[0].mxu0
      %v3001 = vadd.f32 0.0, %v3000
      %v3002 = vpop.f32.mrb[0].mxu0
      %v3003 = vpop.f32.mrb[0].mxu0
      %v3004 = vadd.f32 0.0, %v3003
      %v3005 = vpop.f32.mrb[0].mxu0
      %3006 = vdwg.mxu0
      %3007 = vmatprep.subr.bf16.mxu0 0
      %3008 = vmatpush1.bf16.msra.mxu0 %v525
      %3009 = vmatprep.subr.bf16.mxu0 0
      %3010 = vmatpush1.bf16.msra.mxu0 0
      %3011 = vmatprep.subr.bf16.mxu0 0
      %3012 = vmatpush1.bf16.msra.mxu0 0
      %3013 = vmatprep.subr.bf16.mxu0 0
      %3014 = vmatpush1.bf16.msra.mxu0 0
      %3015 = vmatprep.subr.bf16.mxu0 0
      %3016 = vmatpush1.bf16.msra.mxu0 0
      %3017 = vmatprep.subr.bf16.mxu0 0
      %3018 = vmatpush1.bf16.msra.mxu0 0
      %3019 = vmatprep.subr.bf16.mxu0 0
      %3020 = vmatpush1.bf16.msra.mxu0 0
      %3021 = vmatprep.subr.bf16.mxu0 0
      %3022 = vmatpush1.bf16.msra.mxu0 0
      %3023 = vmatprep.subr.bf16.mxu0 0
      %3024 = vmatpush1.bf16.msra.mxu0 0
      %3025 = vmatprep.subr.bf16.mxu0 0
      %3026 = vmatpush1.bf16.msra.mxu0 0
      %3027 = vmatprep.subr.bf16.mxu0 0
      %3028 = vmatpush1.bf16.msra.mxu0 0
      %3029 = vmatprep.subr.bf16.mxu0 0
      %3030 = vmatpush1.bf16.msra.mxu0 0
      %3031 = vmatprep.subr.bf16.mxu0 0
      %3032 = vmatpush1.bf16.msra.mxu0 0
      %3033 = vmatprep.subr.bf16.mxu0 0
      %3034 = vmatpush1.bf16.msra.mxu0 0
      %3035 = vmatprep.subr.bf16.mxu0 0
      %3036 = vmatpush1.bf16.msra.mxu0 0
      %3037 = vmatprep.subr.bf16.mxu0 0
      %3038 = vmatpush1.bf16.msra.mxu0 0
      %3039 = vmatprep.mubr.bf16.mxu0 0
      %3040 = vmatmul.mubr.bf16.gmra.mrb[0].mxu0 %v2841
      %v3041 = vpop.f32.mrb[0].mxu0
      %v3042 = vadd.f32 0.0, %v3041
      %v3043 = vpop.f32.mrb[0].mxu0
      %v3044 = vpop.f32.mrb[0].mxu0
      %v3045 = vadd.f32 0.0, %v3044
      %v3046 = vpop.f32.mrb[0].mxu0
      %3047 = vdwg.mxu0
      %3048 = vmatprep.subr.bf16.mxu0 0
      %3049 = vmatpush1.bf16.msra.mxu0 %v526
      %3050 = vmatprep.subr.bf16.mxu0 0
      %3051 = vmatpush1.bf16.msra.mxu0 0
      %3052 = vmatprep.subr.bf16.mxu0 0
      %3053 = vmatpush1.bf16.msra.mxu0 0
      %3054 = vmatprep.subr.bf16.mxu0 0
      %3055 = vmatpush1.bf16.msra.mxu0 0
      %3056 = vmatprep.subr.bf16.mxu0 0
      %3057 = vmatpush1.bf16.msra.mxu0 0
      %3058 = vmatprep.subr.bf16.mxu0 0
      %3059 = vmatpush1.bf16.msra.mxu0 0
      %3060 = vmatprep.subr.bf16.mxu0 0
      %3061 = vmatpush1.bf16.msra.mxu0 0
      %3062 = vmatprep.subr.bf16.mxu0 0
      %3063 = vmatpush1.bf16.msra.mxu0 0
      %3064 = vmatprep.subr.bf16.mxu0 0
      %3065 = vmatpush1.bf16.msra.mxu0 0
      %3066 = vmatprep.subr.bf16.mxu0 0
      %3067 = vmatpush1.bf16.msra.mxu0 0
      %3068 = vmatprep.subr.bf16.mxu0 0
      %3069 = vmatpush1.bf16.msra.mxu0 0
      %3070 = vmatprep.subr.bf16.mxu0 0
      %3071 = vmatpush1.bf16.msra.mxu0 0
      %3072 = vmatprep.subr.bf16.mxu0 0
      %3073 = vmatpush1.bf16.msra.mxu0 0
      %3074 = vmatprep.subr.bf16.mxu0 0
      %3075 = vmatpush1.bf16.msra.mxu0 0
      %3076 = vmatprep.subr.bf16.mxu0 0
      %3077 = vmatpush1.bf16.msra.mxu0 0
      %3078 = vmatprep.subr.bf16.mxu0 0
      %3079 = vmatpush1.bf16.msra.mxu0 0
      %3080 = vmatprep.mubr.bf16.mxu0 0
      %3081 = vmatmul.mubr.bf16.gmra.mrb[0].mxu0 %v2841
      %v3082 = vpop.f32.mrb[0].mxu0
      %v3083 = vadd.f32 0.0, %v3082
      %v3084 = vpop.f32.mrb[0].mxu0
      %v3085 = vpop.f32.mrb[0].mxu0
      %v3086 = vadd.f32 0.0, %v3085
      %v3087 = vpop.f32.mrb[0].mxu0
      %3088 = vdwg.mxu0
      %3089 = vmatprep.subr.bf16.mxu0 0
      %3090 = vmatpush1.bf16.msra.mxu0 %v527
      %3091 = vmatprep.subr.bf16.mxu0 0
      %3092 = vmatpush1.bf16.msra.mxu0 0
      %3093 = vmatprep.subr.bf16.mxu0 0
      %3094 = vmatpush1.bf16.msra.mxu0 0
      %3095 = vmatprep.subr.bf16.mxu0 0
      %3096 = vmatpush1.bf16.msra.mxu0 0
      %3097 = vmatprep.subr.bf16.mxu0 0
      %3098 = vmatpush1.bf16.msra.mxu0 0
      %3099 = vmatprep.subr.bf16.mxu0 0
      %3100 = vmatpush1.bf16.msra.mxu0 0
      %3101 = vmatprep.subr.bf16.mxu0 0
      %3102 = vmatpush1.bf16.msra.mxu0 0
      %3103 = vmatprep.subr.bf16.mxu0 0
      %3104 = vmatpush1.bf16.msra.mxu0 0
      %3105 = vmatprep.subr.bf16.mxu0 0
      %3106 = vmatpush1.bf16.msra.mxu0 0
      %3107 = vmatprep.subr.bf16.mxu0 0
      %3108 = vmatpush1.bf16.msra.mxu0 0
      %3109 = vmatprep.subr.bf16.mxu0 0
      %3110 = vmatpush1.bf16.msra.mxu0 0
      %3111 = vmatprep.subr.bf16.mxu0 0
      %3112 = vmatpush1.bf16.msra.mxu0 0
      %3113 = vmatprep.subr.bf16.mxu0 0
      %3114 = vmatpush1.bf16.msra.mxu0 0
      %3115 = vmatprep.subr.bf16.mxu0 0
      %3116 = vmatpush1.bf16.msra.mxu0 0
      %3117 = vmatprep.subr.bf16.mxu0 0
      %3118 = vmatpush1.bf16.msra.mxu0 0
      %3119 = vmatprep.subr.bf16.mxu0 0
      %3120 = vmatpush1.bf16.msra.mxu0 0
      %3121 = vmatprep.mubr.bf16.mxu0 0
      %3122 = vmatmul.mubr.bf16.gmra.mrb[0].mxu0 %v2841
      %v3123 = vpop.f32.mrb[0].mxu0
      %v3124 = vadd.f32 0.0, %v3123
      %v3125 = vpop.f32.mrb[0].mxu0
      %v3126 = vpop.f32.mrb[0].mxu0
      %v3127 = vadd.f32 0.0, %v3126
      %v3128 = vpop.f32.mrb[0].mxu0
      %3129 = vdwg.mxu0
      %3130 = vmatprep.subr.bf16.mxu0 0
      %3131 = vmatpush1.bf16.msra.mxu0 %v528
      %3132 = vmatprep.subr.bf16.mxu0 0
      %3133 = vmatpush1.bf16.msra.mxu0 0
      %3134 = vmatprep.subr.bf16.mxu0 0
      %3135 = vmatpush1.bf16.msra.mxu0 0
      %3136 = vmatprep.subr.bf16.mxu0 0
      %3137 = vmatpush1.bf16.msra.mxu0 0
      %3138 = vmatprep.subr.bf16.mxu0 0
      %3139 = vmatpush1.bf16.msra.mxu0 0
      %3140 = vmatprep.subr.bf16.mxu0 0
      %3141 = vmatpush1.bf16.msra.mxu0 0
      %3142 = vmatprep.subr.bf16.mxu0 0
      %3143 = vmatpush1.bf16.msra.mxu0 0
      %3144 = vmatprep.subr.bf16.mxu0 0
      %3145 = vmatpush1.bf16.msra.mxu0 0
      %3146 = vmatprep.subr.bf16.mxu0 0
      %3147 = vmatpush1.bf16.msra.mxu0 0
      %3148 = vmatprep.subr.bf16.mxu0 0
      %3149 = vmatpush1.bf16.msra.mxu0 0
      %3150 = vmatprep.subr.bf16.mxu0 0
      %3151 = vmatpush1.bf16.msra.mxu0 0
      %3152 = vmatprep.subr.bf16.mxu0 0
      %3153 = vmatpush1.bf16.msra.mxu0 0
      %3154 = vmatprep.subr.bf16.mxu0 0
      %3155 = vmatpush1.bf16.msra.mxu0 0
      %3156 = vmatprep.subr.bf16.mxu0 0
      %3157 = vmatpush1.bf16.msra.mxu0 0
      %3158 = vmatprep.subr.bf16.mxu0 0
      %3159 = vmatpush1.bf16.msra.mxu0 0
      %3160 = vmatprep.subr.bf16.mxu0 0
      %3161 = vmatpush1.bf16.msra.mxu0 0
      %3162 = vmatprep.mubr.bf16.mxu0 0
      %3163 = vmatmul.mubr.bf16.gmra.mrb[0].mxu0 %v2841
      %v3164 = vpop.f32.mrb[0].mxu0
      %v3165 = vadd.f32 0.0, %v3164
      %v3166 = vpop.f32.mrb[0].mxu0
      %v3167 = vpop.f32.mrb[0].mxu0
      %v3168 = vadd.f32 0.0, %v3167
      %v3169 = vpop.f32.mrb[0].mxu0
      %3170 = vdwg.mxu0
      %3187 = vrot.lane.b32.xlu0 %v2079, 3
      %v3188 = vpop.permute.xlu0 %3187
      %3189 = vrot.lane.b32.xlu0 %v2082, 3
      %v3190 = vpop.permute.xlu0 %3189
      %3191 = vrot.lane.b32.xlu0 %v2120, 3
      %v3192 = vpop.permute.xlu0 %3191
      %3193 = vrot.lane.b32.xlu0 %v2123, 3
      %v3194 = vpop.permute.xlu0 %3193
      %3195 = vrot.lane.b32.xlu0 %v2161, 3
      %v3196 = vpop.permute.xlu0 %3195
      %3197 = vrot.lane.b32.xlu0 %v2164, 3
      %v3198 = vpop.permute.xlu0 %3197
      %3199 = vrot.lane.b32.xlu0 %v2202, 3
      %v3200 = vpop.permute.xlu0 %3199
      %3201 = vrot.lane.b32.xlu0 %v2205, 3
      %v3202 = vpop.permute.xlu0 %3201
      %3203 = vrot.lane.b32.xlu0 %v2243, 3
      %v3204 = vpop.permute.xlu0 %3203
      %3205 = vrot.lane.b32.xlu0 %v2246, 3
      %v3206 = vpop.permute.xlu0 %3205
      %3207 = vrot.lane.b32.xlu0 %v2284, 3
      %v3208 = vpop.permute.xlu0 %3207
      %3209 = vrot.lane.b32.xlu0 %v2287, 3
      %v3210 = vpop.permute.xlu0 %3209
      %3211 = vrot.lane.b32.xlu0 %v2325, 3
      %v3212 = vpop.permute.xlu0 %3211
      %3213 = vrot.lane.b32.xlu0 %v2328, 3
      %v3214 = vpop.permute.xlu0 %3213
      %3215 = vrot.lane.b32.xlu0 %v2366, 3
      %v3216 = vpop.permute.xlu0 %3215
      %3217 = vrot.lane.b32.xlu0 %v2369, 3
      %v3218 = vpop.permute.xlu0 %3217
      %3251 = vrot.lane.b32.xlu0 %v2878, 6
      %v3252 = vpop.permute.xlu0 %3251
      %3253 = vrot.lane.b32.xlu0 %v2881, 6
      %v3254 = vpop.permute.xlu0 %3253
      %3255 = vrot.lane.b32.xlu0 %v2919, 6
      %v3256 = vpop.permute.xlu0 %3255
      %3257 = vrot.lane.b32.xlu0 %v2922, 6
      %v3258 = vpop.permute.xlu0 %3257
      %3259 = vrot.lane.b32.xlu0 %v2960, 6
      %v3260 = vpop.permute.xlu0 %3259
      %3261 = vrot.lane.b32.xlu0 %v2963, 6
      %v3262 = vpop.permute.xlu0 %3261
      %3263 = vrot.lane.b32.xlu0 %v3001, 6
      %v3264 = vpop.permute.xlu0 %3263
      %3265 = vrot.lane.b32.xlu0 %v3004, 6
      %v3266 = vpop.permute.xlu0 %3265
      %3267 = vrot.lane.b32.xlu0 %v3042, 6
      %v3268 = vpop.permute.xlu0 %3267
      %3269 = vrot.lane.b32.xlu0 %v3045, 6
      %v3270 = vpop.permute.xlu0 %3269
      %3271 = vrot.lane.b32.xlu0 %v3083, 6
      %v3272 = vpop.permute.xlu0 %3271
      %3273 = vrot.lane.b32.xlu0 %v3086, 6
      %v3274 = vpop.permute.xlu0 %3273
      %3275 = vrot.lane.b32.xlu0 %v3124, 6
      %v3276 = vpop.permute.xlu0 %3275
      %3277 = vrot.lane.b32.xlu0 %v3127, 6
      %v3278 = vpop.permute.xlu0 %3277
      %3279 = vrot.lane.b32.xlu0 %v3165, 6
      %v3280 = vpop.permute.xlu0 %3279
      %3281 = vrot.lane.b32.xlu0 %v3168, 6
      %v3282 = vpop.permute.xlu0 %3281
      %v3299 = vsel %vm537, %v1264, %v3188
      %v3300 = vsel %vm537, %v1267, %v3190
      %v3301 = vsel %vm537, %v1305, %v3192
      %v3302 = vsel %vm537, %v1308, %v3194
      %v3303 = vsel %vm537, %v1346, %v3196
      %v3304 = vsel %vm537, %v1349, %v3198
      %v3305 = vsel %vm537, %v1387, %v3200
      %v3306 = vsel %vm537, %v1390, %v3202
      %v3307 = vsel %vm537, %v1428, %v3204
      %v3308 = vsel %vm537, %v1431, %v3206
      %v3309 = vsel %vm537, %v1469, %v3208
      %v3310 = vsel %vm537, %v1472, %v3210
      %v3311 = vsel %vm537, %v1510, %v3212
      %v3312 = vsel %vm537, %v1513, %v3214
      %v3313 = vsel %vm537, %v1551, %v3216
      %v3314 = vsel %vm537, %v1554, %v3218
      %vm3315 = vcmask 48128
      %v3316 = vsel %vm3315, %v3299, %v3252
      %v3317 = vsel %vm3315, %v3300, %v3254
      %v3318 = vsel %vm3315, %v3301, %v3256
      %v3319 = vsel %vm3315, %v3302, %v3258
      %v3320 = vsel %vm3315, %v3303, %v3260
      %v3321 = vsel %vm3315, %v3304, %v3262
      %v3322 = vsel %vm3315, %v3305, %v3264
      %v3323 = vsel %vm3315, %v3306, %v3266
      %v3324 = vsel %vm3315, %v3307, %v3268
      %v3325 = vsel %vm3315, %v3308, %v3270
      %v3326 = vsel %vm3315, %v3309, %v3272
      %v3327 = vsel %vm3315, %v3310, %v3274
      %v3328 = vsel %vm3315, %v3311, %v3276
      %v3329 = vsel %vm3315, %v3312, %v3278
      %v3330 = vsel %vm3315, %v3313, %v3280
      %v3331 = vsel %vm3315, %v3314, %v3282
      %v3332 = vpack.c.bf16 %v3317, %v3316
      %v3333 = vpack.c.bf16 %v3319, %v3318
      %v3334 = vpack.c.bf16 %v3321, %v3320
      %v3335 = vpack.c.bf16 %v3323, %v3322
      %v3336 = vpack.c.bf16 %v3325, %v3324
      %v3337 = vpack.c.bf16 %v3327, %v3326
      %v3338 = vpack.c.bf16 %v3329, %v3328
      %v3339 = vpack.c.bf16 %v3331, %v3330
      %v3340 = vld [vmem:[%s8] sm:$0xf]
      %v3341 = vld [vmem:[%s8 + $0x4] sm:$0x1]
      %v3342 = vld [vmem:[%s9] sm:$0x1]
      %v3344 = vlaneseq
      %v3345 = vshrl.u32 %v3344, 7
      %v3346 = vsub.s32 0, %v3345
      %v3347 = vrot.slane %v3342, %v3346
      %v3351 = vunpack.c.l.b16 %v3340
      %v3352 = vunpack.c.l.b16 %v3341
      %v3353 = vpack.c.b16 %v3352, %v3351
      %vm3354 = vcmask 72704
      %v3356 = vsel %vm3354, %v3332, 0
      %v3359 = vsel %vm3354, %v3333, 0
      %v3362 = vsel %vm3354, %v3334, 0
      %v3365 = vsel %vm3354, %v3335, 0
      %v3368 = vsel %vm3354, %v3336, 0
      %v3371 = vsel %vm3354, %v3337, 0
      %v3374 = vsel %vm3354, %v3338, 0
      %v3377 = vsel %vm3354, %v3339, 0
      %vm3379 = vcmask 1043456
      %vm3380 = vcmask 1044480
      %v3381 = vsel %vm3379, 4294967295, 65535
      %v3382 = vsel %vm3380, %v3381, 0
      %v3384 = vand.u32 %v3353, %v3382
      %3386 = vmatprep.subr.bf16.mxu0 0
      %3387 = vmatpush1.bf16.msra.mxu0 %v3384
      %3388 = vmatprep.subr.bf16.mxu0 0
      %3389 = vmatpush1.bf16.msra.mxu0 0
      %3390 = vmatprep.subr.bf16.mxu0 0
      %3391 = vmatpush1.bf16.msra.mxu0 0
      %3392 = vmatprep.subr.bf16.mxu0 0
      %3393 = vmatpush1.bf16.msra.mxu0 0
      %3394 = vmatprep.subr.bf16.mxu0 0
      %3395 = vmatpush1.bf16.msra.mxu0 0
      %3396 = vmatprep.subr.bf16.mxu0 0
      %3397 = vmatpush1.bf16.msra.mxu0 0
      %3398 = vmatprep.subr.bf16.mxu0 0
      %3399 = vmatpush1.bf16.msra.mxu0 0
      %3400 = vmatprep.subr.bf16.mxu0 0
      %3401 = vmatpush1.bf16.msra.mxu0 0
      %3402 = vmatprep.subr.bf16.mxu0 0
      %3403 = vmatpush1.bf16.msra.mxu0 0
      %3404 = vmatprep.subr.bf16.mxu0 0
      %3405 = vmatpush1.bf16.msra.mxu0 0
      %3406 = vmatprep.subr.bf16.mxu0 0
      %3407 = vmatpush1.bf16.msra.mxu0 0
      %3408 = vmatprep.subr.bf16.mxu0 0
      %3409 = vmatpush1.bf16.msra.mxu0 0
      %3410 = vmatprep.subr.bf16.mxu0 0
      %3411 = vmatpush1.bf16.msra.mxu0 0
      %3412 = vmatprep.subr.bf16.mxu0 0
      %3413 = vmatpush1.bf16.msra.mxu0 0
      %3414 = vmatprep.subr.bf16.mxu0 0
      %3415 = vmatpush1.bf16.msra.mxu0 0
      %3416 = vmatprep.subr.bf16.mxu0 0
      %3417 = vmatpush1.bf16.msra.mxu0 0
      %3418 = vmatprep.mubr.bf16.mxu0 0
      %3419 = vmatmul.mubr.bf16.gmra.mrb[0].mxu0 %v3356
      %v3420 = vpop.f32.mrb[0].mxu0
      %v3421 = vadd.f32 %v3347, %v3420
      %v3422 = vpop.f32.mrb[0].mxu0
      %v3423 = vpop.f32.mrb[0].mxu0
      %v3424 = vadd.f32 %v3347, %v3423
      %v3425 = vpop.f32.mrb[0].mxu0
      %3426 = vmatprep.mubr.bf16.mxu0 0
      %3427 = vmatmul.mubr.bf16.gmra.mrb[0].mxu0 %v3359
      %v3428 = vpop.f32.mrb[0].mxu0
      %v3429 = vadd.f32 %v3347, %v3428
      %v3430 = vpop.f32.mrb[0].mxu0
      %v3431 = vpop.f32.mrb[0].mxu0
      %v3432 = vadd.f32 %v3347, %v3431
      %v3433 = vpop.f32.mrb[0].mxu0
      %3434 = vmatprep.mubr.bf16.mxu0 0
      %3435 = vmatmul.mubr.bf16.gmra.mrb[0].mxu0 %v3362
      %v3436 = vpop.f32.mrb[0].mxu0
      %v3437 = vadd.f32 %v3347, %v3436
      %v3438 = vpop.f32.mrb[0].mxu0
      %v3439 = vpop.f32.mrb[0].mxu0
      %v3440 = vadd.f32 %v3347, %v3439
      %v3441 = vpop.f32.mrb[0].mxu0
      %3442 = vmatprep.mubr.bf16.mxu0 0
      %3443 = vmatmul.mubr.bf16.gmra.mrb[0].mxu0 %v3365
      %v3444 = vpop.f32.mrb[0].mxu0
      %v3445 = vadd.f32 %v3347, %v3444
      %v3446 = vpop.f32.mrb[0].mxu0
      %v3447 = vpop.f32.mrb[0].mxu0
      %v3448 = vadd.f32 %v3347, %v3447
      %v3449 = vpop.f32.mrb[0].mxu0
      %3450 = vmatprep.mubr.bf16.mxu0 0
      %3451 = vmatmul.mubr.bf16.gmra.mrb[0].mxu0 %v3368
      %v3452 = vpop.f32.mrb[0].mxu0
      %v3453 = vadd.f32 %v3347, %v3452
      %v3454 = vpop.f32.mrb[0].mxu0
      %v3455 = vpop.f32.mrb[0].mxu0
      %v3456 = vadd.f32 %v3347, %v3455
      %v3457 = vpop.f32.mrb[0].mxu0
      %3458 = vmatprep.mubr.bf16.mxu0 0
      %3459 = vmatmul.mubr.bf16.gmra.mrb[0].mxu0 %v3371
      %v3460 = vpop.f32.mrb[0].mxu0
      %v3461 = vadd.f32 %v3347, %v3460
      %v3462 = vpop.f32.mrb[0].mxu0
      %v3463 = vpop.f32.mrb[0].mxu0
      %v3464 = vadd.f32 %v3347, %v3463
      %v3465 = vpop.f32.mrb[0].mxu0
      %3466 = vmatprep.mubr.bf16.mxu0 0
      %3467 = vmatmul.mubr.bf16.gmra.mrb[0].mxu0 %v3374
      %v3468 = vpop.f32.mrb[0].mxu0
      %v3469 = vadd.f32 %v3347, %v3468
      %v3470 = vpop.f32.mrb[0].mxu0
      %v3471 = vpop.f32.mrb[0].mxu0
      %v3472 = vadd.f32 %v3347, %v3471
      %v3473 = vpop.f32.mrb[0].mxu0
      %3474 = vmatprep.mubr.bf16.mxu0 0
      %3475 = vmatmul.mubr.bf16.gmra.mrb[0].mxu0 %v3377
      %v3476 = vpop.f32.mrb[0].mxu0
      %v3477 = vadd.f32 %v3347, %v3476
      %v3478 = vpop.f32.mrb[0].mxu0
      %v3479 = vpop.f32.mrb[0].mxu0
      %v3480 = vadd.f32 %v3347, %v3479
      %v3481 = vpop.f32.mrb[0].mxu0
      %3482 = vdwg.mxu0
      %v3483 = vld [vmem:[%s10] sm:$0x7]
      %v3484 = vld [vmem:[%s11] sm:$0x1]
      %v3486 = vlaneseq
      %v3487 = vshrl.u32 %v3486, 7
      %v3488 = vsub.s32 0, %v3487
      %v3489 = vrot.slane %v3484, %v3488
      %v3492 = vsel %vm537, %v505, 0
      %v3495 = vsel %vm537, %v506, 0
      %v3498 = vsel %vm537, %v507, 0
      %v3501 = vsel %vm537, %v508, 0
      %v3504 = vsel %vm537, %v509, 0
      %v3507 = vsel %vm537, %v510, 0
      %v3510 = vsel %vm537, %v511, 0
      %v3513 = vsel %vm537, %v512, 0
      %v3516 = vsel %vm537, %v513, 0
      %v3519 = vsel %vm537, %v514, 0
      %v3522 = vsel %vm537, %v515, 0
      %v3525 = vsel %vm537, %v516, 0
      %v3528 = vsel %vm537, %v517, 0
      %v3531 = vsel %vm537, %v518, 0
      %v3534 = vsel %vm537, %v519, 0
      %v3537 = vsel %vm537, %v520, 0
      %vm3539 = vcmask 1042432
      %v3541 = vsel %vm3539, %v3483, 0
      %3543 = vmatprep.subr.mxu0 0.0
      %3544 = vmatpush1.msra.mxu0 %v3541
      %3545 = vmatprep.subr.mxu0 0.0
      %3546 = vmatpush1.msra.mxu0 0.0
      %3547 = vmatprep.subr.mxu0 0.0
      %3548 = vmatpush1.msra.mxu0 0.0
      %3549 = vmatprep.subr.mxu0 0.0
      %3550 = vmatpush1.msra.mxu0 0.0
      %3551 = vmatprep.subr.mxu0 0.0
      %3552 = vmatpush1.msra.mxu0 0.0
      %3553 = vmatprep.subr.mxu0 0.0
      %3554 = vmatpush1.msra.mxu0 0.0
      %3555 = vmatprep.subr.mxu0 0.0
      %3556 = vmatpush1.msra.mxu0 0.0
      %3557 = vmatprep.subr.mxu0 0.0
      %3558 = vmatpush1.msra.mxu0 0.0
      %3559 = vmatprep.subr.mxu0 0.0
      %3560 = vmatpush1.msra.mxu0 0.0
      %3561 = vmatprep.subr.mxu0 0.0
      %3562 = vmatpush1.msra.mxu0 0.0
      %3563 = vmatprep.subr.mxu0 0.0
      %3564 = vmatpush1.msra.mxu0 0.0
      %3565 = vmatprep.subr.mxu0 0.0
      %3566 = vmatpush1.msra.mxu0 0.0
      %3567 = vmatprep.subr.mxu0 0.0
      %3568 = vmatpush1.msra.mxu0 0.0
      %3569 = vmatprep.subr.mxu0 0.0
      %3570 = vmatpush1.msra.mxu0 0.0
      %3571 = vmatprep.subr.mxu0 0.0
      %3572 = vmatpush1.msra.mxu0 0.0
      %3573 = vmatprep.subr.mxu0 0.0
      %3574 = vmatpush1.msra.mxu0 0.0
      %3575 = vmatprep.subr.mxu0 0.0
      %3576 = vmatpush1.msra.mxu0 0.0
      %3577 = vmatprep.subr.mxu0 0.0
      %3578 = vmatpush1.msra.mxu0 0.0
      %3579 = vmatprep.subr.mxu0 0.0
      %3580 = vmatpush1.msra.mxu0 0.0
      %3581 = vmatprep.subr.mxu0 0.0
      %3582 = vmatpush1.msra.mxu0 0.0
      %3583 = vmatprep.subr.mxu0 0.0
      %3584 = vmatpush1.msra.mxu0 0.0
      %3585 = vmatprep.subr.mxu0 0.0
      %3586 = vmatpush1.msra.mxu0 0.0
      %3587 = vmatprep.subr.mxu0 0.0
      %3588 = vmatpush1.msra.mxu0 0.0
      %3589 = vmatprep.subr.mxu0 0.0
      %3590 = vmatpush1.msra.mxu0 0.0
      %3591 = vmatprep.subr.mxu0 0.0
      %3592 = vmatpush1.msra.mxu0 0.0
      %3593 = vmatprep.subr.mxu0 0.0
      %3594 = vmatpush1.msra.mxu0 0.0
      %3595 = vmatprep.subr.mxu0 0.0
      %3596 = vmatpush1.msra.mxu0 0.0
      %3597 = vmatprep.subr.mxu0 0.0
      %3598 = vmatpush1.msra.mxu0 0.0
      %3599 = vmatprep.subr.mxu0 0.0
      %3600 = vmatpush1.msra.mxu0 0.0
      %3601 = vmatprep.subr.mxu0 0.0
      %3602 = vmatpush1.msra.mxu0 0.0
      %3603 = vmatprep.subr.mxu0 0.0
      %3604 = vmatpush1.msra.mxu0 0.0
      %3605 = vmatprep.subr.mxu0 0.0
      %3606 = vmatpush1.msra.mxu0 0.0
      %3607 = vmatprep.mubr.f32.mxu0 0.0
      %3608 = vmatmul.mubr.f32.gmra.mrb[0].mxu0 %v3492
      %v3609 = vpop.f32.mrb[0].mxu0
      %v3610 = vadd.f32 %v3489, %v3609
      %v3611 = vpop.f32.mrb[0].mxu0
      %3612 = vmatprep.mubr.f32.mxu0 0.0
      %3613 = vmatmul.mubr.f32.gmra.mrb[0].mxu0 %v3495
      %v3614 = vpop.f32.mrb[0].mxu0
      %v3615 = vadd.f32 %v3489, %v3614
      %v3616 = vpop.f32.mrb[0].mxu0
      %3617 = vmatprep.mubr.f32.mxu0 0.0
      %3618 = vmatmul.mubr.f32.gmra.mrb[0].mxu0 %v3498
      %v3619 = vpop.f32.mrb[0].mxu0
      %v3620 = vadd.f32 %v3489, %v3619
      %v3621 = vpop.f32.mrb[0].mxu0
      %3622 = vmatprep.mubr.f32.mxu0 0.0
      %3623 = vmatmul.mubr.f32.gmra.mrb[0].mxu0 %v3501
      %v3624 = vpop.f32.mrb[0].mxu0
      %v3625 = vadd.f32 %v3489, %v3624
      %v3626 = vpop.f32.mrb[0].mxu0
      %3627 = vmatprep.mubr.f32.mxu0 0.0
      %3628 = vmatmul.mubr.f32.gmra.mrb[0].mxu0 %v3504
      %v3629 = vpop.f32.mrb[0].mxu0
      %v3630 = vadd.f32 %v3489, %v3629
      %v3631 = vpop.f32.mrb[0].mxu0
      %3632 = vmatprep.mubr.f32.mxu0 0.0
      %3633 = vmatmul.mubr.f32.gmra.mrb[0].mxu0 %v3507
      %v3634 = vpop.f32.mrb[0].mxu0
      %v3635 = vadd.f32 %v3489, %v3634
      %v3636 = vpop.f32.mrb[0].mxu0
      %3637 = vmatprep.mubr.f32.mxu0 0.0
      %3638 = vmatmul.mubr.f32.gmra.mrb[0].mxu0 %v3510
      %v3639 = vpop.f32.mrb[0].mxu0
      %v3640 = vadd.f32 %v3489, %v3639
      %v3641 = vpop.f32.mrb[0].mxu0
      %3642 = vmatprep.mubr.f32.mxu0 0.0
      %3643 = vmatmul.mubr.f32.gmra.mrb[0].mxu0 %v3513
      %v3644 = vpop.f32.mrb[0].mxu0
      %v3645 = vadd.f32 %v3489, %v3644
      %v3646 = vpop.f32.mrb[0].mxu0
      %3647 = vmatprep.mubr.f32.mxu0 0.0
      %3648 = vmatmul.mubr.f32.gmra.mrb[0].mxu0 %v3516
      %v3649 = vpop.f32.mrb[0].mxu0
      %v3650 = vadd.f32 %v3489, %v3649
      %v3651 = vpop.f32.mrb[0].mxu0
      %3652 = vmatprep.mubr.f32.mxu0 0.0
      %3653 = vmatmul.mubr.f32.gmra.mrb[0].mxu0 %v3519
      %v3654 = vpop.f32.mrb[0].mxu0
      %v3655 = vadd.f32 %v3489, %v3654
      %v3656 = vpop.f32.mrb[0].mxu0
      %3657 = vmatprep.mubr.f32.mxu0 0.0
      %3658 = vmatmul.mubr.f32.gmra.mrb[0].mxu0 %v3522
      %v3659 = vpop.f32.mrb[0].mxu0
      %v3660 = vadd.f32 %v3489, %v3659
      %v3661 = vpop.f32.mrb[0].mxu0
      %3662 = vmatprep.mubr.f32.mxu0 0.0
      %3663 = vmatmul.mubr.f32.gmra.mrb[0].mxu0 %v3525
      %v3664 = vpop.f32.mrb[0].mxu0
      %v3665 = vadd.f32 %v3489, %v3664
      %v3666 = vpop.f32.mrb[0].mxu0
      %3667 = vmatprep.mubr.f32.mxu0 0.0
      %3668 = vmatmul.mubr.f32.gmra.mrb[0].mxu0 %v3528
      %v3669 = vpop.f32.mrb[0].mxu0
      %v3670 = vadd.f32 %v3489, %v3669
      %v3671 = vpop.f32.mrb[0].mxu0
      %3672 = vmatprep.mubr.f32.mxu0 0.0
      %3673 = vmatmul.mubr.f32.gmra.mrb[0].mxu0 %v3531
      %v3674 = vpop.f32.mrb[0].mxu0
      %v3675 = vadd.f32 %v3489, %v3674
      %v3676 = vpop.f32.mrb[0].mxu0
      %3677 = vmatprep.mubr.f32.mxu0 0.0
      %3678 = vmatmul.mubr.f32.gmra.mrb[0].mxu0 %v3534
      %v3679 = vpop.f32.mrb[0].mxu0
      %v3680 = vadd.f32 %v3489, %v3679
      %v3681 = vpop.f32.mrb[0].mxu0
      %3682 = vmatprep.mubr.f32.mxu0 0.0
      %3683 = vmatmul.mubr.f32.gmra.mrb[0].mxu0 %v3537
      %v3684 = vpop.f32.mrb[0].mxu0
      %v3685 = vadd.f32 %v3489, %v3684
      %v3686 = vpop.f32.mrb[0].mxu0
      %3687 = vdwg.mxu0
      %v3688 = vadd.f32 %v3421, %v3610
      %v3689 = vadd.f32 %v3424, %v3615
      %v3690 = vadd.f32 %v3429, %v3620
      %v3691 = vadd.f32 %v3432, %v3625
      %v3692 = vadd.f32 %v3437, %v3630
      %v3693 = vadd.f32 %v3440, %v3635
      %v3694 = vadd.f32 %v3445, %v3640
      %v3695 = vadd.f32 %v3448, %v3645
      %v3696 = vadd.f32 %v3453, %v3650
      %v3697 = vadd.f32 %v3456, %v3655
      %v3698 = vadd.f32 %v3461, %v3660
      %v3699 = vadd.f32 %v3464, %v3665
      %v3700 = vadd.f32 %v3469, %v3670
      %v3701 = vadd.f32 %v3472, %v3675
      %v3702 = vadd.f32 %v3477, %v3680
      %v3703 = vadd.f32 %v3480, %v3685
      %v3704 = vmax.f32 %v3688, 0.0
      %v3705 = vmax.f32 %v3689, 0.0
      %v3706 = vmax.f32 %v3690, 0.0
      %v3707 = vmax.f32 %v3691, 0.0
      %v3708 = vmax.f32 %v3692, 0.0
      %v3709 = vmax.f32 %v3693, 0.0
      %v3710 = vmax.f32 %v3694, 0.0
      %v3711 = vmax.f32 %v3695, 0.0
      %v3712 = vmax.f32 %v3696, 0.0
      %v3713 = vmax.f32 %v3697, 0.0
      %v3714 = vmax.f32 %v3698, 0.0
      %v3715 = vmax.f32 %v3699, 0.0
      %v3716 = vmax.f32 %v3700, 0.0
      %v3717 = vmax.f32 %v3701, 0.0
      %v3718 = vmax.f32 %v3702, 0.0
      %v3719 = vmax.f32 %v3703, 0.0
      %3731 = vrot.lane.b32.xlu0 0.0, 64
      %v3732 = vpop.permute.xlu0 %3731
      %3733 = vrot.lane.b32.xlu0 %v3704, 64
      %v3734 = vpop.permute.xlu0 %3733
      %3735 = vrot.lane.b32.xlu0 %v3705, 64
      %v3736 = vpop.permute.xlu0 %3735
      %3737 = vrot.lane.b32.xlu0 %v3706, 64
      %v3738 = vpop.permute.xlu0 %3737
      %3739 = vrot.lane.b32.xlu0 %v3707, 64
      %v3740 = vpop.permute.xlu0 %3739
      %3741 = vrot.lane.b32.xlu0 %v3708, 64
      %v3742 = vpop.permute.xlu0 %3741
      %3743 = vrot.lane.b32.xlu0 %v3709, 64
      %v3744 = vpop.permute.xlu0 %3743
      %3745 = vrot.lane.b32.xlu0 %v3710, 64
      %v3746 = vpop.permute.xlu0 %3745
      %3747 = vrot.lane.b32.xlu0 %v3711, 64
      %v3748 = vpop.permute.xlu0 %3747
      %3749 = vrot.lane.b32.xlu0 %v3712, 64
      %v3750 = vpop.permute.xlu0 %3749
      %3751 = vrot.lane.b32.xlu0 %v3713, 64
      %v3752 = vpop.permute.xlu0 %3751
      %3768 = vrot.lane.b32.xlu0 %v3714, 64
      %v3769 = vpop.permute.xlu0 %3768
      %3770 = vrot.lane.b32.xlu0 %v3715, 64
      %v3771 = vpop.permute.xlu0 %3770
      %3772 = vrot.lane.b32.xlu0 %v3716, 64
      %v3773 = vpop.permute.xlu0 %3772
      %3774 = vrot.lane.b32.xlu0 %v3717, 64
      %v3775 = vpop.permute.xlu0 %3774
      %3782 = vrot.lane.b32.xlu0 %v3718, 64
      %v3783 = vpop.permute.xlu0 %3782
      %3784 = vrot.lane.b32.xlu0 %v3719, 64
      %v3785 = vpop.permute.xlu0 %3784
      %vm3788 = vcmask 523264
      %v3789 = vsel %vm3788, 0.0, %v3732
      %v3790 = vsel %vm3788, 0.0, %v3734
      %v3791 = vsel %vm3788, 0.0, %v3736
      %v3792 = vsel %vm3788, %v3704, %v3738
      %v3793 = vsel %vm3788, %v3705, %v3740
      %v3794 = vsel %vm3788, %v3706, %v3742
      %v3795 = vsel %vm3788, %v3707, %v3744
      %v3796 = vsel %vm3788, %v3708, %v3746
      %v3797 = vsel %vm3788, %v3709, %v3748
      %v3798 = vsel %vm3788, %v3710, %v3750
      %v3799 = vsel %vm3788, %v3711, %v3752
      %v3800 = vsel %vm3788, %v3712, %v3769
      %v3801 = vsel %vm3788, %v3713, %v3771
      %v3802 = vsel %vm3788, %v3714, %v3773
      %v3803 = vsel %vm3788, %v3715, %v3775
      %v3804 = vsel %vm3788, %v3716, %v3783
      %v3805 = vsel %vm3788, %v3717, %v3785
      %v3806 = vsel %vm3788, %v3718, %v3732
      %v3807 = vsel %vm3788, %v3719, %v3732
      %v3808 = vpack.c.bf16 %v3789, %v3789
      %v3809 = vpack.c.bf16 %v3793, %v3792
      %v3810 = vpack.c.bf16 %v3797, %v3796
      %v3811 = vpack.c.bf16 %v3713, %v3712
      %v3812 = vpack.c.bf16 %v3791, %v3790
      %v3813 = vpack.c.bf16 %v3795, %v3794
      %v3814 = vpack.c.bf16 %v3799, %v3798
      %v3815 = vpack.c.bf16 %v3715, %v3714
      %v3816 = vpack.c.bf16 %v3801, %v3800
      %v3817 = vpack.c.bf16 %v3717, %v3716
      %v3818 = vpack.c.bf16 %v3803, %v3802
      %v3819 = vpack.c.bf16 %v3719, %v3718
      %v3820 = vpack.c.bf16 %v3805, %v3804
      %v3821 = vpack.c.bf16 0.0, 0.0
      %v3822 = vpack.c.bf16 %v3807, %v3806
      %v3823 = vld [vmem:[%s12] sm:$0xf]
      %v3824 = vld [vmem:[%s12 + $0x4] sm:$0xf]
      %v3825 = vld [vmem:[%s12 + $0x8] sm:$0xf]
      %v3826 = vld [vmem:[%s12 + $0xc] sm:$0xf]
      %v3827 = vld [vmem:[%s12 + $0x10] sm:$0xf]
      %v3828 = vld [vmem:[%s12 + $0x14] sm:$0xf]
      %v3829 = vld [vmem:[%s12 + $0x18] sm:$0xf]
      %v3830 = vld [vmem:[%s12 + $0x1c] sm:$0xf]
      %v3831 = vld [vmem:[%s12 + $0x20] sm:$0xf]
      %v3832 = vld [vmem:[%s12 + $0x24] sm:$0xf]
      %v3833 = vld [vmem:[%s12 + $0x28] sm:$0xf]
      %v3834 = vld [vmem:[%s12 + $0x2c] sm:$0xf]
      %v3835 = vld [vmem:[%s12 + $0x30] sm:$0xf]
      %v3836 = vld [vmem:[%s12 + $0x34] sm:$0xf]
      %v3837 = vld [vmem:[%s12 + $0x38] sm:$0xf]
      %v3838 = vld [vmem:[%s12 + $0x3c] sm:$0xf]
      %v3839 = vld [vmem:[%s12 + $0x40] sm:$0xf]
      %v3840 = vld [vmem:[%s12 + $0x44] sm:$0xf]
      %v3841 = vld [vmem:[%s12 + $0x48] sm:$0xf]
      %v3842 = vld [vmem:[%s12 + $0x4c] sm:$0xf]
      %v3843 = vld [vmem:[%s12 + $0x50] sm:$0xf]
      %v3844 = vld [vmem:[%s12 + $0x54] sm:$0xf]
      %v3845 = vld [vmem:[%s12 + $0x58] sm:$0xf]
      %v3846 = vld [vmem:[%s12 + $0x5c] sm:$0xf]
      %v3847 = vld [vmem:[%s12 + $0x60] sm:$0xf]
      %v3848 = vld [vmem:[%s12 + $0x64] sm:$0xf]
      %v3849 = vld [vmem:[%s12 + $0x68] sm:$0xf]
      %v3850 = vld [vmem:[%s12 + $0x6c] sm:$0xf]
      %v3851 = vld [vmem:[%s12 + $0x70] sm:$0xf]
      %v3852 = vld [vmem:[%s12 + $0x74] sm:$0xf]
      %v3853 = vld [vmem:[%s12 + $0x78] sm:$0xf]
      %v3854 = vld [vmem:[%s12 + $0x7c] sm:$0xf]
      %v3855 = vld [vmem:[%s12 + $0x80] sm:$0xf]
      %v3856 = vld [vmem:[%s12 + $0x84] sm:$0xf]
      %v3857 = vld [vmem:[%s12 + $0x88] sm:$0xf]
      %v3858 = vld [vmem:[%s12 + $0x8c] sm:$0xf]
      %v3859 = vld [vmem:[%s12 + $0x90] sm:$0xf]
      %v3860 = vld [vmem:[%s12 + $0x94] sm:$0xf]
      %v3861 = vld [vmem:[%s12 + $0x98] sm:$0xf]
      %v3862 = vld [vmem:[%s12 + $0x9c] sm:$0xf]
      %v3863 = vld [vmem:[%s12 + $0xa0] sm:$0xf]
      %v3864 = vld [vmem:[%s12 + $0xa4] sm:$0xf]
      %v3865 = vld [vmem:[%s12 + $0xa8] sm:$0xf]
      %v3866 = vld [vmem:[%s12 + $0xac] sm:$0xf]
      %v3867 = vld [vmem:[%s12 + $0xb0] sm:$0xf]
      %v3868 = vld [vmem:[%s12 + $0xb4] sm:$0xf]
      %v3869 = vld [vmem:[%s12 + $0xb8] sm:$0xf]
      %v3870 = vld [vmem:[%s12 + $0xbc] sm:$0xf]
      %v3871 = vld [vmem:[%s12 + $0xc0] sm:$0xf]
      %v3872 = vld [vmem:[%s12 + $0xc4] sm:$0xf]
      %v3873 = vld [vmem:[%s12 + $0xc8] sm:$0xf]
      %v3874 = vld [vmem:[%s12 + $0xcc] sm:$0xf]
      %v3875 = vld [vmem:[%s12 + $0xd0] sm:$0xf]
      %v3876 = vld [vmem:[%s12 + $0xd4] sm:$0xf]
      %v3877 = vld [vmem:[%s12 + $0xd8] sm:$0xf]
      %v3878 = vld [vmem:[%s12 + $0xdc] sm:$0xf]
      %v3879 = vld [vmem:[%s12 + $0xe0] sm:$0xf]
      %v3880 = vld [vmem:[%s12 + $0xe4] sm:$0xf]
      %v3881 = vld [vmem:[%s12 + $0xe8] sm:$0xf]
      %v3882 = vld [vmem:[%s12 + $0xec] sm:$0xf]
      %v3883 = vld [vmem:[%s12 + $0xf0] sm:$0xf]
      %v3884 = vld [vmem:[%s12 + $0xf4] sm:$0xf]
      %v3885 = vld [vmem:[%s12 + $0xf8] sm:$0xf]
      %v3886 = vld [vmem:[%s12 + $0xfc] sm:$0xf]
      %v3887 = vld [vmem:[%s12 + $0x100] sm:$0xf]
      %v3888 = vld [vmem:[%s12 + $0x104] sm:$0xf]
      %v3889 = vld [vmem:[%s12 + $0x108] sm:$0xf]
      %v3890 = vld [vmem:[%s12 + $0x10c] sm:$0xf]
      %v3891 = vld [vmem:[%s12 + $0x110] sm:$0xf]
      %v3892 = vld [vmem:[%s12 + $0x114] sm:$0xf]
      %v3893 = vld [vmem:[%s12 + $0x118] sm:$0xf]
      %v3894 = vld [vmem:[%s12 + $0x11c] sm:$0xf]
      %v3895 = vld [vmem:[%s13] sm:$0x1]
      %v3897 = vlaneseq
      %v3898 = vshrl.u32 %v3897, 7
      %v3899 = vsub.s32 0, %v3898
      %v3900 = vrot.slane %v3895, %v3899
      %v3974 = vunpack.c.l.b16 %v3823
      %v3975 = vunpack.c.l.b16 %v3824
      %v3976 = vunpack.c.l.b16 %v3825
      %v3977 = vunpack.c.l.b16 %v3826
      %v3978 = vunpack.c.l.b16 %v3827
      %v3979 = vunpack.c.l.b16 %v3828
      %v3980 = vunpack.c.l.b16 %v3829
      %v3981 = vunpack.c.l.b16 %v3830
      %v3982 = vunpack.c.l.b16 %v3831
      %v3983 = vunpack.c.l.b16 %v3832
      %v3984 = vunpack.c.l.b16 %v3833
      %v3985 = vunpack.c.l.b16 %v3834
      %v3986 = vunpack.c.l.b16 %v3835
      %v3987 = vunpack.c.l.b16 %v3836
      %v3988 = vunpack.c.l.b16 %v3837
      %v3989 = vunpack.c.l.b16 %v3838
      %v3990 = vunpack.c.l.b16 %v3839
      %v3991 = vunpack.c.l.b16 %v3840
      %v3992 = vunpack.c.l.b16 %v3841
      %v3993 = vunpack.c.l.b16 %v3842
      %v3994 = vunpack.c.l.b16 %v3843
      %v3995 = vunpack.c.l.b16 %v3844
      %v3996 = vunpack.c.l.b16 %v3845
      %v3997 = vunpack.c.l.b16 %v3846
      %v3998 = vunpack.c.l.b16 %v3847
      %v3999 = vunpack.c.l.b16 %v3848
      %v4000 = vunpack.c.l.b16 %v3849
      %v4001 = vunpack.c.l.b16 %v3850
      %v4002 = vunpack.c.l.b16 %v3851
      %v4003 = vunpack.c.l.b16 %v3852
      %v4004 = vunpack.c.l.b16 %v3853
      %v4005 = vunpack.c.l.b16 %v3854
      %v4006 = vunpack.c.l.b16 %v3855
      %v4007 = vunpack.c.l.b16 %v3856
      %v4008 = vunpack.c.l.b16 %v3857
      %v4009 = vunpack.c.l.b16 %v3858
      %v4010 = vunpack.c.l.b16 %v3859
      %v4011 = vunpack.c.l.b16 %v3860
      %v4012 = vunpack.c.l.b16 %v3861
      %v4013 = vunpack.c.l.b16 %v3862
      %v4014 = vunpack.c.l.b16 %v3863
      %v4015 = vunpack.c.l.b16 %v3864
      %v4016 = vunpack.c.l.b16 %v3865
      %v4017 = vunpack.c.l.b16 %v3866
      %v4018 = vunpack.c.l.b16 %v3867
      %v4019 = vunpack.c.l.b16 %v3868
      %v4020 = vunpack.c.l.b16 %v3869
      %v4021 = vunpack.c.l.b16 %v3870
      %v4022 = vunpack.c.l.b16 %v3871
      %v4023 = vunpack.c.l.b16 %v3872
      %v4024 = vunpack.c.l.b16 %v3873
      %v4025 = vunpack.c.l.b16 %v3874
      %v4026 = vunpack.c.l.b16 %v3875
      %v4027 = vunpack.c.l.b16 %v3876
      %v4028 = vunpack.c.l.b16 %v3877
      %v4029 = vunpack.c.l.b16 %v3878
      %v4030 = vunpack.c.l.b16 %v3879
      %v4031 = vunpack.c.l.b16 %v3880
      %v4032 = vunpack.c.l.b16 %v3881
      %v4033 = vunpack.c.l.b16 %v3882
      %v4034 = vunpack.c.l.b16 %v3883
      %v4035 = vunpack.c.l.b16 %v3884
      %v4036 = vunpack.c.l.b16 %v3885
      %v4037 = vunpack.c.l.b16 %v3886
      %v4038 = vunpack.c.l.b16 %v3887
      %v4039 = vunpack.c.l.b16 %v3888
      %v4040 = vunpack.c.l.b16 %v3889
      %v4041 = vunpack.c.l.b16 %v3890
      %v4042 = vunpack.c.l.b16 %v3891
      %v4043 = vunpack.c.l.b16 %v3892
      %v4044 = vunpack.c.l.b16 %v3893
      %v4045 = vunpack.c.l.b16 %v3894
      %v4046 = vpack.c.b16 %v3975, %v3974
      %v4047 = vpack.c.b16 %v3977, %v3976
      %v4048 = vpack.c.b16 %v3979, %v3978
      %v4049 = vpack.c.b16 %v3981, %v3980
      %v4050 = vpack.c.b16 %v3983, %v3982
      %v4051 = vpack.c.b16 %v3985, %v3984
      %v4052 = vpack.c.b16 %v3987, %v3986
      %v4053 = vpack.c.b16 %v3989, %v3988
      %v4054 = vpack.c.b16 %v3991, %v3990
      %v4055 = vpack.c.b16 %v3993, %v3992
      %v4056 = vpack.c.b16 %v3995, %v3994
      %v4057 = vpack.c.b16 %v3997, %v3996
      %v4058 = vpack.c.b16 %v3999, %v3998
      %v4059 = vpack.c.b16 %v4001, %v4000
      %v4060 = vpack.c.b16 %v4003, %v4002
      %v4061 = vpack.c.b16 %v4005, %v4004
      %v4062 = vpack.c.b16 %v4007, %v4006
      %v4063 = vpack.c.b16 %v4009, %v4008
      %v4064 = vpack.c.b16 %v4011, %v4010
      %v4065 = vpack.c.b16 %v4013, %v4012
      %v4066 = vpack.c.b16 %v4015, %v4014
      %v4067 = vpack.c.b16 %v4017, %v4016
      %v4068 = vpack.c.b16 %v4019, %v4018
      %v4069 = vpack.c.b16 %v4021, %v4020
      %v4070 = vpack.c.b16 %v4023, %v4022
      %v4071 = vpack.c.b16 %v4025, %v4024
      %v4072 = vpack.c.b16 %v4027, %v4026
      %v4073 = vpack.c.b16 %v4029, %v4028
      %v4074 = vpack.c.b16 %v4031, %v4030
      %v4075 = vpack.c.b16 %v4033, %v4032
      %v4076 = vpack.c.b16 %v4035, %v4034
      %v4077 = vpack.c.b16 %v4037, %v4036
      %v4078 = vpack.c.b16 %v4039, %v4038
      %v4079 = vpack.c.b16 %v4041, %v4040
      %v4080 = vpack.c.b16 %v4043, %v4042
      %v4081 = vpack.c.b16 %v4045, %v4044
      %v4119 = vsel %vm3788, %v3811, 0
      %v4122 = vsel %vm3788, %v3815, 0
      %v4125 = vsel %vm3788, %v3817, 0
      %v4128 = vsel %vm3788, %v3819, 0
      %v4131 = vsel %vm3788, %v3821, 0
      %4133 = vmatprep.subr.bf16.mxu0 0
      %4134 = vmatpush1.bf16.msra.mxu0 %v4046
      %4135 = vmatprep.subr.bf16.mxu0 0
      %4136 = vmatpush1.bf16.msra.mxu0 %v4047
      %4137 = vmatprep.subr.bf16.mxu0 0
      %4138 = vmatpush1.bf16.msra.mxu0 %v4048
      %4139 = vmatprep.subr.bf16.mxu0 0
      %4140 = vmatpush1.bf16.msra.mxu0 %v4049
      %4141 = vmatprep.subr.bf16.mxu0 0
      %4142 = vmatpush1.bf16.msra.mxu0 %v4050
      %4143 = vmatprep.subr.bf16.mxu0 0
      %4144 = vmatpush1.bf16.msra.mxu0 %v4051
      %4145 = vmatprep.subr.bf16.mxu0 0
      %4146 = vmatpush1.bf16.msra.mxu0 %v4052
      %4147 = vmatprep.subr.bf16.mxu0 0
      %4148 = vmatpush1.bf16.msra.mxu0 %v4053
      %4149 = vmatprep.subr.bf16.mxu0 0
      %4150 = vmatpush1.bf16.msra.mxu0 %v4054
      %4151 = vmatprep.subr.bf16.mxu0 0
      %4152 = vmatpush1.bf16.msra.mxu0 %v4055
      %4153 = vmatprep.subr.bf16.mxu0 0
      %4154 = vmatpush1.bf16.msra.mxu0 %v4056
      %4155 = vmatprep.subr.bf16.mxu0 0
      %4156 = vmatpush1.bf16.msra.mxu0 %v4057
      %4157 = vmatprep.subr.bf16.mxu0 0
      %4158 = vmatpush1.bf16.msra.mxu0 %v4058
      %4159 = vmatprep.subr.bf16.mxu0 0
      %4160 = vmatpush1.bf16.msra.mxu0 %v4059
      %4161 = vmatprep.subr.bf16.mxu0 0
      %4162 = vmatpush1.bf16.msra.mxu0 %v4060
      %4163 = vmatprep.subr.bf16.mxu0 0
      %4164 = vmatpush1.bf16.msra.mxu0 %v4061
      %4165 = vmatprep.mubr.bf16.mxu0 %v3808
      %4166 = vmatmul.mubr.bf16.gmra.mrb[0].mxu0 %v3808
      %v4167 = vpop.f32.mrb[0].mxu0
      %v4168 = vadd.f32 %v3900, %v4167
      %v4169 = vpop.f32.mrb[0].mxu0
      %v4170 = vpop.f32.mrb[0].mxu0
      %v4171 = vadd.f32 %v3900, %v4170
      %v4172 = vpop.f32.mrb[0].mxu0
      %4173 = vmatprep.mubr.bf16.mxu0 %v3812
      %4174 = vmatmul.mubr.bf16.gmra.mrb[0].mxu0 %v3808
      %v4175 = vpop.f32.mrb[0].mxu0
      %v4176 = vadd.f32 %v3900, %v4175
      %v4177 = vpop.f32.mrb[0].mxu0
      %v4178 = vpop.f32.mrb[0].mxu0
      %v4179 = vadd.f32 %v3900, %v4178
      %v4180 = vpop.f32.mrb[0].mxu0
      %4181 = vmatprep.mubr.bf16.mxu0 %v3809
      %4182 = vmatmul.mubr.bf16.gmra.mrb[0].mxu0 %v3808
      %v4183 = vpop.f32.mrb[0].mxu0
      %v4184 = vadd.f32 %v3900, %v4183
      %v4185 = vpop.f32.mrb[0].mxu0
      %v4186 = vpop.f32.mrb[0].mxu0
      %v4187 = vadd.f32 %v3900, %v4186
      %v4188 = vpop.f32.mrb[0].mxu0
      %4189 = vmatprep.mubr.bf16.mxu0 %v3813
      %4190 = vmatmul.mubr.bf16.gmra.mrb[0].mxu0 %v3812
      %v4191 = vpop.f32.mrb[0].mxu0
      %v4192 = vadd.f32 %v3900, %v4191
      %v4193 = vpop.f32.mrb[0].mxu0
      %v4194 = vpop.f32.mrb[0].mxu0
      %v4195 = vadd.f32 %v3900, %v4194
      %v4196 = vpop.f32.mrb[0].mxu0
      %4197 = vmatprep.mubr.bf16.mxu0 %v3810
      %4198 = vmatmul.mubr.bf16.gmra.mrb[0].mxu0 %v3809
      %v4199 = vpop.f32.mrb[0].mxu0
      %v4200 = vadd.f32 %v3900, %v4199
      %v4201 = vpop.f32.mrb[0].mxu0
      %v4202 = vpop.f32.mrb[0].mxu0
      %v4203 = vadd.f32 %v3900, %v4202
      %v4204 = vpop.f32.mrb[0].mxu0
      %4205 = vmatprep.mubr.bf16.mxu0 %v3814
      %4206 = vmatmul.mubr.bf16.gmra.mrb[0].mxu0 %v3813
      %v4207 = vpop.f32.mrb[0].mxu0
      %v4208 = vadd.f32 %v3900, %v4207
      %v4209 = vpop.f32.mrb[0].mxu0
      %v4210 = vpop.f32.mrb[0].mxu0
      %v4211 = vadd.f32 %v3900, %v4210
      %v4212 = vpop.f32.mrb[0].mxu0
      %4213 = vmatprep.mubr.bf16.mxu0 %v3816
      %4214 = vmatmul.mubr.bf16.gmra.mrb[0].mxu0 %v3810
      %v4215 = vpop.f32.mrb[0].mxu0
      %v4216 = vadd.f32 %v3900, %v4215
      %v4217 = vpop.f32.mrb[0].mxu0
      %v4218 = vpop.f32.mrb[0].mxu0
      %v4219 = vadd.f32 %v3900, %v4218
      %v4220 = vpop.f32.mrb[0].mxu0
      %4221 = vmatprep.mubr.bf16.mxu0 %v3818
      %4222 = vmatmul.mubr.bf16.gmra.mrb[0].mxu0 %v3814
      %v4223 = vpop.f32.mrb[0].mxu0
      %v4224 = vadd.f32 %v3900, %v4223
      %v4225 = vpop.f32.mrb[0].mxu0
      %v4226 = vpop.f32.mrb[0].mxu0
      %v4227 = vadd.f32 %v3900, %v4226
      %v4228 = vpop.f32.mrb[0].mxu0
      %4229 = vdwg.mxu0
      %4230 = vmatprep.subr.bf16.mxu0 0
      %4231 = vmatpush1.bf16.msra.mxu0 %v4062
      %4232 = vmatprep.subr.bf16.mxu0 0
      %4233 = vmatpush1.bf16.msra.mxu0 %v4063
      %4234 = vmatprep.subr.bf16.mxu0 0
      %4235 = vmatpush1.bf16.msra.mxu0 %v4064
      %4236 = vmatprep.subr.bf16.mxu0 0
      %4237 = vmatpush1.bf16.msra.mxu0 %v4065
      %4238 = vmatprep.subr.bf16.mxu0 0
      %4239 = vmatpush1.bf16.msra.mxu0 %v4066
      %4240 = vmatprep.subr.bf16.mxu0 0
      %4241 = vmatpush1.bf16.msra.mxu0 %v4067
      %4242 = vmatprep.subr.bf16.mxu0 0
      %4243 = vmatpush1.bf16.msra.mxu0 %v4068
      %4244 = vmatprep.subr.bf16.mxu0 0
      %4245 = vmatpush1.bf16.msra.mxu0 %v4069
      %4246 = vmatprep.subr.bf16.mxu0 0
      %4247 = vmatpush1.bf16.msra.mxu0 %v4070
      %4248 = vmatprep.subr.bf16.mxu0 0
      %4249 = vmatpush1.bf16.msra.mxu0 %v4071
      %4250 = vmatprep.subr.bf16.mxu0 0
      %4251 = vmatpush1.bf16.msra.mxu0 %v4072
      %4252 = vmatprep.subr.bf16.mxu0 0
      %4253 = vmatpush1.bf16.msra.mxu0 %v4073
      %4254 = vmatprep.subr.bf16.mxu0 0
      %4255 = vmatpush1.bf16.msra.mxu0 %v4074
      %4256 = vmatprep.subr.bf16.mxu0 0
      %4257 = vmatpush1.bf16.msra.mxu0 %v4075
      %4258 = vmatprep.subr.bf16.mxu0 0
      %4259 = vmatpush1.bf16.msra.mxu0 %v4076
      %4260 = vmatprep.subr.bf16.mxu0 0
      %4261 = vmatpush1.bf16.msra.mxu0 %v4077
      %4262 = vmatprep.mubr.bf16.mxu0 %v3810
      %4263 = vmatmul.mubr.bf16.gmra.mrb[0].mxu0 %v3809
      %v4264 = vpop.f32.mrb[0].mxu0
      %v4265 = vadd.f32 %v4168, %v4264
      %v4266 = vpop.f32.mrb[0].mxu0
      %v4267 = vpop.f32.mrb[0].mxu0
      %v4268 = vadd.f32 %v4171, %v4267
      %v4269 = vpop.f32.mrb[0].mxu0
      %4270 = vmatprep.mubr.bf16.mxu0 %v3814
      %4271 = vmatmul.mubr.bf16.gmra.mrb[0].mxu0 %v3813
      %v4272 = vpop.f32.mrb[0].mxu0
      %v4273 = vadd.f32 %v4176, %v4272
      %v4274 = vpop.f32.mrb[0].mxu0
      %v4275 = vpop.f32.mrb[0].mxu0
      %v4276 = vadd.f32 %v4179, %v4275
      %v4277 = vpop.f32.mrb[0].mxu0
      %4278 = vmatprep.mubr.bf16.mxu0 %v3816
      %4279 = vmatmul.mubr.bf16.gmra.mrb[0].mxu0 %v3810
      %v4280 = vpop.f32.mrb[0].mxu0
      %v4281 = vadd.f32 %v4184, %v4280
      %v4282 = vpop.f32.mrb[0].mxu0
      %v4283 = vpop.f32.mrb[0].mxu0
      %v4284 = vadd.f32 %v4187, %v4283
      %v4285 = vpop.f32.mrb[0].mxu0
      %4286 = vmatprep.mubr.bf16.mxu0 %v3818
      %4287 = vmatmul.mubr.bf16.gmra.mrb[0].mxu0 %v3814
      %v4288 = vpop.f32.mrb[0].mxu0
      %v4289 = vadd.f32 %v4192, %v4288
      %v4290 = vpop.f32.mrb[0].mxu0
      %v4291 = vpop.f32.mrb[0].mxu0
      %v4292 = vadd.f32 %v4195, %v4291
      %v4293 = vpop.f32.mrb[0].mxu0
      %4294 = vmatprep.mubr.bf16.mxu0 %v3820
      %4295 = vmatmul.mubr.bf16.gmra.mrb[0].mxu0 %v3816
      %v4296 = vpop.f32.mrb[0].mxu0
      %v4297 = vadd.f32 %v4200, %v4296
      %v4298 = vpop.f32.mrb[0].mxu0
      %v4299 = vpop.f32.mrb[0].mxu0
      %v4300 = vadd.f32 %v4203, %v4299
      %v4301 = vpop.f32.mrb[0].mxu0
      %4302 = vmatprep.mubr.bf16.mxu0 %v3822
      %4303 = vmatmul.mubr.bf16.gmra.mrb[0].mxu0 %v3818
      %v4304 = vpop.f32.mrb[0].mxu0
      %v4305 = vadd.f32 %v4208, %v4304
      %v4306 = vpop.f32.mrb[0].mxu0
      %v4307 = vpop.f32.mrb[0].mxu0
      %v4308 = vadd.f32 %v4211, %v4307
      %v4309 = vpop.f32.mrb[0].mxu0
      %4310 = vmatprep.mubr.bf16.mxu0 %v3808
      %4311 = vmatmul.mubr.bf16.gmra.mrb[0].mxu0 %v3820
      %v4312 = vpop.f32.mrb[0].mxu0
      %v4313 = vadd.f32 %v4216, %v4312
      %v4314 = vpop.f32.mrb[0].mxu0
      %v4315 = vpop.f32.mrb[0].mxu0
      %v4316 = vadd.f32 %v4219, %v4315
      %v4317 = vpop.f32.mrb[0].mxu0
      %4318 = vmatprep.mubr.bf16.mxu0 %v3808
      %4319 = vmatmul.mubr.bf16.gmra.mrb[0].mxu0 %v3822
      %v4320 = vpop.f32.mrb[0].mxu0
      %v4321 = vadd.f32 %v4224, %v4320
      %v4322 = vpop.f32.mrb[0].mxu0
      %v4323 = vpop.f32.mrb[0].mxu0
      %v4324 = vadd.f32 %v4227, %v4323
      %v4325 = vpop.f32.mrb[0].mxu0
      %4326 = vdwg.mxu0
      %4327 = vmatprep.subr.bf16.mxu0 0
      %4328 = vmatpush1.bf16.msra.mxu0 %v4078
      %4329 = vmatprep.subr.bf16.mxu0 0
      %4330 = vmatpush1.bf16.msra.mxu0 %v4079
      %4331 = vmatprep.subr.bf16.mxu0 0
      %4332 = vmatpush1.bf16.msra.mxu0 %v4080
      %4333 = vmatprep.subr.bf16.mxu0 0
      %4334 = vmatpush1.bf16.msra.mxu0 %v4081
      %4335 = vmatprep.subr.bf16.mxu0 0
      %4336 = vmatpush1.bf16.msra.mxu0 0
      %4337 = vmatprep.subr.bf16.mxu0 0
      %4338 = vmatpush1.bf16.msra.mxu0 0
      %4339 = vmatprep.subr.bf16.mxu0 0
      %4340 = vmatpush1.bf16.msra.mxu0 0
      %4341 = vmatprep.subr.bf16.mxu0 0
      %4342 = vmatpush1.bf16.msra.mxu0 0
      %4343 = vmatprep.subr.bf16.mxu0 0
      %4344 = vmatpush1.bf16.msra.mxu0 0
      %4345 = vmatprep.subr.bf16.mxu0 0
      %4346 = vmatpush1.bf16.msra.mxu0 0
      %4347 = vmatprep.subr.bf16.mxu0 0
      %4348 = vmatpush1.bf16.msra.mxu0 0
      %4349 = vmatprep.subr.bf16.mxu0 0
      %4350 = vmatpush1.bf16.msra.mxu0 0
      %4351 = vmatprep.subr.bf16.mxu0 0
      %4352 = vmatpush1.bf16.msra.mxu0 0
      %4353 = vmatprep.subr.bf16.mxu0 0
      %4354 = vmatpush1.bf16.msra.mxu0 0
      %4355 = vmatprep.subr.bf16.mxu0 0
      %4356 = vmatpush1.bf16.msra.mxu0 0
      %4357 = vmatprep.subr.bf16.mxu0 0
      %4358 = vmatpush1.bf16.msra.mxu0 0
      %4359 = vmatprep.mubr.bf16.mxu0 0
      %4360 = vmatmul.mubr.bf16.gmra.mrb[0].mxu0 %v4119
      %v4361 = vpop.f32.mrb[0].mxu0
      %v4362 = vadd.f32 %v4265, %v4361
      %v4363 = vpop.f32.mrb[0].mxu0
      %v4364 = vpop.f32.mrb[0].mxu0
      %v4365 = vadd.f32 %v4268, %v4364
      %v4366 = vpop.f32.mrb[0].mxu0
      %4367 = vmatprep.mubr.bf16.mxu0 0
      %4368 = vmatmul.mubr.bf16.gmra.mrb[0].mxu0 %v4122
      %v4369 = vpop.f32.mrb[0].mxu0
      %v4370 = vadd.f32 %v4273, %v4369
      %v4371 = vpop.f32.mrb[0].mxu0
      %v4372 = vpop.f32.mrb[0].mxu0
      %v4373 = vadd.f32 %v4276, %v4372
      %v4374 = vpop.f32.mrb[0].mxu0
      %4375 = vmatprep.mubr.bf16.mxu0 0
      %4376 = vmatmul.mubr.bf16.gmra.mrb[0].mxu0 %v4125
      %v4377 = vpop.f32.mrb[0].mxu0
      %v4378 = vadd.f32 %v4281, %v4377
      %v4379 = vpop.f32.mrb[0].mxu0
      %v4380 = vpop.f32.mrb[0].mxu0
      %v4381 = vadd.f32 %v4284, %v4380
      %v4382 = vpop.f32.mrb[0].mxu0
      %4383 = vmatprep.mubr.bf16.mxu0 0
      %4384 = vmatmul.mubr.bf16.gmra.mrb[0].mxu0 %v4128
      %v4385 = vpop.f32.mrb[0].mxu0
      %v4386 = vadd.f32 %v4289, %v4385
      %v4387 = vpop.f32.mrb[0].mxu0
      %v4388 = vpop.f32.mrb[0].mxu0
      %v4389 = vadd.f32 %v4292, %v4388
      %v4390 = vpop.f32.mrb[0].mxu0
      %4391 = vmatprep.mubr.bf16.mxu0 0
      %4392 = vmatmul.mubr.bf16.gmra.mrb[0].mxu0 %v4131
      %v4393 = vpop.f32.mrb[0].mxu0
      %v4394 = vadd.f32 %v4297, %v4393
      %v4395 = vpop.f32.mrb[0].mxu0
      %v4396 = vpop.f32.mrb[0].mxu0
      %v4397 = vadd.f32 %v4300, %v4396
      %v4398 = vpop.f32.mrb[0].mxu0
      %4399 = vmatprep.mubr.bf16.mxu0 0
      %4400 = vmatmul.mubr.bf16.gmra.mrb[0].mxu0 %v4131
      %v4401 = vpop.f32.mrb[0].mxu0
      %v4402 = vadd.f32 %v4305, %v4401
      %v4403 = vpop.f32.mrb[0].mxu0
      %v4404 = vpop.f32.mrb[0].mxu0
      %v4405 = vadd.f32 %v4308, %v4404
      %v4406 = vpop.f32.mrb[0].mxu0
      %4407 = vmatprep.mubr.bf16.mxu0 0
      %4408 = vmatmul.mubr.bf16.gmra.mrb[0].mxu0 %v4131
      %v4409 = vpop.f32.mrb[0].mxu0
      %v4410 = vadd.f32 %v4313, %v4409
      %v4411 = vpop.f32.mrb[0].mxu0
      %v4412 = vpop.f32.mrb[0].mxu0
      %v4413 = vadd.f32 %v4316, %v4412
      %v4414 = vpop.f32.mrb[0].mxu0
      %4415 = vmatprep.mubr.bf16.mxu0 0
      %4416 = vmatmul.mubr.bf16.gmra.mrb[0].mxu0 %v4131
      %v4417 = vpop.f32.mrb[0].mxu0
      %v4418 = vadd.f32 %v4321, %v4417
      %v4419 = vpop.f32.mrb[0].mxu0
      %v4420 = vpop.f32.mrb[0].mxu0
      %v4421 = vadd.f32 %v4324, %v4420
      %v4422 = vpop.f32.mrb[0].mxu0
      %4423 = vdwg.mxu0
      %v4424 = vmax.f32 %v4362, 0.0
      %v4425 = vmax.f32 %v4365, 0.0
      %v4426 = vmax.f32 %v4370, 0.0
      %v4427 = vmax.f32 %v4373, 0.0
      %v4428 = vmax.f32 %v4378, 0.0
      %v4429 = vmax.f32 %v4381, 0.0
      %v4430 = vmax.f32 %v4386, 0.0
      %v4431 = vmax.f32 %v4389, 0.0
      %v4432 = vmax.f32 %v4394, 0.0
      %v4433 = vmax.f32 %v4397, 0.0
      %v4434 = vmax.f32 %v4402, 0.0
      %v4435 = vmax.f32 %v4405, 0.0
      %v4436 = vmax.f32 %v4410, 0.0
      %v4437 = vmax.f32 %v4413, 0.0
      %v4438 = vmax.f32 %v4418, 0.0
      %v4439 = vmax.f32 %v4421, 0.0
      %4440 = vst.msk [vmem:[%s467] sm:$0xff] %vm3788, %v4424
      %4441 = vst.msk [vmem:[%s467 + $0x8] sm:$0xff] %vm3788, %v4425
      %4442 = vst.msk [vmem:[%s467 + $0x10] sm:$0xff] %vm3788, %v4426
      %4443 = vst.msk [vmem:[%s467 + $0x18] sm:$0xff] %vm3788, %v4427
      %4444 = vst.msk [vmem:[%s467 + $0x20] sm:$0xff] %vm3788, %v4428
      %4445 = vst.msk [vmem:[%s467 + $0x28] sm:$0xff] %vm3788, %v4429
      %4446 = vst.msk [vmem:[%s467 + $0x30] sm:$0xff] %vm3788, %v4430
      %4447 = vst.msk [vmem:[%s467 + $0x38] sm:$0xff] %vm3788, %v4431
      %4448 = vst.msk [vmem:[%s467 + $0x40] sm:$0xff] %vm3788, %v4432
      %4449 = vst.msk [vmem:[%s467 + $0x48] sm:$0xff] %vm3788, %v4433
      %4450 = vst.msk [vmem:[%s467 + $0x50] sm:$0xff] %vm3788, %v4434
      %4451 = vst.msk [vmem:[%s467 + $0x58] sm:$0xff] %vm3788, %v4435
      %4452 = vst.msk [vmem:[%s467 + $0x60] sm:$0xff] %vm3788, %v4436
      %4453 = vst.msk [vmem:[%s467 + $0x68] sm:$0xff] %vm3788, %v4437
      %4454 = vst.msk [vmem:[%s467 + $0x70] sm:$0xff] %vm3788, %v4438
      %4455 = vst.msk [vmem:[%s467 + $0x78] sm:$0xff] %vm3788, %v4439
      %p4456 = scmp.lt.s32.totalorder %s25, 3
      %s4457 = scalar_select %p4456, %s25, 3
      %s4458 = smul.addr %s4457, 16
      %s4459 = smul.addr %s4458, 8
      %s4460 = scalar_lea.vmem %s14, %s4459
      // Predicated region
      $region77: #{agcn_forward.4} parent=75 // pred_check
        %p4461 = pneg %p342
      $region78: #{agcn_forward.4} parent=75 // pred_check_branch
        %4463 = sbr.rel (%p4461) target = $region80
      $region79: #{agcn_forward.4} parent=75 // pred_region
        _
      $region80: #{agcn_forward.4} parent=75 // pred_fallthru
        _
    $region76: #{agcn_forward.4} parent=5 // pred_fallthru
      _
    %p4464 = scmp.le.s32.totalorder 2, %s20
    // Predicated region
    $region81: #{agcn_forward.4} parent=5 // pred_check
      %p4465 = pneg %p4464
    $region82: #{agcn_forward.4} parent=5 // pred_check_branch
      %4467 = sbr.rel (%p4465) target = $region84
    $region83: #{agcn_forward.4} parent=5 // pred_region
      %s4468 = ssub.s32 %s20, 2
      // Predicated region
      $region85: #{agcn_forward.4} parent=83 // pred_check
        %p4469 = pneg %p348
      $region86: #{agcn_forward.4} parent=83 // pred_check_branch
        %4471 = sbr.rel (%p4469) target = $region88
      $region87: #{agcn_forward.4} parent=83 // pred_region
        %p4472 = scmp.lt.s32.totalorder %s26, 3
        %s4473 = scalar_select %p4472, %s26, 3
        %s4474 = smul.addr %s4473, 16
        %s4475 = smul.addr %s4474, 8
        %s4476 = scalar_lea.vmem %s14, %s4475
      $region88: #{agcn_forward.4} parent=83 // pred_fallthru
        _
    $region84: #{agcn_forward.4} parent=5 // pred_fallthru
      _
  $region6: #{agcn_forward.4} parent=0 // loop_footer
    %s24 = sadd.s32 1, %s20
  $region7: #{agcn_forward.4} parent=0 // loop_footer_branch
    %19 = sbr.rel target = $region3
  $region8: #{agcn_forward.4} parent=0 // loop_exit
    _

// kernel: agcn_forward.5
$region0: #{agcn_forward.5}
  #allocation0 [shape = 'u32[]', space=smem, size = 0x4, offset = 0x4, fixed_abs, tag = 'smem constant byte address 0x4 - core index']
  #allocation1 [shape = 'u32[144,128]{1,0:T(1,128)}', space=vmem, size = 0x12000, scoped, tag = 'internal scratch']
  %s0 = inlined_call_operand.vmem [shape: f32[4,8,16,64], index: 0, kind: input, shape index: {}]
  %s1 = inlined_call_operand.vmem [shape: f32[1,16,64], index: 1, kind: input, shape index: {}]
  %s2 = inlined_call_operand.vmem [shape: f32[1,16,64], index: 2, kind: input, shape index: {}]
  %s3 = inlined_call_operand.vmem [shape: bf16[64,48], index: 3, kind: input, shape index: {}]
  %s4 = inlined_call_operand.vmem [shape: f32[1,48], index: 4, kind: input, shape index: {}]
  %s5 = inlined_call_operand.vmem [shape: bf16[64,48], index: 5, kind: input, shape index: {}]
  %s6 = inlined_call_operand.vmem [shape: f32[1,48], index: 6, kind: input, shape index: {}]
  %s7 = inlined_call_operand.vmem [shape: f32[3,16,16], index: 7, kind: input, shape index: {}]
  %s8 = inlined_call_operand.vmem [shape: bf16[192,64], index: 8, kind: input, shape index: {}]
  %s9 = inlined_call_operand.vmem [shape: f32[1,64], index: 9, kind: input, shape index: {}]
  %s10 = inlined_call_operand.vmem [shape: f32[64,64], index: 10, kind: input, shape index: {}]
  %s11 = inlined_call_operand.vmem [shape: f32[1,64], index: 11, kind: input, shape index: {}]
  %s12 = inlined_call_operand.vmem [shape: bf16[576,64], index: 12, kind: input, shape index: {}]
  %s13 = inlined_call_operand.vmem [shape: f32[1,64], index: 13, kind: input, shape index: {}]
  %s14 = inlined_call_operand.vmem [shape: f32[4,8,16,64], index: 14, kind: output, shape index: {}]
  %s15 = sld [smem:[#allocation0]]
  $region89: #{agcn_forward.5} parent=0
    _
  %s17 = ssub.s32 1, %s15
  %s18 = scalar_select 0, %s17, %s15
  loop: start=0, step=1, limit=6
  $region2: #{agcn_forward.5} parent=0 // loop_pre_header
    _
  $region3: #{agcn_forward.5} parent=0 // loop_header
    %s20 = sphi 0, %s24
    %p21 = scmp.ge.s32.totalorder %s20, 6
    %s30 = sphi 0, %s32
    %s33 = sphi 0, %s30
    %s34 = sphi 0, %s33
    %s50 = sphi 0, %s34
    %s54 = sphi 0, %s54
    %s56 = sphi 0, %s54
    %s57 = sphi 0, %s56
    %s71 = sphi 0, %s57
    %s75 = sphi 0, %s75
    %s77 = sphi 0, %s75
    %s78 = sphi 0, %s77
    %s92 = sphi 0, %s78
    %s96 = sphi 0, %s96
    %s98 = sphi 0, %s96
    %s99 = sphi 0, %s98
    %s113 = sphi 0, %s99
    %s117 = sphi 0, %s117
    %s119 = sphi 0, %s117
    %s120 = sphi 0, %s119
    %s134 = sphi 0, %s120
    %s138 = sphi 0, %s138
    %s140 = sphi 0, %s138
    %s141 = sphi 0, %s140
    %s155 = sphi 0, %s141
    %s159 = sphi 0, %s159
    %s161 = sphi 0, %s159
    %s162 = sphi 0, %s161
    %s176 = sphi 0, %s162
    %s180 = sphi 0, %s180
    %s182 = sphi 0, %s180
    %s183 = sphi 0, %s182
    %s197 = sphi 0, %s183
    %s201 = sphi 0, %s201
    %s203 = sphi 0, %s201
    %s204 = sphi 0, %s203
    %s218 = sphi 0, %s204
    %s222 = sphi 0, %s222
    %s224 = sphi 0, %s222
    %s225 = sphi 0, %s224
    %s239 = sphi 0, %s225
    %s243 = sphi 0, %s243
    %s245 = sphi 0, %s243
    %s246 = sphi 0, %s245
    %s260 = sphi 0, %s246
    %s264 = sphi 0, %s264
    %s266 = sphi 0, %s264
    %s267 = sphi 0, %s266
    %s281 = sphi 0, %s267
    %s285 = sphi 0, %s285
    %s287 = sphi 0, %s285
    %s288 = sphi 0, %s287
    %s302 = sphi 0, %s288
    %s306 = sphi 0, %s306
    %s308 = sphi 0, %s306
    %s309 = sphi 0, %s308
    %s323 = sphi 0, %s309
    %s329 = sphi 0, %s331
    %s332 = sphi 0, %s329
    %s333 = sphi 0, %s332
    %s349 = sphi 0, %s333
  $region4: #{agcn_forward.5} parent=0 // loop_header_branch
    %23 = sbr.rel (%p21) target = $region8
  $region5: #{agcn_forward.5} parent=0 // loop_body
    %s25 = ssub.s32 %s20, 1
    %s26 = ssub.s32 %s20, 2
    %s27 = sadd.s32 %s20, 1
    %s28 = ssub.s32 %s20, %s27
    %p29 = scmp.eq.s32.totalorder %s28, 0
    %s31 = sadd.s32 %s30, 1
    %s32 = scalar_select %p29, %s30, %s31
    %p35 = pneg %p29
    %p36 = scmp.eq.s32.totalorder %s20, 3
    %p37 = por %p35, %p36
    %p38 = scmp.ne.s32.totalorder %s30, %s33
    %p39 = scmp.eq.s32.totalorder %s20, 0
    %p40 = por %p38, %p39
    %p41 = scmp.ne.s32.totalorder %s30, %s33
    %p42 = scmp.eq.s32.totalorder %s25, 3
    %p43 = por %p41, %p42
    %p44 = scmp.ne.s32.totalorder %s33, %s34
    %p45 = scmp.eq.s32.totalorder %s25, 0
    %p46 = por %p44, %p45
    %p47 = scmp.ne.s32.totalorder %s33, %s34
    %p48 = scmp.eq.s32.totalorder %s26, 3
    %p49 = por %p47, %p48
    %p51 = scmp.ne.s32.totalorder %s34, %s50
    %p52 = scmp.eq.s32.totalorder %s26, 0
    %p53 = por %p51, %p52
    %s55 = sadd.s32 %s54, 1
    %p58 = scmp.eq.s32.totalorder %s20, 3
    %p59 = scmp.ne.s32.totalorder %s54, %s56
    %p60 = scmp.eq.s32.totalorder %s20, 0
    %p61 = por %p59, %p60
    %p62 = scmp.ne.s32.totalorder %s54, %s56
    %p63 = scmp.eq.s32.totalorder %s25, 3
    %p64 = por %p62, %p63
    %p65 = scmp.ne.s32.totalorder %s56, %s57
    %p66 = scmp.eq.s32.totalorder %s25, 0
    %p67 = por %p65, %p66
    %p68 = scmp.ne.s32.totalorder %s56, %s57
    %p69 = scmp.eq.s32.totalorder %s26, 3
    %p70 = por %p68, %p69
    %p72 = scmp.ne.s32.totalorder %s57, %s71
    %p73 = scmp.eq.s32.totalorder %s26, 0
    %p74 = por %p72, %p73
    %s76 = sadd.s32 %s75, 1
    %p79 = scmp.eq.s32.totalorder %s20, 3
    %p80 = scmp.ne.s32.totalorder %s75, %s77
    %p81 = scmp.eq.s32.totalorder %s20, 0
    %p82 = por %p80, %p81
    %p83 = scmp.ne.s32.totalorder %s75, %s77
    %p84 = scmp.eq.s32.totalorder %s25, 3
    %p85 = por %p83, %p84
    %p86 = scmp.ne.s32.totalorder %s77, %s78
    %p87 = scmp.eq.s32.totalorder %s25, 0
    %p88 = por %p86, %p87
    %p89 = scmp.ne.s32.totalorder %s77, %s78
    %p90 = scmp.eq.s32.totalorder %s26, 3
    %p91 = por %p89, %p90
    %p93 = scmp.ne.s32.totalorder %s78, %s92
    %p94 = scmp.eq.s32.totalorder %s26, 0
    %p95 = por %p93, %p94
    %s97 = sadd.s32 %s96, 1
    %p100 = scmp.eq.s32.totalorder %s20, 3
    %p101 = scmp.ne.s32.totalorder %s96, %s98
    %p102 = scmp.eq.s32.totalorder %s20, 0
    %p103 = por %p101, %p102
    %p104 = scmp.ne.s32.totalorder %s96, %s98
    %p105 = scmp.eq.s32.totalorder %s25, 3
    %p106 = por %p104, %p105
    %p107 = scmp.ne.s32.totalorder %s98, %s99
    %p108 = scmp.eq.s32.totalorder %s25, 0
    %p109 = por %p107, %p108
    %p110 = scmp.ne.s32.totalorder %s98, %s99
    %p111 = scmp.eq.s32.totalorder %s26, 3
    %p112 = por %p110, %p111
    %p114 = scmp.ne.s32.totalorder %s99, %s113
    %p115 = scmp.eq.s32.totalorder %s26, 0
    %p116 = por %p114, %p115
    %s118 = sadd.s32 %s117, 1
    %p121 = scmp.eq.s32.totalorder %s20, 3
    %p122 = scmp.ne.s32.totalorder %s117, %s119
    %p123 = scmp.eq.s32.totalorder %s20, 0
    %p124 = por %p122, %p123
    %p125 = scmp.ne.s32.totalorder %s117, %s119
    %p126 = scmp.eq.s32.totalorder %s25, 3
    %p127 = por %p125, %p126
    %p128 = scmp.ne.s32.totalorder %s119, %s120
    %p129 = scmp.eq.s32.totalorder %s25, 0
    %p130 = por %p128, %p129
    %p131 = scmp.ne.s32.totalorder %s119, %s120
    %p132 = scmp.eq.s32.totalorder %s26, 3
    %p133 = por %p131, %p132
    %p135 = scmp.ne.s32.totalorder %s120, %s134
    %p136 = scmp.eq.s32.totalorder %s26, 0
    %p137 = por %p135, %p136
    %s139 = sadd.s32 %s138, 1
    %p142 = scmp.eq.s32.totalorder %s20, 3
    %p143 = scmp.ne.s32.totalorder %s138, %s140
    %p144 = scmp.eq.s32.totalorder %s20, 0
    %p145 = por %p143, %p144
    %p146 = scmp.ne.s32.totalorder %s138, %s140
    %p147 = scmp.eq.s32.totalorder %s25, 3
    %p148 = por %p146, %p147
    %p149 = scmp.ne.s32.totalorder %s140, %s141
    %p150 = scmp.eq.s32.totalorder %s25, 0
    %p151 = por %p149, %p150
    %p152 = scmp.ne.s32.totalorder %s140, %s141
    %p153 = scmp.eq.s32.totalorder %s26, 3
    %p154 = por %p152, %p153
    %p156 = scmp.ne.s32.totalorder %s141, %s155
    %p157 = scmp.eq.s32.totalorder %s26, 0
    %p158 = por %p156, %p157
    %s160 = sadd.s32 %s159, 1
    %p163 = scmp.eq.s32.totalorder %s20, 3
    %p164 = scmp.ne.s32.totalorder %s159, %s161
    %p165 = scmp.eq.s32.totalorder %s20, 0
    %p166 = por %p164, %p165
    %p167 = scmp.ne.s32.totalorder %s159, %s161
    %p168 = scmp.eq.s32.totalorder %s25, 3
    %p169 = por %p167, %p168
    %p170 = scmp.ne.s32.totalorder %s161, %s162
    %p171 = scmp.eq.s32.totalorder %s25, 0
    %p172 = por %p170, %p171
    %p173 = scmp.ne.s32.totalorder %s161, %s162
    %p174 = scmp.eq.s32.totalorder %s26, 3
    %p175 = por %p173, %p174
    %p177 = scmp.ne.s32.totalorder %s162, %s176
    %p178 = scmp.eq.s32.totalorder %s26, 0
    %p179 = por %p177, %p178
    %s181 = sadd.s32 %s180, 1
    %p184 = scmp.eq.s32.totalorder %s20, 3
    %p185 = scmp.ne.s32.totalorder %s180, %s182
    %p186 = scmp.eq.s32.totalorder %s20, 0
    %p187 = por %p185, %p186
    %p188 = scmp.ne.s32.totalorder %s180, %s182
    %p189 = scmp.eq.s32.totalorder %s25, 3
    %p190 = por %p188, %p189
    %p191 = scmp.ne.s32.totalorder %s182, %s183
    %p192 = scmp.eq.s32.totalorder %s25, 0
    %p193 = por %p191, %p192
    %p194 = scmp.ne.s32.totalorder %s182, %s183
    %p195 = scmp.eq.s32.totalorder %s26, 3
    %p196 = por %p194, %p195
    %p198 = scmp.ne.s32.totalorder %s183, %s197
    %p199 = scmp.eq.s32.totalorder %s26, 0
    %p200 = por %p198, %p199
    %s202 = sadd.s32 %s201, 1
    %p205 = scmp.eq.s32.totalorder %s20, 3
    %p206 = scmp.ne.s32.totalorder %s201, %s203
    %p207 = scmp.eq.s32.totalorder %s20, 0
    %p208 = por %p206, %p207
    %p209 = scmp.ne.s32.totalorder %s201, %s203
    %p210 = scmp.eq.s32.totalorder %s25, 3
    %p211 = por %p209, %p210
    %p212 = scmp.ne.s32.totalorder %s203, %s204
    %p213 = scmp.eq.s32.totalorder %s25, 0
    %p214 = por %p212, %p213
    %p215 = scmp.ne.s32.totalorder %s203, %s204
    %p216 = scmp.eq.s32.totalorder %s26, 3
    %p217 = por %p215, %p216
    %p219 = scmp.ne.s32.totalorder %s204, %s218
    %p220 = scmp.eq.s32.totalorder %s26, 0
    %p221 = por %p219, %p220
    %s223 = sadd.s32 %s222, 1
    %p226 = scmp.eq.s32.totalorder %s20, 3
    %p227 = scmp.ne.s32.totalorder %s222, %s224
    %p228 = scmp.eq.s32.totalorder %s20, 0
    %p229 = por %p227, %p228
    %p230 = scmp.ne.s32.totalorder %s222, %s224
    %p231 = scmp.eq.s32.totalorder %s25, 3
    %p232 = por %p230, %p231
    %p233 = scmp.ne.s32.totalorder %s224, %s225
    %p234 = scmp.eq.s32.totalorder %s25, 0
    %p235 = por %p233, %p234
    %p236 = scmp.ne.s32.totalorder %s224, %s225
    %p237 = scmp.eq.s32.totalorder %s26, 3
    %p238 = por %p236, %p237
    %p240 = scmp.ne.s32.totalorder %s225, %s239
    %p241 = scmp.eq.s32.totalorder %s26, 0
    %p242 = por %p240, %p241
    %s244 = sadd.s32 %s243, 1
    %p247 = scmp.eq.s32.totalorder %s20, 3
    %p248 = scmp.ne.s32.totalorder %s243, %s245
    %p249 = scmp.eq.s32.totalorder %s20, 0
    %p250 = por %p248, %p249
    %p251 = scmp.ne.s32.totalorder %s243, %s245
    %p252 = scmp.eq.s32.totalorder %s25, 3
    %p253 = por %p251, %p252
    %p254 = scmp.ne.s32.totalorder %s245, %s246
    %p255 = scmp.eq.s32.totalorder %s25, 0
    %p256 = por %p254, %p255
    %p257 = scmp.ne.s32.totalorder %s245, %s246
    %p258 = scmp.eq.s32.totalorder %s26, 3
    %p259 = por %p257, %p258
    %p261 = scmp.ne.s32.totalorder %s246, %s260
    %p262 = scmp.eq.s32.totalorder %s26, 0
    %p263 = por %p261, %p262
    %s265 = sadd.s32 %s264, 1
    %p268 = scmp.eq.s32.totalorder %s20, 3
    %p269 = scmp.ne.s32.totalorder %s264, %s266
    %p270 = scmp.eq.s32.totalorder %s20, 0
    %p271 = por %p269, %p270
    %p272 = scmp.ne.s32.totalorder %s264, %s266
    %p273 = scmp.eq.s32.totalorder %s25, 3
    %p274 = por %p272, %p273
    %p275 = scmp.ne.s32.totalorder %s266, %s267
    %p276 = scmp.eq.s32.totalorder %s25, 0
    %p277 = por %p275, %p276
    %p278 = scmp.ne.s32.totalorder %s266, %s267
    %p279 = scmp.eq.s32.totalorder %s26, 3
    %p280 = por %p278, %p279
    %p282 = scmp.ne.s32.totalorder %s267, %s281
    %p283 = scmp.eq.s32.totalorder %s26, 0
    %p284 = por %p282, %p283
    %s286 = sadd.s32 %s285, 1
    %p289 = scmp.eq.s32.totalorder %s20, 3
    %p290 = scmp.ne.s32.totalorder %s285, %s287
    %p291 = scmp.eq.s32.totalorder %s20, 0
    %p292 = por %p290, %p291
    %p293 = scmp.ne.s32.totalorder %s285, %s287
    %p294 = scmp.eq.s32.totalorder %s25, 3
    %p295 = por %p293, %p294
    %p296 = scmp.ne.s32.totalorder %s287, %s288
    %p297 = scmp.eq.s32.totalorder %s25, 0
    %p298 = por %p296, %p297
    %p299 = scmp.ne.s32.totalorder %s287, %s288
    %p300 = scmp.eq.s32.totalorder %s26, 3
    %p301 = por %p299, %p300
    %p303 = scmp.ne.s32.totalorder %s288, %s302
    %p304 = scmp.eq.s32.totalorder %s26, 0
    %p305 = por %p303, %p304
    %s307 = sadd.s32 %s306, 1
    %p310 = scmp.eq.s32.totalorder %s20, 3
    %p311 = scmp.ne.s32.totalorder %s306, %s308
    %p312 = scmp.eq.s32.totalorder %s20, 0
    %p313 = por %p311, %p312
    %p314 = scmp.ne.s32.totalorder %s306, %s308
    %p315 = scmp.eq.s32.totalorder %s25, 3
    %p316 = por %p314, %p315
    %p317 = scmp.ne.s32.totalorder %s308, %s309
    %p318 = scmp.eq.s32.totalorder %s25, 0
    %p319 = por %p317, %p318
    %p320 = scmp.ne.s32.totalorder %s308, %s309
    %p321 = scmp.eq.s32.totalorder %s26, 3
    %p322 = por %p320, %p321
    %p324 = scmp.ne.s32.totalorder %s309, %s323
    %p325 = scmp.eq.s32.totalorder %s26, 0
    %p326 = por %p324, %p325
    %s327 = ssub.s32 %s20, %s27
    %p328 = scmp.eq.s32.totalorder %s327, 0
    %s330 = sadd.s32 %s329, 1
    %s331 = scalar_select %p328, %s329, %s330
    %p334 = pneg %p328
    %p335 = scmp.eq.s32.totalorder %s20, 3
    %p336 = por %p334, %p335
    %p337 = scmp.ne.s32.totalorder %s329, %s332
    %p338 = scmp.eq.s32.totalorder %s20, 0
    %p339 = por %p337, %p338
    %p340 = scmp.ne.s32.totalorder %s329, %s332
    %p341 = scmp.eq.s32.totalorder %s25, 3
    %p342 = por %p340, %p341
    %p343 = scmp.ne.s32.totalorder %s332, %s333
    %p344 = scmp.eq.s32.totalorder %s25, 0
    %p345 = por %p343, %p344
    %p346 = scmp.ne.s32.totalorder %s332, %s333
    %p347 = scmp.eq.s32.totalorder %s26, 3
    %p348 = por %p346, %p347
    %p350 = scmp.ne.s32.totalorder %s333, %s349
    %p351 = scmp.eq.s32.totalorder %s26, 0
    %p352 = por %p350, %p351
    %p353 = scmp.le.s32.totalorder 1, %s20
    %p354 = scmp.lt.s32.totalorder %s20, 5
    %p355 = pnand %p353, %p354
    %p356 = pneg %p355
    // Predicated region
    $region9: #{agcn_forward.5} parent=5 // pred_check
      _
    $region10: #{agcn_forward.5} parent=5 // pred_check_branch
      %358 = sbr.rel (%p355) target = $region12
    $region11: #{agcn_forward.5} parent=5 // pred_region
      %s359 = ssub.s32 %s20, 1
      // Predicated region
      $region13: #{agcn_forward.5} parent=11 // pred_check
        %p360 = pneg %p67
      $region14: #{agcn_forward.5} parent=11 // pred_check_branch
        %362 = sbr.rel (%p360) target = $region16
      $region15: #{agcn_forward.5} parent=11 // pred_region
        _
      $region16: #{agcn_forward.5} parent=11 // pred_fallthru
        _
      // Predicated region
      $region17: #{agcn_forward.5} parent=11 // pred_check
        %p363 = pneg %p88
      $region18: #{agcn_forward.5} parent=11 // pred_check_branch
        %365 = sbr.rel (%p363) target = $region20
      $region19: #{agcn_forward.5} parent=11 // pred_region
        _
      $region20: #{agcn_forward.5} parent=11 // pred_fallthru
        _
      // Predicated region
      $region21: #{agcn_forward.5} parent=11 // pred_check
        %p366 = pneg %p109
      $region22: #{agcn_forward.5} parent=11 // pred_check_branch
        %368 = sbr.rel (%p366) target = $region24
      $region23: #{agcn_forward.5} parent=11 // pred_region
        _
      $region24: #{agcn_forward.5} parent=11 // pred_fallthru
        _
      // Predicated region
      $region25: #{agcn_forward.5} parent=11 // pred_check
        %p369 = pneg %p130
      $region26: #{agcn_forward.5} parent=11 // pred_check_branch
        %371 = sbr.rel (%p369) target = $region28
      $region27: #{agcn_forward.5} parent=11 // pred_region
        _
      $region28: #{agcn_forward.5} parent=11 // pred_fallthru
        _
      // Predicated region
      $region29: #{agcn_forward.5} parent=11 // pred_check
        %p372 = pneg %p151
      $region30: #{agcn_forward.5} parent=11 // pred_check_branch
        %374 = sbr.rel (%p372) target = $region32
      $region31: #{agcn_forward.5} parent=11 // pred_region
        _
      $region32: #{agcn_forward.5} parent=11 // pred_fallthru
        _
      // Predicated region
      $region33: #{agcn_forward.5} parent=11 // pred_check
        %p375 = pneg %p172
      $region34: #{agcn_forward.5} parent=11 // pred_check_branch
        %377 = sbr.rel (%p375) target = $region36
      $region35: #{agcn_forward.5} parent=11 // pred_region
        _
      $region36: #{agcn_forward.5} parent=11 // pred_fallthru
        _
      // Predicated region
      $region37: #{agcn_forward.5} parent=11 // pred_check
        %p378 = pneg %p193
      $region38: #{agcn_forward.5} parent=11 // pred_check_branch
        %380 = sbr.rel (%p378) target = $region40
      $region39: #{agcn_forward.5} parent=11 // pred_region
        _
      $region40: #{agcn_forward.5} parent=11 // pred_fallthru
        _
      // Predicated region
      $region41: #{agcn_forward.5} parent=11 // pred_check
        %p381 = pneg %p214
      $region42: #{agcn_forward.5} parent=11 // pred_check_branch
        %383 = sbr.rel (%p381) target = $region44
      $region43: #{agcn_forward.5} parent=11 // pred_region
        _
      $region44: #{agcn_forward.5} parent=11 // pred_fallthru
        _
      // Predicated region
      $region45: #{agcn_forward.5} parent=11 // pred_check
        %p384 = pneg %p235
      $region46: #{agcn_forward.5} parent=11 // pred_check_branch
        %386 = sbr.rel (%p384) target = $region48
      $region47: #{agcn_forward.5} parent=11 // pred_region
        _
      $region48: #{agcn_forward.5} parent=11 // pred_fallthru
        _
      // Predicated region
      $region49: #{agcn_forward.5} parent=11 // pred_check
        %p387 = pneg %p256
      $region50: #{agcn_forward.5} parent=11 // pred_check_branch
        %389 = sbr.rel (%p387) target = $region52
      $region51: #{agcn_forward.5} parent=11 // pred_region
        _
      $region52: #{agcn_forward.5} parent=11 // pred_fallthru
        _
      // Predicated region
      $region53: #{agcn_forward.5} parent=11 // pred_check
        %p390 = pneg %p277
      $region54: #{agcn_forward.5} parent=11 // pred_check_branch
        %392 = sbr.rel (%p390) target = $region56
      $region55: #{agcn_forward.5} parent=11 // pred_region
        _
      $region56: #{agcn_forward.5} parent=11 // pred_fallthru
        _
      // Predicated region
      $region57: #{agcn_forward.5} parent=11 // pred_check
        %p393 = pneg %p298
      $region58: #{agcn_forward.5} parent=11 // pred_check_branch
        %395 = sbr.rel (%p393) target = $region60
      $region59: #{agcn_forward.5} parent=11 // pred_region
        _
      $region60: #{agcn_forward.5} parent=11 // pred_fallthru
        _
      // Predicated region
      $region61: #{agcn_forward.5} parent=11 // pred_check
        %p396 = pneg %p319
      $region62: #{agcn_forward.5} parent=11 // pred_check_branch
        %398 = sbr.rel (%p396) target = $region64
      $region63: #{agcn_forward.5} parent=11 // pred_region
        _
      $region64: #{agcn_forward.5} parent=11 // pred_fallthru
        _
    $region12: #{agcn_forward.5} parent=5 // pred_fallthru
      _
    %p399 = scmp.lt.s32.totalorder %s20, 4
    // Predicated region
    $region65: #{agcn_forward.5} parent=5 // pred_check
      %p400 = pneg %p399
    $region66: #{agcn_forward.5} parent=5 // pred_check_branch
      %402 = sbr.rel (%p400) target = $region68
    $region67: #{agcn_forward.5} parent=5 // pred_region
      // Predicated region
      $region69: #{agcn_forward.5} parent=67 // pred_check
        %p403 = pneg %p40
      $region70: #{agcn_forward.5} parent=67 // pred_check_branch
        %405 = sbr.rel (%p403) target = $region72
      $region71: #{agcn_forward.5} parent=67 // pred_region
        %p406 = scmp.lt.s32.totalorder %s20, 3
        %s407 = scalar_select %p406, %s20, 3
        %s408 = smul.addr %s407, 16
        %s409 = smul.addr %s408, 8
        %s410 = scalar_lea.vmem %s0, %s409
      $region72: #{agcn_forward.5} parent=67 // pred_fallthru
        _
    $region68: #{agcn_forward.5} parent=5 // pred_fallthru
      _
    %p411 = scmp.le.s32.totalorder 1, %s20
    %p412 = scmp.lt.s32.totalorder %s20, 5
    %p413 = pnand %p411, %p412
    %p414 = pneg %p413
    // Predicated region
    $region73: #{agcn_forward.5} parent=5 // pred_check
      _
    $region74: #{agcn_forward.5} parent=5 // pred_check_branch
      %416 = sbr.rel (%p413) target = $region76
    $region75: #{agcn_forward.5} parent=5 // pred_region
      %s417 = ssub.s32 %s20, 1
      %p418 = scmp.lt.s32.totalorder %s25, 3
      %s419 = scalar_select %p418, %s25, 3
      %s420 = smul.addr %s419, 16
      %s421 = smul.addr %s420, 8
      %s422 = scalar_lea.vmem %s0, %s421
      %p423 = pneg %p46
      %p424 = pneg %p43
      %p425 = pneg %p67
      %p426 = pneg %p64
      %p427 = pneg %p88
      %p428 = pneg %p85
      %p429 = pneg %p109
      %p430 = pneg %p106
      %p431 = pneg %p130
      %p432 = pneg %p127
      %p433 = pneg %p151
      %p434 = pneg %p148
      %p435 = pneg %p172
      %p436 = pneg %p169
      %p437 = pneg %p193
      %p438 = pneg %p190
      %p439 = pneg %p214
      %p440 = pneg %p211
      %p441 = pneg %p235
      %p442 = pneg %p232
      %p443 = pneg %p256
      %p444 = pneg %p253
      %p445 = pneg %p277
      %p446 = pneg %p274
      %p447 = pneg %p298
      %p448 = pneg %p295
      %p449 = pneg %p319
      %p450 = pneg %p316
      %p451 = pneg %p345
      %p452 = pneg %p342
      %p453 = scmp.lt.s32.totalorder %s25, 3
      %s454 = scalar_select %p453, %s25, 3
      %s455 = smul.addr %s454, 16
      %s456 = smul.addr %s455, 8
      %s457 = scalar_lea.vmem %s14, %s456
      %p458 = scmp.lt.s32.totalorder %s25, 3
      %s459 = scalar_select %p458, %s25, 3
      %s460 = smul.addr %s459, 16
      %s461 = smul.addr %s460, 8
      %s462 = scalar_lea.vmem %s0, %s461
      %p463 = scmp.lt.s32.totalorder %s25, 3
      %s464 = scalar_select %p463, %s25, 3
      %s465 = smul.addr %s464, 16
      %s466 = smul.addr %s465, 8
      %s467 = scalar_lea.vmem %s14, %s466
      %v469 = vld [vmem:[%s462] sm:$0xff]
      %v470 = vld [vmem:[%s462 + $0x8] sm:$0xff]
      %v471 = vld [vmem:[%s462 + $0x10] sm:$0xff]
      %v472 = vld [vmem:[%s462 + $0x18] sm:$0xff]
      %v473 = vld [vmem:[%s462 + $0x20] sm:$0xff]
      %v474 = vld [vmem:[%s462 + $0x28] sm:$0xff]
      %v475 = vld [vmem:[%s462 + $0x30] sm:$0xff]
      %v476 = vld [vmem:[%s462 + $0x38] sm:$0xff]
      %v477 = vld [vmem:[%s462 + $0x40] sm:$0xff]
      %v478 = vld [vmem:[%s462 + $0x48] sm:$0xff]
      %v479 = vld [vmem:[%s462 + $0x50] sm:$0xff]
      %v480 = vld [vmem:[%s462 + $0x58] sm:$0xff]
      %v481 = vld [vmem:[%s462 + $0x60] sm:$0xff]
      %v482 = vld [vmem:[%s462 + $0x68] sm:$0xff]
      %v483 = vld [vmem:[%s462 + $0x70] sm:$0xff]
      %v484 = vld [vmem:[%s462 + $0x78] sm:$0xff]
      %v485 = vld [vmem:[%s1] sm:$0xff]
      %v486 = vld [vmem:[%s1 + $0x8] sm:$0xff]
      %v487 = vmul.f32 %v469, %v485
      %v488 = vmul.f32 %v470, %v486
      %v489 = vmul.f32 %v471, %v485
      %v490 = vmul.f32 %v472, %v486
      %v491 = vmul.f32 %v473, %v485
      %v492 = vmul.f32 %v474, %v486
      %v493 = vmul.f32 %v475, %v485
      %v494 = vmul.f32 %v476, %v486
      %v495 = vmul.f32 %v477, %v485
      %v496 = vmul.f32 %v478, %v486
      %v497 = vmul.f32 %v479, %v485
      %v498 = vmul.f32 %v480, %v486
      %v499 = vmul.f32 %v481, %v485
      %v500 = vmul.f32 %v482, %v486
      %v501 = vmul.f32 %v483, %v485
      %v502 = vmul.f32 %v484, %v486
      %v503 = vld [vmem:[%s2] sm:$0xff]
      %v504 = vld [vmem:[%s2 + $0x8] sm:$0xff]
      %v505 = vadd.f32 %v487, %v503
      %v506 = vadd.f32 %v488, %v504
      %v507 = vadd.f32 %v489, %v503
      %v508 = vadd.f32 %v490, %v504
      %v509 = vadd.f32 %v491, %v503
      %v510 = vadd.f32 %v492, %v504
      %v511 = vadd.f32 %v493, %v503
      %v512 = vadd.f32 %v494, %v504
      %v513 = vadd.f32 %v495, %v503
      %v514 = vadd.f32 %v496, %v504
      %v515 = vadd.f32 %v497, %v503
      %v516 = vadd.f32 %v498, %v504
      %v517 = vadd.f32 %v499, %v503
      %v518 = vadd.f32 %v500, %v504
      %v519 = vadd.f32 %v501, %v503
      %v520 = vadd.f32 %v502, %v504
      %v521 = vpack.c.bf16 %v506, %v505
      %v522 = vpack.c.bf16 %v508, %v507
      %v523 = vpack.c.bf16 %v510, %v509
      %v524 = vpack.c.bf16 %v512, %v511
      %v525 = vpack.c.bf16 %v514, %v513
      %v526 = vpack.c.bf16 %v516, %v515
      %v527 = vpack.c.bf16 %v518, %v517
      %v528 = vpack.c.bf16 %v520, %v519
      %v529 = vld [vmem:[%s3] sm:$0xf]
      %v530 = vld [vmem:[%s3 + $0x4] sm:$0xf]
      %v531 = vld [vmem:[%s3 + $0x8] sm:$0xf]
      %v532 = vld [vmem:[%s3 + $0xc] sm:$0xf]
      %v533 = vld [vmem:[%s3 + $0x10] sm:$0xf]
      %v534 = vld [vmem:[%s3 + $0x14] sm:$0xf]
      %v535 = vld [vmem:[%s3 + $0x18] sm:$0xf]
      %v536 = vld [vmem:[%s3 + $0x1c] sm:$0xf]
      %v537 = vld [vmem:[%s4] sm:$0x1]
      %v539 = vlaneseq
      %v540 = vshrl.u32 %v539, 7
      %v541 = vsub.s32 0, %v540
      %v542 = vrot.slane %v537, %v541
      %v552 = vunpack.c.l.b16 %v529
      %v553 = vunpack.c.l.b16 %v530
      %v554 = vunpack.c.l.b16 %v531
      %v555 = vunpack.c.l.b16 %v532
      %v556 = vunpack.c.l.b16 %v533
      %v557 = vunpack.c.l.b16 %v534
      %v558 = vunpack.c.l.b16 %v535
      %v559 = vunpack.c.l.b16 %v536
      %v560 = vpack.c.b16 %v553, %v552
      %v561 = vpack.c.b16 %v555, %v554
      %v562 = vpack.c.b16 %v557, %v556
      %v563 = vpack.c.b16 %v559, %v558
      %vm568 = vcmask 523264
      %v570 = vsel %vm568, %v521, 0
      %v573 = vsel %vm568, %v522, 0
      %v576 = vsel %vm568, %v523, 0
      %v579 = vsel %vm568, %v524, 0
      %v582 = vsel %vm568, %v525, 0
      %v585 = vsel %vm568, %v526, 0
      %v588 = vsel %vm568, %v527, 0
      %v591 = vsel %vm568, %v528, 0
      %593 = vmatprep.subr.bf16.mxu0 0
      %594 = vmatpush1.bf16.msra.mxu0 %v560
      %595 = vmatprep.subr.bf16.mxu0 0
      %596 = vmatpush1.bf16.msra.mxu0 %v561
      %597 = vmatprep.subr.bf16.mxu0 0
      %598 = vmatpush1.bf16.msra.mxu0 %v562
      %599 = vmatprep.subr.bf16.mxu0 0
      %600 = vmatpush1.bf16.msra.mxu0 %v563
      %601 = vmatprep.subr.bf16.mxu0 0
      %602 = vmatpush1.bf16.msra.mxu0 0
      %603 = vmatprep.subr.bf16.mxu0 0
      %604 = vmatpush1.bf16.msra.mxu0 0
      %605 = vmatprep.subr.bf16.mxu0 0
      %606 = vmatpush1.bf16.msra.mxu0 0
      %607 = vmatprep.subr.bf16.mxu0 0
      %608 = vmatpush1.bf16.msra.mxu0 0
      %609 = vmatprep.subr.bf16.mxu0 0
      %610 = vmatpush1.bf16.msra.mxu0 0
      %611 = vmatprep.subr.bf16.mxu0 0
      %612 = vmatpush1.bf16.msra.mxu0 0
      %613 = vmatprep.subr.bf16.mxu0 0
      %614 = vmatpush1.bf16.msra.mxu0 0
      %615 = vmatprep.subr.bf16.mxu0 0
      %616 = vmatpush1.bf16.msra.mxu0 0
      %617 = vmatprep.subr.bf16.mxu0 0
      %618 = vmatpush1.bf16.msra.mxu0 0
      %619 = vmatprep.subr.bf16.mxu0 0
      %620 = vmatpush1.bf16.msra.mxu0 0
      %621 = vmatprep.subr.bf16.mxu0 0
      %622 = vmatpush1.bf16.msra.mxu0 0
      %623 = vmatprep.subr.bf16.mxu0 0
      %624 = vmatpush1.bf16.msra.mxu0 0
      %625 = vmatprep.mubr.bf16.mxu0 0
      %626 = vmatmul.mubr.bf16.gmra.mrb[0].mxu0 %v570
      %v627 = vpop.f32.mrb[0].mxu0
      %v628 = vadd.f32 %v542, %v627
      %v629 = vpop.f32.mrb[0].mxu0
      %v630 = vpop.f32.mrb[0].mxu0
      %v631 = vadd.f32 %v542, %v630
      %v632 = vpop.f32.mrb[0].mxu0
      %633 = vmatprep.mubr.bf16.mxu0 0
      %634 = vmatmul.mubr.bf16.gmra.mrb[0].mxu0 %v573
      %v635 = vpop.f32.mrb[0].mxu0
      %v636 = vadd.f32 %v542, %v635
      %v637 = vpop.f32.mrb[0].mxu0
      %v638 = vpop.f32.mrb[0].mxu0
      %v639 = vadd.f32 %v542, %v638
      %v640 = vpop.f32.mrb[0].mxu0
      %641 = vmatprep.mubr.bf16.mxu0 0
      %642 = vmatmul.mubr.bf16.gmra.mrb[0].mxu0 %v576
      %v643 = vpop.f32.mrb[0].mxu0
      %v644 = vadd.f32 %v542, %v643
      %v645 = vpop.f32.mrb[0].mxu0
      %v646 = vpop.f32.mrb[0].mxu0
      %v647 = vadd.f32 %v542, %v646
      %v648 = vpop.f32.mrb[0].mxu0
      %649 = vmatprep.mubr.bf16.mxu0 0
      %650 = vmatmul.mubr.bf16.gmra.mrb[0].mxu0 %v579
      %v651 = vpop.f32.mrb[0].mxu0
      %v652 = vadd.f32 %v542, %v651
      %v653 = vpop.f32.mrb[0].mxu0
      %v654 = vpop.f32.mrb[0].mxu0
      %v655 = vadd.f32 %v542, %v654
      %v656 = vpop.f32.mrb[0].mxu0
      %657 = vmatprep.mubr.bf16.mxu0 0
      %658 = vmatmul.mubr.bf16.gmra.mrb[0].mxu0 %v582
      %v659 = vpop.f32.mrb[0].mxu0
      %v660 = vadd.f32 %v542, %v659
      %v661 = vpop.f32.mrb[0].mxu0
      %v662 = vpop.f32.mrb[0].mxu0
      %v663 = vadd.f32 %v542, %v662
      %v664 = vpop.f32.mrb[0].mxu0
      %665 = vmatprep.mubr.bf16.mxu0 0
      %666 = vmatmul.mubr.bf16.gmra.mrb[0].mxu0 %v585
      %v667 = vpop.f32.mrb[0].mxu0
      %v668 = vadd.f32 %v542, %v667
      %v669 = vpop.f32.mrb[0].mxu0
      %v670 = vpop.f32.mrb[0].mxu0
      %v671 = vadd.f32 %v542, %v670
      %v672 = vpop.f32.mrb[0].mxu0
      %673 = vmatprep.mubr.bf16.mxu0 0
      %674 = vmatmul.mubr.bf16.gmra.mrb[0].mxu0 %v588
      %v675 = vpop.f32.mrb[0].mxu0
      %v676 = vadd.f32 %v542, %v675
      %v677 = vpop.f32.mrb[0].mxu0
      %v678 = vpop.f32.mrb[0].mxu0
      %v679 = vadd.f32 %v542, %v678
      %v680 = vpop.f32.mrb[0].mxu0
      %681 = vmatprep.mubr.bf16.mxu0 0
      %682 = vmatmul.mubr.bf16.gmra.mrb[0].mxu0 %v591
      %v683 = vpop.f32.mrb[0].mxu0
      %v684 = vadd.f32 %v542, %v683
      %v685 = vpop.f32.mrb[0].mxu0
      %v686 = vpop.f32.mrb[0].mxu0
      %v687 = vadd.f32 %v542, %v686
      %v688 = vpop.f32.mrb[0].mxu0
      %689 = vdwg.mxu0
      %v690 = vld [vmem:[%s5] sm:$0xf]
      %v691 = vld [vmem:[%s5 + $0x4] sm:$0xf]
      %v692 = vld [vmem:[%s5 + $0x8] sm:$0xf]
      %v693 = vld [vmem:[%s5 + $0xc] sm:$0xf]
      %v694 = vld [vmem:[%s5 + $0x10] sm:$0xf]
      %v695 = vld [vmem:[%s5 + $0x14] sm:$0xf]
      %v696 = vld [vmem:[%s5 + $0x18] sm:$0xf]
      %v697 = vld [vmem:[%s5 + $0x1c] sm:$0xf]
      %v698 = vld [vmem:[%s6] sm:$0x1]
      %v700 = vlaneseq
      %v701 = vshrl.u32 %v700, 7
      %v702 = vsub.s32 0, %v701
      %v703 = vrot.slane %v698, %v702
      %v713 = vunpack.c.l.b16 %v690
      %v714 = vunpack.c.l.b16 %v691
      %v715 = vunpack.c.l.b16 %v692
      %v716 = vunpack.c.l.b16 %v693
      %v717 = vunpack.c.l.b16 %v694
      %v718 = vunpack.c.l.b16 %v695
      %v719 = vunpack.c.l.b16 %v696
      %v720 = vunpack.c.l.b16 %v697
      %v721 = vpack.c.b16 %v714, %v713
      %v722 = vpack.c.b16 %v716, %v715
      %v723 = vpack.c.b16 %v718, %v717
      %v724 = vpack.c.b16 %v720, %v719
      %729 = vmatprep.subr.bf16.mxu0 0
      %730 = vmatpush1.bf16.msra.mxu0 %v721
      %731 = vmatprep.subr.bf16.mxu0 0
      %732 = vmatpush1.bf16.msra.mxu0 %v722
      %733 = vmatprep.subr.bf16.mxu0 0
      %734 = vmatpush1.bf16.msra.mxu0 %v723
      %735 = vmatprep.subr.bf16.mxu0 0
      %736 = vmatpush1.bf16.msra.mxu0 %v724
      %737 = vmatprep.subr.bf16.mxu0 0
      %738 = vmatpush1.bf16.msra.mxu0 0
      %739 = vmatprep.subr.bf16.mxu0 0
      %740 = vmatpush1.bf16.msra.mxu0 0
      %741 = vmatprep.subr.bf16.mxu0 0
      %742 = vmatpush1.bf16.msra.mxu0 0
      %743 = vmatprep.subr.bf16.mxu0 0
      %744 = vmatpush1.bf16.msra.mxu0 0
      %745 = vmatprep.subr.bf16.mxu0 0
      %746 = vmatpush1.bf16.msra.mxu0 0
      %747 = vmatprep.subr.bf16.mxu0 0
      %748 = vmatpush1.bf16.msra.mxu0 0
      %749 = vmatprep.subr.bf16.mxu0 0
      %750 = vmatpush1.bf16.msra.mxu0 0
      %751 = vmatprep.subr.bf16.mxu0 0
      %752 = vmatpush1.bf16.msra.mxu0 0
      %753 = vmatprep.subr.bf16.mxu0 0
      %754 = vmatpush1.bf16.msra.mxu0 0
      %755 = vmatprep.subr.bf16.mxu0 0
      %756 = vmatpush1.bf16.msra.mxu0 0
      %757 = vmatprep.subr.bf16.mxu0 0
      %758 = vmatpush1.bf16.msra.mxu0 0
      %759 = vmatprep.subr.bf16.mxu0 0
      %760 = vmatpush1.bf16.msra.mxu0 0
      %761 = vmatprep.mubr.bf16.mxu0 0
      %762 = vmatmul.mubr.bf16.gmra.mrb[0].mxu0 %v570
      %v763 = vpop.f32.mrb[0].mxu0
      %v764 = vadd.f32 %v703, %v763
      %v765 = vpop.f32.mrb[0].mxu0
      %v766 = vpop.f32.mrb[0].mxu0
      %v767 = vadd.f32 %v703, %v766
      %v768 = vpop.f32.mrb[0].mxu0
      %769 = vmatprep.mubr.bf16.mxu0 0
      %770 = vmatmul.mubr.bf16.gmra.mrb[0].mxu0 %v573
      %v771 = vpop.f32.mrb[0].mxu0
      %v772 = vadd.f32 %v703, %v771
      %v773 = vpop.f32.mrb[0].mxu0
      %v774 = vpop.f32.mrb[0].mxu0
      %v775 = vadd.f32 %v703, %v774
      %v776 = vpop.f32.mrb[0].mxu0
      %777 = vmatprep.mubr.bf16.mxu0 0
      %778 = vmatmul.mubr.bf16.gmra.mrb[0].mxu0 %v576
      %v779 = vpop.f32.mrb[0].mxu0
      %v780 = vadd.f32 %v703, %v779
      %v781 = vpop.f32.mrb[0].mxu0
      %v782 = vpop.f32.mrb[0].mxu0
      %v783 = vadd.f32 %v703, %v782
      %v784 = vpop.f32.mrb[0].mxu0
      %785 = vmatprep.mubr.bf16.mxu0 0
      %786 = vmatmul.mubr.bf16.gmra.mrb[0].mxu0 %v579
      %v787 = vpop.f32.mrb[0].mxu0
      %v788 = vadd.f32 %v703, %v787
      %v789 = vpop.f32.mrb[0].mxu0
      %v790 = vpop.f32.mrb[0].mxu0
      %v791 = vadd.f32 %v703, %v790
      %v792 = vpop.f32.mrb[0].mxu0
      %793 = vmatprep.mubr.bf16.mxu0 0
      %794 = vmatmul.mubr.bf16.gmra.mrb[0].mxu0 %v582
      %v795 = vpop.f32.mrb[0].mxu0
      %v796 = vadd.f32 %v703, %v795
      %v797 = vpop.f32.mrb[0].mxu0
      %v798 = vpop.f32.mrb[0].mxu0
      %v799 = vadd.f32 %v703, %v798
      %v800 = vpop.f32.mrb[0].mxu0
      %801 = vmatprep.mubr.bf16.mxu0 0
      %802 = vmatmul.mubr.bf16.gmra.mrb[0].mxu0 %v585
      %v803 = vpop.f32.mrb[0].mxu0
      %v804 = vadd.f32 %v703, %v803
      %v805 = vpop.f32.mrb[0].mxu0
      %v806 = vpop.f32.mrb[0].mxu0
      %v807 = vadd.f32 %v703, %v806
      %v808 = vpop.f32.mrb[0].mxu0
      %809 = vmatprep.mubr.bf16.mxu0 0
      %810 = vmatmul.mubr.bf16.gmra.mrb[0].mxu0 %v588
      %v811 = vpop.f32.mrb[0].mxu0
      %v812 = vadd.f32 %v703, %v811
      %v813 = vpop.f32.mrb[0].mxu0
      %v814 = vpop.f32.mrb[0].mxu0
      %v815 = vadd.f32 %v703, %v814
      %v816 = vpop.f32.mrb[0].mxu0
      %817 = vmatprep.mubr.bf16.mxu0 0
      %818 = vmatmul.mubr.bf16.gmra.mrb[0].mxu0 %v591
      %v819 = vpop.f32.mrb[0].mxu0
      %v820 = vadd.f32 %v703, %v819
      %v821 = vpop.f32.mrb[0].mxu0
      %v822 = vpop.f32.mrb[0].mxu0
      %v823 = vadd.f32 %v703, %v822
      %v824 = vpop.f32.mrb[0].mxu0
      %825 = vdwg.mxu0
      %v826 = vpack.c.bf16 %v631, %v628
      %v827 = vpack.c.bf16 %v639, %v636
      %v828 = vpack.c.bf16 %v647, %v644
      %v829 = vpack.c.bf16 %v655, %v652
      %v830 = vpack.c.bf16 %v663, %v660
      %v831 = vpack.c.bf16 %v671, %v668
      %v832 = vpack.c.bf16 %v679, %v676
      %v833 = vpack.c.bf16 %v687, %v684
      %v834 = vpack.c.bf16 %v767, %v764
      %v835 = vpack.c.bf16 %v775, %v772
      %v836 = vpack.c.bf16 %v783, %v780
      %v837 = vpack.c.bf16 %v791, %v788
      %v838 = vpack.c.bf16 %v799, %v796
      %v839 = vpack.c.bf16 %v807, %v804
      %v840 = vpack.c.bf16 %v815, %v812
      %v841 = vpack.c.bf16 %v823, %v820
      %vm842 = vcmask 130048
      %v844 = vsel %vm842, %v834, 0
      %v847 = vsel %vm842, %v826, 0
      %849 = vmatprep.subr.bf16.mxu0 0
      %850 = vmatpush1.bf16.xpose.msra.mxu0 %v847
      %851 = vmatprep.subr.bf16.mxu0 0
      %852 = vmatpush1.bf16.xpose.msra.mxu0 0
      %853 = vmatprep.subr.bf16.mxu0 0
      %854 = vmatpush1.bf16.xpose.msra.mxu0 0
      %855 = vmatprep.subr.bf16.mxu0 0
      %856 = vmatpush1.bf16.xpose.msra.mxu0 0
      %857 = vmatprep.subr.bf16.mxu0 0
      %858 = vmatpush1.bf16.xpose.msra.mxu0 0
      %859 = vmatprep.subr.bf16.mxu0 0
      %860 = vmatpush1.bf16.xpose.msra.mxu0 0
      %861 = vmatprep.subr.bf16.mxu0 0
      %862 = vmatpush1.bf16.xpose.msra.mxu0 0
      %863 = vmatprep.subr.bf16.mxu0 0
      %864 = vmatpush1.bf16.xpose.msra.mxu0 0
      %865 = vmatprep.subr.bf16.mxu0 0
      %866 = vmatpush1.bf16.xpose.msra.mxu0 0
      %867 = vmatprep.subr.bf16.mxu0 0
      %868 = vmatpush1.bf16.xpose.msra.mxu0 0
      %869 = vmatprep.subr.bf16.mxu0 0
      %870 = vmatpush1.bf16.xpose.msra.mxu0 0
      %871 = vmatprep.subr.bf16.mxu0 0
      %872 = vmatpush1.bf16.xpose.msra.mxu0 0
      %873 = vmatprep.subr.bf16.mxu0 0
      %874 = vmatpush1.bf16.xpose.msra.mxu0 0
      %875 = vmatprep.subr.bf16.mxu0 0
      %876 = vmatpush1.bf16.xpose.msra.mxu0 0
      %877 = vmatprep.subr.bf16.mxu0 0
      %878 = vmatpush1.bf16.xpose.msra.mxu0 0
      %879 = vmatprep.subr.bf16.mxu0 0
      %880 = vmatpush1.bf16.xpose.msra.mxu0 0
      %881 = vmatprep.mubr.bf16.mxu0 0
      %882 = vmatmul.mubr.bf16.gmra.mrb[0].mxu0 %v844
      %v883 = vpop.f32.mrb[0].mxu0
      %v884 = vadd.f32 0.0, %v883
      %v885 = vpop.f32.mrb[0].mxu0
      %v886 = vpop.f32.mrb[0].mxu0
      %v887 = vadd.f32 0.0, %v886
      %v888 = vpop.f32.mrb[0].mxu0
      %889 = vdwg.mxu0
      %v891 = vsel %vm842, %v835, 0
      %v894 = vsel %vm842, %v827, 0
      %896 = vmatprep.subr.bf16.mxu0 0
      %897 = vmatpush1.bf16.xpose.msra.mxu0 %v894
      %898 = vmatprep.subr.bf16.mxu0 0
      %899 = vmatpush1.bf16.xpose.msra.mxu0 0
      %900 = vmatprep.subr.bf16.mxu0 0
      %901 = vmatpush1.bf16.xpose.msra.mxu0 0
      %902 = vmatprep.subr.bf16.mxu0 0
      %903 = vmatpush1.bf16.xpose.msra.mxu0 0
      %904 = vmatprep.subr.bf16.mxu0 0
      %905 = vmatpush1.bf16.xpose.msra.mxu0 0
      %906 = vmatprep.subr.bf16.mxu0 0
      %907 = vmatpush1.bf16.xpose.msra.mxu0 0
      %908 = vmatprep.subr.bf16.mxu0 0
      %909 = vmatpush1.bf16.xpose.msra.mxu0 0
      %910 = vmatprep.subr.bf16.mxu0 0
      %911 = vmatpush1.bf16.xpose.msra.mxu0 0
      %912 = vmatprep.subr.bf16.mxu0 0
      %913 = vmatpush1.bf16.xpose.msra.mxu0 0
      %914 = vmatprep.subr.bf16.mxu0 0
      %915 = vmatpush1.bf16.xpose.msra.mxu0 0
      %916 = vmatprep.subr.bf16.mxu0 0
      %917 = vmatpush1.bf16.xpose.msra.mxu0 0
      %918 = vmatprep.subr.bf16.mxu0 0
      %919 = vmatpush1.bf16.xpose.msra.mxu0 0
      %920 = vmatprep.subr.bf16.mxu0 0
      %921 = vmatpush1.bf16.xpose.msra.mxu0 0
      %922 = vmatprep.subr.bf16.mxu0 0
      %923 = vmatpush1.bf16.xpose.msra.mxu0 0
      %924 = vmatprep.subr.bf16.mxu0 0
      %925 = vmatpush1.bf16.xpose.msra.mxu0 0
      %926 = vmatprep.subr.bf16.mxu0 0
      %927 = vmatpush1.bf16.xpose.msra.mxu0 0
      %928 = vmatprep.mubr.bf16.mxu0 0
      %929 = vmatmul.mubr.bf16.gmra.mrb[0].mxu0 %v891
      %v930 = vpop.f32.mrb[0].mxu0
      %v931 = vadd.f32 0.0, %v930
      %v932 = vpop.f32.mrb[0].mxu0
      %v933 = vpop.f32.mrb[0].mxu0
      %v934 = vadd.f32 0.0, %v933
      %v935 = vpop.f32.mrb[0].mxu0
      %936 = vdwg.mxu0
      %v938 = vsel %vm842, %v836, 0
      %v941 = vsel %vm842, %v828, 0
      %943 = vmatprep.subr.bf16.mxu0 0
      %944 = vmatpush1.bf16.xpose.msra.mxu0 %v941
      %945 = vmatprep.subr.bf16.mxu0 0
      %946 = vmatpush1.bf16.xpose.msra.mxu0 0
      %947 = vmatprep.subr.bf16.mxu0 0
      %948 = vmatpush1.bf16.xpose.msra.mxu0 0
      %949 = vmatprep.subr.bf16.mxu0 0
      %950 = vmatpush1.bf16.xpose.msra.mxu0 0
      %951 = vmatprep.subr.bf16.mxu0 0
      %952 = vmatpush1.bf16.xpose.msra.mxu0 0
      %953 = vmatprep.subr.bf16.mxu0 0
      %954 = vmatpush1.bf16.xpose.msra.mxu0 0
      %955 = vmatprep.subr.bf16.mxu0 0
      %956 = vmatpush1.bf16.xpose.msra.mxu0 0
      %957 = vmatprep.subr.bf16.mxu0 0
      %958 = vmatpush1.bf16.xpose.msra.mxu0 0
      %959 = vmatprep.subr.bf16.mxu0 0
      %960 = vmatpush1.bf16.xpose.msra.mxu0 0
      %961 = vmatprep.subr.bf16.mxu0 0
      %962 = vmatpush1.bf16.xpose.msra.mxu0 0
      %963 = vmatprep.subr.bf16.mxu0 0
      %964 = vmatpush1.bf16.xpose.msra.mxu0 0
      %965 = vmatprep.subr.bf16.mxu0 0
      %966 = vmatpush1.bf16.xpose.msra.mxu0 0
      %967 = vmatprep.subr.bf16.mxu0 0
      %968 = vmatpush1.bf16.xpose.msra.mxu0 0
      %969 = vmatprep.subr.bf16.mxu0 0
      %970 = vmatpush1.bf16.xpose.msra.mxu0 0
      %971 = vmatprep.subr.bf16.mxu0 0
      %972 = vmatpush1.bf16.xpose.msra.mxu0 0
      %973 = vmatprep.subr.bf16.mxu0 0
      %974 = vmatpush1.bf16.xpose.msra.mxu0 0
      %975 = vmatprep.mubr.bf16.mxu0 0
      %976 = vmatmul.mubr.bf16.gmra.mrb[0].mxu0 %v938
      %v977 = vpop.f32.mrb[0].mxu0
      %v978 = vadd.f32 0.0, %v977
      %v979 = vpop.f32.mrb[0].mxu0
      %v980 = vpop.f32.mrb[0].mxu0
      %v981 = vadd.f32 0.0, %v980
      %v982 = vpop.f32.mrb[0].mxu0
      %983 = vdwg.mxu0
      %v985 = vsel %vm842, %v837, 0
      %v988 = vsel %vm842, %v829, 0
      %990 = vmatprep.subr.bf16.mxu0 0
      %991 = vmatpush1.bf16.xpose.msra.mxu0 %v988
      %992 = vmatprep.subr.bf16.mxu0 0
      %993 = vmatpush1.bf16.xpose.msra.mxu0 0
      %994 = vmatprep.subr.bf16.mxu0 0
      %995 = vmatpush1.bf16.xpose.msra.mxu0 0
      %996 = vmatprep.subr.bf16.mxu0 0
      %997 = vmatpush1.bf16.xpose.msra.mxu0 0
      %998 = vmatprep.subr.bf16.mxu0 0
      %999 = vmatpush1.bf16.xpose.msra.mxu0 0
      %1000 = vmatprep.subr.bf16.mxu0 0
      %1001 = vmatpush1.bf16.xpose.msra.mxu0 0
      %1002 = vmatprep.subr.bf16.mxu0 0
      %1003 = vmatpush1.bf16.xpose.msra.mxu0 0
      %1004 = vmatprep.subr.bf16.mxu0 0
      %1005 = vmatpush1.bf16.xpose.msra.mxu0 0
      %1006 = vmatprep.subr.bf16.mxu0 0
      %1007 = vmatpush1.bf16.xpose.msra.mxu0 0
      %1008 = vmatprep.subr.bf16.mxu0 0
      %1009 = vmatpush1.bf16.xpose.msra.mxu0 0
      %1010 = vmatprep.subr.bf16.mxu0 0
      %1011 = vmatpush1.bf16.xpose.msra.mxu0 0
      %1012 = vmatprep.subr.bf16.mxu0 0
      %1013 = vmatpush1.bf16.xpose.msra.mxu0 0
      %1014 = vmatprep.subr.bf16.mxu0 0
      %1015 = vmatpush1.bf16.xpose.msra.mxu0 0
      %1016 = vmatprep.subr.bf16.mxu0 0
      %1017 = vmatpush1.bf16.xpose.msra.mxu0 0
      %1018 = vmatprep.subr.bf16.mxu0 0
      %1019 = vmatpush1.bf16.xpose.msra.mxu0 0
      %1020 = vmatprep.subr.bf16.mxu0 0
      %1021 = vmatpush1.bf16.xpose.msra.mxu0 0
      %1022 = vmatprep.mubr.bf16.mxu0 0
      %1023 = vmatmul.mubr.bf16.gmra.mrb[0].mxu0 %v985
      %v1024 = vpop.f32.mrb[0].mxu0
      %v1025 = vadd.f32 0.0, %v1024
      %v1026 = vpop.f32.mrb[0].mxu0
      %v1027 = vpop.f32.mrb[0].mxu0
      %v1028 = vadd.f32 0.0, %v1027
      %v1029 = vpop.f32.mrb[0].mxu0
      %1030 = vdwg.mxu0
      %v1032 = vsel %vm842, %v838, 0
      %v1035 = vsel %vm842, %v830, 0
      %1037 = vmatprep.subr.bf16.mxu0 0
      %1038 = vmatpush1.bf16.xpose.msra.mxu0 %v1035
      %1039 = vmatprep.subr.bf16.mxu0 0
      %1040 = vmatpush1.bf16.xpose.msra.mxu0 0
      %1041 = vmatprep.subr.bf16.mxu0 0
      %1042 = vmatpush1.bf16.xpose.msra.mxu0 0
      %1043 = vmatprep.subr.bf16.mxu0 0
      %1044 = vmatpush1.bf16.xpose.msra.mxu0 0
      %1045 = vmatprep.subr.bf16.mxu0 0
      %1046 = vmatpush1.bf16.xpose.msra.mxu0 0
      %1047 = vmatprep.subr.bf16.mxu0 0
      %1048 = vmatpush1.bf16.xpose.msra.mxu0 0
      %1049 = vmatprep.subr.bf16.mxu0 0
      %1050 = vmatpush1.bf16.xpose.msra.mxu0 0
      %1051 = vmatprep.subr.bf16.mxu0 0
      %1052 = vmatpush1.bf16.xpose.msra.mxu0 0
      %1053 = vmatprep.subr.bf16.mxu0 0
      %1054 = vmatpush1.bf16.xpose.msra.mxu0 0
      %1055 = vmatprep.subr.bf16.mxu0 0
      %1056 = vmatpush1.bf16.xpose.msra.mxu0 0
      %1057 = vmatprep.subr.bf16.mxu0 0
      %1058 = vmatpush1.bf16.xpose.msra.mxu0 0
      %1059 = vmatprep.subr.bf16.mxu0 0
      %1060 = vmatpush1.bf16.xpose.msra.mxu0 0
      %1061 = vmatprep.subr.bf16.mxu0 0
      %1062 = vmatpush1.bf16.xpose.msra.mxu0 0
      %1063 = vmatprep.subr.bf16.mxu0 0
      %1064 = vmatpush1.bf16.xpose.msra.mxu0 0
      %1065 = vmatprep.subr.bf16.mxu0 0
      %1066 = vmatpush1.bf16.xpose.msra.mxu0 0
      %1067 = vmatprep.subr.bf16.mxu0 0
      %1068 = vmatpush1.bf16.xpose.msra.mxu0 0
      %1069 = vmatprep.mubr.bf16.mxu0 0
      %1070 = vmatmul.mubr.bf16.gmra.mrb[0].mxu0 %v1032
      %v1071 = vpop.f32.mrb[0].mxu0
      %v1072 = vadd.f32 0.0, %v1071
      %v1073 = vpop.f32.mrb[0].mxu0
      %v1074 = vpop.f32.mrb[0].mxu0
      %v1075 = vadd.f32 0.0, %v1074
      %v1076 = vpop.f32.mrb[0].mxu0
      %1077 = vdwg.mxu0
      %v1079 = vsel %vm842, %v839, 0
      %v1082 = vsel %vm842, %v831, 0
      %1084 = vmatprep.subr.bf16.mxu0 0
      %1085 = vmatpush1.bf16.xpose.msra.mxu0 %v1082
      %1086 = vmatprep.subr.bf16.mxu0 0
      %1087 = vmatpush1.bf16.xpose.msra.mxu0 0
      %1088 = vmatprep.subr.bf16.mxu0 0
      %1089 = vmatpush1.bf16.xpose.msra.mxu0 0
      %1090 = vmatprep.subr.bf16.mxu0 0
      %1091 = vmatpush1.bf16.xpose.msra.mxu0 0
      %1092 = vmatprep.subr.bf16.mxu0 0
      %1093 = vmatpush1.bf16.xpose.msra.mxu0 0
      %1094 = vmatprep.subr.bf16.mxu0 0
      %1095 = vmatpush1.bf16.xpose.msra.mxu0 0
      %1096 = vmatprep.subr.bf16.mxu0 0
      %1097 = vmatpush1.bf16.xpose.msra.mxu0 0
      %1098 = vmatprep.subr.bf16.mxu0 0
      %1099 = vmatpush1.bf16.xpose.msra.mxu0 0
      %1100 = vmatprep.subr.bf16.mxu0 0
      %1101 = vmatpush1.bf16.xpose.msra.mxu0 0
      %1102 = vmatprep.subr.bf16.mxu0 0
      %1103 = vmatpush1.bf16.xpose.msra.mxu0 0
      %1104 = vmatprep.subr.bf16.mxu0 0
      %1105 = vmatpush1.bf16.xpose.msra.mxu0 0
      %1106 = vmatprep.subr.bf16.mxu0 0
      %1107 = vmatpush1.bf16.xpose.msra.mxu0 0
      %1108 = vmatprep.subr.bf16.mxu0 0
      %1109 = vmatpush1.bf16.xpose.msra.mxu0 0
      %1110 = vmatprep.subr.bf16.mxu0 0
      %1111 = vmatpush1.bf16.xpose.msra.mxu0 0
      %1112 = vmatprep.subr.bf16.mxu0 0
      %1113 = vmatpush1.bf16.xpose.msra.mxu0 0
      %1114 = vmatprep.subr.bf16.mxu0 0
      %1115 = vmatpush1.bf16.xpose.msra.mxu0 0
      %1116 = vmatprep.mubr.bf16.mxu0 0
      %1117 = vmatmul.mubr.bf16.gmra.mrb[0].mxu0 %v1079
      %v1118 = vpop.f32.mrb[0].mxu0
      %v1119 = vadd.f32 0.0, %v1118
      %v1120 = vpop.f32.mrb[0].mxu0
      %v1121 = vpop.f32.mrb[0].mxu0
      %v1122 = vadd.f32 0.0, %v1121
      %v1123 = vpop.f32.mrb[0].mxu0
      %1124 = vdwg.mxu0
      %v1126 = vsel %vm842, %v840, 0
      %v1129 = vsel %vm842, %v832, 0
      %1131 = vmatprep.subr.bf16.mxu0 0
      %1132 = vmatpush1.bf16.xpose.msra.mxu0 %v1129
      %1133 = vmatprep.subr.bf16.mxu0 0
      %1134 = vmatpush1.bf16.xpose.msra.mxu0 0
      %1135 = vmatprep.subr.bf16.mxu0 0
      %1136 = vmatpush1.bf16.xpose.msra.mxu0 0
      %1137 = vmatprep.subr.bf16.mxu0 0
      %1138 = vmatpush1.bf16.xpose.msra.mxu0 0
      %1139 = vmatprep.subr.bf16.mxu0 0
      %1140 = vmatpush1.bf16.xpose.msra.mxu0 0
      %1141 = vmatprep.subr.bf16.mxu0 0
      %1142 = vmatpush1.bf16.xpose.msra.mxu0 0
      %1143 = vmatprep.subr.bf16.mxu0 0
      %1144 = vmatpush1.bf16.xpose.msra.mxu0 0
      %1145 = vmatprep.subr.bf16.mxu0 0
      %1146 = vmatpush1.bf16.xpose.msra.mxu0 0
      %1147 = vmatprep.subr.bf16.mxu0 0
      %1148 = vmatpush1.bf16.xpose.msra.mxu0 0
      %1149 = vmatprep.subr.bf16.mxu0 0
      %1150 = vmatpush1.bf16.xpose.msra.mxu0 0
      %1151 = vmatprep.subr.bf16.mxu0 0
      %1152 = vmatpush1.bf16.xpose.msra.mxu0 0
      %1153 = vmatprep.subr.bf16.mxu0 0
      %1154 = vmatpush1.bf16.xpose.msra.mxu0 0
      %1155 = vmatprep.subr.bf16.mxu0 0
      %1156 = vmatpush1.bf16.xpose.msra.mxu0 0
      %1157 = vmatprep.subr.bf16.mxu0 0
      %1158 = vmatpush1.bf16.xpose.msra.mxu0 0
      %1159 = vmatprep.subr.bf16.mxu0 0
      %1160 = vmatpush1.bf16.xpose.msra.mxu0 0
      %1161 = vmatprep.subr.bf16.mxu0 0
      %1162 = vmatpush1.bf16.xpose.msra.mxu0 0
      %1163 = vmatprep.mubr.bf16.mxu0 0
      %1164 = vmatmul.mubr.bf16.gmra.mrb[0].mxu0 %v1126
      %v1165 = vpop.f32.mrb[0].mxu0
      %v1166 = vadd.f32 0.0, %v1165
      %v1167 = vpop.f32.mrb[0].mxu0
      %v1168 = vpop.f32.mrb[0].mxu0
      %v1169 = vadd.f32 0.0, %v1168
      %v1170 = vpop.f32.mrb[0].mxu0
      %1171 = vdwg.mxu0
      %v1173 = vsel %vm842, %v841, 0
      %v1176 = vsel %vm842, %v833, 0
      %1178 = vmatprep.subr.bf16.mxu0 0
      %1179 = vmatpush1.bf16.xpose.msra.mxu0 %v1176
      %1180 = vmatprep.subr.bf16.mxu0 0
      %1181 = vmatpush1.bf16.xpose.msra.mxu0 0
      %1182 = vmatprep.subr.bf16.mxu0 0
      %1183 = vmatpush1.bf16.xpose.msra.mxu0 0
      %1184 = vmatprep.subr.bf16.mxu0 0
      %1185 = vmatpush1.bf16.xpose.msra.mxu0 0
      %1186 = vmatprep.subr.bf16.mxu0 0
      %1187 = vmatpush1.bf16.xpose.msra.mxu0 0
      %1188 = vmatprep.subr.bf16.mxu0 0
      %1189 = vmatpush1.bf16.xpose.msra.mxu0 0
      %1190 = vmatprep.subr.bf16.mxu0 0
      %1191 = vmatpush1.bf16.xpose.msra.mxu0 0
      %1192 = vmatprep.subr.bf16.mxu0 0
      %1193 = vmatpush1.bf16.xpose.msra.mxu0 0
      %1194 = vmatprep.subr.bf16.mxu0 0
      %1195 = vmatpush1.bf16.xpose.msra.mxu0 0
      %1196 = vmatprep.subr.bf16.mxu0 0
      %1197 = vmatpush1.bf16.xpose.msra.mxu0 0
      %1198 = vmatprep.subr.bf16.mxu0 0
      %1199 = vmatpush1.bf16.xpose.msra.mxu0 0
      %1200 = vmatprep.subr.bf16.mxu0 0
      %1201 = vmatpush1.bf16.xpose.msra.mxu0 0
      %1202 = vmatprep.subr.bf16.mxu0 0
      %1203 = vmatpush1.bf16.xpose.msra.mxu0 0
      %1204 = vmatprep.subr.bf16.mxu0 0
      %1205 = vmatpush1.bf16.xpose.msra.mxu0 0
      %1206 = vmatprep.subr.bf16.mxu0 0
      %1207 = vmatpush1.bf16.xpose.msra.mxu0 0
      %1208 = vmatprep.subr.bf16.mxu0 0
      %1209 = vmatpush1.bf16.xpose.msra.mxu0 0
      %1210 = vmatprep.mubr.bf16.mxu0 0
      %1211 = vmatmul.mubr.bf16.gmra.mrb[0].mxu0 %v1173
      %v1212 = vpop.f32.mrb[0].mxu0
      %v1213 = vadd.f32 0.0, %v1212
      %v1214 = vpop.f32.mrb[0].mxu0
      %v1215 = vpop.f32.mrb[0].mxu0
      %v1216 = vadd.f32 0.0, %v1215
      %v1217 = vpop.f32.mrb[0].mxu0
      %1218 = vdwg.mxu0
      %v1219 = vsel %vm842, %v884, 0.0
      %v1220 = vsel %vm842, %v931, 0.0
      %v1221 = vadd.f32 %v1219, %v1220
      %v1222 = vsel %vm842, %v978, 0.0
      %v1223 = vadd.f32 %v1221, %v1222
      %v1224 = vsel %vm842, %v1025, 0.0
      %v1225 = vadd.f32 %v1223, %v1224
      %v1226 = vsel %vm842, %v1072, 0.0
      %v1227 = vadd.f32 %v1225, %v1226
      %v1228 = vsel %vm842, %v1119, 0.0
      %v1229 = vadd.f32 %v1227, %v1228
      %v1230 = vsel %vm842, %v1166, 0.0
      %v1231 = vadd.f32 %v1229, %v1230
      %v1232 = vsel %vm842, %v1213, 0.0
      %v1233 = vadd.f32 %v1231, %v1232
      %v1234 = vsel %vm842, %v887, 0.0
      %v1235 = vsel %vm842, %v934, 0.0
      %v1236 = vadd.f32 %v1234, %v1235
      %v1237 = vsel %vm842, %v981, 0.0
      %v1238 = vadd.f32 %v1236, %v1237
      %v1239 = vsel %vm842, %v1028, 0.0
      %v1240 = vadd.f32 %v1238, %v1239
      %v1241 = vsel %vm842, %v1075, 0.0
      %v1242 = vadd.f32 %v1240, %v1241
      %v1243 = vsel %vm842, %v1122, 0.0
      %v1244 = vadd.f32 %v1242, %v1243
      %v1245 = vsel %vm842, %v1169, 0.0
      %v1246 = vadd.f32 %v1244, %v1245
      %v1247 = vsel %vm842, %v1216, 0.0
      %v1248 = vadd.f32 %v1246, %v1247
      %v1249 = vmul.f32 %v1233, 0.0078125
      %v1250 = vmul.f32 %v1248, 0.0078125
      %v1251 = vsel %vm842, %v1249, -inf
      %1252 = vmax.xlane.f32.xlu0 %v1251
      %v1253 = vpop.xlane.xlu0 %1252
      %v1254 = vsel %vm842, %v1250, -inf
      %1255 = vmax.xlane.f32.xlu0 %v1254
      %v1256 = vpop.xlane.xlu0 %1255
      %v1257 = vsub.f32 %v1249, %v1253
      %v1258 = vsub.f32 %v1250, %v1256
      %v1259 = vmul.f32 %v1257, 1.442695
      %v1260 = vpow.pop %v1259
      %v1261 = vmul.f32 %v1258, 1.442695
      %v1262 = vpow.pop %v1261
      %v1263 = vsel %vm842, %v1260, 0.0
      %1264 = vadd.xlane.f32.xlu0 %v1263
      %v1265 = vpop.xlane.xlu0 %1264
      %v1266 = vsel %vm842, %v1262, 0.0
      %1267 = vadd.xlane.f32.xlu0 %v1266
      %v1268 = vpop.xlane.xlu0 %1267
      %v1269 = vrcp.pop %v1265
      %v1270 = vmul.f32 %v1260, %v1269
      %v1271 = vrcp.pop %v1268
      %v1272 = vmul.f32 %v1262, %v1271
      %v1273 = vld [vmem:[%s7] sm:$0xff]
      %v1274 = vld [vmem:[%s7 + $0x8] sm:$0xff]
      %v1275 = vadd.f32 %v1270, %v1273
      %v1276 = vadd.f32 %v1272, %v1274
      %v1277 = vpack.c.bf16 %v1276, %v1275
      %v1279 = vsel %vm842, %v1277, 0
      %1281 = vmatprep.subr.bf16.mxu0 0
      %1282 = vmatpush1.bf16.msra.mxu0 %v521
      %1283 = vmatprep.subr.bf16.mxu0 0
      %1284 = vmatpush1.bf16.msra.mxu0 0
      %1285 = vmatprep.subr.bf16.mxu0 0
      %1286 = vmatpush1.bf16.msra.mxu0 0
      %1287 = vmatprep.subr.bf16.mxu0 0
      %1288 = vmatpush1.bf16.msra.mxu0 0
      %1289 = vmatprep.subr.bf16.mxu0 0
      %1290 = vmatpush1.bf16.msra.mxu0 0
      %1291 = vmatprep.subr.bf16.mxu0 0
      %1292 = vmatpush1.bf16.msra.mxu0 0
      %1293 = vmatprep.subr.bf16.mxu0 0
      %1294 = vmatpush1.bf16.msra.mxu0 0
      %1295 = vmatprep.subr.bf16.mxu0 0
      %1296 = vmatpush1.bf16.msra.mxu0 0
      %1297 = vmatprep.subr.bf16.mxu0 0
      %1298 = vmatpush1.bf16.msra.mxu0 0
      %1299 = vmatprep.subr.bf16.mxu0 0
      %1300 = vmatpush1.bf16.msra.mxu0 0
      %1301 = vmatprep.subr.bf16.mxu0 0
      %1302 = vmatpush1.bf16.msra.mxu0 0
      %1303 = vmatprep.subr.bf16.mxu0 0
      %1304 = vmatpush1.bf16.msra.mxu0 0
      %1305 = vmatprep.subr.bf16.mxu0 0
      %1306 = vmatpush1.bf16.msra.mxu0 0
      %1307 = vmatprep.subr.bf16.mxu0 0
      %1308 = vmatpush1.bf16.msra.mxu0 0
      %1309 = vmatprep.subr.bf16.mxu0 0
      %1310 = vmatpush1.bf16.msra.mxu0 0
      %1311 = vmatprep.subr.bf16.mxu0 0
      %1312 = vmatpush1.bf16.msra.mxu0 0
      %1313 = vmatprep.mubr.bf16.mxu0 0
      %1314 = vmatmul.mubr.bf16.gmra.mrb[0].mxu0 %v1279
      %v1315 = vpop.f32.mrb[0].mxu0
      %v1316 = vadd.f32 0.0, %v1315
      %v1317 = vpop.f32.mrb[0].mxu0
      %v1318 = vpop.f32.mrb[0].mxu0
      %v1319 = vadd.f32 0.0, %v1318
      %v1320 = vpop.f32.mrb[0].mxu0
      %1321 = vdwg.mxu0
      %1322 = vmatprep.subr.bf16.mxu0 0
      %1323 = vmatpush1.bf16.msra.mxu0 %v522
      %1324 = vmatprep.subr.bf16.mxu0 0
      %1325 = vmatpush1.bf16.msra.mxu0 0
      %1326 = vmatprep.subr.bf16.mxu0 0
      %1327 = vmatpush1.bf16.msra.mxu0 0
      %1328 = vmatprep.subr.bf16.mxu0 0
      %1329 = vmatpush1.bf16.msra.mxu0 0
      %1330 = vmatprep.subr.bf16.mxu0 0
      %1331 = vmatpush1.bf16.msra.mxu0 0
      %1332 = vmatprep.subr.bf16.mxu0 0
      %1333 = vmatpush1.bf16.msra.mxu0 0
      %1334 = vmatprep.subr.bf16.mxu0 0
      %1335 = vmatpush1.bf16.msra.mxu0 0
      %1336 = vmatprep.subr.bf16.mxu0 0
      %1337 = vmatpush1.bf16.msra.mxu0 0
      %1338 = vmatprep.subr.bf16.mxu0 0
      %1339 = vmatpush1.bf16.msra.mxu0 0
      %1340 = vmatprep.subr.bf16.mxu0 0
      %1341 = vmatpush1.bf16.msra.mxu0 0
      %1342 = vmatprep.subr.bf16.mxu0 0
      %1343 = vmatpush1.bf16.msra.mxu0 0
      %1344 = vmatprep.subr.bf16.mxu0 0
      %1345 = vmatpush1.bf16.msra.mxu0 0
      %1346 = vmatprep.subr.bf16.mxu0 0
      %1347 = vmatpush1.bf16.msra.mxu0 0
      %1348 = vmatprep.subr.bf16.mxu0 0
      %1349 = vmatpush1.bf16.msra.mxu0 0
      %1350 = vmatprep.subr.bf16.mxu0 0
      %1351 = vmatpush1.bf16.msra.mxu0 0
      %1352 = vmatprep.subr.bf16.mxu0 0
      %1353 = vmatpush1.bf16.msra.mxu0 0
      %1354 = vmatprep.mubr.bf16.mxu0 0
      %1355 = vmatmul.mubr.bf16.gmra.mrb[0].mxu0 %v1279
      %v1356 = vpop.f32.mrb[0].mxu0
      %v1357 = vadd.f32 0.0, %v1356
      %v1358 = vpop.f32.mrb[0].mxu0
      %v1359 = vpop.f32.mrb[0].mxu0
      %v1360 = vadd.f32 0.0, %v1359
      %v1361 = vpop.f32.mrb[0].mxu0
      %1362 = vdwg.mxu0
      %1363 = vmatprep.subr.bf16.mxu0 0
      %1364 = vmatpush1.bf16.msra.mxu0 %v523
      %1365 = vmatprep.subr.bf16.mxu0 0
      %1366 = vmatpush1.bf16.msra.mxu0 0
      %1367 = vmatprep.subr.bf16.mxu0 0
      %1368 = vmatpush1.bf16.msra.mxu0 0
      %1369 = vmatprep.subr.bf16.mxu0 0
      %1370 = vmatpush1.bf16.msra.mxu0 0
      %1371 = vmatprep.subr.bf16.mxu0 0
      %1372 = vmatpush1.bf16.msra.mxu0 0
      %1373 = vmatprep.subr.bf16.mxu0 0
      %1374 = vmatpush1.bf16.msra.mxu0 0
      %1375 = vmatprep.subr.bf16.mxu0 0
      %1376 = vmatpush1.bf16.msra.mxu0 0
      %1377 = vmatprep.subr.bf16.mxu0 0
      %1378 = vmatpush1.bf16.msra.mxu0 0
      %1379 = vmatprep.subr.bf16.mxu0 0
      %1380 = vmatpush1.bf16.msra.mxu0 0
      %1381 = vmatprep.subr.bf16.mxu0 0
      %1382 = vmatpush1.bf16.msra.mxu0 0
      %1383 = vmatprep.subr.bf16.mxu0 0
      %1384 = vmatpush1.bf16.msra.mxu0 0
      %1385 = vmatprep.subr.bf16.mxu0 0
      %1386 = vmatpush1.bf16.msra.mxu0 0
      %1387 = vmatprep.subr.bf16.mxu0 0
      %1388 = vmatpush1.bf16.msra.mxu0 0
      %1389 = vmatprep.subr.bf16.mxu0 0
      %1390 = vmatpush1.bf16.msra.mxu0 0
      %1391 = vmatprep.subr.bf16.mxu0 0
      %1392 = vmatpush1.bf16.msra.mxu0 0
      %1393 = vmatprep.subr.bf16.mxu0 0
      %1394 = vmatpush1.bf16.msra.mxu0 0
      %1395 = vmatprep.mubr.bf16.mxu0 0
      %1396 = vmatmul.mubr.bf16.gmra.mrb[0].mxu0 %v1279
      %v1397 = vpop.f32.mrb[0].mxu0
      %v1398 = vadd.f32 0.0, %v1397
      %v1399 = vpop.f32.mrb[0].mxu0
      %v1400 = vpop.f32.mrb[0].mxu0
      %v1401 = vadd.f32 0.0, %v1400
      %v1402 = vpop.f32.mrb[0].mxu0
      %1403 = vdwg.mxu0
      %1404 = vmatprep.subr.bf16.mxu0 0
      %1405 = vmatpush1.bf16.msra.mxu0 %v524
      %1406 = vmatprep.subr.bf16.mxu0 0
      %1407 = vmatpush1.bf16.msra.mxu0 0
      %1408 = vmatprep.subr.bf16.mxu0 0
      %1409 = vmatpush1.bf16.msra.mxu0 0
      %1410 = vmatprep.subr.bf16.mxu0 0
      %1411 = vmatpush1.bf16.msra.mxu0 0
      %1412 = vmatprep.subr.bf16.mxu0 0
      %1413 = vmatpush1.bf16.msra.mxu0 0
      %1414 = vmatprep.subr.bf16.mxu0 0
      %1415 = vmatpush1.bf16.msra.mxu0 0
      %1416 = vmatprep.subr.bf16.mxu0 0
      %1417 = vmatpush1.bf16.msra.mxu0 0
      %1418 = vmatprep.subr.bf16.mxu0 0
      %1419 = vmatpush1.bf16.msra.mxu0 0
      %1420 = vmatprep.subr.bf16.mxu0 0
      %1421 = vmatpush1.bf16.msra.mxu0 0
      %1422 = vmatprep.subr.bf16.mxu0 0
      %1423 = vmatpush1.bf16.msra.mxu0 0
      %1424 = vmatprep.subr.bf16.mxu0 0
      %1425 = vmatpush1.bf16.msra.mxu0 0
      %1426 = vmatprep.subr.bf16.mxu0 0
      %1427 = vmatpush1.bf16.msra.mxu0 0
      %1428 = vmatprep.subr.bf16.mxu0 0
      %1429 = vmatpush1.bf16.msra.mxu0 0
      %1430 = vmatprep.subr.bf16.mxu0 0
      %1431 = vmatpush1.bf16.msra.mxu0 0
      %1432 = vmatprep.subr.bf16.mxu0 0
      %1433 = vmatpush1.bf16.msra.mxu0 0
      %1434 = vmatprep.subr.bf16.mxu0 0
      %1435 = vmatpush1.bf16.msra.mxu0 0
      %1436 = vmatprep.mubr.bf16.mxu0 0
      %1437 = vmatmul.mubr.bf16.gmra.mrb[0].mxu0 %v1279
      %v1438 = vpop.f32.mrb[0].mxu0
      %v1439 = vadd.f32 0.0, %v1438
      %v1440 = vpop.f32.mrb[0].mxu0
      %v1441 = vpop.f32.mrb[0].mxu0
      %v1442 = vadd.f32 0.0, %v1441
      %v1443 = vpop.f32.mrb[0].mxu0
      %1444 = vdwg.mxu0
      %1445 = vmatprep.subr.bf16.mxu0 0
      %1446 = vmatpush1.bf16.msra.mxu0 %v525
      %1447 = vmatprep.subr.bf16.mxu0 0
      %1448 = vmatpush1.bf16.msra.mxu0 0
      %1449 = vmatprep.subr.bf16.mxu0 0
      %1450 = vmatpush1.bf16.msra.mxu0 0
      %1451 = vmatprep.subr.bf16.mxu0 0
      %1452 = vmatpush1.bf16.msra.mxu0 0
      %1453 = vmatprep.subr.bf16.mxu0 0
      %1454 = vmatpush1.bf16.msra.mxu0 0
      %1455 = vmatprep.subr.bf16.mxu0 0
      %1456 = vmatpush1.bf16.msra.mxu0 0
      %1457 = vmatprep.subr.bf16.mxu0 0
      %1458 = vmatpush1.bf16.msra.mxu0 0
      %1459 = vmatprep.subr.bf16.mxu0 0
      %1460 = vmatpush1.bf16.msra.mxu0 0
      %1461 = vmatprep.subr.bf16.mxu0 0
      %1462 = vmatpush1.bf16.msra.mxu0 0
      %1463 = vmatprep.subr.bf16.mxu0 0
      %1464 = vmatpush1.bf16.msra.mxu0 0
      %1465 = vmatprep.subr.bf16.mxu0 0
      %1466 = vmatpush1.bf16.msra.mxu0 0
      %1467 = vmatprep.subr.bf16.mxu0 0
      %1468 = vmatpush1.bf16.msra.mxu0 0
      %1469 = vmatprep.subr.bf16.mxu0 0
      %1470 = vmatpush1.bf16.msra.mxu0 0
      %1471 = vmatprep.subr.bf16.mxu0 0
      %1472 = vmatpush1.bf16.msra.mxu0 0
      %1473 = vmatprep.subr.bf16.mxu0 0
      %1474 = vmatpush1.bf16.msra.mxu0 0
      %1475 = vmatprep.subr.bf16.mxu0 0
      %1476 = vmatpush1.bf16.msra.mxu0 0
      %1477 = vmatprep.mubr.bf16.mxu0 0
      %1478 = vmatmul.mubr.bf16.gmra.mrb[0].mxu0 %v1279
      %v1479 = vpop.f32.mrb[0].mxu0
      %v1480 = vadd.f32 0.0, %v1479
      %v1481 = vpop.f32.mrb[0].mxu0
      %v1482 = vpop.f32.mrb[0].mxu0
      %v1483 = vadd.f32 0.0, %v1482
      %v1484 = vpop.f32.mrb[0].mxu0
      %1485 = vdwg.mxu0
      %1486 = vmatprep.subr.bf16.mxu0 0
      %1487 = vmatpush1.bf16.msra.mxu0 %v526
      %1488 = vmatprep.subr.bf16.mxu0 0
      %1489 = vmatpush1.bf16.msra.mxu0 0
      %1490 = vmatprep.subr.bf16.mxu0 0
      %1491 = vmatpush1.bf16.msra.mxu0 0
      %1492 = vmatprep.subr.bf16.mxu0 0
      %1493 = vmatpush1.bf16.msra.mxu0 0
      %1494 = vmatprep.subr.bf16.mxu0 0
      %1495 = vmatpush1.bf16.msra.mxu0 0
      %1496 = vmatprep.subr.bf16.mxu0 0
      %1497 = vmatpush1.bf16.msra.mxu0 0
      %1498 = vmatprep.subr.bf16.mxu0 0
      %1499 = vmatpush1.bf16.msra.mxu0 0
      %1500 = vmatprep.subr.bf16.mxu0 0
      %1501 = vmatpush1.bf16.msra.mxu0 0
      %1502 = vmatprep.subr.bf16.mxu0 0
      %1503 = vmatpush1.bf16.msra.mxu0 0
      %1504 = vmatprep.subr.bf16.mxu0 0
      %1505 = vmatpush1.bf16.msra.mxu0 0
      %1506 = vmatprep.subr.bf16.mxu0 0
      %1507 = vmatpush1.bf16.msra.mxu0 0
      %1508 = vmatprep.subr.bf16.mxu0 0
      %1509 = vmatpush1.bf16.msra.mxu0 0
      %1510 = vmatprep.subr.bf16.mxu0 0
      %1511 = vmatpush1.bf16.msra.mxu0 0
      %1512 = vmatprep.subr.bf16.mxu0 0
      %1513 = vmatpush1.bf16.msra.mxu0 0
      %1514 = vmatprep.subr.bf16.mxu0 0
      %1515 = vmatpush1.bf16.msra.mxu0 0
      %1516 = vmatprep.subr.bf16.mxu0 0
      %1517 = vmatpush1.bf16.msra.mxu0 0
      %1518 = vmatprep.mubr.bf16.mxu0 0
      %1519 = vmatmul.mubr.bf16.gmra.mrb[0].mxu0 %v1279
      %v1520 = vpop.f32.mrb[0].mxu0
      %v1521 = vadd.f32 0.0, %v1520
      %v1522 = vpop.f32.mrb[0].mxu0
      %v1523 = vpop.f32.mrb[0].mxu0
      %v1524 = vadd.f32 0.0, %v1523
      %v1525 = vpop.f32.mrb[0].mxu0
      %1526 = vdwg.mxu0
      %1527 = vmatprep.subr.bf16.mxu0 0
      %1528 = vmatpush1.bf16.msra.mxu0 %v527
      %1529 = vmatprep.subr.bf16.mxu0 0
      %1530 = vmatpush1.bf16.msra.mxu0 0
      %1531 = vmatprep.subr.bf16.mxu0 0
      %1532 = vmatpush1.bf16.msra.mxu0 0
      %1533 = vmatprep.subr.bf16.mxu0 0
      %1534 = vmatpush1.bf16.msra.mxu0 0
      %1535 = vmatprep.subr.bf16.mxu0 0
      %1536 = vmatpush1.bf16.msra.mxu0 0
      %1537 = vmatprep.subr.bf16.mxu0 0
      %1538 = vmatpush1.bf16.msra.mxu0 0
      %1539 = vmatprep.subr.bf16.mxu0 0
      %1540 = vmatpush1.bf16.msra.mxu0 0
      %1541 = vmatprep.subr.bf16.mxu0 0
      %1542 = vmatpush1.bf16.msra.mxu0 0
      %1543 = vmatprep.subr.bf16.mxu0 0
      %1544 = vmatpush1.bf16.msra.mxu0 0
      %1545 = vmatprep.subr.bf16.mxu0 0
      %1546 = vmatpush1.bf16.msra.mxu0 0
      %1547 = vmatprep.subr.bf16.mxu0 0
      %1548 = vmatpush1.bf16.msra.mxu0 0
      %1549 = vmatprep.subr.bf16.mxu0 0
      %1550 = vmatpush1.bf16.msra.mxu0 0
      %1551 = vmatprep.subr.bf16.mxu0 0
      %1552 = vmatpush1.bf16.msra.mxu0 0
      %1553 = vmatprep.subr.bf16.mxu0 0
      %1554 = vmatpush1.bf16.msra.mxu0 0
      %1555 = vmatprep.subr.bf16.mxu0 0
      %1556 = vmatpush1.bf16.msra.mxu0 0
      %1557 = vmatprep.subr.bf16.mxu0 0
      %1558 = vmatpush1.bf16.msra.mxu0 0
      %1559 = vmatprep.mubr.bf16.mxu0 0
      %1560 = vmatmul.mubr.bf16.gmra.mrb[0].mxu0 %v1279
      %v1561 = vpop.f32.mrb[0].mxu0
      %v1562 = vadd.f32 0.0, %v1561
      %v1563 = vpop.f32.mrb[0].mxu0
      %v1564 = vpop.f32.mrb[0].mxu0
      %v1565 = vadd.f32 0.0, %v1564
      %v1566 = vpop.f32.mrb[0].mxu0
      %1567 = vdwg.mxu0
      %1568 = vmatprep.subr.bf16.mxu0 0
      %1569 = vmatpush1.bf16.msra.mxu0 %v528
      %1570 = vmatprep.subr.bf16.mxu0 0
      %1571 = vmatpush1.bf16.msra.mxu0 0
      %1572 = vmatprep.subr.bf16.mxu0 0
      %1573 = vmatpush1.bf16.msra.mxu0 0
      %1574 = vmatprep.subr.bf16.mxu0 0
      %1575 = vmatpush1.bf16.msra.mxu0 0
      %1576 = vmatprep.subr.bf16.mxu0 0
      %1577 = vmatpush1.bf16.msra.mxu0 0
      %1578 = vmatprep.subr.bf16.mxu0 0
      %1579 = vmatpush1.bf16.msra.mxu0 0
      %1580 = vmatprep.subr.bf16.mxu0 0
      %1581 = vmatpush1.bf16.msra.mxu0 0
      %1582 = vmatprep.subr.bf16.mxu0 0
      %1583 = vmatpush1.bf16.msra.mxu0 0
      %1584 = vmatprep.subr.bf16.mxu0 0
      %1585 = vmatpush1.bf16.msra.mxu0 0
      %1586 = vmatprep.subr.bf16.mxu0 0
      %1587 = vmatpush1.bf16.msra.mxu0 0
      %1588 = vmatprep.subr.bf16.mxu0 0
      %1589 = vmatpush1.bf16.msra.mxu0 0
      %1590 = vmatprep.subr.bf16.mxu0 0
      %1591 = vmatpush1.bf16.msra.mxu0 0
      %1592 = vmatprep.subr.bf16.mxu0 0
      %1593 = vmatpush1.bf16.msra.mxu0 0
      %1594 = vmatprep.subr.bf16.mxu0 0
      %1595 = vmatpush1.bf16.msra.mxu0 0
      %1596 = vmatprep.subr.bf16.mxu0 0
      %1597 = vmatpush1.bf16.msra.mxu0 0
      %1598 = vmatprep.subr.bf16.mxu0 0
      %1599 = vmatpush1.bf16.msra.mxu0 0
      %1600 = vmatprep.mubr.bf16.mxu0 0
      %1601 = vmatmul.mubr.bf16.gmra.mrb[0].mxu0 %v1279
      %v1602 = vpop.f32.mrb[0].mxu0
      %v1603 = vadd.f32 0.0, %v1602
      %v1604 = vpop.f32.mrb[0].mxu0
      %v1605 = vpop.f32.mrb[0].mxu0
      %v1606 = vadd.f32 0.0, %v1605
      %v1607 = vpop.f32.mrb[0].mxu0
      %1608 = vdwg.mxu0
      %1610 = vrot.lane.b32.xlu0 %v834, 112
      %v1611 = vpop.permute.xlu0 %1610
      %1613 = vrot.lane.b32.xlu0 %v826, 112
      %v1614 = vpop.permute.xlu0 %1613
      %v1616 = vsel %vm842, %v1611, 0
      %v1619 = vsel %vm842, %v1614, 0
      %1621 = vmatprep.subr.bf16.mxu0 0
      %1622 = vmatpush1.bf16.xpose.msra.mxu0 %v1619
      %1623 = vmatprep.subr.bf16.mxu0 0
      %1624 = vmatpush1.bf16.xpose.msra.mxu0 0
      %1625 = vmatprep.subr.bf16.mxu0 0
      %1626 = vmatpush1.bf16.xpose.msra.mxu0 0
      %1627 = vmatprep.subr.bf16.mxu0 0
      %1628 = vmatpush1.bf16.xpose.msra.mxu0 0
      %1629 = vmatprep.subr.bf16.mxu0 0
      %1630 = vmatpush1.bf16.xpose.msra.mxu0 0
      %1631 = vmatprep.subr.bf16.mxu0 0
      %1632 = vmatpush1.bf16.xpose.msra.mxu0 0
      %1633 = vmatprep.subr.bf16.mxu0 0
      %1634 = vmatpush1.bf16.xpose.msra.mxu0 0
      %1635 = vmatprep.subr.bf16.mxu0 0
      %1636 = vmatpush1.bf16.xpose.msra.mxu0 0
      %1637 = vmatprep.subr.bf16.mxu0 0
      %1638 = vmatpush1.bf16.xpose.msra.mxu0 0
      %1639 = vmatprep.subr.bf16.mxu0 0
      %1640 = vmatpush1.bf16.xpose.msra.mxu0 0
      %1641 = vmatprep.subr.bf16.mxu0 0
      %1642 = vmatpush1.bf16.xpose.msra.mxu0 0
      %1643 = vmatprep.subr.bf16.mxu0 0
      %1644 = vmatpush1.bf16.xpose.msra.mxu0 0
      %1645 = vmatprep.subr.bf16.mxu0 0
      %1646 = vmatpush1.bf16.xpose.msra.mxu0 0
      %1647 = vmatprep.subr.bf16.mxu0 0
      %1648 = vmatpush1.bf16.xpose.msra.mxu0 0
      %1649 = vmatprep.subr.bf16.mxu0 0
      %1650 = vmatpush1.bf16.xpose.msra.mxu0 0
      %1651 = vmatprep.subr.bf16.mxu0 0
      %1652 = vmatpush1.bf16.xpose.msra.mxu0 0
      %1653 = vmatprep.mubr.bf16.mxu0 0
      %1654 = vmatmul.mubr.bf16.gmra.mrb[0].mxu0 %v1616
      %v1655 = vpop.f32.mrb[0].mxu0
      %v1656 = vadd.f32 0.0, %v1655
      %v1657 = vpop.f32.mrb[0].mxu0
      %v1658 = vpop.f32.mrb[0].mxu0
      %v1659 = vadd.f32 0.0, %v1658
      %v1660 = vpop.f32.mrb[0].mxu0
      %1661 = vdwg.mxu0
      %1663 = vrot.lane.b32.xlu0 %v835, 112
      %v1664 = vpop.permute.xlu0 %1663
      %1666 = vrot.lane.b32.xlu0 %v827, 112
      %v1667 = vpop.permute.xlu0 %1666
      %v1669 = vsel %vm842, %v1664, 0
      %v1672 = vsel %vm842, %v1667, 0
      %1674 = vmatprep.subr.bf16.mxu0 0
      %1675 = vmatpush1.bf16.xpose.msra.mxu0 %v1672
      %1676 = vmatprep.subr.bf16.mxu0 0
      %1677 = vmatpush1.bf16.xpose.msra.mxu0 0
      %1678 = vmatprep.subr.bf16.mxu0 0
      %1679 = vmatpush1.bf16.xpose.msra.mxu0 0
      %1680 = vmatprep.subr.bf16.mxu0 0
      %1681 = vmatpush1.bf16.xpose.msra.mxu0 0
      %1682 = vmatprep.subr.bf16.mxu0 0
      %1683 = vmatpush1.bf16.xpose.msra.mxu0 0
      %1684 = vmatprep.subr.bf16.mxu0 0
      %1685 = vmatpush1.bf16.xpose.msra.mxu0 0
      %1686 = vmatprep.subr.bf16.mxu0 0
      %1687 = vmatpush1.bf16.xpose.msra.mxu0 0
      %1688 = vmatprep.subr.bf16.mxu0 0
      %1689 = vmatpush1.bf16.xpose.msra.mxu0 0
      %1690 = vmatprep.subr.bf16.mxu0 0
      %1691 = vmatpush1.bf16.xpose.msra.mxu0 0
      %1692 = vmatprep.subr.bf16.mxu0 0
      %1693 = vmatpush1.bf16.xpose.msra.mxu0 0
      %1694 = vmatprep.subr.bf16.mxu0 0
      %1695 = vmatpush1.bf16.xpose.msra.mxu0 0
      %1696 = vmatprep.subr.bf16.mxu0 0
      %1697 = vmatpush1.bf16.xpose.msra.mxu0 0
      %1698 = vmatprep.subr.bf16.mxu0 0
      %1699 = vmatpush1.bf16.xpose.msra.mxu0 0
      %1700 = vmatprep.subr.bf16.mxu0 0
      %1701 = vmatpush1.bf16.xpose.msra.mxu0 0
      %1702 = vmatprep.subr.bf16.mxu0 0
      %1703 = vmatpush1.bf16.xpose.msra.mxu0 0
      %1704 = vmatprep.subr.bf16.mxu0 0
      %1705 = vmatpush1.bf16.xpose.msra.mxu0 0
      %1706 = vmatprep.mubr.bf16.mxu0 0
      %1707 = vmatmul.mubr.bf16.gmra.mrb[0].mxu0 %v1669
      %v1708 = vpop.f32.mrb[0].mxu0
      %v1709 = vadd.f32 0.0, %v1708
      %v1710 = vpop.f32.mrb[0].mxu0
      %v1711 = vpop.f32.mrb[0].mxu0
      %v1712 = vadd.f32 0.0, %v1711
      %v1713 = vpop.f32.mrb[0].mxu0
      %1714 = vdwg.mxu0
      %1716 = vrot.lane.b32.xlu0 %v836, 112
      %v1717 = vpop.permute.xlu0 %1716
      %1719 = vrot.lane.b32.xlu0 %v828, 112
      %v1720 = vpop.permute.xlu0 %1719
      %v1722 = vsel %vm842, %v1717, 0
      %v1725 = vsel %vm842, %v1720, 0
      %1727 = vmatprep.subr.bf16.mxu0 0
      %1728 = vmatpush1.bf16.xpose.msra.mxu0 %v1725
      %1729 = vmatprep.subr.bf16.mxu0 0
      %1730 = vmatpush1.bf16.xpose.msra.mxu0 0
      %1731 = vmatprep.subr.bf16.mxu0 0
      %1732 = vmatpush1.bf16.xpose.msra.mxu0 0
      %1733 = vmatprep.subr.bf16.mxu0 0
      %1734 = vmatpush1.bf16.xpose.msra.mxu0 0
      %1735 = vmatprep.subr.bf16.mxu0 0
      %1736 = vmatpush1.bf16.xpose.msra.mxu0 0
      %1737 = vmatprep.subr.bf16.mxu0 0
      %1738 = vmatpush1.bf16.xpose.msra.mxu0 0
      %1739 = vmatprep.subr.bf16.mxu0 0
      %1740 = vmatpush1.bf16.xpose.msra.mxu0 0
      %1741 = vmatprep.subr.bf16.mxu0 0
      %1742 = vmatpush1.bf16.xpose.msra.mxu0 0
      %1743 = vmatprep.subr.bf16.mxu0 0
      %1744 = vmatpush1.bf16.xpose.msra.mxu0 0
      %1745 = vmatprep.subr.bf16.mxu0 0
      %1746 = vmatpush1.bf16.xpose.msra.mxu0 0
      %1747 = vmatprep.subr.bf16.mxu0 0
      %1748 = vmatpush1.bf16.xpose.msra.mxu0 0
      %1749 = vmatprep.subr.bf16.mxu0 0
      %1750 = vmatpush1.bf16.xpose.msra.mxu0 0
      %1751 = vmatprep.subr.bf16.mxu0 0
      %1752 = vmatpush1.bf16.xpose.msra.mxu0 0
      %1753 = vmatprep.subr.bf16.mxu0 0
      %1754 = vmatpush1.bf16.xpose.msra.mxu0 0
      %1755 = vmatprep.subr.bf16.mxu0 0
      %1756 = vmatpush1.bf16.xpose.msra.mxu0 0
      %1757 = vmatprep.subr.bf16.mxu0 0
      %1758 = vmatpush1.bf16.xpose.msra.mxu0 0
      %1759 = vmatprep.mubr.bf16.mxu0 0
      %1760 = vmatmul.mubr.bf16.gmra.mrb[0].mxu0 %v1722
      %v1761 = vpop.f32.mrb[0].mxu0
      %v1762 = vadd.f32 0.0, %v1761
      %v1763 = vpop.f32.mrb[0].mxu0
      %v1764 = vpop.f32.mrb[0].mxu0
      %v1765 = vadd.f32 0.0, %v1764
      %v1766 = vpop.f32.mrb[0].mxu0
      %1767 = vdwg.mxu0
      %1769 = vrot.lane.b32.xlu0 %v837, 112
      %v1770 = vpop.permute.xlu0 %1769
      %1772 = vrot.lane.b32.xlu0 %v829, 112
      %v1773 = vpop.permute.xlu0 %1772
      %v1775 = vsel %vm842, %v1770, 0
      %v1778 = vsel %vm842, %v1773, 0
      %1780 = vmatprep.subr.bf16.mxu0 0
      %1781 = vmatpush1.bf16.xpose.msra.mxu0 %v1778
      %1782 = vmatprep.subr.bf16.mxu0 0
      %1783 = vmatpush1.bf16.xpose.msra.mxu0 0
      %1784 = vmatprep.subr.bf16.mxu0 0
      %1785 = vmatpush1.bf16.xpose.msra.mxu0 0
      %1786 = vmatprep.subr.bf16.mxu0 0
      %1787 = vmatpush1.bf16.xpose.msra.mxu0 0
      %1788 = vmatprep.subr.bf16.mxu0 0
      %1789 = vmatpush1.bf16.xpose.msra.mxu0 0
      %1790 = vmatprep.subr.bf16.mxu0 0
      %1791 = vmatpush1.bf16.xpose.msra.mxu0 0
      %1792 = vmatprep.subr.bf16.mxu0 0
      %1793 = vmatpush1.bf16.xpose.msra.mxu0 0
      %1794 = vmatprep.subr.bf16.mxu0 0
      %1795 = vmatpush1.bf16.xpose.msra.mxu0 0
      %1796 = vmatprep.subr.bf16.mxu0 0
      %1797 = vmatpush1.bf16.xpose.msra.mxu0 0
      %1798 = vmatprep.subr.bf16.mxu0 0
      %1799 = vmatpush1.bf16.xpose.msra.mxu0 0
      %1800 = vmatprep.subr.bf16.mxu0 0
      %1801 = vmatpush1.bf16.xpose.msra.mxu0 0
      %1802 = vmatprep.subr.bf16.mxu0 0
      %1803 = vmatpush1.bf16.xpose.msra.mxu0 0
      %1804 = vmatprep.subr.bf16.mxu0 0
      %1805 = vmatpush1.bf16.xpose.msra.mxu0 0
      %1806 = vmatprep.subr.bf16.mxu0 0
      %1807 = vmatpush1.bf16.xpose.msra.mxu0 0
      %1808 = vmatprep.subr.bf16.mxu0 0
      %1809 = vmatpush1.bf16.xpose.msra.mxu0 0
      %1810 = vmatprep.subr.bf16.mxu0 0
      %1811 = vmatpush1.bf16.xpose.msra.mxu0 0
      %1812 = vmatprep.mubr.bf16.mxu0 0
      %1813 = vmatmul.mubr.bf16.gmra.mrb[0].mxu0 %v1775
      %v1814 = vpop.f32.mrb[0].mxu0
      %v1815 = vadd.f32 0.0, %v1814
      %v1816 = vpop.f32.mrb[0].mxu0
      %v1817 = vpop.f32.mrb[0].mxu0
      %v1818 = vadd.f32 0.0, %v1817
      %v1819 = vpop.f32.mrb[0].mxu0
      %1820 = vdwg.mxu0
      %1822 = vrot.lane.b32.xlu0 %v838, 112
      %v1823 = vpop.permute.xlu0 %1822
      %1825 = vrot.lane.b32.xlu0 %v830, 112
      %v1826 = vpop.permute.xlu0 %1825
      %v1828 = vsel %vm842, %v1823, 0
      %v1831 = vsel %vm842, %v1826, 0
      %1833 = vmatprep.subr.bf16.mxu0 0
      %1834 = vmatpush1.bf16.xpose.msra.mxu0 %v1831
      %1835 = vmatprep.subr.bf16.mxu0 0
      %1836 = vmatpush1.bf16.xpose.msra.mxu0 0
      %1837 = vmatprep.subr.bf16.mxu0 0
      %1838 = vmatpush1.bf16.xpose.msra.mxu0 0
      %1839 = vmatprep.subr.bf16.mxu0 0
      %1840 = vmatpush1.bf16.xpose.msra.mxu0 0
      %1841 = vmatprep.subr.bf16.mxu0 0
      %1842 = vmatpush1.bf16.xpose.msra.mxu0 0
      %1843 = vmatprep.subr.bf16.mxu0 0
      %1844 = vmatpush1.bf16.xpose.msra.mxu0 0
      %1845 = vmatprep.subr.bf16.mxu0 0
      %1846 = vmatpush1.bf16.xpose.msra.mxu0 0
      %1847 = vmatprep.subr.bf16.mxu0 0
      %1848 = vmatpush1.bf16.xpose.msra.mxu0 0
      %1849 = vmatprep.subr.bf16.mxu0 0
      %1850 = vmatpush1.bf16.xpose.msra.mxu0 0
      %1851 = vmatprep.subr.bf16.mxu0 0
      %1852 = vmatpush1.bf16.xpose.msra.mxu0 0
      %1853 = vmatprep.subr.bf16.mxu0 0
      %1854 = vmatpush1.bf16.xpose.msra.mxu0 0
      %1855 = vmatprep.subr.bf16.mxu0 0
      %1856 = vmatpush1.bf16.xpose.msra.mxu0 0
      %1857 = vmatprep.subr.bf16.mxu0 0
      %1858 = vmatpush1.bf16.xpose.msra.mxu0 0
      %1859 = vmatprep.subr.bf16.mxu0 0
      %1860 = vmatpush1.bf16.xpose.msra.mxu0 0
      %1861 = vmatprep.subr.bf16.mxu0 0
      %1862 = vmatpush1.bf16.xpose.msra.mxu0 0
      %1863 = vmatprep.subr.bf16.mxu0 0
      %1864 = vmatpush1.bf16.xpose.msra.mxu0 0
      %1865 = vmatprep.mubr.bf16.mxu0 0
      %1866 = vmatmul.mubr.bf16.gmra.mrb[0].mxu0 %v1828
      %v1867 = vpop.f32.mrb[0].mxu0
      %v1868 = vadd.f32 0.0, %v1867
      %v1869 = vpop.f32.mrb[0].mxu0
      %v1870 = vpop.f32.mrb[0].mxu0
      %v1871 = vadd.f32 0.0, %v1870
      %v1872 = vpop.f32.mrb[0].mxu0
      %1873 = vdwg.mxu0
      %1875 = vrot.lane.b32.xlu0 %v839, 112
      %v1876 = vpop.permute.xlu0 %1875
      %1878 = vrot.lane.b32.xlu0 %v831, 112
      %v1879 = vpop.permute.xlu0 %1878
      %v1881 = vsel %vm842, %v1876, 0
      %v1884 = vsel %vm842, %v1879, 0
      %1886 = vmatprep.subr.bf16.mxu0 0
      %1887 = vmatpush1.bf16.xpose.msra.mxu0 %v1884
      %1888 = vmatprep.subr.bf16.mxu0 0
      %1889 = vmatpush1.bf16.xpose.msra.mxu0 0
      %1890 = vmatprep.subr.bf16.mxu0 0
      %1891 = vmatpush1.bf16.xpose.msra.mxu0 0
      %1892 = vmatprep.subr.bf16.mxu0 0
      %1893 = vmatpush1.bf16.xpose.msra.mxu0 0
      %1894 = vmatprep.subr.bf16.mxu0 0
      %1895 = vmatpush1.bf16.xpose.msra.mxu0 0
      %1896 = vmatprep.subr.bf16.mxu0 0
      %1897 = vmatpush1.bf16.xpose.msra.mxu0 0
      %1898 = vmatprep.subr.bf16.mxu0 0
      %1899 = vmatpush1.bf16.xpose.msra.mxu0 0
      %1900 = vmatprep.subr.bf16.mxu0 0
      %1901 = vmatpush1.bf16.xpose.msra.mxu0 0
      %1902 = vmatprep.subr.bf16.mxu0 0
      %1903 = vmatpush1.bf16.xpose.msra.mxu0 0
      %1904 = vmatprep.subr.bf16.mxu0 0
      %1905 = vmatpush1.bf16.xpose.msra.mxu0 0
      %1906 = vmatprep.subr.bf16.mxu0 0
      %1907 = vmatpush1.bf16.xpose.msra.mxu0 0
      %1908 = vmatprep.subr.bf16.mxu0 0
      %1909 = vmatpush1.bf16.xpose.msra.mxu0 0
      %1910 = vmatprep.subr.bf16.mxu0 0
      %1911 = vmatpush1.bf16.xpose.msra.mxu0 0
      %1912 = vmatprep.subr.bf16.mxu0 0
      %1913 = vmatpush1.bf16.xpose.msra.mxu0 0
      %1914 = vmatprep.subr.bf16.mxu0 0
      %1915 = vmatpush1.bf16.xpose.msra.mxu0 0
      %1916 = vmatprep.subr.bf16.mxu0 0
      %1917 = vmatpush1.bf16.xpose.msra.mxu0 0
      %1918 = vmatprep.mubr.bf16.mxu0 0
      %1919 = vmatmul.mubr.bf16.gmra.mrb[0].mxu0 %v1881
      %v1920 = vpop.f32.mrb[0].mxu0
      %v1921 = vadd.f32 0.0, %v1920
      %v1922 = vpop.f32.mrb[0].mxu0
      %v1923 = vpop.f32.mrb[0].mxu0
      %v1924 = vadd.f32 0.0, %v1923
      %v1925 = vpop.f32.mrb[0].mxu0
      %1926 = vdwg.mxu0
      %1928 = vrot.lane.b32.xlu0 %v840, 112
      %v1929 = vpop.permute.xlu0 %1928
      %1931 = vrot.lane.b32.xlu0 %v832, 112
      %v1932 = vpop.permute.xlu0 %1931
      %v1934 = vsel %vm842, %v1929, 0
      %v1937 = vsel %vm842, %v1932, 0
      %1939 = vmatprep.subr.bf16.mxu0 0
      %1940 = vmatpush1.bf16.xpose.msra.mxu0 %v1937
      %1941 = vmatprep.subr.bf16.mxu0 0
      %1942 = vmatpush1.bf16.xpose.msra.mxu0 0
      %1943 = vmatprep.subr.bf16.mxu0 0
      %1944 = vmatpush1.bf16.xpose.msra.mxu0 0
      %1945 = vmatprep.subr.bf16.mxu0 0
      %1946 = vmatpush1.bf16.xpose.msra.mxu0 0
      %1947 = vmatprep.subr.bf16.mxu0 0
      %1948 = vmatpush1.bf16.xpose.msra.mxu0 0
      %1949 = vmatprep.subr.bf16.mxu0 0
      %1950 = vmatpush1.bf16.xpose.msra.mxu0 0
      %1951 = vmatprep.subr.bf16.mxu0 0
      %1952 = vmatpush1.bf16.xpose.msra.mxu0 0
      %1953 = vmatprep.subr.bf16.mxu0 0
      %1954 = vmatpush1.bf16.xpose.msra.mxu0 0
      %1955 = vmatprep.subr.bf16.mxu0 0
      %1956 = vmatpush1.bf16.xpose.msra.mxu0 0
      %1957 = vmatprep.subr.bf16.mxu0 0
      %1958 = vmatpush1.bf16.xpose.msra.mxu0 0
      %1959 = vmatprep.subr.bf16.mxu0 0
      %1960 = vmatpush1.bf16.xpose.msra.mxu0 0
      %1961 = vmatprep.subr.bf16.mxu0 0
      %1962 = vmatpush1.bf16.xpose.msra.mxu0 0
      %1963 = vmatprep.subr.bf16.mxu0 0
      %1964 = vmatpush1.bf16.xpose.msra.mxu0 0
      %1965 = vmatprep.subr.bf16.mxu0 0
      %1966 = vmatpush1.bf16.xpose.msra.mxu0 0
      %1967 = vmatprep.subr.bf16.mxu0 0
      %1968 = vmatpush1.bf16.xpose.msra.mxu0 0
      %1969 = vmatprep.subr.bf16.mxu0 0
      %1970 = vmatpush1.bf16.xpose.msra.mxu0 0
      %1971 = vmatprep.mubr.bf16.mxu0 0
      %1972 = vmatmul.mubr.bf16.gmra.mrb[0].mxu0 %v1934
      %v1973 = vpop.f32.mrb[0].mxu0
      %v1974 = vadd.f32 0.0, %v1973
      %v1975 = vpop.f32.mrb[0].mxu0
      %v1976 = vpop.f32.mrb[0].mxu0
      %v1977 = vadd.f32 0.0, %v1976
      %v1978 = vpop.f32.mrb[0].mxu0
      %1979 = vdwg.mxu0
      %1981 = vrot.lane.b32.xlu0 %v841, 112
      %v1982 = vpop.permute.xlu0 %1981
      %1984 = vrot.lane.b32.xlu0 %v833, 112
      %v1985 = vpop.permute.xlu0 %1984
      %v1987 = vsel %vm842, %v1982, 0
      %v1990 = vsel %vm842, %v1985, 0
      %1992 = vmatprep.subr.bf16.mxu0 0
      %1993 = vmatpush1.bf16.xpose.msra.mxu0 %v1990
      %1994 = vmatprep.subr.bf16.mxu0 0
      %1995 = vmatpush1.bf16.xpose.msra.mxu0 0
      %1996 = vmatprep.subr.bf16.mxu0 0
      %1997 = vmatpush1.bf16.xpose.msra.mxu0 0
      %1998 = vmatprep.subr.bf16.mxu0 0
      %1999 = vmatpush1.bf16.xpose.msra.mxu0 0
      %2000 = vmatprep.subr.bf16.mxu0 0
      %2001 = vmatpush1.bf16.xpose.msra.mxu0 0
      %2002 = vmatprep.subr.bf16.mxu0 0
      %2003 = vmatpush1.bf16.xpose.msra.mxu0 0
      %2004 = vmatprep.subr.bf16.mxu0 0
      %2005 = vmatpush1.bf16.xpose.msra.mxu0 0
      %2006 = vmatprep.subr.bf16.mxu0 0
      %2007 = vmatpush1.bf16.xpose.msra.mxu0 0
      %2008 = vmatprep.subr.bf16.mxu0 0
      %2009 = vmatpush1.bf16.xpose.msra.mxu0 0
      %2010 = vmatprep.subr.bf16.mxu0 0
      %2011 = vmatpush1.bf16.xpose.msra.mxu0 0
      %2012 = vmatprep.subr.bf16.mxu0 0
      %2013 = vmatpush1.bf16.xpose.msra.mxu0 0
      %2014 = vmatprep.subr.bf16.mxu0 0
      %2015 = vmatpush1.bf16.xpose.msra.mxu0 0
      %2016 = vmatprep.subr.bf16.mxu0 0
      %2017 = vmatpush1.bf16.xpose.msra.mxu0 0
      %2018 = vmatprep.subr.bf16.mxu0 0
      %2019 = vmatpush1.bf16.xpose.msra.mxu0 0
      %2020 = vmatprep.subr.bf16.mxu0 0
      %2021 = vmatpush1.bf16.xpose.msra.mxu0 0
      %2022 = vmatprep.subr.bf16.mxu0 0
      %2023 = vmatpush1.bf16.xpose.msra.mxu0 0
      %2024 = vmatprep.mubr.bf16.mxu0 0
      %2025 = vmatmul.mubr.bf16.gmra.mrb[0].mxu0 %v1987
      %v2026 = vpop.f32.mrb[0].mxu0
      %v2027 = vadd.f32 0.0, %v2026
      %v2028 = vpop.f32.mrb[0].mxu0
      %v2029 = vpop.f32.mrb[0].mxu0
      %v2030 = vadd.f32 0.0, %v2029
      %v2031 = vpop.f32.mrb[0].mxu0
      %2032 = vdwg.mxu0
      %v2033 = vsel %vm842, %v1656, 0.0
      %v2034 = vsel %vm842, %v1709, 0.0
      %v2035 = vadd.f32 %v2033, %v2034
      %v2036 = vsel %vm842, %v1762, 0.0
      %v2037 = vadd.f32 %v2035, %v2036
      %v2038 = vsel %vm842, %v1815, 0.0
      %v2039 = vadd.f32 %v2037, %v2038
      %v2040 = vsel %vm842, %v1868, 0.0
      %v2041 = vadd.f32 %v2039, %v2040
      %v2042 = vsel %vm842, %v1921, 0.0
      %v2043 = vadd.f32 %v2041, %v2042
      %v2044 = vsel %vm842, %v1974, 0.0
      %v2045 = vadd.f32 %v2043, %v2044
      %v2046 = vsel %vm842, %v2027, 0.0
      %v2047 = vadd.f32 %v2045, %v2046
      %v2048 = vsel %vm842, %v1659, 0.0
      %v2049 = vsel %vm842, %v1712, 0.0
      %v2050 = vadd.f32 %v2048, %v2049
      %v2051 = vsel %vm842, %v1765, 0.0
      %v2052 = vadd.f32 %v2050, %v2051
      %v2053 = vsel %vm842, %v1818, 0.0
      %v2054 = vadd.f32 %v2052, %v2053
      %v2055 = vsel %vm842, %v1871, 0.0
      %v2056 = vadd.f32 %v2054, %v2055
      %v2057 = vsel %vm842, %v1924, 0.0
      %v2058 = vadd.f32 %v2056, %v2057
      %v2059 = vsel %vm842, %v1977, 0.0
      %v2060 = vadd.f32 %v2058, %v2059
      %v2061 = vsel %vm842, %v2030, 0.0
      %v2062 = vadd.f32 %v2060, %v2061
      %v2063 = vmul.f32 %v2047, 0.0078125
      %v2064 = vmul.f32 %v2062, 0.0078125
      %v2065 = vsel %vm842, %v2063, -inf
      %2066 = vmax.xlane.f32.xlu0 %v2065
      %v2067 = vpop.xlane.xlu0 %2066
      %v2068 = vsel %vm842, %v2064, -inf
      %2069 = vmax.xlane.f32.xlu0 %v2068
      %v2070 = vpop.xlane.xlu0 %2069
      %v2071 = vsub.f32 %v2063, %v2067
      %v2072 = vsub.f32 %v2064, %v2070
      %v2073 = vmul.f32 %v2071, 1.442695
      %v2074 = vpow.pop %v2073
      %v2075 = vmul.f32 %v2072, 1.442695
      %v2076 = vpow.pop %v2075
      %v2077 = vsel %vm842, %v2074, 0.0
      %2078 = vadd.xlane.f32.xlu0 %v2077
      %v2079 = vpop.xlane.xlu0 %2078
      %v2080 = vsel %vm842, %v2076, 0.0
      %2081 = vadd.xlane.f32.xlu0 %v2080
      %v2082 = vpop.xlane.xlu0 %2081
      %v2083 = vrcp.pop %v2079
      %v2084 = vmul.f32 %v2074, %v2083
      %v2085 = vrcp.pop %v2082
      %v2086 = vmul.f32 %v2076, %v2085
      %s2087 = scalar_lea.vmem %s7, 16
      %v2088 = vld [vmem:[%s2087] sm:$0xff]
      %v2089 = vld [vmem:[%s2087 + $0x8] sm:$0xff]
      %v2090 = vadd.f32 %v2084, %v2088
      %v2091 = vadd.f32 %v2086, %v2089
      %v2092 = vpack.c.bf16 %v2091, %v2090
      %v2094 = vsel %vm842, %v2092, 0
      %2096 = vmatprep.subr.bf16.mxu0 0
      %2097 = vmatpush1.bf16.msra.mxu0 %v521
      %2098 = vmatprep.subr.bf16.mxu0 0
      %2099 = vmatpush1.bf16.msra.mxu0 0
      %2100 = vmatprep.subr.bf16.mxu0 0
      %2101 = vmatpush1.bf16.msra.mxu0 0
      %2102 = vmatprep.subr.bf16.mxu0 0
      %2103 = vmatpush1.bf16.msra.mxu0 0
      %2104 = vmatprep.subr.bf16.mxu0 0
      %2105 = vmatpush1.bf16.msra.mxu0 0
      %2106 = vmatprep.subr.bf16.mxu0 0
      %2107 = vmatpush1.bf16.msra.mxu0 0
      %2108 = vmatprep.subr.bf16.mxu0 0
      %2109 = vmatpush1.bf16.msra.mxu0 0
      %2110 = vmatprep.subr.bf16.mxu0 0
      %2111 = vmatpush1.bf16.msra.mxu0 0
      %2112 = vmatprep.subr.bf16.mxu0 0
      %2113 = vmatpush1.bf16.msra.mxu0 0
      %2114 = vmatprep.subr.bf16.mxu0 0
      %2115 = vmatpush1.bf16.msra.mxu0 0
      %2116 = vmatprep.subr.bf16.mxu0 0
      %2117 = vmatpush1.bf16.msra.mxu0 0
      %2118 = vmatprep.subr.bf16.mxu0 0
      %2119 = vmatpush1.bf16.msra.mxu0 0
      %2120 = vmatprep.subr.bf16.mxu0 0
      %2121 = vmatpush1.bf16.msra.mxu0 0
      %2122 = vmatprep.subr.bf16.mxu0 0
      %2123 = vmatpush1.bf16.msra.mxu0 0
      %2124 = vmatprep.subr.bf16.mxu0 0
      %2125 = vmatpush1.bf16.msra.mxu0 0
      %2126 = vmatprep.subr.bf16.mxu0 0
      %2127 = vmatpush1.bf16.msra.mxu0 0
      %2128 = vmatprep.mubr.bf16.mxu0 0
      %2129 = vmatmul.mubr.bf16.gmra.mrb[0].mxu0 %v2094
      %v2130 = vpop.f32.mrb[0].mxu0
      %v2131 = vadd.f32 0.0, %v2130
      %v2132 = vpop.f32.mrb[0].mxu0
      %v2133 = vpop.f32.mrb[0].mxu0
      %v2134 = vadd.f32 0.0, %v2133
      %v2135 = vpop.f32.mrb[0].mxu0
      %2136 = vdwg.mxu0
      %2137 = vmatprep.subr.bf16.mxu0 0
      %2138 = vmatpush1.bf16.msra.mxu0 %v522
      %2139 = vmatprep.subr.bf16.mxu0 0
      %2140 = vmatpush1.bf16.msra.mxu0 0
      %2141 = vmatprep.subr.bf16.mxu0 0
      %2142 = vmatpush1.bf16.msra.mxu0 0
      %2143 = vmatprep.subr.bf16.mxu0 0
      %2144 = vmatpush1.bf16.msra.mxu0 0
      %2145 = vmatprep.subr.bf16.mxu0 0
      %2146 = vmatpush1.bf16.msra.mxu0 0
      %2147 = vmatprep.subr.bf16.mxu0 0
      %2148 = vmatpush1.bf16.msra.mxu0 0
      %2149 = vmatprep.subr.bf16.mxu0 0
      %2150 = vmatpush1.bf16.msra.mxu0 0
      %2151 = vmatprep.subr.bf16.mxu0 0
      %2152 = vmatpush1.bf16.msra.mxu0 0
      %2153 = vmatprep.subr.bf16.mxu0 0
      %2154 = vmatpush1.bf16.msra.mxu0 0
      %2155 = vmatprep.subr.bf16.mxu0 0
      %2156 = vmatpush1.bf16.msra.mxu0 0
      %2157 = vmatprep.subr.bf16.mxu0 0
      %2158 = vmatpush1.bf16.msra.mxu0 0
      %2159 = vmatprep.subr.bf16.mxu0 0
      %2160 = vmatpush1.bf16.msra.mxu0 0
      %2161 = vmatprep.subr.bf16.mxu0 0
      %2162 = vmatpush1.bf16.msra.mxu0 0
      %2163 = vmatprep.subr.bf16.mxu0 0
      %2164 = vmatpush1.bf16.msra.mxu0 0
      %2165 = vmatprep.subr.bf16.mxu0 0
      %2166 = vmatpush1.bf16.msra.mxu0 0
      %2167 = vmatprep.subr.bf16.mxu0 0
      %2168 = vmatpush1.bf16.msra.mxu0 0
      %2169 = vmatprep.mubr.bf16.mxu0 0
      %2170 = vmatmul.mubr.bf16.gmra.mrb[0].mxu0 %v2094
      %v2171 = vpop.f32.mrb[0].mxu0
      %v2172 = vadd.f32 0.0, %v2171
      %v2173 = vpop.f32.mrb[0].mxu0
      %v2174 = vpop.f32.mrb[0].mxu0
      %v2175 = vadd.f32 0.0, %v2174
      %v2176 = vpop.f32.mrb[0].mxu0
      %2177 = vdwg.mxu0
      %2178 = vmatprep.subr.bf16.mxu0 0
      %2179 = vmatpush1.bf16.msra.mxu0 %v523
      %2180 = vmatprep.subr.bf16.mxu0 0
      %2181 = vmatpush1.bf16.msra.mxu0 0
      %2182 = vmatprep.subr.bf16.mxu0 0
      %2183 = vmatpush1.bf16.msra.mxu0 0
      %2184 = vmatprep.subr.bf16.mxu0 0
      %2185 = vmatpush1.bf16.msra.mxu0 0
      %2186 = vmatprep.subr.bf16.mxu0 0
      %2187 = vmatpush1.bf16.msra.mxu0 0
      %2188 = vmatprep.subr.bf16.mxu0 0
      %2189 = vmatpush1.bf16.msra.mxu0 0
      %2190 = vmatprep.subr.bf16.mxu0 0
      %2191 = vmatpush1.bf16.msra.mxu0 0
      %2192 = vmatprep.subr.bf16.mxu0 0
      %2193 = vmatpush1.bf16.msra.mxu0 0
      %2194 = vmatprep.subr.bf16.mxu0 0
      %2195 = vmatpush1.bf16.msra.mxu0 0
      %2196 = vmatprep.subr.bf16.mxu0 0
      %2197 = vmatpush1.bf16.msra.mxu0 0
      %2198 = vmatprep.subr.bf16.mxu0 0
      %2199 = vmatpush1.bf16.msra.mxu0 0
      %2200 = vmatprep.subr.bf16.mxu0 0
      %2201 = vmatpush1.bf16.msra.mxu0 0
      %2202 = vmatprep.subr.bf16.mxu0 0
      %2203 = vmatpush1.bf16.msra.mxu0 0
      %2204 = vmatprep.subr.bf16.mxu0 0
      %2205 = vmatpush1.bf16.msra.mxu0 0
      %2206 = vmatprep.subr.bf16.mxu0 0
      %2207 = vmatpush1.bf16.msra.mxu0 0
      %2208 = vmatprep.subr.bf16.mxu0 0
      %2209 = vmatpush1.bf16.msra.mxu0 0
      %2210 = vmatprep.mubr.bf16.mxu0 0
      %2211 = vmatmul.mubr.bf16.gmra.mrb[0].mxu0 %v2094
      %v2212 = vpop.f32.mrb[0].mxu0
      %v2213 = vadd.f32 0.0, %v2212
      %v2214 = vpop.f32.mrb[0].mxu0
      %v2215 = vpop.f32.mrb[0].mxu0
      %v2216 = vadd.f32 0.0, %v2215
      %v2217 = vpop.f32.mrb[0].mxu0
      %2218 = vdwg.mxu0
      %2219 = vmatprep.subr.bf16.mxu0 0
      %2220 = vmatpush1.bf16.msra.mxu0 %v524
      %2221 = vmatprep.subr.bf16.mxu0 0
      %2222 = vmatpush1.bf16.msra.mxu0 0
      %2223 = vmatprep.subr.bf16.mxu0 0
      %2224 = vmatpush1.bf16.msra.mxu0 0
      %2225 = vmatprep.subr.bf16.mxu0 0
      %2226 = vmatpush1.bf16.msra.mxu0 0
      %2227 = vmatprep.subr.bf16.mxu0 0
      %2228 = vmatpush1.bf16.msra.mxu0 0
      %2229 = vmatprep.subr.bf16.mxu0 0
      %2230 = vmatpush1.bf16.msra.mxu0 0
      %2231 = vmatprep.subr.bf16.mxu0 0
      %2232 = vmatpush1.bf16.msra.mxu0 0
      %2233 = vmatprep.subr.bf16.mxu0 0
      %2234 = vmatpush1.bf16.msra.mxu0 0
      %2235 = vmatprep.subr.bf16.mxu0 0
      %2236 = vmatpush1.bf16.msra.mxu0 0
      %2237 = vmatprep.subr.bf16.mxu0 0
      %2238 = vmatpush1.bf16.msra.mxu0 0
      %2239 = vmatprep.subr.bf16.mxu0 0
      %2240 = vmatpush1.bf16.msra.mxu0 0
      %2241 = vmatprep.subr.bf16.mxu0 0
      %2242 = vmatpush1.bf16.msra.mxu0 0
      %2243 = vmatprep.subr.bf16.mxu0 0
      %2244 = vmatpush1.bf16.msra.mxu0 0
      %2245 = vmatprep.subr.bf16.mxu0 0
      %2246 = vmatpush1.bf16.msra.mxu0 0
      %2247 = vmatprep.subr.bf16.mxu0 0
      %2248 = vmatpush1.bf16.msra.mxu0 0
      %2249 = vmatprep.subr.bf16.mxu0 0
      %2250 = vmatpush1.bf16.msra.mxu0 0
      %2251 = vmatprep.mubr.bf16.mxu0 0
      %2252 = vmatmul.mubr.bf16.gmra.mrb[0].mxu0 %v2094
      %v2253 = vpop.f32.mrb[0].mxu0
      %v2254 = vadd.f32 0.0, %v2253
      %v2255 = vpop.f32.mrb[0].mxu0
      %v2256 = vpop.f32.mrb[0].mxu0
      %v2257 = vadd.f32 0.0, %v2256
      %v2258 = vpop.f32.mrb[0].mxu0
      %2259 = vdwg.mxu0
      %2260 = vmatprep.subr.bf16.mxu0 0
      %2261 = vmatpush1.bf16.msra.mxu0 %v525
      %2262 = vmatprep.subr.bf16.mxu0 0
      %2263 = vmatpush1.bf16.msra.mxu0 0
      %2264 = vmatprep.subr.bf16.mxu0 0
      %2265 = vmatpush1.bf16.msra.mxu0 0
      %2266 = vmatprep.subr.bf16.mxu0 0
      %2267 = vmatpush1.bf16.msra.mxu0 0
      %2268 = vmatprep.subr.bf16.mxu0 0
      %2269 = vmatpush1.bf16.msra.mxu0 0
      %2270 = vmatprep.subr.bf16.mxu0 0
      %2271 = vmatpush1.bf16.msra.mxu0 0
      %2272 = vmatprep.subr.bf16.mxu0 0
      %2273 = vmatpush1.bf16.msra.mxu0 0
      %2274 = vmatprep.subr.bf16.mxu0 0
      %2275 = vmatpush1.bf16.msra.mxu0 0
      %2276 = vmatprep.subr.bf16.mxu0 0
      %2277 = vmatpush1.bf16.msra.mxu0 0
      %2278 = vmatprep.subr.bf16.mxu0 0
      %2279 = vmatpush1.bf16.msra.mxu0 0
      %2280 = vmatprep.subr.bf16.mxu0 0
      %2281 = vmatpush1.bf16.msra.mxu0 0
      %2282 = vmatprep.subr.bf16.mxu0 0
      %2283 = vmatpush1.bf16.msra.mxu0 0
      %2284 = vmatprep.subr.bf16.mxu0 0
      %2285 = vmatpush1.bf16.msra.mxu0 0
      %2286 = vmatprep.subr.bf16.mxu0 0
      %2287 = vmatpush1.bf16.msra.mxu0 0
      %2288 = vmatprep.subr.bf16.mxu0 0
      %2289 = vmatpush1.bf16.msra.mxu0 0
      %2290 = vmatprep.subr.bf16.mxu0 0
      %2291 = vmatpush1.bf16.msra.mxu0 0
      %2292 = vmatprep.mubr.bf16.mxu0 0
      %2293 = vmatmul.mubr.bf16.gmra.mrb[0].mxu0 %v2094
      %v2294 = vpop.f32.mrb[0].mxu0
      %v2295 = vadd.f32 0.0, %v2294
      %v2296 = vpop.f32.mrb[0].mxu0
      %v2297 = vpop.f32.mrb[0].mxu0
      %v2298 = vadd.f32 0.0, %v2297
      %v2299 = vpop.f32.mrb[0].mxu0
      %2300 = vdwg.mxu0
      %2301 = vmatprep.subr.bf16.mxu0 0
      %2302 = vmatpush1.bf16.msra.mxu0 %v526
      %2303 = vmatprep.subr.bf16.mxu0 0
      %2304 = vmatpush1.bf16.msra.mxu0 0
      %2305 = vmatprep.subr.bf16.mxu0 0
      %2306 = vmatpush1.bf16.msra.mxu0 0
      %2307 = vmatprep.subr.bf16.mxu0 0
      %2308 = vmatpush1.bf16.msra.mxu0 0
      %2309 = vmatprep.subr.bf16.mxu0 0
      %2310 = vmatpush1.bf16.msra.mxu0 0
      %2311 = vmatprep.subr.bf16.mxu0 0
      %2312 = vmatpush1.bf16.msra.mxu0 0
      %2313 = vmatprep.subr.bf16.mxu0 0
      %2314 = vmatpush1.bf16.msra.mxu0 0
      %2315 = vmatprep.subr.bf16.mxu0 0
      %2316 = vmatpush1.bf16.msra.mxu0 0
      %2317 = vmatprep.subr.bf16.mxu0 0
      %2318 = vmatpush1.bf16.msra.mxu0 0
      %2319 = vmatprep.subr.bf16.mxu0 0
      %2320 = vmatpush1.bf16.msra.mxu0 0
      %2321 = vmatprep.subr.bf16.mxu0 0
      %2322 = vmatpush1.bf16.msra.mxu0 0
      %2323 = vmatprep.subr.bf16.mxu0 0
      %2324 = vmatpush1.bf16.msra.mxu0 0
      %2325 = vmatprep.subr.bf16.mxu0 0
      %2326 = vmatpush1.bf16.msra.mxu0 0
      %2327 = vmatprep.subr.bf16.mxu0 0
      %2328 = vmatpush1.bf16.msra.mxu0 0
      %2329 = vmatprep.subr.bf16.mxu0 0
      %2330 = vmatpush1.bf16.msra.mxu0 0
      %2331 = vmatprep.subr.bf16.mxu0 0
      %2332 = vmatpush1.bf16.msra.mxu0 0
      %2333 = vmatprep.mubr.bf16.mxu0 0
      %2334 = vmatmul.mubr.bf16.gmra.mrb[0].mxu0 %v2094
      %v2335 = vpop.f32.mrb[0].mxu0
      %v2336 = vadd.f32 0.0, %v2335
      %v2337 = vpop.f32.mrb[0].mxu0
      %v2338 = vpop.f32.mrb[0].mxu0
      %v2339 = vadd.f32 0.0, %v2338
      %v2340 = vpop.f32.mrb[0].mxu0
      %2341 = vdwg.mxu0
      %2342 = vmatprep.subr.bf16.mxu0 0
      %2343 = vmatpush1.bf16.msra.mxu0 %v527
      %2344 = vmatprep.subr.bf16.mxu0 0
      %2345 = vmatpush1.bf16.msra.mxu0 0
      %2346 = vmatprep.subr.bf16.mxu0 0
      %2347 = vmatpush1.bf16.msra.mxu0 0
      %2348 = vmatprep.subr.bf16.mxu0 0
      %2349 = vmatpush1.bf16.msra.mxu0 0
      %2350 = vmatprep.subr.bf16.mxu0 0
      %2351 = vmatpush1.bf16.msra.mxu0 0
      %2352 = vmatprep.subr.bf16.mxu0 0
      %2353 = vmatpush1.bf16.msra.mxu0 0
      %2354 = vmatprep.subr.bf16.mxu0 0
      %2355 = vmatpush1.bf16.msra.mxu0 0
      %2356 = vmatprep.subr.bf16.mxu0 0
      %2357 = vmatpush1.bf16.msra.mxu0 0
      %2358 = vmatprep.subr.bf16.mxu0 0
      %2359 = vmatpush1.bf16.msra.mxu0 0
      %2360 = vmatprep.subr.bf16.mxu0 0
      %2361 = vmatpush1.bf16.msra.mxu0 0
      %2362 = vmatprep.subr.bf16.mxu0 0
      %2363 = vmatpush1.bf16.msra.mxu0 0
      %2364 = vmatprep.subr.bf16.mxu0 0
      %2365 = vmatpush1.bf16.msra.mxu0 0
      %2366 = vmatprep.subr.bf16.mxu0 0
      %2367 = vmatpush1.bf16.msra.mxu0 0
      %2368 = vmatprep.subr.bf16.mxu0 0
      %2369 = vmatpush1.bf16.msra.mxu0 0
      %2370 = vmatprep.subr.bf16.mxu0 0
      %2371 = vmatpush1.bf16.msra.mxu0 0
      %2372 = vmatprep.subr.bf16.mxu0 0
      %2373 = vmatpush1.bf16.msra.mxu0 0
      %2374 = vmatprep.mubr.bf16.mxu0 0
      %2375 = vmatmul.mubr.bf16.gmra.mrb[0].mxu0 %v2094
      %v2376 = vpop.f32.mrb[0].mxu0
      %v2377 = vadd.f32 0.0, %v2376
      %v2378 = vpop.f32.mrb[0].mxu0
      %v2379 = vpop.f32.mrb[0].mxu0
      %v2380 = vadd.f32 0.0, %v2379
      %v2381 = vpop.f32.mrb[0].mxu0
      %2382 = vdwg.mxu0
      %2383 = vmatprep.subr.bf16.mxu0 0
      %2384 = vmatpush1.bf16.msra.mxu0 %v528
      %2385 = vmatprep.subr.bf16.mxu0 0
      %2386 = vmatpush1.bf16.msra.mxu0 0
      %2387 = vmatprep.subr.bf16.mxu0 0
      %2388 = vmatpush1.bf16.msra.mxu0 0
      %2389 = vmatprep.subr.bf16.mxu0 0
      %2390 = vmatpush1.bf16.msra.mxu0 0
      %2391 = vmatprep.subr.bf16.mxu0 0
      %2392 = vmatpush1.bf16.msra.mxu0 0
      %2393 = vmatprep.subr.bf16.mxu0 0
      %2394 = vmatpush1.bf16.msra.mxu0 0
      %2395 = vmatprep.subr.bf16.mxu0 0
      %2396 = vmatpush1.bf16.msra.mxu0 0
      %2397 = vmatprep.subr.bf16.mxu0 0
      %2398 = vmatpush1.bf16.msra.mxu0 0
      %2399 = vmatprep.subr.bf16.mxu0 0
      %2400 = vmatpush1.bf16.msra.mxu0 0
      %2401 = vmatprep.subr.bf16.mxu0 0
      %2402 = vmatpush1.bf16.msra.mxu0 0
      %2403 = vmatprep.subr.bf16.mxu0 0
      %2404 = vmatpush1.bf16.msra.mxu0 0
      %2405 = vmatprep.subr.bf16.mxu0 0
      %2406 = vmatpush1.bf16.msra.mxu0 0
      %2407 = vmatprep.subr.bf16.mxu0 0
      %2408 = vmatpush1.bf16.msra.mxu0 0
      %2409 = vmatprep.subr.bf16.mxu0 0
      %2410 = vmatpush1.bf16.msra.mxu0 0
      %2411 = vmatprep.subr.bf16.mxu0 0
      %2412 = vmatpush1.bf16.msra.mxu0 0
      %2413 = vmatprep.subr.bf16.mxu0 0
      %2414 = vmatpush1.bf16.msra.mxu0 0
      %2415 = vmatprep.mubr.bf16.mxu0 0
      %2416 = vmatmul.mubr.bf16.gmra.mrb[0].mxu0 %v2094
      %v2417 = vpop.f32.mrb[0].mxu0
      %v2418 = vadd.f32 0.0, %v2417
      %v2419 = vpop.f32.mrb[0].mxu0
      %v2420 = vpop.f32.mrb[0].mxu0
      %v2421 = vadd.f32 0.0, %v2420
      %v2422 = vpop.f32.mrb[0].mxu0
      %2423 = vdwg.mxu0
      %2424 = vrot.lane.b32.xlu0 %v834, 96
      %v2425 = vpop.permute.xlu0 %2424
      %2426 = vrot.lane.b32.xlu0 %v826, 96
      %v2427 = vpop.permute.xlu0 %2426
      %v2429 = vsel %vm842, %v2425, 0
      %v2432 = vsel %vm842, %v2427, 0
      %2434 = vmatprep.subr.bf16.mxu0 0
      %2435 = vmatpush1.bf16.xpose.msra.mxu0 %v2432
      %2436 = vmatprep.subr.bf16.mxu0 0
      %2437 = vmatpush1.bf16.xpose.msra.mxu0 0
      %2438 = vmatprep.subr.bf16.mxu0 0
      %2439 = vmatpush1.bf16.xpose.msra.mxu0 0
      %2440 = vmatprep.subr.bf16.mxu0 0
      %2441 = vmatpush1.bf16.xpose.msra.mxu0 0
      %2442 = vmatprep.subr.bf16.mxu0 0
      %2443 = vmatpush1.bf16.xpose.msra.mxu0 0
      %2444 = vmatprep.subr.bf16.mxu0 0
      %2445 = vmatpush1.bf16.xpose.msra.mxu0 0
      %2446 = vmatprep.subr.bf16.mxu0 0
      %2447 = vmatpush1.bf16.xpose.msra.mxu0 0
      %2448 = vmatprep.subr.bf16.mxu0 0
      %2449 = vmatpush1.bf16.xpose.msra.mxu0 0
      %2450 = vmatprep.subr.bf16.mxu0 0
      %2451 = vmatpush1.bf16.xpose.msra.mxu0 0
      %2452 = vmatprep.subr.bf16.mxu0 0
      %2453 = vmatpush1.bf16.xpose.msra.mxu0 0
      %2454 = vmatprep.subr.bf16.mxu0 0
      %2455 = vmatpush1.bf16.xpose.msra.mxu0 0
      %2456 = vmatprep.subr.bf16.mxu0 0
      %2457 = vmatpush1.bf16.xpose.msra.mxu0 0
      %2458 = vmatprep.subr.bf16.mxu0 0
      %2459 = vmatpush1.bf16.xpose.msra.mxu0 0
      %2460 = vmatprep.subr.bf16.mxu0 0
      %2461 = vmatpush1.bf16.xpose.msra.mxu0 0
      %2462 = vmatprep.subr.bf16.mxu0 0
      %2463 = vmatpush1.bf16.xpose.msra.mxu0 0
      %2464 = vmatprep.subr.bf16.mxu0 0
      %2465 = vmatpush1.bf16.xpose.msra.mxu0 0
      %2466 = vmatprep.mubr.bf16.mxu0 0
      %2467 = vmatmul.mubr.bf16.gmra.mrb[0].mxu0 %v2429
      %v2468 = vpop.f32.mrb[0].mxu0
      %v2469 = vadd.f32 0.0, %v2468
      %v2470 = vpop.f32.mrb[0].mxu0
      %v2471 = vpop.f32.mrb[0].mxu0
      %v2472 = vadd.f32 0.0, %v2471
      %v2473 = vpop.f32.mrb[0].mxu0
      %2474 = vdwg.mxu0
      %2475 = vrot.lane.b32.xlu0 %v835, 96
      %v2476 = vpop.permute.xlu0 %2475
      %2477 = vrot.lane.b32.xlu0 %v827, 96
      %v2478 = vpop.permute.xlu0 %2477
      %v2480 = vsel %vm842, %v2476, 0
      %v2483 = vsel %vm842, %v2478, 0
      %2485 = vmatprep.subr.bf16.mxu0 0
      %2486 = vmatpush1.bf16.xpose.msra.mxu0 %v2483
      %2487 = vmatprep.subr.bf16.mxu0 0
      %2488 = vmatpush1.bf16.xpose.msra.mxu0 0
      %2489 = vmatprep.subr.bf16.mxu0 0
      %2490 = vmatpush1.bf16.xpose.msra.mxu0 0
      %2491 = vmatprep.subr.bf16.mxu0 0
      %2492 = vmatpush1.bf16.xpose.msra.mxu0 0
      %2493 = vmatprep.subr.bf16.mxu0 0
      %2494 = vmatpush1.bf16.xpose.msra.mxu0 0
      %2495 = vmatprep.subr.bf16.mxu0 0
      %2496 = vmatpush1.bf16.xpose.msra.mxu0 0
      %2497 = vmatprep.subr.bf16.mxu0 0
      %2498 = vmatpush1.bf16.xpose.msra.mxu0 0
      %2499 = vmatprep.subr.bf16.mxu0 0
      %2500 = vmatpush1.bf16.xpose.msra.mxu0 0
      %2501 = vmatprep.subr.bf16.mxu0 0
      %2502 = vmatpush1.bf16.xpose.msra.mxu0 0
      %2503 = vmatprep.subr.bf16.mxu0 0
      %2504 = vmatpush1.bf16.xpose.msra.mxu0 0
      %2505 = vmatprep.subr.bf16.mxu0 0
      %2506 = vmatpush1.bf16.xpose.msra.mxu0 0
      %2507 = vmatprep.subr.bf16.mxu0 0
      %2508 = vmatpush1.bf16.xpose.msra.mxu0 0
      %2509 = vmatprep.subr.bf16.mxu0 0
      %2510 = vmatpush1.bf16.xpose.msra.mxu0 0
      %2511 = vmatprep.subr.bf16.mxu0 0
      %2512 = vmatpush1.bf16.xpose.msra.mxu0 0
      %2513 = vmatprep.subr.bf16.mxu0 0
      %2514 = vmatpush1.bf16.xpose.msra.mxu0 0
      %2515 = vmatprep.subr.bf16.mxu0 0
      %2516 = vmatpush1.bf16.xpose.msra.mxu0 0
      %2517 = vmatprep.mubr.bf16.mxu0 0
      %2518 = vmatmul.mubr.bf16.gmra.mrb[0].mxu0 %v2480
      %v2519 = vpop.f32.mrb[0].mxu0
      %v2520 = vadd.f32 0.0, %v2519
      %v2521 = vpop.f32.mrb[0].mxu0
      %v2522 = vpop.f32.mrb[0].mxu0
      %v2523 = vadd.f32 0.0, %v2522
      %v2524 = vpop.f32.mrb[0].mxu0
      %2525 = vdwg.mxu0
      %2526 = vrot.lane.b32.xlu0 %v836, 96
      %v2527 = vpop.permute.xlu0 %2526
      %2528 = vrot.lane.b32.xlu0 %v828, 96
      %v2529 = vpop.permute.xlu0 %2528
      %v2531 = vsel %vm842, %v2527, 0
      %v2534 = vsel %vm842, %v2529, 0
      %2536 = vmatprep.subr.bf16.mxu0 0
      %2537 = vmatpush1.bf16.xpose.msra.mxu0 %v2534
      %2538 = vmatprep.subr.bf16.mxu0 0
      %2539 = vmatpush1.bf16.xpose.msra.mxu0 0
      %2540 = vmatprep.subr.bf16.mxu0 0
      %2541 = vmatpush1.bf16.xpose.msra.mxu0 0
      %2542 = vmatprep.subr.bf16.mxu0 0
      %2543 = vmatpush1.bf16.xpose.msra.mxu0 0
      %2544 = vmatprep.subr.bf16.mxu0 0
      %2545 = vmatpush1.bf16.xpose.msra.mxu0 0
      %2546 = vmatprep.subr.bf16.mxu0 0
      %2547 = vmatpush1.bf16.xpose.msra.mxu0 0
      %2548 = vmatprep.subr.bf16.mxu0 0
      %2549 = vmatpush1.bf16.xpose.msra.mxu0 0
      %2550 = vmatprep.subr.bf16.mxu0 0
      %2551 = vmatpush1.bf16.xpose.msra.mxu0 0
      %2552 = vmatprep.subr.bf16.mxu0 0
      %2553 = vmatpush1.bf16.xpose.msra.mxu0 0
      %2554 = vmatprep.subr.bf16.mxu0 0
      %2555 = vmatpush1.bf16.xpose.msra.mxu0 0
      %2556 = vmatprep.subr.bf16.mxu0 0
      %2557 = vmatpush1.bf16.xpose.msra.mxu0 0
      %2558 = vmatprep.subr.bf16.mxu0 0
      %2559 = vmatpush1.bf16.xpose.msra.mxu0 0
      %2560 = vmatprep.subr.bf16.mxu0 0
      %2561 = vmatpush1.bf16.xpose.msra.mxu0 0
      %2562 = vmatprep.subr.bf16.mxu0 0
      %2563 = vmatpush1.bf16.xpose.msra.mxu0 0
      %2564 = vmatprep.subr.bf16.mxu0 0
      %2565 = vmatpush1.bf16.xpose.msra.mxu0 0
      %2566 = vmatprep.subr.bf16.mxu0 0
      %2567 = vmatpush1.bf16.xpose.msra.mxu0 0
      %2568 = vmatprep.mubr.bf16.mxu0 0
      %2569 = vmatmul.mubr.bf16.gmra.mrb[0].mxu0 %v2531
      %v2570 = vpop.f32.mrb[0].mxu0
      %v2571 = vadd.f32 0.0, %v2570
      %v2572 = vpop.f32.mrb[0].mxu0
      %v2573 = vpop.f32.mrb[0].mxu0
      %v2574 = vadd.f32 0.0, %v2573
      %v2575 = vpop.f32.mrb[0].mxu0
      %2576 = vdwg.mxu0
      %2577 = vrot.lane.b32.xlu0 %v837, 96
      %v2578 = vpop.permute.xlu0 %2577
      %2579 = vrot.lane.b32.xlu0 %v829, 96
      %v2580 = vpop.permute.xlu0 %2579
      %v2582 = vsel %vm842, %v2578, 0
      %v2585 = vsel %vm842, %v2580, 0
      %2587 = vmatprep.subr.bf16.mxu0 0
      %2588 = vmatpush1.bf16.xpose.msra.mxu0 %v2585
      %2589 = vmatprep.subr.bf16.mxu0 0
      %2590 = vmatpush1.bf16.xpose.msra.mxu0 0
      %2591 = vmatprep.subr.bf16.mxu0 0
      %2592 = vmatpush1.bf16.xpose.msra.mxu0 0
      %2593 = vmatprep.subr.bf16.mxu0 0
      %2594 = vmatpush1.bf16.xpose.msra.mxu0 0
      %2595 = vmatprep.subr.bf16.mxu0 0
      %2596 = vmatpush1.bf16.xpose.msra.mxu0 0
      %2597 = vmatprep.subr.bf16.mxu0 0
      %2598 = vmatpush1.bf16.xpose.msra.mxu0 0
      %2599 = vmatprep.subr.bf16.mxu0 0
      %2600 = vmatpush1.bf16.xpose.msra.mxu0 0
      %2601 = vmatprep.subr.bf16.mxu0 0
      %2602 = vmatpush1.bf16.xpose.msra.mxu0 0
      %2603 = vmatprep.subr.bf16.mxu0 0
      %2604 = vmatpush1.bf16.xpose.msra.mxu0 0
      %2605 = vmatprep.subr.bf16.mxu0 0
      %2606 = vmatpush1.bf16.xpose.msra.mxu0 0
      %2607 = vmatprep.subr.bf16.mxu0 0
      %2608 = vmatpush1.bf16.xpose.msra.mxu0 0
      %2609 = vmatprep.subr.bf16.mxu0 0
      %2610 = vmatpush1.bf16.xpose.msra.mxu0 0
      %2611 = vmatprep.subr.bf16.mxu0 0
      %2612 = vmatpush1.bf16.xpose.msra.mxu0 0
      %2613 = vmatprep.subr.bf16.mxu0 0
      %2614 = vmatpush1.bf16.xpose.msra.mxu0 0
      %2615 = vmatprep.subr.bf16.mxu0 0
      %2616 = vmatpush1.bf16.xpose.msra.mxu0 0
      %2617 = vmatprep.subr.bf16.mxu0 0
      %2618 = vmatpush1.bf16.xpose.msra.mxu0 0
      %2619 = vmatprep.mubr.bf16.mxu0 0
      %2620 = vmatmul.mubr.bf16.gmra.mrb[0].mxu0 %v2582
      %v2621 = vpop.f32.mrb[0].mxu0
      %v2622 = vadd.f32 0.0, %v2621
      %v2623 = vpop.f32.mrb[0].mxu0
      %v2624 = vpop.f32.mrb[0].mxu0
      %v2625 = vadd.f32 0.0, %v2624
      %v2626 = vpop.f32.mrb[0].mxu0
      %2627 = vdwg.mxu0
      %2628 = vrot.lane.b32.xlu0 %v838, 96
      %v2629 = vpop.permute.xlu0 %2628
      %2630 = vrot.lane.b32.xlu0 %v830, 96
      %v2631 = vpop.permute.xlu0 %2630
      %v2633 = vsel %vm842, %v2629, 0
      %v2636 = vsel %vm842, %v2631, 0
      %2638 = vmatprep.subr.bf16.mxu0 0
      %2639 = vmatpush1.bf16.xpose.msra.mxu0 %v2636
      %2640 = vmatprep.subr.bf16.mxu0 0
      %2641 = vmatpush1.bf16.xpose.msra.mxu0 0
      %2642 = vmatprep.subr.bf16.mxu0 0
      %2643 = vmatpush1.bf16.xpose.msra.mxu0 0
      %2644 = vmatprep.subr.bf16.mxu0 0
      %2645 = vmatpush1.bf16.xpose.msra.mxu0 0
      %2646 = vmatprep.subr.bf16.mxu0 0
      %2647 = vmatpush1.bf16.xpose.msra.mxu0 0
      %2648 = vmatprep.subr.bf16.mxu0 0
      %2649 = vmatpush1.bf16.xpose.msra.mxu0 0
      %2650 = vmatprep.subr.bf16.mxu0 0
      %2651 = vmatpush1.bf16.xpose.msra.mxu0 0
      %2652 = vmatprep.subr.bf16.mxu0 0
      %2653 = vmatpush1.bf16.xpose.msra.mxu0 0
      %2654 = vmatprep.subr.bf16.mxu0 0
      %2655 = vmatpush1.bf16.xpose.msra.mxu0 0
      %2656 = vmatprep.subr.bf16.mxu0 0
      %2657 = vmatpush1.bf16.xpose.msra.mxu0 0
      %2658 = vmatprep.subr.bf16.mxu0 0
      %2659 = vmatpush1.bf16.xpose.msra.mxu0 0
      %2660 = vmatprep.subr.bf16.mxu0 0
      %2661 = vmatpush1.bf16.xpose.msra.mxu0 0
      %2662 = vmatprep.subr.bf16.mxu0 0
      %2663 = vmatpush1.bf16.xpose.msra.mxu0 0
      %2664 = vmatprep.subr.bf16.mxu0 0
      %2665 = vmatpush1.bf16.xpose.msra.mxu0 0
      %2666 = vmatprep.subr.bf16.mxu0 0
      %2667 = vmatpush1.bf16.xpose.msra.mxu0 0
      %2668 = vmatprep.subr.bf16.mxu0 0
      %2669 = vmatpush1.bf16.xpose.msra.mxu0 0
      %2670 = vmatprep.mubr.bf16.mxu0 0
      %2671 = vmatmul.mubr.bf16.gmra.mrb[0].mxu0 %v2633
      %v2672 = vpop.f32.mrb[0].mxu0
      %v2673 = vadd.f32 0.0, %v2672
      %v2674 = vpop.f32.mrb[0].mxu0
      %v2675 = vpop.f32.mrb[0].mxu0
      %v2676 = vadd.f32 0.0, %v2675
      %v2677 = vpop.f32.mrb[0].mxu0
      %2678 = vdwg.mxu0
      %2679 = vrot.lane.b32.xlu0 %v839, 96
      %v2680 = vpop.permute.xlu0 %2679
      %2681 = vrot.lane.b32.xlu0 %v831, 96
      %v2682 = vpop.permute.xlu0 %2681
      %v2684 = vsel %vm842, %v2680, 0
      %v2687 = vsel %vm842, %v2682, 0
      %2689 = vmatprep.subr.bf16.mxu0 0
      %2690 = vmatpush1.bf16.xpose.msra.mxu0 %v2687
      %2691 = vmatprep.subr.bf16.mxu0 0
      %2692 = vmatpush1.bf16.xpose.msra.mxu0 0
      %2693 = vmatprep.subr.bf16.mxu0 0
      %2694 = vmatpush1.bf16.xpose.msra.mxu0 0
      %2695 = vmatprep.subr.bf16.mxu0 0
      %2696 = vmatpush1.bf16.xpose.msra.mxu0 0
      %2697 = vmatprep.subr.bf16.mxu0 0
      %2698 = vmatpush1.bf16.xpose.msra.mxu0 0
      %2699 = vmatprep.subr.bf16.mxu0 0
      %2700 = vmatpush1.bf16.xpose.msra.mxu0 0
      %2701 = vmatprep.subr.bf16.mxu0 0
      %2702 = vmatpush1.bf16.xpose.msra.mxu0 0
      %2703 = vmatprep.subr.bf16.mxu0 0
      %2704 = vmatpush1.bf16.xpose.msra.mxu0 0
      %2705 = vmatprep.subr.bf16.mxu0 0
      %2706 = vmatpush1.bf16.xpose.msra.mxu0 0
      %2707 = vmatprep.subr.bf16.mxu0 0
      %2708 = vmatpush1.bf16.xpose.msra.mxu0 0
      %2709 = vmatprep.subr.bf16.mxu0 0
      %2710 = vmatpush1.bf16.xpose.msra.mxu0 0
      %2711 = vmatprep.subr.bf16.mxu0 0
      %2712 = vmatpush1.bf16.xpose.msra.mxu0 0
      %2713 = vmatprep.subr.bf16.mxu0 0
      %2714 = vmatpush1.bf16.xpose.msra.mxu0 0
      %2715 = vmatprep.subr.bf16.mxu0 0
      %2716 = vmatpush1.bf16.xpose.msra.mxu0 0
      %2717 = vmatprep.subr.bf16.mxu0 0
      %2718 = vmatpush1.bf16.xpose.msra.mxu0 0
      %2719 = vmatprep.subr.bf16.mxu0 0
      %2720 = vmatpush1.bf16.xpose.msra.mxu0 0
      %2721 = vmatprep.mubr.bf16.mxu0 0
      %2722 = vmatmul.mubr.bf16.gmra.mrb[0].mxu0 %v2684
      %v2723 = vpop.f32.mrb[0].mxu0
      %v2724 = vadd.f32 0.0, %v2723
      %v2725 = vpop.f32.mrb[0].mxu0
      %v2726 = vpop.f32.mrb[0].mxu0
      %v2727 = vadd.f32 0.0, %v2726
      %v2728 = vpop.f32.mrb[0].mxu0
      %2729 = vdwg.mxu0
      %2730 = vrot.lane.b32.xlu0 %v840, 96
      %v2731 = vpop.permute.xlu0 %2730
      %2732 = vrot.lane.b32.xlu0 %v832, 96
      %v2733 = vpop.permute.xlu0 %2732
      %v2735 = vsel %vm842, %v2731, 0
      %v2738 = vsel %vm842, %v2733, 0
      %2740 = vmatprep.subr.bf16.mxu0 0
      %2741 = vmatpush1.bf16.xpose.msra.mxu0 %v2738
      %2742 = vmatprep.subr.bf16.mxu0 0
      %2743 = vmatpush1.bf16.xpose.msra.mxu0 0
      %2744 = vmatprep.subr.bf16.mxu0 0
      %2745 = vmatpush1.bf16.xpose.msra.mxu0 0
      %2746 = vmatprep.subr.bf16.mxu0 0
      %2747 = vmatpush1.bf16.xpose.msra.mxu0 0
      %2748 = vmatprep.subr.bf16.mxu0 0
      %2749 = vmatpush1.bf16.xpose.msra.mxu0 0
      %2750 = vmatprep.subr.bf16.mxu0 0
      %2751 = vmatpush1.bf16.xpose.msra.mxu0 0
      %2752 = vmatprep.subr.bf16.mxu0 0
      %2753 = vmatpush1.bf16.xpose.msra.mxu0 0
      %2754 = vmatprep.subr.bf16.mxu0 0
      %2755 = vmatpush1.bf16.xpose.msra.mxu0 0
      %2756 = vmatprep.subr.bf16.mxu0 0
      %2757 = vmatpush1.bf16.xpose.msra.mxu0 0
      %2758 = vmatprep.subr.bf16.mxu0 0
      %2759 = vmatpush1.bf16.xpose.msra.mxu0 0
      %2760 = vmatprep.subr.bf16.mxu0 0
      %2761 = vmatpush1.bf16.xpose.msra.mxu0 0
      %2762 = vmatprep.subr.bf16.mxu0 0
      %2763 = vmatpush1.bf16.xpose.msra.mxu0 0
      %2764 = vmatprep.subr.bf16.mxu0 0
      %2765 = vmatpush1.bf16.xpose.msra.mxu0 0
      %2766 = vmatprep.subr.bf16.mxu0 0
      %2767 = vmatpush1.bf16.xpose.msra.mxu0 0
      %2768 = vmatprep.subr.bf16.mxu0 0
      %2769 = vmatpush1.bf16.xpose.msra.mxu0 0
      %2770 = vmatprep.subr.bf16.mxu0 0
      %2771 = vmatpush1.bf16.xpose.msra.mxu0 0
      %2772 = vmatprep.mubr.bf16.mxu0 0
      %2773 = vmatmul.mubr.bf16.gmra.mrb[0].mxu0 %v2735
      %v2774 = vpop.f32.mrb[0].mxu0
      %v2775 = vadd.f32 0.0, %v2774
      %v2776 = vpop.f32.mrb[0].mxu0
      %v2777 = vpop.f32.mrb[0].mxu0
      %v2778 = vadd.f32 0.0, %v2777
      %v2779 = vpop.f32.mrb[0].mxu0
      %2780 = vdwg.mxu0
      %2781 = vrot.lane.b32.xlu0 %v841, 96
      %v2782 = vpop.permute.xlu0 %2781
      %2783 = vrot.lane.b32.xlu0 %v833, 96
      %v2784 = vpop.permute.xlu0 %2783
      %v2786 = vsel %vm842, %v2782, 0
      %v2789 = vsel %vm842, %v2784, 0
      %2791 = vmatprep.subr.bf16.mxu0 0
      %2792 = vmatpush1.bf16.xpose.msra.mxu0 %v2789
      %2793 = vmatprep.subr.bf16.mxu0 0
      %2794 = vmatpush1.bf16.xpose.msra.mxu0 0
      %2795 = vmatprep.subr.bf16.mxu0 0
      %2796 = vmatpush1.bf16.xpose.msra.mxu0 0
      %2797 = vmatprep.subr.bf16.mxu0 0
      %2798 = vmatpush1.bf16.xpose.msra.mxu0 0
      %2799 = vmatprep.subr.bf16.mxu0 0
      %2800 = vmatpush1.bf16.xpose.msra.mxu0 0
      %2801 = vmatprep.subr.bf16.mxu0 0
      %2802 = vmatpush1.bf16.xpose.msra.mxu0 0
      %2803 = vmatprep.subr.bf16.mxu0 0
      %2804 = vmatpush1.bf16.xpose.msra.mxu0 0
      %2805 = vmatprep.subr.bf16.mxu0 0
      %2806 = vmatpush1.bf16.xpose.msra.mxu0 0
      %2807 = vmatprep.subr.bf16.mxu0 0
      %2808 = vmatpush1.bf16.xpose.msra.mxu0 0
      %2809 = vmatprep.subr.bf16.mxu0 0
      %2810 = vmatpush1.bf16.xpose.msra.mxu0 0
      %2811 = vmatprep.subr.bf16.mxu0 0
      %2812 = vmatpush1.bf16.xpose.msra.mxu0 0
      %2813 = vmatprep.subr.bf16.mxu0 0
      %2814 = vmatpush1.bf16.xpose.msra.mxu0 0
      %2815 = vmatprep.subr.bf16.mxu0 0
      %2816 = vmatpush1.bf16.xpose.msra.mxu0 0
      %2817 = vmatprep.subr.bf16.mxu0 0
      %2818 = vmatpush1.bf16.xpose.msra.mxu0 0
      %2819 = vmatprep.subr.bf16.mxu0 0
      %2820 = vmatpush1.bf16.xpose.msra.mxu0 0
      %2821 = vmatprep.subr.bf16.mxu0 0
      %2822 = vmatpush1.bf16.xpose.msra.mxu0 0
      %2823 = vmatprep.mubr.bf16.mxu0 0
      %2824 = vmatmul.mubr.bf16.gmra.mrb[0].mxu0 %v2786
      %v2825 = vpop.f32.mrb[0].mxu0
      %v2826 = vadd.f32 0.0, %v2825
      %v2827 = vpop.f32.mrb[0].mxu0
      %v2828 = vpop.f32.mrb[0].mxu0
      %v2829 = vadd.f32 0.0, %v2828
      %v2830 = vpop.f32.mrb[0].mxu0
      %2831 = vdwg.mxu0
      %v2832 = vsel %vm842, %v2469, 0.0
      %v2833 = vsel %vm842, %v2520, 0.0
      %v2834 = vadd.f32 %v2832, %v2833
      %v2835 = vsel %vm842, %v2571, 0.0
      %v2836 = vadd.f32 %v2834, %v2835
      %v2837 = vsel %vm842, %v2622, 0.0
      %v2838 = vadd.f32 %v2836, %v2837
      %v2839 = vsel %vm842, %v2673, 0.0
      %v2840 = vadd.f32 %v2838, %v2839
      %v2841 = vsel %vm842, %v2724, 0.0
      %v2842 = vadd.f32 %v2840, %v2841
      %v2843 = vsel %vm842, %v2775, 0.0
      %v2844 = vadd.f32 %v2842, %v2843
      %v2845 = vsel %vm842, %v2826, 0.0
      %v2846 = vadd.f32 %v2844, %v2845
      %v2847 = vsel %vm842, %v2472, 0.0
      %v2848 = vsel %vm842, %v2523, 0.0
      %v2849 = vadd.f32 %v2847, %v2848
      %v2850 = vsel %vm842, %v2574, 0.0
      %v2851 = vadd.f32 %v2849, %v2850
      %v2852 = vsel %vm842, %v2625, 0.0
      %v2853 = vadd.f32 %v2851, %v2852
      %v2854 = vsel %vm842, %v2676, 0.0
      %v2855 = vadd.f32 %v2853, %v2854
      %v2856 = vsel %vm842, %v2727, 0.0
      %v2857 = vadd.f32 %v2855, %v2856
      %v2858 = vsel %vm842, %v2778, 0.0
      %v2859 = vadd.f32 %v2857, %v2858
      %v2860 = vsel %vm842, %v2829, 0.0
      %v2861 = vadd.f32 %v2859, %v2860
      %v2862 = vmul.f32 %v2846, 0.0078125
      %v2863 = vmul.f32 %v2861, 0.0078125
      %v2864 = vsel %vm842, %v2862, -inf
      %2865 = vmax.xlane.f32.xlu0 %v2864
      %v2866 = vpop.xlane.xlu0 %2865
      %v2867 = vsel %vm842, %v2863, -inf
      %2868 = vmax.xlane.f32.xlu0 %v2867
      %v2869 = vpop.xlane.xlu0 %2868
      %v2870 = vsub.f32 %v2862, %v2866
      %v2871 = vsub.f32 %v2863, %v2869
      %v2872 = vmul.f32 %v2870, 1.442695
      %v2873 = vpow.pop %v2872
      %v2874 = vmul.f32 %v2871, 1.442695
      %v2875 = vpow.pop %v2874
      %v2876 = vsel %vm842, %v2873, 0.0
      %2877 = vadd.xlane.f32.xlu0 %v2876
      %v2878 = vpop.xlane.xlu0 %2877
      %v2879 = vsel %vm842, %v2875, 0.0
      %2880 = vadd.xlane.f32.xlu0 %v2879
      %v2881 = vpop.xlane.xlu0 %2880
      %v2882 = vrcp.pop %v2878
      %v2883 = vmul.f32 %v2873, %v2882
      %v2884 = vrcp.pop %v2881
      %v2885 = vmul.f32 %v2875, %v2884
      %s2886 = scalar_lea.vmem %s7, 32
      %v2887 = vld [vmem:[%s2886] sm:$0xff]
      %v2888 = vld [vmem:[%s2886 + $0x8] sm:$0xff]
      %v2889 = vadd.f32 %v2883, %v2887
      %v2890 = vadd.f32 %v2885, %v2888
      %v2891 = vpack.c.bf16 %v2890, %v2889
      %v2893 = vsel %vm842, %v2891, 0
      %2895 = vmatprep.subr.bf16.mxu0 0
      %2896 = vmatpush1.bf16.msra.mxu0 %v521
      %2897 = vmatprep.subr.bf16.mxu0 0
      %2898 = vmatpush1.bf16.msra.mxu0 0
      %2899 = vmatprep.subr.bf16.mxu0 0
      %2900 = vmatpush1.bf16.msra.mxu0 0
      %2901 = vmatprep.subr.bf16.mxu0 0
      %2902 = vmatpush1.bf16.msra.mxu0 0
      %2903 = vmatprep.subr.bf16.mxu0 0
      %2904 = vmatpush1.bf16.msra.mxu0 0
      %2905 = vmatprep.subr.bf16.mxu0 0
      %2906 = vmatpush1.bf16.msra.mxu0 0
      %2907 = vmatprep.subr.bf16.mxu0 0
      %2908 = vmatpush1.bf16.msra.mxu0 0
      %2909 = vmatprep.subr.bf16.mxu0 0
      %2910 = vmatpush1.bf16.msra.mxu0 0
      %2911 = vmatprep.subr.bf16.mxu0 0
      %2912 = vmatpush1.bf16.msra.mxu0 0
      %2913 = vmatprep.subr.bf16.mxu0 0
      %2914 = vmatpush1.bf16.msra.mxu0 0
      %2915 = vmatprep.subr.bf16.mxu0 0
      %2916 = vmatpush1.bf16.msra.mxu0 0
      %2917 = vmatprep.subr.bf16.mxu0 0
      %2918 = vmatpush1.bf16.msra.mxu0 0
      %2919 = vmatprep.subr.bf16.mxu0 0
      %2920 = vmatpush1.bf16.msra.mxu0 0
      %2921 = vmatprep.subr.bf16.mxu0 0
      %2922 = vmatpush1.bf16.msra.mxu0 0
      %2923 = vmatprep.subr.bf16.mxu0 0
      %2924 = vmatpush1.bf16.msra.mxu0 0
      %2925 = vmatprep.subr.bf16.mxu0 0
      %2926 = vmatpush1.bf16.msra.mxu0 0
      %2927 = vmatprep.mubr.bf16.mxu0 0
      %2928 = vmatmul.mubr.bf16.gmra.mrb[0].mxu0 %v2893
      %v2929 = vpop.f32.mrb[0].mxu0
      %v2930 = vadd.f32 0.0, %v2929
      %v2931 = vpop.f32.mrb[0].mxu0
      %v2932 = vpop.f32.mrb[0].mxu0
      %v2933 = vadd.f32 0.0, %v2932
      %v2934 = vpop.f32.mrb[0].mxu0
      %2935 = vdwg.mxu0
      %2936 = vmatprep.subr.bf16.mxu0 0
      %2937 = vmatpush1.bf16.msra.mxu0 %v522
      %2938 = vmatprep.subr.bf16.mxu0 0
      %2939 = vmatpush1.bf16.msra.mxu0 0
      %2940 = vmatprep.subr.bf16.mxu0 0
      %2941 = vmatpush1.bf16.msra.mxu0 0
      %2942 = vmatprep.subr.bf16.mxu0 0
      %2943 = vmatpush1.bf16.msra.mxu0 0
      %2944 = vmatprep.subr.bf16.mxu0 0
      %2945 = vmatpush1.bf16.msra.mxu0 0
      %2946 = vmatprep.subr.bf16.mxu0 0
      %2947 = vmatpush1.bf16.msra.mxu0 0
      %2948 = vmatprep.subr.bf16.mxu0 0
      %2949 = vmatpush1.bf16.msra.mxu0 0
      %2950 = vmatprep.subr.bf16.mxu0 0
      %2951 = vmatpush1.bf16.msra.mxu0 0
      %2952 = vmatprep.subr.bf16.mxu0 0
      %2953 = vmatpush1.bf16.msra.mxu0 0
      %2954 = vmatprep.subr.bf16.mxu0 0
      %2955 = vmatpush1.bf16.msra.mxu0 0
      %2956 = vmatprep.subr.bf16.mxu0 0
      %2957 = vmatpush1.bf16.msra.mxu0 0
      %2958 = vmatprep.subr.bf16.mxu0 0
      %2959 = vmatpush1.bf16.msra.mxu0 0
      %2960 = vmatprep.subr.bf16.mxu0 0
      %2961 = vmatpush1.bf16.msra.mxu0 0
      %2962 = vmatprep.subr.bf16.mxu0 0
      %2963 = vmatpush1.bf16.msra.mxu0 0
      %2964 = vmatprep.subr.bf16.mxu0 0
      %2965 = vmatpush1.bf16.msra.mxu0 0
      %2966 = vmatprep.subr.bf16.mxu0 0
      %2967 = vmatpush1.bf16.msra.mxu0 0
      %2968 = vmatprep.mubr.bf16.mxu0 0
      %2969 = vmatmul.mubr.bf16.gmra.mrb[0].mxu0 %v2893
      %v2970 = vpop.f32.mrb[0].mxu0
      %v2971 = vadd.f32 0.0, %v2970
      %v2972 = vpop.f32.mrb[0].mxu0
      %v2973 = vpop.f32.mrb[0].mxu0
      %v2974 = vadd.f32 0.0, %v2973
      %v2975 = vpop.f32.mrb[0].mxu0
      %2976 = vdwg.mxu0
      %2977 = vmatprep.subr.bf16.mxu0 0
      %2978 = vmatpush1.bf16.msra.mxu0 %v523
      %2979 = vmatprep.subr.bf16.mxu0 0
      %2980 = vmatpush1.bf16.msra.mxu0 0
      %2981 = vmatprep.subr.bf16.mxu0 0
      %2982 = vmatpush1.bf16.msra.mxu0 0
      %2983 = vmatprep.subr.bf16.mxu0 0
      %2984 = vmatpush1.bf16.msra.mxu0 0
      %2985 = vmatprep.subr.bf16.mxu0 0
      %2986 = vmatpush1.bf16.msra.mxu0 0
      %2987 = vmatprep.subr.bf16.mxu0 0
      %2988 = vmatpush1.bf16.msra.mxu0 0
      %2989 = vmatprep.subr.bf16.mxu0 0
      %2990 = vmatpush1.bf16.msra.mxu0 0
      %2991 = vmatprep.subr.bf16.mxu0 0
      %2992 = vmatpush1.bf16.msra.mxu0 0
      %2993 = vmatprep.subr.bf16.mxu0 0
      %2994 = vmatpush1.bf16.msra.mxu0 0
      %2995 = vmatprep.subr.bf16.mxu0 0
      %2996 = vmatpush1.bf16.msra.mxu0 0
      %2997 = vmatprep.subr.bf16.mxu0 0
      %2998 = vmatpush1.bf16.msra.mxu0 0
      %2999 = vmatprep.subr.bf16.mxu0 0
      %3000 = vmatpush1.bf16.msra.mxu0 0
      %3001 = vmatprep.subr.bf16.mxu0 0
      %3002 = vmatpush1.bf16.msra.mxu0 0
      %3003 = vmatprep.subr.bf16.mxu0 0
      %3004 = vmatpush1.bf16.msra.mxu0 0
      %3005 = vmatprep.subr.bf16.mxu0 0
      %3006 = vmatpush1.bf16.msra.mxu0 0
      %3007 = vmatprep.subr.bf16.mxu0 0
      %3008 = vmatpush1.bf16.msra.mxu0 0
      %3009 = vmatprep.mubr.bf16.mxu0 0
      %3010 = vmatmul.mubr.bf16.gmra.mrb[0].mxu0 %v2893
      %v3011 = vpop.f32.mrb[0].mxu0
      %v3012 = vadd.f32 0.0, %v3011
      %v3013 = vpop.f32.mrb[0].mxu0
      %v3014 = vpop.f32.mrb[0].mxu0
      %v3015 = vadd.f32 0.0, %v3014
      %v3016 = vpop.f32.mrb[0].mxu0
      %3017 = vdwg.mxu0
      %3018 = vmatprep.subr.bf16.mxu0 0
      %3019 = vmatpush1.bf16.msra.mxu0 %v524
      %3020 = vmatprep.subr.bf16.mxu0 0
      %3021 = vmatpush1.bf16.msra.mxu0 0
      %3022 = vmatprep.subr.bf16.mxu0 0
      %3023 = vmatpush1.bf16.msra.mxu0 0
      %3024 = vmatprep.subr.bf16.mxu0 0
      %3025 = vmatpush1.bf16.msra.mxu0 0
      %3026 = vmatprep.subr.bf16.mxu0 0
      %3027 = vmatpush1.bf16.msra.mxu0 0
      %3028 = vmatprep.subr.bf16.mxu0 0
      %3029 = vmatpush1.bf16.msra.mxu0 0
      %3030 = vmatprep.subr.bf16.mxu0 0
      %3031 = vmatpush1.bf16.msra.mxu0 0
      %3032 = vmatprep.subr.bf16.mxu0 0
      %3033 = vmatpush1.bf16.msra.mxu0 0
      %3034 = vmatprep.subr.bf16.mxu0 0
      %3035 = vmatpush1.bf16.msra.mxu0 0
      %3036 = vmatprep.subr.bf16.mxu0 0
      %3037 = vmatpush1.bf16.msra.mxu0 0
      %3038 = vmatprep.subr.bf16.mxu0 0
      %3039 = vmatpush1.bf16.msra.mxu0 0
      %3040 = vmatprep.subr.bf16.mxu0 0
      %3041 = vmatpush1.bf16.msra.mxu0 0
      %3042 = vmatprep.subr.bf16.mxu0 0
      %3043 = vmatpush1.bf16.msra.mxu0 0
      %3044 = vmatprep.subr.bf16.mxu0 0
      %3045 = vmatpush1.bf16.msra.mxu0 0
      %3046 = vmatprep.subr.bf16.mxu0 0
      %3047 = vmatpush1.bf16.msra.mxu0 0
      %3048 = vmatprep.subr.bf16.mxu0 0
      %3049 = vmatpush1.bf16.msra.mxu0 0
      %3050 = vmatprep.mubr.bf16.mxu0 0
      %3051 = vmatmul.mubr.bf16.gmra.mrb[0].mxu0 %v2893
      %v3052 = vpop.f32.mrb[0].mxu0
      %v3053 = vadd.f32 0.0, %v3052
      %v3054 = vpop.f32.mrb[0].mxu0
      %v3055 = vpop.f32.mrb[0].mxu0
      %v3056 = vadd.f32 0.0, %v3055
      %v3057 = vpop.f32.mrb[0].mxu0
      %3058 = vdwg.mxu0
      %3059 = vmatprep.subr.bf16.mxu0 0
      %3060 = vmatpush1.bf16.msra.mxu0 %v525
      %3061 = vmatprep.subr.bf16.mxu0 0
      %3062 = vmatpush1.bf16.msra.mxu0 0
      %3063 = vmatprep.subr.bf16.mxu0 0
      %3064 = vmatpush1.bf16.msra.mxu0 0
      %3065 = vmatprep.subr.bf16.mxu0 0
      %3066 = vmatpush1.bf16.msra.mxu0 0
      %3067 = vmatprep.subr.bf16.mxu0 0
      %3068 = vmatpush1.bf16.msra.mxu0 0
      %3069 = vmatprep.subr.bf16.mxu0 0
      %3070 = vmatpush1.bf16.msra.mxu0 0
      %3071 = vmatprep.subr.bf16.mxu0 0
      %3072 = vmatpush1.bf16.msra.mxu0 0
      %3073 = vmatprep.subr.bf16.mxu0 0
      %3074 = vmatpush1.bf16.msra.mxu0 0
      %3075 = vmatprep.subr.bf16.mxu0 0
      %3076 = vmatpush1.bf16.msra.mxu0 0
      %3077 = vmatprep.subr.bf16.mxu0 0
      %3078 = vmatpush1.bf16.msra.mxu0 0
      %3079 = vmatprep.subr.bf16.mxu0 0
      %3080 = vmatpush1.bf16.msra.mxu0 0
      %3081 = vmatprep.subr.bf16.mxu0 0
      %3082 = vmatpush1.bf16.msra.mxu0 0
      %3083 = vmatprep.subr.bf16.mxu0 0
      %3084 = vmatpush1.bf16.msra.mxu0 0
      %3085 = vmatprep.subr.bf16.mxu0 0
      %3086 = vmatpush1.bf16.msra.mxu0 0
      %3087 = vmatprep.subr.bf16.mxu0 0
      %3088 = vmatpush1.bf16.msra.mxu0 0
      %3089 = vmatprep.subr.bf16.mxu0 0
      %3090 = vmatpush1.bf16.msra.mxu0 0
      %3091 = vmatprep.mubr.bf16.mxu0 0
      %3092 = vmatmul.mubr.bf16.gmra.mrb[0].mxu0 %v2893
      %v3093 = vpop.f32.mrb[0].mxu0
      %v3094 = vadd.f32 0.0, %v3093
      %v3095 = vpop.f32.mrb[0].mxu0
      %v3096 = vpop.f32.mrb[0].mxu0
      %v3097 = vadd.f32 0.0, %v3096
      %v3098 = vpop.f32.mrb[0].mxu0
      %3099 = vdwg.mxu0
      %3100 = vmatprep.subr.bf16.mxu0 0
      %3101 = vmatpush1.bf16.msra.mxu0 %v526
      %3102 = vmatprep.subr.bf16.mxu0 0
      %3103 = vmatpush1.bf16.msra.mxu0 0
      %3104 = vmatprep.subr.bf16.mxu0 0
      %3105 = vmatpush1.bf16.msra.mxu0 0
      %3106 = vmatprep.subr.bf16.mxu0 0
      %3107 = vmatpush1.bf16.msra.mxu0 0
      %3108 = vmatprep.subr.bf16.mxu0 0
      %3109 = vmatpush1.bf16.msra.mxu0 0
      %3110 = vmatprep.subr.bf16.mxu0 0
      %3111 = vmatpush1.bf16.msra.mxu0 0
      %3112 = vmatprep.subr.bf16.mxu0 0
      %3113 = vmatpush1.bf16.msra.mxu0 0
      %3114 = vmatprep.subr.bf16.mxu0 0
      %3115 = vmatpush1.bf16.msra.mxu0 0
      %3116 = vmatprep.subr.bf16.mxu0 0
      %3117 = vmatpush1.bf16.msra.mxu0 0
      %3118 = vmatprep.subr.bf16.mxu0 0
      %3119 = vmatpush1.bf16.msra.mxu0 0
      %3120 = vmatprep.subr.bf16.mxu0 0
      %3121 = vmatpush1.bf16.msra.mxu0 0
      %3122 = vmatprep.subr.bf16.mxu0 0
      %3123 = vmatpush1.bf16.msra.mxu0 0
      %3124 = vmatprep.subr.bf16.mxu0 0
      %3125 = vmatpush1.bf16.msra.mxu0 0
      %3126 = vmatprep.subr.bf16.mxu0 0
      %3127 = vmatpush1.bf16.msra.mxu0 0
      %3128 = vmatprep.subr.bf16.mxu0 0
      %3129 = vmatpush1.bf16.msra.mxu0 0
      %3130 = vmatprep.subr.bf16.mxu0 0
      %3131 = vmatpush1.bf16.msra.mxu0 0
      %3132 = vmatprep.mubr.bf16.mxu0 0
      %3133 = vmatmul.mubr.bf16.gmra.mrb[0].mxu0 %v2893
      %v3134 = vpop.f32.mrb[0].mxu0
      %v3135 = vadd.f32 0.0, %v3134
      %v3136 = vpop.f32.mrb[0].mxu0
      %v3137 = vpop.f32.mrb[0].mxu0
      %v3138 = vadd.f32 0.0, %v3137
      %v3139 = vpop.f32.mrb[0].mxu0
      %3140 = vdwg.mxu0
      %3141 = vmatprep.subr.bf16.mxu0 0
      %3142 = vmatpush1.bf16.msra.mxu0 %v527
      %3143 = vmatprep.subr.bf16.mxu0 0
      %3144 = vmatpush1.bf16.msra.mxu0 0
      %3145 = vmatprep.subr.bf16.mxu0 0
      %3146 = vmatpush1.bf16.msra.mxu0 0
      %3147 = vmatprep.subr.bf16.mxu0 0
      %3148 = vmatpush1.bf16.msra.mxu0 0
      %3149 = vmatprep.subr.bf16.mxu0 0
      %3150 = vmatpush1.bf16.msra.mxu0 0
      %3151 = vmatprep.subr.bf16.mxu0 0
      %3152 = vmatpush1.bf16.msra.mxu0 0
      %3153 = vmatprep.subr.bf16.mxu0 0
      %3154 = vmatpush1.bf16.msra.mxu0 0
      %3155 = vmatprep.subr.bf16.mxu0 0
      %3156 = vmatpush1.bf16.msra.mxu0 0
      %3157 = vmatprep.subr.bf16.mxu0 0
      %3158 = vmatpush1.bf16.msra.mxu0 0
      %3159 = vmatprep.subr.bf16.mxu0 0
      %3160 = vmatpush1.bf16.msra.mxu0 0
      %3161 = vmatprep.subr.bf16.mxu0 0
      %3162 = vmatpush1.bf16.msra.mxu0 0
      %3163 = vmatprep.subr.bf16.mxu0 0
      %3164 = vmatpush1.bf16.msra.mxu0 0
      %3165 = vmatprep.subr.bf16.mxu0 0
      %3166 = vmatpush1.bf16.msra.mxu0 0
      %3167 = vmatprep.subr.bf16.mxu0 0
      %3168 = vmatpush1.bf16.msra.mxu0 0
      %3169 = vmatprep.subr.bf16.mxu0 0
      %3170 = vmatpush1.bf16.msra.mxu0 0
      %3171 = vmatprep.subr.bf16.mxu0 0
      %3172 = vmatpush1.bf16.msra.mxu0 0
      %3173 = vmatprep.mubr.bf16.mxu0 0
      %3174 = vmatmul.mubr.bf16.gmra.mrb[0].mxu0 %v2893
      %v3175 = vpop.f32.mrb[0].mxu0
      %v3176 = vadd.f32 0.0, %v3175
      %v3177 = vpop.f32.mrb[0].mxu0
      %v3178 = vpop.f32.mrb[0].mxu0
      %v3179 = vadd.f32 0.0, %v3178
      %v3180 = vpop.f32.mrb[0].mxu0
      %3181 = vdwg.mxu0
      %3182 = vmatprep.subr.bf16.mxu0 0
      %3183 = vmatpush1.bf16.msra.mxu0 %v528
      %3184 = vmatprep.subr.bf16.mxu0 0
      %3185 = vmatpush1.bf16.msra.mxu0 0
      %3186 = vmatprep.subr.bf16.mxu0 0
      %3187 = vmatpush1.bf16.msra.mxu0 0
      %3188 = vmatprep.subr.bf16.mxu0 0
      %3189 = vmatpush1.bf16.msra.mxu0 0
      %3190 = vmatprep.subr.bf16.mxu0 0
      %3191 = vmatpush1.bf16.msra.mxu0 0
      %3192 = vmatprep.subr.bf16.mxu0 0
      %3193 = vmatpush1.bf16.msra.mxu0 0
      %3194 = vmatprep.subr.bf16.mxu0 0
      %3195 = vmatpush1.bf16.msra.mxu0 0
      %3196 = vmatprep.subr.bf16.mxu0 0
      %3197 = vmatpush1.bf16.msra.mxu0 0
      %3198 = vmatprep.subr.bf16.mxu0 0
      %3199 = vmatpush1.bf16.msra.mxu0 0
      %3200 = vmatprep.subr.bf16.mxu0 0
      %3201 = vmatpush1.bf16.msra.mxu0 0
      %3202 = vmatprep.subr.bf16.mxu0 0
      %3203 = vmatpush1.bf16.msra.mxu0 0
      %3204 = vmatprep.subr.bf16.mxu0 0
      %3205 = vmatpush1.bf16.msra.mxu0 0
      %3206 = vmatprep.subr.bf16.mxu0 0
      %3207 = vmatpush1.bf16.msra.mxu0 0
      %3208 = vmatprep.subr.bf16.mxu0 0
      %3209 = vmatpush1.bf16.msra.mxu0 0
      %3210 = vmatprep.subr.bf16.mxu0 0
      %3211 = vmatpush1.bf16.msra.mxu0 0
      %3212 = vmatprep.subr.bf16.mxu0 0
      %3213 = vmatpush1.bf16.msra.mxu0 0
      %3214 = vmatprep.mubr.bf16.mxu0 0
      %3215 = vmatmul.mubr.bf16.gmra.mrb[0].mxu0 %v2893
      %v3216 = vpop.f32.mrb[0].mxu0
      %v3217 = vadd.f32 0.0, %v3216
      %v3218 = vpop.f32.mrb[0].mxu0
      %v3219 = vpop.f32.mrb[0].mxu0
      %v3220 = vadd.f32 0.0, %v3219
      %v3221 = vpop.f32.mrb[0].mxu0
      %3222 = vdwg.mxu0
      %3239 = vrot.lane.b32.xlu0 %v2131, 64
      %v3240 = vpop.permute.xlu0 %3239
      %3241 = vrot.lane.b32.xlu0 %v2134, 64
      %v3242 = vpop.permute.xlu0 %3241
      %3243 = vrot.lane.b32.xlu0 %v2172, 64
      %v3244 = vpop.permute.xlu0 %3243
      %3245 = vrot.lane.b32.xlu0 %v2175, 64
      %v3246 = vpop.permute.xlu0 %3245
      %3247 = vrot.lane.b32.xlu0 %v2213, 64
      %v3248 = vpop.permute.xlu0 %3247
      %3249 = vrot.lane.b32.xlu0 %v2216, 64
      %v3250 = vpop.permute.xlu0 %3249
      %3251 = vrot.lane.b32.xlu0 %v2254, 64
      %v3252 = vpop.permute.xlu0 %3251
      %3253 = vrot.lane.b32.xlu0 %v2257, 64
      %v3254 = vpop.permute.xlu0 %3253
      %3255 = vrot.lane.b32.xlu0 %v2295, 64
      %v3256 = vpop.permute.xlu0 %3255
      %3257 = vrot.lane.b32.xlu0 %v2298, 64
      %v3258 = vpop.permute.xlu0 %3257
      %3259 = vrot.lane.b32.xlu0 %v2336, 64
      %v3260 = vpop.permute.xlu0 %3259
      %3261 = vrot.lane.b32.xlu0 %v2339, 64
      %v3262 = vpop.permute.xlu0 %3261
      %3263 = vrot.lane.b32.xlu0 %v2377, 64
      %v3264 = vpop.permute.xlu0 %3263
      %3265 = vrot.lane.b32.xlu0 %v2380, 64
      %v3266 = vpop.permute.xlu0 %3265
      %3267 = vrot.lane.b32.xlu0 %v2418, 64
      %v3268 = vpop.permute.xlu0 %3267
      %3269 = vrot.lane.b32.xlu0 %v2421, 64
      %v3270 = vpop.permute.xlu0 %3269
      %v3287 = vsel %vm568, %v1316, %v3240
      %v3288 = vsel %vm568, %v1319, %v3242
      %v3289 = vsel %vm568, %v1357, %v3244
      %v3290 = vsel %vm568, %v1360, %v3246
      %v3291 = vsel %vm568, %v1398, %v3248
      %v3292 = vsel %vm568, %v1401, %v3250
      %v3293 = vsel %vm568, %v1439, %v3252
      %v3294 = vsel %vm568, %v1442, %v3254
      %v3295 = vsel %vm568, %v1480, %v3256
      %v3296 = vsel %vm568, %v1483, %v3258
      %v3297 = vsel %vm568, %v1521, %v3260
      %v3298 = vsel %vm568, %v1524, %v3262
      %v3299 = vsel %vm568, %v1562, %v3264
      %v3300 = vsel %vm568, %v1565, %v3266
      %v3301 = vsel %vm568, %v1603, %v3268
      %v3302 = vsel %vm568, %v1606, %v3270
      %v3303 = vpack.c.bf16 %v3288, %v3287
      %v3304 = vpack.c.bf16 %v2933, %v2930
      %v3305 = vpack.c.bf16 %v3290, %v3289
      %v3306 = vpack.c.bf16 %v2974, %v2971
      %v3307 = vpack.c.bf16 %v3292, %v3291
      %v3308 = vpack.c.bf16 %v3015, %v3012
      %v3309 = vpack.c.bf16 %v3294, %v3293
      %v3310 = vpack.c.bf16 %v3056, %v3053
      %v3311 = vpack.c.bf16 %v3296, %v3295
      %v3312 = vpack.c.bf16 %v3097, %v3094
      %v3313 = vpack.c.bf16 %v3298, %v3297
      %v3314 = vpack.c.bf16 %v3138, %v3135
      %v3315 = vpack.c.bf16 %v3300, %v3299
      %v3316 = vpack.c.bf16 %v3179, %v3176
      %v3317 = vpack.c.bf16 %v3302, %v3301
      %v3318 = vpack.c.bf16 %v3220, %v3217
      %v3319 = vld [vmem:[%s8] sm:$0xf]
      %v3320 = vld [vmem:[%s8 + $0x4] sm:$0xf]
      %v3321 = vld [vmem:[%s8 + $0x8] sm:$0xf]
      %v3322 = vld [vmem:[%s8 + $0xc] sm:$0xf]
      %v3323 = vld [vmem:[%s8 + $0x10] sm:$0xf]
      %v3324 = vld [vmem:[%s8 + $0x14] sm:$0xf]
      %v3325 = vld [vmem:[%s8 + $0x18] sm:$0xf]
      %v3326 = vld [vmem:[%s8 + $0x1c] sm:$0xf]
      %v3327 = vld [vmem:[%s8 + $0x20] sm:$0xf]
      %v3328 = vld [vmem:[%s8 + $0x24] sm:$0xf]
      %v3329 = vld [vmem:[%s8 + $0x28] sm:$0xf]
      %v3330 = vld [vmem:[%s8 + $0x2c] sm:$0xf]
      %v3331 = vld [vmem:[%s8 + $0x30] sm:$0xf]
      %v3332 = vld [vmem:[%s8 + $0x34] sm:$0xf]
      %v3333 = vld [vmem:[%s8 + $0x38] sm:$0xf]
      %v3334 = vld [vmem:[%s8 + $0x3c] sm:$0xf]
      %v3335 = vld [vmem:[%s8 + $0x40] sm:$0xf]
      %v3336 = vld [vmem:[%s8 + $0x44] sm:$0xf]
      %v3337 = vld [vmem:[%s8 + $0x48] sm:$0xf]
      %v3338 = vld [vmem:[%s8 + $0x4c] sm:$0xf]
      %v3339 = vld [vmem:[%s8 + $0x50] sm:$0xf]
      %v3340 = vld [vmem:[%s8 + $0x54] sm:$0xf]
      %v3341 = vld [vmem:[%s8 + $0x58] sm:$0xf]
      %v3342 = vld [vmem:[%s8 + $0x5c] sm:$0xf]
      %v3343 = vld [vmem:[%s9] sm:$0x1]
      %v3345 = vlaneseq
      %v3346 = vshrl.u32 %v3345, 7
      %v3347 = vsub.s32 0, %v3346
      %v3348 = vrot.slane %v3343, %v3347
      %v3374 = vunpack.c.l.b16 %v3319
      %v3375 = vunpack.c.l.b16 %v3320
      %v3376 = vunpack.c.l.b16 %v3321
      %v3377 = vunpack.c.l.b16 %v3322
      %v3378 = vunpack.c.l.b16 %v3323
      %v3379 = vunpack.c.l.b16 %v3324
      %v3380 = vunpack.c.l.b16 %v3325
      %v3381 = vunpack.c.l.b16 %v3326
      %v3382 = vunpack.c.l.b16 %v3327
      %v3383 = vunpack.c.l.b16 %v3328
      %v3384 = vunpack.c.l.b16 %v3329
      %v3385 = vunpack.c.l.b16 %v3330
      %v3386 = vunpack.c.l.b16 %v3331
      %v3387 = vunpack.c.l.b16 %v3332
      %v3388 = vunpack.c.l.b16 %v3333
      %v3389 = vunpack.c.l.b16 %v3334
      %v3390 = vunpack.c.l.b16 %v3335
      %v3391 = vunpack.c.l.b16 %v3336
      %v3392 = vunpack.c.l.b16 %v3337
      %v3393 = vunpack.c.l.b16 %v3338
      %v3394 = vunpack.c.l.b16 %v3339
      %v3395 = vunpack.c.l.b16 %v3340
      %v3396 = vunpack.c.l.b16 %v3341
      %v3397 = vunpack.c.l.b16 %v3342
      %v3398 = vpack.c.b16 %v3375, %v3374
      %v3399 = vpack.c.b16 %v3377, %v3376
      %v3400 = vpack.c.b16 %v3379, %v3378
      %v3401 = vpack.c.b16 %v3381, %v3380
      %v3402 = vpack.c.b16 %v3383, %v3382
      %v3403 = vpack.c.b16 %v3385, %v3384
      %v3404 = vpack.c.b16 %v3387, %v3386
      %v3405 = vpack.c.b16 %v3389, %v3388
      %v3406 = vpack.c.b16 %v3391, %v3390
      %v3407 = vpack.c.b16 %v3393, %v3392
      %v3408 = vpack.c.b16 %v3395, %v3394
      %v3409 = vpack.c.b16 %v3397, %v3396
      %v3423 = vsel %vm568, %v3304, 0
      %v3426 = vsel %vm568, %v3306, 0
      %v3429 = vsel %vm568, %v3308, 0
      %v3432 = vsel %vm568, %v3310, 0
      %v3435 = vsel %vm568, %v3312, 0
      %v3438 = vsel %vm568, %v3314, 0
      %v3441 = vsel %vm568, %v3316, 0
      %v3444 = vsel %vm568, %v3318, 0
      %3446 = vmatprep.subr.bf16.mxu0 0
      %3447 = vmatpush1.bf16.msra.mxu0 %v3398
      %3448 = vmatprep.subr.bf16.mxu0 0
      %3449 = vmatpush1.bf16.msra.mxu0 %v3399
      %3450 = vmatprep.subr.bf16.mxu0 0
      %3451 = vmatpush1.bf16.msra.mxu0 %v3400
      %3452 = vmatprep.subr.bf16.mxu0 0
      %3453 = vmatpush1.bf16.msra.mxu0 %v3401
      %3454 = vmatprep.subr.bf16.mxu0 0
      %3455 = vmatpush1.bf16.msra.mxu0 %v3402
      %3456 = vmatprep.subr.bf16.mxu0 0
      %3457 = vmatpush1.bf16.msra.mxu0 %v3403
      %3458 = vmatprep.subr.bf16.mxu0 0
      %3459 = vmatpush1.bf16.msra.mxu0 %v3404
      %3460 = vmatprep.subr.bf16.mxu0 0
      %3461 = vmatpush1.bf16.msra.mxu0 %v3405
      %3462 = vmatprep.subr.bf16.mxu0 0
      %3463 = vmatpush1.bf16.msra.mxu0 %v3406
      %3464 = vmatprep.subr.bf16.mxu0 0
      %3465 = vmatpush1.bf16.msra.mxu0 %v3407
      %3466 = vmatprep.subr.bf16.mxu0 0
      %3467 = vmatpush1.bf16.msra.mxu0 %v3408
      %3468 = vmatprep.subr.bf16.mxu0 0
      %3469 = vmatpush1.bf16.msra.mxu0 %v3409
      %3470 = vmatprep.subr.bf16.mxu0 0
      %3471 = vmatpush1.bf16.msra.mxu0 0
      %3472 = vmatprep.subr.bf16.mxu0 0
      %3473 = vmatpush1.bf16.msra.mxu0 0
      %3474 = vmatprep.subr.bf16.mxu0 0
      %3475 = vmatpush1.bf16.msra.mxu0 0
      %3476 = vmatprep.subr.bf16.mxu0 0
      %3477 = vmatpush1.bf16.msra.mxu0 0
      %3478 = vmatprep.mubr.bf16.mxu0 %v3423
      %3479 = vmatmul.mubr.bf16.gmra.mrb[0].mxu0 %v3303
      %v3480 = vpop.f32.mrb[0].mxu0
      %v3481 = vadd.f32 %v3348, %v3480
      %v3482 = vpop.f32.mrb[0].mxu0
      %v3483 = vpop.f32.mrb[0].mxu0
      %v3484 = vadd.f32 %v3348, %v3483
      %v3485 = vpop.f32.mrb[0].mxu0
      %3486 = vmatprep.mubr.bf16.mxu0 %v3426
      %3487 = vmatmul.mubr.bf16.gmra.mrb[0].mxu0 %v3305
      %v3488 = vpop.f32.mrb[0].mxu0
      %v3489 = vadd.f32 %v3348, %v3488
      %v3490 = vpop.f32.mrb[0].mxu0
      %v3491 = vpop.f32.mrb[0].mxu0
      %v3492 = vadd.f32 %v3348, %v3491
      %v3493 = vpop.f32.mrb[0].mxu0
      %3494 = vmatprep.mubr.bf16.mxu0 %v3429
      %3495 = vmatmul.mubr.bf16.gmra.mrb[0].mxu0 %v3307
      %v3496 = vpop.f32.mrb[0].mxu0
      %v3497 = vadd.f32 %v3348, %v3496
      %v3498 = vpop.f32.mrb[0].mxu0
      %v3499 = vpop.f32.mrb[0].mxu0
      %v3500 = vadd.f32 %v3348, %v3499
      %v3501 = vpop.f32.mrb[0].mxu0
      %3502 = vmatprep.mubr.bf16.mxu0 %v3432
      %3503 = vmatmul.mubr.bf16.gmra.mrb[0].mxu0 %v3309
      %v3504 = vpop.f32.mrb[0].mxu0
      %v3505 = vadd.f32 %v3348, %v3504
      %v3506 = vpop.f32.mrb[0].mxu0
      %v3507 = vpop.f32.mrb[0].mxu0
      %v3508 = vadd.f32 %v3348, %v3507
      %v3509 = vpop.f32.mrb[0].mxu0
      %3510 = vmatprep.mubr.bf16.mxu0 %v3435
      %3511 = vmatmul.mubr.bf16.gmra.mrb[0].mxu0 %v3311
      %v3512 = vpop.f32.mrb[0].mxu0
      %v3513 = vadd.f32 %v3348, %v3512
      %v3514 = vpop.f32.mrb[0].mxu0
      %v3515 = vpop.f32.mrb[0].mxu0
      %v3516 = vadd.f32 %v3348, %v3515
      %v3517 = vpop.f32.mrb[0].mxu0
      %3518 = vmatprep.mubr.bf16.mxu0 %v3438
      %3519 = vmatmul.mubr.bf16.gmra.mrb[0].mxu0 %v3313
      %v3520 = vpop.f32.mrb[0].mxu0
      %v3521 = vadd.f32 %v3348, %v3520
      %v3522 = vpop.f32.mrb[0].mxu0
      %v3523 = vpop.f32.mrb[0].mxu0
      %v3524 = vadd.f32 %v3348, %v3523
      %v3525 = vpop.f32.mrb[0].mxu0
      %3526 = vmatprep.mubr.bf16.mxu0 %v3441
      %3527 = vmatmul.mubr.bf16.gmra.mrb[0].mxu0 %v3315
      %v3528 = vpop.f32.mrb[0].mxu0
      %v3529 = vadd.f32 %v3348, %v3528
      %v3530 = vpop.f32.mrb[0].mxu0
      %v3531 = vpop.f32.mrb[0].mxu0
      %v3532 = vadd.f32 %v3348, %v3531
      %v3533 = vpop.f32.mrb[0].mxu0
      %3534 = vmatprep.mubr.bf16.mxu0 %v3444
      %3535 = vmatmul.mubr.bf16.gmra.mrb[0].mxu0 %v3317
      %v3536 = vpop.f32.mrb[0].mxu0
      %v3537 = vadd.f32 %v3348, %v3536
      %v3538 = vpop.f32.mrb[0].mxu0
      %v3539 = vpop.f32.mrb[0].mxu0
      %v3540 = vadd.f32 %v3348, %v3539
      %v3541 = vpop.f32.mrb[0].mxu0
      %3542 = vdwg.mxu0
      %v3543 = vld [vmem:[%s10] sm:$0xff]
      %v3544 = vld [vmem:[%s10 + $0x8] sm:$0xff]
      %v3545 = vld [vmem:[%s10 + $0x10] sm:$0xff]
      %v3546 = vld [vmem:[%s10 + $0x18] sm:$0xff]
      %v3547 = vld [vmem:[%s10 + $0x20] sm:$0xff]
      %v3548 = vld [vmem:[%s10 + $0x28] sm:$0xff]
      %v3549 = vld [vmem:[%s10 + $0x30] sm:$0xff]
      %v3550 = vld [vmem:[%s10 + $0x38] sm:$0xff]
      %v3551 = vld [vmem:[%s11] sm:$0x1]
      %v3553 = vlaneseq
      %v3554 = vshrl.u32 %v3553, 7
      %v3555 = vsub.s32 0, %v3554
      %v3556 = vrot.slane %v3551, %v3555
      %v3559 = vsel %vm568, %v505, 0
      %v3562 = vsel %vm568, %v506, 0
      %v3565 = vsel %vm568, %v507, 0
      %v3568 = vsel %vm568, %v508, 0
      %v3571 = vsel %vm568, %v509, 0
      %v3574 = vsel %vm568, %v510, 0
      %v3577 = vsel %vm568, %v511, 0
      %v3580 = vsel %vm568, %v512, 0
      %v3583 = vsel %vm568, %v513, 0
      %v3586 = vsel %vm568, %v514, 0
      %v3589 = vsel %vm568, %v515, 0
      %v3592 = vsel %vm568, %v516, 0
      %v3595 = vsel %vm568, %v517, 0
      %v3598 = vsel %vm568, %v518, 0
      %v3601 = vsel %vm568, %v519, 0
      %v3604 = vsel %vm568, %v520, 0
      %3606 = vmatprep.subr.mxu0 0.0
      %3607 = vmatpush1.msra.mxu0 %v3543
      %3608 = vmatprep.subr.mxu0 0.0
      %3609 = vmatpush1.msra.mxu0 %v3544
      %3610 = vmatprep.subr.mxu0 0.0
      %3611 = vmatpush1.msra.mxu0 %v3545
      %3612 = vmatprep.subr.mxu0 0.0
      %3613 = vmatpush1.msra.mxu0 %v3546
      %3614 = vmatprep.subr.mxu0 0.0
      %3615 = vmatpush1.msra.mxu0 %v3547
      %3616 = vmatprep.subr.mxu0 0.0
      %3617 = vmatpush1.msra.mxu0 %v3548
      %3618 = vmatprep.subr.mxu0 0.0
      %3619 = vmatpush1.msra.mxu0 %v3549
      %3620 = vmatprep.subr.mxu0 0.0
      %3621 = vmatpush1.msra.mxu0 %v3550
      %3622 = vmatprep.subr.mxu0 0.0
      %3623 = vmatpush1.msra.mxu0 0.0
      %3624 = vmatprep.subr.mxu0 0.0
      %3625 = vmatpush1.msra.mxu0 0.0
      %3626 = vmatprep.subr.mxu0 0.0
      %3627 = vmatpush1.msra.mxu0 0.0
      %3628 = vmatprep.subr.mxu0 0.0
      %3629 = vmatpush1.msra.mxu0 0.0
      %3630 = vmatprep.subr.mxu0 0.0
      %3631 = vmatpush1.msra.mxu0 0.0
      %3632 = vmatprep.subr.mxu0 0.0
      %3633 = vmatpush1.msra.mxu0 0.0
      %3634 = vmatprep.subr.mxu0 0.0
      %3635 = vmatpush1.msra.mxu0 0.0
      %3636 = vmatprep.subr.mxu0 0.0
      %3637 = vmatpush1.msra.mxu0 0.0
      %3638 = vmatprep.subr.mxu0 0.0
      %3639 = vmatpush1.msra.mxu0 0.0
      %3640 = vmatprep.subr.mxu0 0.0
      %3641 = vmatpush1.msra.mxu0 0.0
      %3642 = vmatprep.subr.mxu0 0.0
      %3643 = vmatpush1.msra.mxu0 0.0
      %3644 = vmatprep.subr.mxu0 0.0
      %3645 = vmatpush1.msra.mxu0 0.0
      %3646 = vmatprep.subr.mxu0 0.0
      %3647 = vmatpush1.msra.mxu0 0.0
      %3648 = vmatprep.subr.mxu0 0.0
      %3649 = vmatpush1.msra.mxu0 0.0
      %3650 = vmatprep.subr.mxu0 0.0
      %3651 = vmatpush1.msra.mxu0 0.0
      %3652 = vmatprep.subr.mxu0 0.0
      %3653 = vmatpush1.msra.mxu0 0.0
      %3654 = vmatprep.subr.mxu0 0.0
      %3655 = vmatpush1.msra.mxu0 0.0
      %3656 = vmatprep.subr.mxu0 0.0
      %3657 = vmatpush1.msra.mxu0 0.0
      %3658 = vmatprep.subr.mxu0 0.0
      %3659 = vmatpush1.msra.mxu0 0.0
      %3660 = vmatprep.subr.mxu0 0.0
      %3661 = vmatpush1.msra.mxu0 0.0
      %3662 = vmatprep.subr.mxu0 0.0
      %3663 = vmatpush1.msra.mxu0 0.0
      %3664 = vmatprep.subr.mxu0 0.0
      %3665 = vmatpush1.msra.mxu0 0.0
      %3666 = vmatprep.subr.mxu0 0.0
      %3667 = vmatpush1.msra.mxu0 0.0
      %3668 = vmatprep.subr.mxu0 0.0
      %3669 = vmatpush1.msra.mxu0 0.0
      %3670 = vmatprep.mubr.f32.mxu0 0.0
      %3671 = vmatmul.mubr.f32.gmra.mrb[0].mxu0 %v3559
      %v3672 = vpop.f32.mrb[0].mxu0
      %v3673 = vadd.f32 %v3556, %v3672
      %v3674 = vpop.f32.mrb[0].mxu0
      %3675 = vmatprep.mubr.f32.mxu0 0.0
      %3676 = vmatmul.mubr.f32.gmra.mrb[0].mxu0 %v3562
      %v3677 = vpop.f32.mrb[0].mxu0
      %v3678 = vadd.f32 %v3556, %v3677
      %v3679 = vpop.f32.mrb[0].mxu0
      %3680 = vmatprep.mubr.f32.mxu0 0.0
      %3681 = vmatmul.mubr.f32.gmra.mrb[0].mxu0 %v3565
      %v3682 = vpop.f32.mrb[0].mxu0
      %v3683 = vadd.f32 %v3556, %v3682
      %v3684 = vpop.f32.mrb[0].mxu0
      %3685 = vmatprep.mubr.f32.mxu0 0.0
      %3686 = vmatmul.mubr.f32.gmra.mrb[0].mxu0 %v3568
      %v3687 = vpop.f32.mrb[0].mxu0
      %v3688 = vadd.f32 %v3556, %v3687
      %v3689 = vpop.f32.mrb[0].mxu0
      %3690 = vmatprep.mubr.f32.mxu0 0.0
      %3691 = vmatmul.mubr.f32.gmra.mrb[0].mxu0 %v3571
      %v3692 = vpop.f32.mrb[0].mxu0
      %v3693 = vadd.f32 %v3556, %v3692
      %v3694 = vpop.f32.mrb[0].mxu0
      %3695 = vmatprep.mubr.f32.mxu0 0.0
      %3696 = vmatmul.mubr.f32.gmra.mrb[0].mxu0 %v3574
      %v3697 = vpop.f32.mrb[0].mxu0
      %v3698 = vadd.f32 %v3556, %v3697
      %v3699 = vpop.f32.mrb[0].mxu0
      %3700 = vmatprep.mubr.f32.mxu0 0.0
      %3701 = vmatmul.mubr.f32.gmra.mrb[0].mxu0 %v3577
      %v3702 = vpop.f32.mrb[0].mxu0
      %v3703 = vadd.f32 %v3556, %v3702
      %v3704 = vpop.f32.mrb[0].mxu0
      %3705 = vmatprep.mubr.f32.mxu0 0.0
      %3706 = vmatmul.mubr.f32.gmra.mrb[0].mxu0 %v3580
      %v3707 = vpop.f32.mrb[0].mxu0
      %v3708 = vadd.f32 %v3556, %v3707
      %v3709 = vpop.f32.mrb[0].mxu0
      %3710 = vmatprep.mubr.f32.mxu0 0.0
      %3711 = vmatmul.mubr.f32.gmra.mrb[0].mxu0 %v3583
      %v3712 = vpop.f32.mrb[0].mxu0
      %v3713 = vadd.f32 %v3556, %v3712
      %v3714 = vpop.f32.mrb[0].mxu0
      %3715 = vmatprep.mubr.f32.mxu0 0.0
      %3716 = vmatmul.mubr.f32.gmra.mrb[0].mxu0 %v3586
      %v3717 = vpop.f32.mrb[0].mxu0
      %v3718 = vadd.f32 %v3556, %v3717
      %v3719 = vpop.f32.mrb[0].mxu0
      %3720 = vmatprep.mubr.f32.mxu0 0.0
      %3721 = vmatmul.mubr.f32.gmra.mrb[0].mxu0 %v3589
      %v3722 = vpop.f32.mrb[0].mxu0
      %v3723 = vadd.f32 %v3556, %v3722
      %v3724 = vpop.f32.mrb[0].mxu0
      %3725 = vmatprep.mubr.f32.mxu0 0.0
      %3726 = vmatmul.mubr.f32.gmra.mrb[0].mxu0 %v3592
      %v3727 = vpop.f32.mrb[0].mxu0
      %v3728 = vadd.f32 %v3556, %v3727
      %v3729 = vpop.f32.mrb[0].mxu0
      %3730 = vmatprep.mubr.f32.mxu0 0.0
      %3731 = vmatmul.mubr.f32.gmra.mrb[0].mxu0 %v3595
      %v3732 = vpop.f32.mrb[0].mxu0
      %v3733 = vadd.f32 %v3556, %v3732
      %v3734 = vpop.f32.mrb[0].mxu0
      %3735 = vmatprep.mubr.f32.mxu0 0.0
      %3736 = vmatmul.mubr.f32.gmra.mrb[0].mxu0 %v3598
      %v3737 = vpop.f32.mrb[0].mxu0
      %v3738 = vadd.f32 %v3556, %v3737
      %v3739 = vpop.f32.mrb[0].mxu0
      %3740 = vmatprep.mubr.f32.mxu0 0.0
      %3741 = vmatmul.mubr.f32.gmra.mrb[0].mxu0 %v3601
      %v3742 = vpop.f32.mrb[0].mxu0
      %v3743 = vadd.f32 %v3556, %v3742
      %v3744 = vpop.f32.mrb[0].mxu0
      %3745 = vmatprep.mubr.f32.mxu0 0.0
      %3746 = vmatmul.mubr.f32.gmra.mrb[0].mxu0 %v3604
      %v3747 = vpop.f32.mrb[0].mxu0
      %v3748 = vadd.f32 %v3556, %v3747
      %v3749 = vpop.f32.mrb[0].mxu0
      %3750 = vdwg.mxu0
      %v3751 = vadd.f32 %v3481, %v3673
      %v3752 = vadd.f32 %v3484, %v3678
      %v3753 = vadd.f32 %v3489, %v3683
      %v3754 = vadd.f32 %v3492, %v3688
      %v3755 = vadd.f32 %v3497, %v3693
      %v3756 = vadd.f32 %v3500, %v3698
      %v3757 = vadd.f32 %v3505, %v3703
      %v3758 = vadd.f32 %v3508, %v3708
      %v3759 = vadd.f32 %v3513, %v3713
      %v3760 = vadd.f32 %v3516, %v3718
      %v3761 = vadd.f32 %v3521, %v3723
      %v3762 = vadd.f32 %v3524, %v3728
      %v3763 = vadd.f32 %v3529, %v3733
      %v3764 = vadd.f32 %v3532, %v3738
      %v3765 = vadd.f32 %v3537, %v3743
      %v3766 = vadd.f32 %v3540, %v3748
      %v3767 = vmax.f32 %v3751, 0.0
      %v3768 = vmax.f32 %v3752, 0.0
      %v3769 = vmax.f32 %v3753, 0.0
      %v3770 = vmax.f32 %v3754, 0.0
      %v3771 = vmax.f32 %v3755, 0.0
      %v3772 = vmax.f32 %v3756, 0.0
      %v3773 = vmax.f32 %v3757, 0.0
      %v3774 = vmax.f32 %v3758, 0.0
      %v3775 = vmax.f32 %v3759, 0.0
      %v3776 = vmax.f32 %v3760, 0.0
      %v3777 = vmax.f32 %v3761, 0.0
      %v3778 = vmax.f32 %v3762, 0.0
      %v3779 = vmax.f32 %v3763, 0.0
      %v3780 = vmax.f32 %v3764, 0.0
      %v3781 = vmax.f32 %v3765, 0.0
      %v3782 = vmax.f32 %v3766, 0.0
      %3794 = vrot.lane.b32.xlu0 0.0, 64
      %v3795 = vpop.permute.xlu0 %3794
      %3796 = vrot.lane.b32.xlu0 %v3767, 64
      %v3797 = vpop.permute.xlu0 %3796
      %3798 = vrot.lane.b32.xlu0 %v3768, 64
      %v3799 = vpop.permute.xlu0 %3798
      %3800 = vrot.lane.b32.xlu0 %v3769, 64
      %v3801 = vpop.permute.xlu0 %3800
      %3802 = vrot.lane.b32.xlu0 %v3770, 64
      %v3803 = vpop.permute.xlu0 %3802
      %3804 = vrot.lane.b32.xlu0 %v3771, 64
      %v3805 = vpop.permute.xlu0 %3804
      %3806 = vrot.lane.b32.xlu0 %v3772, 64
      %v3807 = vpop.permute.xlu0 %3806
      %3808 = vrot.lane.b32.xlu0 %v3773, 64
      %v3809 = vpop.permute.xlu0 %3808
      %3810 = vrot.lane.b32.xlu0 %v3774, 64
      %v3811 = vpop.permute.xlu0 %3810
      %3812 = vrot.lane.b32.xlu0 %v3775, 64
      %v3813 = vpop.permute.xlu0 %3812
      %3814 = vrot.lane.b32.xlu0 %v3776, 64
      %v3815 = vpop.permute.xlu0 %3814
      %3831 = vrot.lane.b32.xlu0 %v3777, 64
      %v3832 = vpop.permute.xlu0 %3831
      %3833 = vrot.lane.b32.xlu0 %v3778, 64
      %v3834 = vpop.permute.xlu0 %3833
      %3835 = vrot.lane.b32.xlu0 %v3779, 64
      %v3836 = vpop.permute.xlu0 %3835
      %3837 = vrot.lane.b32.xlu0 %v3780, 64
      %v3838 = vpop.permute.xlu0 %3837
      %3845 = vrot.lane.b32.xlu0 %v3781, 64
      %v3846 = vpop.permute.xlu0 %3845
      %3847 = vrot.lane.b32.xlu0 %v3782, 64
      %v3848 = vpop.permute.xlu0 %3847
      %v3851 = vsel %vm568, 0.0, %v3795
      %v3852 = vsel %vm568, 0.0, %v3797
      %v3853 = vsel %vm568, 0.0, %v3799
      %v3854 = vsel %vm568, %v3767, %v3801
      %v3855 = vsel %vm568, %v3768, %v3803
      %v3856 = vsel %vm568, %v3769, %v3805
      %v3857 = vsel %vm568, %v3770, %v3807
      %v3858 = vsel %vm568, %v3771, %v3809
      %v3859 = vsel %vm568, %v3772, %v3811
      %v3860 = vsel %vm568, %v3773, %v3813
      %v3861 = vsel %vm568, %v3774, %v3815
      %v3862 = vsel %vm568, %v3775, %v3832
      %v3863 = vsel %vm568, %v3776, %v3834
      %v3864 = vsel %vm568, %v3777, %v3836
      %v3865 = vsel %vm568, %v3778, %v3838
      %v3866 = vsel %vm568, %v3779, %v3846
      %v3867 = vsel %vm568, %v3780, %v3848
      %v3868 = vsel %vm568, %v3781, %v3795
      %v3869 = vsel %vm568, %v3782, %v3795
      %v3870 = vpack.c.bf16 %v3851, %v3851
      %v3871 = vpack.c.bf16 %v3855, %v3854
      %v3872 = vpack.c.bf16 %v3859, %v3858
      %v3873 = vpack.c.bf16 %v3776, %v3775
      %v3874 = vpack.c.bf16 %v3853, %v3852
      %v3875 = vpack.c.bf16 %v3857, %v3856
      %v3876 = vpack.c.bf16 %v3861, %v3860
      %v3877 = vpack.c.bf16 %v3778, %v3777
      %v3878 = vpack.c.bf16 %v3863, %v3862
      %v3879 = vpack.c.bf16 %v3780, %v3779
      %v3880 = vpack.c.bf16 %v3865, %v3864
      %v3881 = vpack.c.bf16 %v3782, %v3781
      %v3882 = vpack.c.bf16 %v3867, %v3866
      %v3883 = vpack.c.bf16 0.0, 0.0
      %v3884 = vpack.c.bf16 %v3869, %v3868
      %v3885 = vld [vmem:[%s12] sm:$0xf]
      %v3886 = vld [vmem:[%s12 + $0x4] sm:$0xf]
      %v3887 = vld [vmem:[%s12 + $0x8] sm:$0xf]
      %v3888 = vld [vmem:[%s12 + $0xc] sm:$0xf]
      %v3889 = vld [vmem:[%s12 + $0x10] sm:$0xf]
      %v3890 = vld [vmem:[%s12 + $0x14] sm:$0xf]
      %v3891 = vld [vmem:[%s12 + $0x18] sm:$0xf]
      %v3892 = vld [vmem:[%s12 + $0x1c] sm:$0xf]
      %v3893 = vld [vmem:[%s12 + $0x20] sm:$0xf]
      %v3894 = vld [vmem:[%s12 + $0x24] sm:$0xf]
      %v3895 = vld [vmem:[%s12 + $0x28] sm:$0xf]
      %v3896 = vld [vmem:[%s12 + $0x2c] sm:$0xf]
      %v3897 = vld [vmem:[%s12 + $0x30] sm:$0xf]
      %v3898 = vld [vmem:[%s12 + $0x34] sm:$0xf]
      %v3899 = vld [vmem:[%s12 + $0x38] sm:$0xf]
      %v3900 = vld [vmem:[%s12 + $0x3c] sm:$0xf]
      %v3901 = vld [vmem:[%s12 + $0x40] sm:$0xf]
      %v3902 = vld [vmem:[%s12 + $0x44] sm:$0xf]
      %v3903 = vld [vmem:[%s12 + $0x48] sm:$0xf]
      %v3904 = vld [vmem:[%s12 + $0x4c] sm:$0xf]
      %v3905 = vld [vmem:[%s12 + $0x50] sm:$0xf]
      %v3906 = vld [vmem:[%s12 + $0x54] sm:$0xf]
      %v3907 = vld [vmem:[%s12 + $0x58] sm:$0xf]
      %v3908 = vld [vmem:[%s12 + $0x5c] sm:$0xf]
      %v3909 = vld [vmem:[%s12 + $0x60] sm:$0xf]
      %v3910 = vld [vmem:[%s12 + $0x64] sm:$0xf]
      %v3911 = vld [vmem:[%s12 + $0x68] sm:$0xf]
      %v3912 = vld [vmem:[%s12 + $0x6c] sm:$0xf]
      %v3913 = vld [vmem:[%s12 + $0x70] sm:$0xf]
      %v3914 = vld [vmem:[%s12 + $0x74] sm:$0xf]
      %v3915 = vld [vmem:[%s12 + $0x78] sm:$0xf]
      %v3916 = vld [vmem:[%s12 + $0x7c] sm:$0xf]
      %v3917 = vld [vmem:[%s12 + $0x80] sm:$0xf]
      %v3918 = vld [vmem:[%s12 + $0x84] sm:$0xf]
      %v3919 = vld [vmem:[%s12 + $0x88] sm:$0xf]
      %v3920 = vld [vmem:[%s12 + $0x8c] sm:$0xf]
      %v3921 = vld [vmem:[%s12 + $0x90] sm:$0xf]
      %v3922 = vld [vmem:[%s12 + $0x94] sm:$0xf]
      %v3923 = vld [vmem:[%s12 + $0x98] sm:$0xf]
      %v3924 = vld [vmem:[%s12 + $0x9c] sm:$0xf]
      %v3925 = vld [vmem:[%s12 + $0xa0] sm:$0xf]
      %v3926 = vld [vmem:[%s12 + $0xa4] sm:$0xf]
      %v3927 = vld [vmem:[%s12 + $0xa8] sm:$0xf]
      %v3928 = vld [vmem:[%s12 + $0xac] sm:$0xf]
      %v3929 = vld [vmem:[%s12 + $0xb0] sm:$0xf]
      %v3930 = vld [vmem:[%s12 + $0xb4] sm:$0xf]
      %v3931 = vld [vmem:[%s12 + $0xb8] sm:$0xf]
      %v3932 = vld [vmem:[%s12 + $0xbc] sm:$0xf]
      %v3933 = vld [vmem:[%s12 + $0xc0] sm:$0xf]
      %v3934 = vld [vmem:[%s12 + $0xc4] sm:$0xf]
      %v3935 = vld [vmem:[%s12 + $0xc8] sm:$0xf]
      %v3936 = vld [vmem:[%s12 + $0xcc] sm:$0xf]
      %v3937 = vld [vmem:[%s12 + $0xd0] sm:$0xf]
      %v3938 = vld [vmem:[%s12 + $0xd4] sm:$0xf]
      %v3939 = vld [vmem:[%s12 + $0xd8] sm:$0xf]
      %v3940 = vld [vmem:[%s12 + $0xdc] sm:$0xf]
      %v3941 = vld [vmem:[%s12 + $0xe0] sm:$0xf]
      %v3942 = vld [vmem:[%s12 + $0xe4] sm:$0xf]
      %v3943 = vld [vmem:[%s12 + $0xe8] sm:$0xf]
      %v3944 = vld [vmem:[%s12 + $0xec] sm:$0xf]
      %v3945 = vld [vmem:[%s12 + $0xf0] sm:$0xf]
      %v3946 = vld [vmem:[%s12 + $0xf4] sm:$0xf]
      %v3947 = vld [vmem:[%s12 + $0xf8] sm:$0xf]
      %v3948 = vld [vmem:[%s12 + $0xfc] sm:$0xf]
      %v3949 = vld [vmem:[%s12 + $0x100] sm:$0xf]
      %v3950 = vld [vmem:[%s12 + $0x104] sm:$0xf]
      %v3951 = vld [vmem:[%s12 + $0x108] sm:$0xf]
      %v3952 = vld [vmem:[%s12 + $0x10c] sm:$0xf]
      %v3953 = vld [vmem:[%s12 + $0x110] sm:$0xf]
      %v3954 = vld [vmem:[%s12 + $0x114] sm:$0xf]
      %v3955 = vld [vmem:[%s12 + $0x118] sm:$0xf]
      %v3956 = vld [vmem:[%s12 + $0x11c] sm:$0xf]
      %v3957 = vld [vmem:[%s13] sm:$0x1]
      %v3959 = vlaneseq
      %v3960 = vshrl.u32 %v3959, 7
      %v3961 = vsub.s32 0, %v3960
      %v3962 = vrot.slane %v3957, %v3961
      %v4036 = vunpack.c.l.b16 %v3885
      %v4037 = vunpack.c.l.b16 %v3886
      %v4038 = vunpack.c.l.b16 %v3887
      %v4039 = vunpack.c.l.b16 %v3888
      %v4040 = vunpack.c.l.b16 %v3889
      %v4041 = vunpack.c.l.b16 %v3890
      %v4042 = vunpack.c.l.b16 %v3891
      %v4043 = vunpack.c.l.b16 %v3892
      %v4044 = vunpack.c.l.b16 %v3893
      %v4045 = vunpack.c.l.b16 %v3894
      %v4046 = vunpack.c.l.b16 %v3895
      %v4047 = vunpack.c.l.b16 %v3896
      %v4048 = vunpack.c.l.b16 %v3897
      %v4049 = vunpack.c.l.b16 %v3898
      %v4050 = vunpack.c.l.b16 %v3899
      %v4051 = vunpack.c.l.b16 %v3900
      %v4052 = vunpack.c.l.b16 %v3901
      %v4053 = vunpack.c.l.b16 %v3902
      %v4054 = vunpack.c.l.b16 %v3903
      %v4055 = vunpack.c.l.b16 %v3904
      %v4056 = vunpack.c.l.b16 %v3905
      %v4057 = vunpack.c.l.b16 %v3906
      %v4058 = vunpack.c.l.b16 %v3907
      %v4059 = vunpack.c.l.b16 %v3908
      %v4060 = vunpack.c.l.b16 %v3909
      %v4061 = vunpack.c.l.b16 %v3910
      %v4062 = vunpack.c.l.b16 %v3911
      %v4063 = vunpack.c.l.b16 %v3912
      %v4064 = vunpack.c.l.b16 %v3913
      %v4065 = vunpack.c.l.b16 %v3914
      %v4066 = vunpack.c.l.b16 %v3915
      %v4067 = vunpack.c.l.b16 %v3916
      %v4068 = vunpack.c.l.b16 %v3917
      %v4069 = vunpack.c.l.b16 %v3918
      %v4070 = vunpack.c.l.b16 %v3919
      %v4071 = vunpack.c.l.b16 %v3920
      %v4072 = vunpack.c.l.b16 %v3921
      %v4073 = vunpack.c.l.b16 %v3922
      %v4074 = vunpack.c.l.b16 %v3923
      %v4075 = vunpack.c.l.b16 %v3924
      %v4076 = vunpack.c.l.b16 %v3925
      %v4077 = vunpack.c.l.b16 %v3926
      %v4078 = vunpack.c.l.b16 %v3927
      %v4079 = vunpack.c.l.b16 %v3928
      %v4080 = vunpack.c.l.b16 %v3929
      %v4081 = vunpack.c.l.b16 %v3930
      %v4082 = vunpack.c.l.b16 %v3931
      %v4083 = vunpack.c.l.b16 %v3932
      %v4084 = vunpack.c.l.b16 %v3933
      %v4085 = vunpack.c.l.b16 %v3934
      %v4086 = vunpack.c.l.b16 %v3935
      %v4087 = vunpack.c.l.b16 %v3936
      %v4088 = vunpack.c.l.b16 %v3937
      %v4089 = vunpack.c.l.b16 %v3938
      %v4090 = vunpack.c.l.b16 %v3939
      %v4091 = vunpack.c.l.b16 %v3940
      %v4092 = vunpack.c.l.b16 %v3941
      %v4093 = vunpack.c.l.b16 %v3942
      %v4094 = vunpack.c.l.b16 %v3943
      %v4095 = vunpack.c.l.b16 %v3944
      %v4096 = vunpack.c.l.b16 %v3945
      %v4097 = vunpack.c.l.b16 %v3946
      %v4098 = vunpack.c.l.b16 %v3947
      %v4099 = vunpack.c.l.b16 %v3948
      %v4100 = vunpack.c.l.b16 %v3949
      %v4101 = vunpack.c.l.b16 %v3950
      %v4102 = vunpack.c.l.b16 %v3951
      %v4103 = vunpack.c.l.b16 %v3952
      %v4104 = vunpack.c.l.b16 %v3953
      %v4105 = vunpack.c.l.b16 %v3954
      %v4106 = vunpack.c.l.b16 %v3955
      %v4107 = vunpack.c.l.b16 %v3956
      %v4108 = vpack.c.b16 %v4037, %v4036
      %v4109 = vpack.c.b16 %v4039, %v4038
      %v4110 = vpack.c.b16 %v4041, %v4040
      %v4111 = vpack.c.b16 %v4043, %v4042
      %v4112 = vpack.c.b16 %v4045, %v4044
      %v4113 = vpack.c.b16 %v4047, %v4046
      %v4114 = vpack.c.b16 %v4049, %v4048
      %v4115 = vpack.c.b16 %v4051, %v4050
      %v4116 = vpack.c.b16 %v4053, %v4052
      %v4117 = vpack.c.b16 %v4055, %v4054
      %v4118 = vpack.c.b16 %v4057, %v4056
      %v4119 = vpack.c.b16 %v4059, %v4058
      %v4120 = vpack.c.b16 %v4061, %v4060
      %v4121 = vpack.c.b16 %v4063, %v4062
      %v4122 = vpack.c.b16 %v4065, %v4064
      %v4123 = vpack.c.b16 %v4067, %v4066
      %v4124 = vpack.c.b16 %v4069, %v4068
      %v4125 = vpack.c.b16 %v4071, %v4070
      %v4126 = vpack.c.b16 %v4073, %v4072
      %v4127 = vpack.c.b16 %v4075, %v4074
      %v4128 = vpack.c.b16 %v4077, %v4076
      %v4129 = vpack.c.b16 %v4079, %v4078
      %v4130 = vpack.c.b16 %v4081, %v4080
      %v4131 = vpack.c.b16 %v4083, %v4082
      %v4132 = vpack.c.b16 %v4085, %v4084
      %v4133 = vpack.c.b16 %v4087, %v4086
      %v4134 = vpack.c.b16 %v4089, %v4088
      %v4135 = vpack.c.b16 %v4091, %v4090
      %v4136 = vpack.c.b16 %v4093, %v4092
      %v4137 = vpack.c.b16 %v4095, %v4094
      %v4138 = vpack.c.b16 %v4097, %v4096
      %v4139 = vpack.c.b16 %v4099, %v4098
      %v4140 = vpack.c.b16 %v4101, %v4100
      %v4141 = vpack.c.b16 %v4103, %v4102
      %v4142 = vpack.c.b16 %v4105, %v4104
      %v4143 = vpack.c.b16 %v4107, %v4106
      %v4181 = vsel %vm568, %v3873, 0
      %v4184 = vsel %vm568, %v3877, 0
      %v4187 = vsel %vm568, %v3879, 0
      %v4190 = vsel %vm568, %v3881, 0
      %v4193 = vsel %vm568, %v3883, 0
      %4195 = vmatprep.subr.bf16.mxu0 0
      %4196 = vmatpush1.bf16.msra.mxu0 %v4108
      %4197 = vmatprep.subr.bf16.mxu0 0
      %4198 = vmatpush1.bf16.msra.mxu0 %v4109
      %4199 = vmatprep.subr.bf16.mxu0 0
      %4200 = vmatpush1.bf16.msra.mxu0 %v4110
      %4201 = vmatprep.subr.bf16.mxu0 0
      %4202 = vmatpush1.bf16.msra.mxu0 %v4111
      %4203 = vmatprep.subr.bf16.mxu0 0
      %4204 = vmatpush1.bf16.msra.mxu0 %v4112
      %4205 = vmatprep.subr.bf16.mxu0 0
      %4206 = vmatpush1.bf16.msra.mxu0 %v4113
      %4207 = vmatprep.subr.bf16.mxu0 0
      %4208 = vmatpush1.bf16.msra.mxu0 %v4114
      %4209 = vmatprep.subr.bf16.mxu0 0
      %4210 = vmatpush1.bf16.msra.mxu0 %v4115
      %4211 = vmatprep.subr.bf16.mxu0 0
      %4212 = vmatpush1.bf16.msra.mxu0 %v4116
      %4213 = vmatprep.subr.bf16.mxu0 0
      %4214 = vmatpush1.bf16.msra.mxu0 %v4117
      %4215 = vmatprep.subr.bf16.mxu0 0
      %4216 = vmatpush1.bf16.msra.mxu0 %v4118
      %4217 = vmatprep.subr.bf16.mxu0 0
      %4218 = vmatpush1.bf16.msra.mxu0 %v4119
      %4219 = vmatprep.subr.bf16.mxu0 0
      %4220 = vmatpush1.bf16.msra.mxu0 %v4120
      %4221 = vmatprep.subr.bf16.mxu0 0
      %4222 = vmatpush1.bf16.msra.mxu0 %v4121
      %4223 = vmatprep.subr.bf16.mxu0 0
      %4224 = vmatpush1.bf16.msra.mxu0 %v4122
      %4225 = vmatprep.subr.bf16.mxu0 0
      %4226 = vmatpush1.bf16.msra.mxu0 %v4123
      %4227 = vmatprep.mubr.bf16.mxu0 %v3870
      %4228 = vmatmul.mubr.bf16.gmra.mrb[0].mxu0 %v3870
      %v4229 = vpop.f32.mrb[0].mxu0
      %v4230 = vadd.f32 %v3962, %v4229
      %v4231 = vpop.f32.mrb[0].mxu0
      %v4232 = vpop.f32.mrb[0].mxu0
      %v4233 = vadd.f32 %v3962, %v4232
      %v4234 = vpop.f32.mrb[0].mxu0
      %4235 = vmatprep.mubr.bf16.mxu0 %v3874
      %4236 = vmatmul.mubr.bf16.gmra.mrb[0].mxu0 %v3870
      %v4237 = vpop.f32.mrb[0].mxu0
      %v4238 = vadd.f32 %v3962, %v4237
      %v4239 = vpop.f32.mrb[0].mxu0
      %v4240 = vpop.f32.mrb[0].mxu0
      %v4241 = vadd.f32 %v3962, %v4240
      %v4242 = vpop.f32.mrb[0].mxu0
      %4243 = vmatprep.mubr.bf16.mxu0 %v3871
      %4244 = vmatmul.mubr.bf16.gmra.mrb[0].mxu0 %v3870
      %v4245 = vpop.f32.mrb[0].mxu0
      %v4246 = vadd.f32 %v3962, %v4245
      %v4247 = vpop.f32.mrb[0].mxu0
      %v4248 = vpop.f32.mrb[0].mxu0
      %v4249 = vadd.f32 %v3962, %v4248
      %v4250 = vpop.f32.mrb[0].mxu0
      %4251 = vmatprep.mubr.bf16.mxu0 %v3875
      %4252 = vmatmul.mubr.bf16.gmra.mrb[0].mxu0 %v3874
      %v4253 = vpop.f32.mrb[0].mxu0
      %v4254 = vadd.f32 %v3962, %v4253
      %v4255 = vpop.f32.mrb[0].mxu0
      %v4256 = vpop.f32.mrb[0].mxu0
      %v4257 = vadd.f32 %v3962, %v4256
      %v4258 = vpop.f32.mrb[0].mxu0
      %4259 = vmatprep.mubr.bf16.mxu0 %v3872
      %4260 = vmatmul.mubr.bf16.gmra.mrb[0].mxu0 %v3871
      %v4261 = vpop.f32.mrb[0].mxu0
      %v4262 = vadd.f32 %v3962, %v4261
      %v4263 = vpop.f32.mrb[0].mxu0
      %v4264 = vpop.f32.mrb[0].mxu0
      %v4265 = vadd.f32 %v3962, %v4264
      %v4266 = vpop.f32.mrb[0].mxu0
      %4267 = vmatprep.mubr.bf16.mxu0 %v3876
      %4268 = vmatmul.mubr.bf16.gmra.mrb[0].mxu0 %v3875
      %v4269 = vpop.f32.mrb[0].mxu0
      %v4270 = vadd.f32 %v3962, %v4269
      %v4271 = vpop.f32.mrb[0].mxu0
      %v4272 = vpop.f32.mrb[0].mxu0
      %v4273 = vadd.f32 %v3962, %v4272
      %v4274 = vpop.f32.mrb[0].mxu0
      %4275 = vmatprep.mubr.bf16.mxu0 %v3878
      %4276 = vmatmul.mubr.bf16.gmra.mrb[0].mxu0 %v3872
      %v4277 = vpop.f32.mrb[0].mxu0
      %v4278 = vadd.f32 %v3962, %v4277
      %v4279 = vpop.f32.mrb[0].mxu0
      %v4280 = vpop.f32.mrb[0].mxu0
      %v4281 = vadd.f32 %v3962, %v4280
      %v4282 = vpop.f32.mrb[0].mxu0
      %4283 = vmatprep.mubr.bf16.mxu0 %v3880
      %4284 = vmatmul.mubr.bf16.gmra.mrb[0].mxu0 %v3876
      %v4285 = vpop.f32.mrb[0].mxu0
      %v4286 = vadd.f32 %v3962, %v4285
      %v4287 = vpop.f32.mrb[0].mxu0
      %v4288 = vpop.f32.mrb[0].mxu0
      %v4289 = vadd.f32 %v3962, %v4288
      %v4290 = vpop.f32.mrb[0].mxu0
      %4291 = vdwg.mxu0
      %4292 = vmatprep.subr.bf16.mxu0 0
      %4293 = vmatpush1.bf16.msra.mxu0 %v4124
      %4294 = vmatprep.subr.bf16.mxu0 0
      %4295 = vmatpush1.bf16.msra.mxu0 %v4125
      %4296 = vmatprep.subr.bf16.mxu0 0
      %4297 = vmatpush1.bf16.msra.mxu0 %v4126
      %4298 = vmatprep.subr.bf16.mxu0 0
      %4299 = vmatpush1.bf16.msra.mxu0 %v4127
      %4300 = vmatprep.subr.bf16.mxu0 0
      %4301 = vmatpush1.bf16.msra.mxu0 %v4128
      %4302 = vmatprep.subr.bf16.mxu0 0
      %4303 = vmatpush1.bf16.msra.mxu0 %v4129
      %4304 = vmatprep.subr.bf16.mxu0 0
      %4305 = vmatpush1.bf16.msra.mxu0 %v4130
      %4306 = vmatprep.subr.bf16.mxu0 0
      %4307 = vmatpush1.bf16.msra.mxu0 %v4131
      %4308 = vmatprep.subr.bf16.mxu0 0
      %4309 = vmatpush1.bf16.msra.mxu0 %v4132
      %4310 = vmatprep.subr.bf16.mxu0 0
      %4311 = vmatpush1.bf16.msra.mxu0 %v4133
      %4312 = vmatprep.subr.bf16.mxu0 0
      %4313 = vmatpush1.bf16.msra.mxu0 %v4134
      %4314 = vmatprep.subr.bf16.mxu0 0
      %4315 = vmatpush1.bf16.msra.mxu0 %v4135
      %4316 = vmatprep.subr.bf16.mxu0 0
      %4317 = vmatpush1.bf16.msra.mxu0 %v4136
      %4318 = vmatprep.subr.bf16.mxu0 0
      %4319 = vmatpush1.bf16.msra.mxu0 %v4137
      %4320 = vmatprep.subr.bf16.mxu0 0
      %4321 = vmatpush1.bf16.msra.mxu0 %v4138
      %4322 = vmatprep.subr.bf16.mxu0 0
      %4323 = vmatpush1.bf16.msra.mxu0 %v4139
      %4324 = vmatprep.mubr.bf16.mxu0 %v3872
      %4325 = vmatmul.mubr.bf16.gmra.mrb[0].mxu0 %v3871
      %v4326 = vpop.f32.mrb[0].mxu0
      %v4327 = vadd.f32 %v4230, %v4326
      %v4328 = vpop.f32.mrb[0].mxu0
      %v4329 = vpop.f32.mrb[0].mxu0
      %v4330 = vadd.f32 %v4233, %v4329
      %v4331 = vpop.f32.mrb[0].mxu0
      %4332 = vmatprep.mubr.bf16.mxu0 %v3876
      %4333 = vmatmul.mubr.bf16.gmra.mrb[0].mxu0 %v3875
      %v4334 = vpop.f32.mrb[0].mxu0
      %v4335 = vadd.f32 %v4238, %v4334
      %v4336 = vpop.f32.mrb[0].mxu0
      %v4337 = vpop.f32.mrb[0].mxu0
      %v4338 = vadd.f32 %v4241, %v4337
      %v4339 = vpop.f32.mrb[0].mxu0
      %4340 = vmatprep.mubr.bf16.mxu0 %v3878
      %4341 = vmatmul.mubr.bf16.gmra.mrb[0].mxu0 %v3872
      %v4342 = vpop.f32.mrb[0].mxu0
      %v4343 = vadd.f32 %v4246, %v4342
      %v4344 = vpop.f32.mrb[0].mxu0
      %v4345 = vpop.f32.mrb[0].mxu0
      %v4346 = vadd.f32 %v4249, %v4345
      %v4347 = vpop.f32.mrb[0].mxu0
      %4348 = vmatprep.mubr.bf16.mxu0 %v3880
      %4349 = vmatmul.mubr.bf16.gmra.mrb[0].mxu0 %v3876
      %v4350 = vpop.f32.mrb[0].mxu0
      %v4351 = vadd.f32 %v4254, %v4350
      %v4352 = vpop.f32.mrb[0].mxu0
      %v4353 = vpop.f32.mrb[0].mxu0
      %v4354 = vadd.f32 %v4257, %v4353
      %v4355 = vpop.f32.mrb[0].mxu0
      %4356 = vmatprep.mubr.bf16.mxu0 %v3882
      %4357 = vmatmul.mubr.bf16.gmra.mrb[0].mxu0 %v3878
      %v4358 = vpop.f32.mrb[0].mxu0
      %v4359 = vadd.f32 %v4262, %v4358
      %v4360 = vpop.f32.mrb[0].mxu0
      %v4361 = vpop.f32.mrb[0].mxu0
      %v4362 = vadd.f32 %v4265, %v4361
      %v4363 = vpop.f32.mrb[0].mxu0
      %4364 = vmatprep.mubr.bf16.mxu0 %v3884
      %4365 = vmatmul.mubr.bf16.gmra.mrb[0].mxu0 %v3880
      %v4366 = vpop.f32.mrb[0].mxu0
      %v4367 = vadd.f32 %v4270, %v4366
      %v4368 = vpop.f32.mrb[0].mxu0
      %v4369 = vpop.f32.mrb[0].mxu0
      %v4370 = vadd.f32 %v4273, %v4369
      %v4371 = vpop.f32.mrb[0].mxu0
      %4372 = vmatprep.mubr.bf16.mxu0 %v3870
      %4373 = vmatmul.mubr.bf16.gmra.mrb[0].mxu0 %v3882
      %v4374 = vpop.f32.mrb[0].mxu0
      %v4375 = vadd.f32 %v4278, %v4374
      %v4376 = vpop.f32.mrb[0].mxu0
      %v4377 = vpop.f32.mrb[0].mxu0
      %v4378 = vadd.f32 %v4281, %v4377
      %v4379 = vpop.f32.mrb[0].mxu0
      %4380 = vmatprep.mubr.bf16.mxu0 %v3870
      %4381 = vmatmul.mubr.bf16.gmra.mrb[0].mxu0 %v3884
      %v4382 = vpop.f32.mrb[0].mxu0
      %v4383 = vadd.f32 %v4286, %v4382
      %v4384 = vpop.f32.mrb[0].mxu0
      %v4385 = vpop.f32.mrb[0].mxu0
      %v4386 = vadd.f32 %v4289, %v4385
      %v4387 = vpop.f32.mrb[0].mxu0
      %4388 = vdwg.mxu0
      %4389 = vmatprep.subr.bf16.mxu0 0
      %4390 = vmatpush1.bf16.msra.mxu0 %v4140
      %4391 = vmatprep.subr.bf16.mxu0 0
      %4392 = vmatpush1.bf16.msra.mxu0 %v4141
      %4393 = vmatprep.subr.bf16.mxu0 0
      %4394 = vmatpush1.bf16.msra.mxu0 %v4142
      %4395 = vmatprep.subr.bf16.mxu0 0
      %4396 = vmatpush1.bf16.msra.mxu0 %v4143
      %4397 = vmatprep.subr.bf16.mxu0 0
      %4398 = vmatpush1.bf16.msra.mxu0 0
      %4399 = vmatprep.subr.bf16.mxu0 0
      %4400 = vmatpush1.bf16.msra.mxu0 0
      %4401 = vmatprep.subr.bf16.mxu0 0
      %4402 = vmatpush1.bf16.msra.mxu0 0
      %4403 = vmatprep.subr.bf16.mxu0 0
      %4404 = vmatpush1.bf16.msra.mxu0 0
      %4405 = vmatprep.subr.bf16.mxu0 0
      %4406 = vmatpush1.bf16.msra.mxu0 0
      %4407 = vmatprep.subr.bf16.mxu0 0
      %4408 = vmatpush1.bf16.msra.mxu0 0
      %4409 = vmatprep.subr.bf16.mxu0 0
      %4410 = vmatpush1.bf16.msra.mxu0 0
      %4411 = vmatprep.subr.bf16.mxu0 0
      %4412 = vmatpush1.bf16.msra.mxu0 0
      %4413 = vmatprep.subr.bf16.mxu0 0
      %4414 = vmatpush1.bf16.msra.mxu0 0
      %4415 = vmatprep.subr.bf16.mxu0 0
      %4416 = vmatpush1.bf16.msra.mxu0 0
      %4417 = vmatprep.subr.bf16.mxu0 0
      %4418 = vmatpush1.bf16.msra.mxu0 0
      %4419 = vmatprep.subr.bf16.mxu0 0
      %4420 = vmatpush1.bf16.msra.mxu0 0
      %4421 = vmatprep.mubr.bf16.mxu0 0
      %4422 = vmatmul.mubr.bf16.gmra.mrb[0].mxu0 %v4181
      %v4423 = vpop.f32.mrb[0].mxu0
      %v4424 = vadd.f32 %v4327, %v4423
      %v4425 = vpop.f32.mrb[0].mxu0
      %v4426 = vpop.f32.mrb[0].mxu0
      %v4427 = vadd.f32 %v4330, %v4426
      %v4428 = vpop.f32.mrb[0].mxu0
      %4429 = vmatprep.mubr.bf16.mxu0 0
      %4430 = vmatmul.mubr.bf16.gmra.mrb[0].mxu0 %v4184
      %v4431 = vpop.f32.mrb[0].mxu0
      %v4432 = vadd.f32 %v4335, %v4431
      %v4433 = vpop.f32.mrb[0].mxu0
      %v4434 = vpop.f32.mrb[0].mxu0
      %v4435 = vadd.f32 %v4338, %v4434
      %v4436 = vpop.f32.mrb[0].mxu0
      %4437 = vmatprep.mubr.bf16.mxu0 0
      %4438 = vmatmul.mubr.bf16.gmra.mrb[0].mxu0 %v4187
      %v4439 = vpop.f32.mrb[0].mxu0
      %v4440 = vadd.f32 %v4343, %v4439
      %v4441 = vpop.f32.mrb[0].mxu0
      %v4442 = vpop.f32.mrb[0].mxu0
      %v4443 = vadd.f32 %v4346, %v4442
      %v4444 = vpop.f32.mrb[0].mxu0
      %4445 = vmatprep.mubr.bf16.mxu0 0
      %4446 = vmatmul.mubr.bf16.gmra.mrb[0].mxu0 %v4190
      %v4447 = vpop.f32.mrb[0].mxu0
      %v4448 = vadd.f32 %v4351, %v4447
      %v4449 = vpop.f32.mrb[0].mxu0
      %v4450 = vpop.f32.mrb[0].mxu0
      %v4451 = vadd.f32 %v4354, %v4450
      %v4452 = vpop.f32.mrb[0].mxu0
      %4453 = vmatprep.mubr.bf16.mxu0 0
      %4454 = vmatmul.mubr.bf16.gmra.mrb[0].mxu0 %v4193
      %v4455 = vpop.f32.mrb[0].mxu0
      %v4456 = vadd.f32 %v4359, %v4455
      %v4457 = vpop.f32.mrb[0].mxu0
      %v4458 = vpop.f32.mrb[0].mxu0
      %v4459 = vadd.f32 %v4362, %v4458
      %v4460 = vpop.f32.mrb[0].mxu0
      %4461 = vmatprep.mubr.bf16.mxu0 0
      %4462 = vmatmul.mubr.bf16.gmra.mrb[0].mxu0 %v4193
      %v4463 = vpop.f32.mrb[0].mxu0
      %v4464 = vadd.f32 %v4367, %v4463
      %v4465 = vpop.f32.mrb[0].mxu0
      %v4466 = vpop.f32.mrb[0].mxu0
      %v4467 = vadd.f32 %v4370, %v4466
      %v4468 = vpop.f32.mrb[0].mxu0
      %4469 = vmatprep.mubr.bf16.mxu0 0
      %4470 = vmatmul.mubr.bf16.gmra.mrb[0].mxu0 %v4193
      %v4471 = vpop.f32.mrb[0].mxu0
      %v4472 = vadd.f32 %v4375, %v4471
      %v4473 = vpop.f32.mrb[0].mxu0
      %v4474 = vpop.f32.mrb[0].mxu0
      %v4475 = vadd.f32 %v4378, %v4474
      %v4476 = vpop.f32.mrb[0].mxu0
      %4477 = vmatprep.mubr.bf16.mxu0 0
      %4478 = vmatmul.mubr.bf16.gmra.mrb[0].mxu0 %v4193
      %v4479 = vpop.f32.mrb[0].mxu0
      %v4480 = vadd.f32 %v4383, %v4479
      %v4481 = vpop.f32.mrb[0].mxu0
      %v4482 = vpop.f32.mrb[0].mxu0
      %v4483 = vadd.f32 %v4386, %v4482
      %v4484 = vpop.f32.mrb[0].mxu0
      %4485 = vdwg.mxu0
      %v4486 = vmax.f32 %v4424, 0.0
      %v4487 = vmax.f32 %v4427, 0.0
      %v4488 = vmax.f32 %v4432, 0.0
      %v4489 = vmax.f32 %v4435, 0.0
      %v4490 = vmax.f32 %v4440, 0.0
      %v4491 = vmax.f32 %v4443, 0.0
      %v4492 = vmax.f32 %v4448, 0.0
      %v4493 = vmax.f32 %v4451, 0.0
      %v4494 = vmax.f32 %v4456, 0.0
      %v4495 = vmax.f32 %v4459, 0.0
      %v4496 = vmax.f32 %v4464, 0.0
      %v4497 = vmax.f32 %v4467, 0.0
      %v4498 = vmax.f32 %v4472, 0.0
      %v4499 = vmax.f32 %v4475, 0.0
      %v4500 = vmax.f32 %v4480, 0.0
      %v4501 = vmax.f32 %v4483, 0.0
      %4502 = vst.msk [vmem:[%s467] sm:$0xff] %vm568, %v4486
      %4503 = vst.msk [vmem:[%s467 + $0x8] sm:$0xff] %vm568, %v4487
      %4504 = vst.msk [vmem:[%s467 + $0x10] sm:$0xff] %vm568, %v4488
      %4505 = vst.msk [vmem:[%s467 + $0x18] sm:$0xff] %vm568, %v4489
      %4506 = vst.msk [vmem:[%s467 + $0x20] sm:$0xff] %vm568, %v4490
      %4507 = vst.msk [vmem:[%s467 + $0x28] sm:$0xff] %vm568, %v4491
      %4508 = vst.msk [vmem:[%s467 + $0x30] sm:$0xff] %vm568, %v4492
      %4509 = vst.msk [vmem:[%s467 + $0x38] sm:$0xff] %vm568, %v4493
      %4510 = vst.msk [vmem:[%s467 + $0x40] sm:$0xff] %vm568, %v4494
      %4511 = vst.msk [vmem:[%s467 + $0x48] sm:$0xff] %vm568, %v4495
      %4512 = vst.msk [vmem:[%s467 + $0x50] sm:$0xff] %vm568, %v4496
      %4513 = vst.msk [vmem:[%s467 + $0x58] sm:$0xff] %vm568, %v4497
      %4514 = vst.msk [vmem:[%s467 + $0x60] sm:$0xff] %vm568, %v4498
      %4515 = vst.msk [vmem:[%s467 + $0x68] sm:$0xff] %vm568, %v4499
      %4516 = vst.msk [vmem:[%s467 + $0x70] sm:$0xff] %vm568, %v4500
      %4517 = vst.msk [vmem:[%s467 + $0x78] sm:$0xff] %vm568, %v4501
      %p4518 = scmp.lt.s32.totalorder %s25, 3
      %s4519 = scalar_select %p4518, %s25, 3
      %s4520 = smul.addr %s4519, 16
      %s4521 = smul.addr %s4520, 8
      %s4522 = scalar_lea.vmem %s14, %s4521
      // Predicated region
      $region77: #{agcn_forward.5} parent=75 // pred_check
        %p4523 = pneg %p342
      $region78: #{agcn_forward.5} parent=75 // pred_check_branch
        %4525 = sbr.rel (%p4523) target = $region80
      $region79: #{agcn_forward.5} parent=75 // pred_region
        _
      $region80: #{agcn_forward.5} parent=75 // pred_fallthru
        _
    $region76: #{agcn_forward.5} parent=5 // pred_fallthru
      _
    %p4526 = scmp.le.s32.totalorder 2, %s20
    // Predicated region
    $region81: #{agcn_forward.5} parent=5 // pred_check
      %p4527 = pneg %p4526
    $region82: #{agcn_forward.5} parent=5 // pred_check_branch
      %4529 = sbr.rel (%p4527) target = $region84
    $region83: #{agcn_forward.5} parent=5 // pred_region
      %s4530 = ssub.s32 %s20, 2
      // Predicated region
      $region85: #{agcn_forward.5} parent=83 // pred_check
        %p4531 = pneg %p348
      $region86: #{agcn_forward.5} parent=83 // pred_check_branch
        %4533 = sbr.rel (%p4531) target = $region88
      $region87: #{agcn_forward.5} parent=83 // pred_region
        %p4534 = scmp.lt.s32.totalorder %s26, 3
        %s4535 = scalar_select %p4534, %s26, 3
        %s4536 = smul.addr %s4535, 16
        %s4537 = smul.addr %s4536, 8
        %s4538 = scalar_lea.vmem %s14, %s4537
      $region88: #{agcn_forward.5} parent=83 // pred_fallthru
        _
    $region84: #{agcn_forward.5} parent=5 // pred_fallthru
      _
  $region6: #{agcn_forward.5} parent=0 // loop_footer
    %s24 = sadd.s32 1, %s20
  $region7: #{agcn_forward.5} parent=0 // loop_footer_branch
    %19 = sbr.rel target = $region3
  $region8: #{agcn_forward.5} parent=0 // loop_exit
    _

</llo_original>
